<compile_context>
chip_gen: v6e
topology: v6e:2x2x1
jax: 0.10.0
libtpu: 0.0.40
codegen_flags: <defaults>
</compile_context>

<pallas_src>
import math

import jax
import jax.numpy as jnp
from jax.experimental import pallas as pl
from jax.experimental.pallas import tpu as pltpu

D_MODEL = 32
NHEAD = 4
HEAD_DIM = D_MODEL // NHEAD
DIM_FF = 64
LN_EPS = 1e-5                      # python floats only -> no captured jnp consts
SCALE = 1.0 / math.sqrt(HEAD_DIM)
BIG_NEG = -1e30


def _layer_norm(x, gamma, beta):
    mean = jnp.mean(x, axis=-1, keepdims=True)
    var = jnp.mean(jnp.square(x - mean), axis=-1, keepdims=True)
    inv = jax.lax.rsqrt(var + LN_EPS)
    return (x - mean) * inv * gamma + beta


def encoder_layer_kernel(
    cnt_ref, s_blk_ref, k_all_ref, vproj_ref,
    wq_ref, bq_ref, g1_ref, be1_ref, bo_ref,
    w1_ref, bf1_ref, w2_ref, bf2_ref, g2_ref, be2_ref,
    out_ref,
):
    s_t = s_blk_ref[...]                           # [TM, D]  target block (Q + residual)
    cnt = cnt_ref[...].astype(jnp.float32)         # [TM, M]  edge multiplicity (tgt, src)
    k_all = k_all_ref[...]                         # [M, D]   hoisted K (resident)
    tm = s_t.shape[0]
    m = k_all.shape[0]

    # ---------------- pre-LN + Q projection (per-block work only) ----------------
    x_t = _layer_norm(s_t, g1_ref[...], be1_ref[...])
    q_t = jnp.dot(x_t, wq_ref[...], preferred_element_type=jnp.float32) + bq_ref[...]

    # ---------------- graph attention ----------------
    head_scores = []
    for h in range(NHEAD):                         # tiny K=8 MXU contractions, no transpose
        lo, hi = h * HEAD_DIM, (h + 1) * HEAD_DIM
        sc = jax.lax.dot_general(
            q_t[:, lo:hi], k_all[:, lo:hi],
            dimension_numbers=(((1,), (1,)), ((), ())),
            preferred_element_type=jnp.float32)    # [TM, M]
        head_scores.append(sc)
    # 2-D head-stacked slab along sublanes (no awkward 3-D leading-4 layout);
    # one mask/max/exp/sum/reciprocal pass for all heads.
    scores = jnp.concatenate(head_scores, axis=0) * SCALE      # [H*TM, M]

    cnt_rep = jnp.concatenate([cnt] * NHEAD, axis=0)           # [H*TM, M]
    masked = jnp.where(cnt_rep > 0.0, scores, BIG_NEG)
    row_max = jnp.max(masked, axis=-1, keepdims=True)
    p = jnp.exp(masked - row_max)                  # masked lanes underflow to 0; no +inf
    numer = cnt_rep * p                            # duplicate edges weighted by count
    denom = jnp.sum(numer, axis=-1, keepdims=True)
    inv = pl.reciprocal(jnp.where(denom > 0.0, denom, 1.0))    # exact: keep 1e-4 tolerance
    attn = numer * inv                             # edgeless target rows -> all-zero weights

    # Wo already folded into vproj (hoisted per-head V @ Wo_h, stacked [H*M, D]).
    o = jnp.zeros_like(s_t)
    for h in range(NHEAD):
        o = o + jnp.dot(attn[h * tm:(h + 1) * tm, :],
                        vproj_ref[h * m:(h + 1) * m, :],
                        preferred_element_type=jnp.float32)    # [TM, D]
    s1 = o + bo_ref[...] + s_t

    # ---------------- pre-LN + FFN ----------------
    y = _layer_norm(s1, g2_ref[...], be2_ref[...])
    y = jnp.dot(y, w1_ref[...], preferred_element_type=jnp.float32) + bf1_ref[...]
    y = jnp.maximum(y, 0.0)
    y = jnp.dot(y, w2_ref[...], preferred_element_type=jnp.float32) + bf2_ref[...]
    out_ref[...] = (y + s1).astype(out_ref.dtype)


def _vmem_limit_bytes():
    # Per-generation VMEM budget: ~85% of physical leaves headroom for compiler
    # scratch (v7x 64 MiB -> ~54 MiB, v5e/v6e 128 MiB -> ~108 MiB).
    try:
        cap = int(pltpu.get_tpu_info().vmem_capacity_bytes)
    except Exception:
        cap = 64 * 1024 * 1024     # conservative fallback: safe on every chip
    return int(cap * 0.85)


def _pick_block_m(m, vmem_limit):
    """Largest block_m (multiple of 32, divisor of M) whose double-buffered
    int8 cnt tile fits in half the VMEM budget, with >= 2 grid steps when
    possible so the 'parallel' axis feeds both v7x TensorCores."""
    if m % 32 != 0:
        return m                                   # single full block fallback
    cap = max(32, (vmem_limit // 2) // max(1, 2 * m))   # cnt: block_m*M bytes x 2 bufs
    block_m = m
    for c in (512, 256, 128, 64, 32):
        if c <= m and m % c == 0 and c <= cap:
            block_m = c
            break
    if block_m == m and m >= 64 and (m // 2) % 32 == 0:
        block_m = m // 2                           # guarantee >= 2 grid steps
    return block_m


def transformer_encoder_layer(s, edge_index, params, *, block_m=None):
    M, D = s.shape
    assert D == D_MODEL

    vmem_limit = _vmem_limit_bytes()
    if block_m is None:
        block_m = _pick_block_m(M, vmem_limit)
    assert M % block_m == 0
    assert block_m == M or block_m % 32 == 0       # int8 sublane packing

    src, tgt = edge_index[0], edge_index[1]
    # Plain-JAX glue: irregular scatter -> dense edge-count matrix.  int8 is the
    # cheapest encoding of the only O(M^2) HBM stream (edge multiplicities must
    # be <= 127; typical graphs have tiny counts).
    cnt = jnp.zeros((M, M), jnp.int32).at[tgt, src].add(1).astype(jnp.int8)

    # Hoisted block-invariant work (previously recomputed on every grid step):
    # LN(s), the K/V projection, and the per-head V @ Wo_h pre-projection.
    x_all = _layer_norm(s, params["g1"], params["be1"])
    kv_all = x_all @ params["wkv"] + params["bkv"]           # [M, 2D]
    k_all = kv_all[:, :D_MODEL]
    v_all = kv_all[:, D_MODEL:]
    vproj = jnp.einsum(
        "mhc,hcd->hmd",
        v_all.reshape(M, NHEAD, HEAD_DIM),
        params["wo"].reshape(NHEAD, HEAD_DIM, D_MODEL),
    ).reshape(NHEAD * M, D_MODEL)                            # [H*M, D]

    args = (
        cnt, s, k_all, vproj,
        params["wq"], params["bq"], params["g1"], params["be1"], params["bo"],
        params["w1"], params["bf1"], params["w2"], params["bf2"],
        params["g2"], params["be2"],
    )
    grid = (M // block_m,)

    # Cost estimate for the kernel body only (hoisted projections excluded).
    flops = 2 * (
        M * D * D                       # Q projection
        + M * M * D                     # scores (H heads x HEAD_DIM contraction)
        + NHEAD * M * M * D             # attn @ vproj
        + 2 * M * D * DIM_FF            # FFN
    )
    bytes_accessed = (cnt.size * cnt.dtype.itemsize
                      + (2 * s.size + k_all.size + vproj.size) * 4
                      + sum(int(a.size) * 4 for a in args[4:]))
    cost = pl.CostEstimate(flops=int(flops),
                           transcendentals=int(NHEAD * M * M),
                           bytes_accessed=int(bytes_accessed))

    def build_call(single_buffer_residents):
        def resident(a):
            kwargs = {}
            if single_buffer_residents:
                # Block-invariant operands don't need double-buffering.
                kwargs["pipeline_mode"] = pl.Buffered(buffer_count=1)
            return pl.BlockSpec(a.shape, lambda i: (0, 0), **kwargs)

        in_specs = [
            pl.BlockSpec((block_m, M), lambda i: (i, 0)),    # cnt tile (only O(M^2) stream)
            pl.BlockSpec((block_m, D), lambda i: (i, 0)),    # target block (Q + residual)
        ] + [resident(a) for a in args[2:]]
        out_specs = pl.BlockSpec((block_m, D), lambda i: (i, 0))

        return pl.pallas_call(
            encoder_layer_kernel,
            out_shape=jax.ShapeDtypeStruct(s.shape, s.dtype),
            grid=grid,
            in_specs=in_specs,
            out_specs=out_specs,
            compiler_params=pltpu.CompilerParams(
                dimension_semantics=("parallel",),           # megacore on v7x
                vmem_limit_bytes=vmem_limit,
            ),
            cost_estimate=cost,
        )

    try:
        return build_call(True)(*args)
    except Exception:
        # Compatibility fallback: JAX versions whose pallas_call lowering does
        # not accept pipeline_mode / Buffered(1) -> default double-buffering.
        return build_call(False)(*args)


def init_params(key):
    ks = jax.random.split(key, 8)

    def lin(kw, kb, fan_in, fan_out):
        bound = 1.0 / math.sqrt(fan_in)
        w = jax.random.uniform(kw, (fan_in, fan_out), jnp.float32, -bound, bound)
        b = jax.random.uniform(kb, (1, fan_out), jnp.float32, -bound, bound)
        return w, b

    wq, bq = lin(ks[0], ks[1], D_MODEL, D_MODEL)
    wkv, bkv = lin(ks[2], ks[3], D_MODEL, 2 * D_MODEL)
    wo, bo = lin(ks[4], ks[5], D_MODEL, D_MODEL)
    w1, bf1 = lin(ks[6], ks[7], D_MODEL, DIM_FF)
    k2 = jax.random.split(ks[7], 2)
    w2, bf2 = lin(k2[0], k2[1], DIM_FF, D_MODEL)
    return dict(
        wq=wq, bq=bq, wkv=wkv, bkv=bkv, wo=wo, bo=bo,
        g1=jnp.ones((1, D_MODEL), jnp.float32), be1=jnp.zeros((1, D_MODEL), jnp.float32),
        w1=w1, bf1=bf1, w2=w2, bf2=bf2,
        g2=jnp.ones((1, D_MODEL), jnp.float32), be2=jnp.zeros((1, D_MODEL), jnp.float32),
    )


def reference(s, edge_index, p):
    """Pure-JAX edge-based reference (mirrors the PyTorch forward)."""
    def ln(x, g, b):
        m = x.mean(-1, keepdims=True)
        v = ((x - m) ** 2).mean(-1, keepdims=True)
        return (x - m) / jnp.sqrt(v + LN_EPS) * g + b

    M = s.shape[0]
    x = ln(s, p["g1"], p["be1"])
    q = (x @ p["wq"] + p["bq"]).reshape(M, NHEAD, HEAD_DIM)
    kv = x @ p["wkv"] + p["bkv"]
    k = kv[:, :D_MODEL].reshape(M, NHEAD, HEAD_DIM)
    v = kv[:, D_MODEL:].reshape(M, NHEAD, HEAD_DIM)
    src, tgt = edge_index[0], edge_index[1]
    a = jnp.einsum("ehc,ehc->eh", q[tgt], k[src]) * SCALE
    seg_max = jnp.full((M, NHEAD), -jnp.inf, jnp.float32).at[tgt].max(a)
    a = jnp.exp(a - seg_max[tgt])
    seg_sum = jnp.zeros((M, NHEAD), jnp.float32).at[tgt].add(a)
    a = a / seg_sum[tgt]
    o_msg = a[..., None] * v[src]
    o = jnp.zeros((M, NHEAD, HEAD_DIM), jnp.float32).at[tgt].add(o_msg)
    o = o.reshape(M, D_MODEL) @ p["wo"] + p["bo"]
    s = o + s
    y = ln(s, p["g2"], p["be2"])
    y = jnp.maximum(y @ p["w1"] + p["bf1"], 0.0)
    y = y @ p["w2"] + p["bf2"]
    return y + s


if __name__ == "__main__":
    M, E = 128, 384           # small graph; auto block_m -> 64 => grid=(2,)
    key = jax.random.PRNGKey(0)
    k_s, k_e1, k_e2, k_p = jax.random.split(key, 4)

    s = jax.random.normal(k_s, (M, D_MODEL), jnp.float32)
    src = jax.random.randint(k_e1, (E,), 0, M)
    tgt = jax.random.randint(k_e2, (E,), 0, M)
    edge_index = jnp.stack([src, tgt], axis=0)          # [2, E]
    params = init_params(k_p)

    out = transformer_encoder_layer(s, edge_index, params)
    out = jax.block_until_ready(out)

    ref = reference(s, edge_index, params)
    assert out.shape == (M, D_MODEL)
    assert jnp.allclose(out, ref, atol=1e-4, rtol=1e-4), "mismatch vs reference"
    print("KERNEL_OK")
</pallas_src>

<mosaic_0001>
module attributes {stable_mosaic.version = 11 : i64} {
  func.func @encoder_layer_kernel(%arg0: i32, %arg1: memref<64x128xi8, #tpu.memory_space<vmem>>, %arg2: memref<64x32xf32, #tpu.memory_space<vmem>>, %arg3: memref<128x32xf32, #tpu.memory_space<vmem>>, %arg4: memref<512x32xf32, #tpu.memory_space<vmem>>, %arg5: memref<32x32xf32, #tpu.memory_space<vmem>>, %arg6: memref<1x32xf32, #tpu.memory_space<vmem>>, %arg7: memref<1x32xf32, #tpu.memory_space<vmem>>, %arg8: memref<1x32xf32, #tpu.memory_space<vmem>>, %arg9: memref<1x32xf32, #tpu.memory_space<vmem>>, %arg10: memref<32x64xf32, #tpu.memory_space<vmem>>, %arg11: memref<1x64xf32, #tpu.memory_space<vmem>>, %arg12: memref<64x32xf32, #tpu.memory_space<vmem>>, %arg13: memref<1x32xf32, #tpu.memory_space<vmem>>, %arg14: memref<1x32xf32, #tpu.memory_space<vmem>>, %arg15: memref<1x32xf32, #tpu.memory_space<vmem>>, %arg16: memref<64x32xf32, #tpu.memory_space<vmem>>) attributes {dimension_semantics = [#tpu.dimension_semantics<parallel>], iteration_bounds = array<i64: 2>, scalar_prefetch = 0 : i64, scratch_operands = 0 : i64, tpu.core_type = #tpu.core_type<tc>, window_params = [{transform_indices = @transform_0, window_bounds = array<i64: 64, 128>}, {transform_indices = @transform_1, window_bounds = array<i64: 64, 32>}, {pipeline_mode = #tpu.pipeline_mode<synchronous>, transform_indices = @transform_2, window_bounds = array<i64: 128, 32>}, {pipeline_mode = #tpu.pipeline_mode<synchronous>, transform_indices = @transform_3, window_bounds = array<i64: 512, 32>}, {pipeline_mode = #tpu.pipeline_mode<synchronous>, transform_indices = @transform_4, window_bounds = array<i64: 32, 32>}, {pipeline_mode = #tpu.pipeline_mode<synchronous>, transform_indices = @transform_5, window_bounds = array<i64: 1, 32>}, {pipeline_mode = #tpu.pipeline_mode<synchronous>, transform_indices = @transform_6, window_bounds = array<i64: 1, 32>}, {pipeline_mode = #tpu.pipeline_mode<synchronous>, transform_indices = @transform_7, window_bounds = array<i64: 1, 32>}, {pipeline_mode = #tpu.pipeline_mode<synchronous>, transform_indices = @transform_8, window_bounds = array<i64: 1, 32>}, {pipeline_mode = #tpu.pipeline_mode<synchronous>, transform_indices = @transform_9, window_bounds = array<i64: 32, 64>}, {pipeline_mode = #tpu.pipeline_mode<synchronous>, transform_indices = @transform_10, window_bounds = array<i64: 1, 64>}, {pipeline_mode = #tpu.pipeline_mode<synchronous>, transform_indices = @transform_11, window_bounds = array<i64: 64, 32>}, {pipeline_mode = #tpu.pipeline_mode<synchronous>, transform_indices = @transform_12, window_bounds = array<i64: 1, 32>}, {pipeline_mode = #tpu.pipeline_mode<synchronous>, transform_indices = @transform_13, window_bounds = array<i64: 1, 32>}, {pipeline_mode = #tpu.pipeline_mode<synchronous>, transform_indices = @transform_14, window_bounds = array<i64: 1, 32>}, {transform_indices = @transform_15, window_bounds = array<i64: 64, 32>}]} {
    %c0 = arith.constant 0 : index
    %c0_0 = arith.constant 0 : index
    %0 = vector.load %arg2[%c0, %c0_0] : memref<64x32xf32, #tpu.memory_space<vmem>>, vector<64x32xf32>
    %c0_1 = arith.constant 0 : index
    %c0_2 = arith.constant 0 : index
    %1 = vector.load %arg1[%c0_1, %c0_2] : memref<64x128xi8, #tpu.memory_space<vmem>>, vector<64x128xi8>
    %2 = arith.sitofp %1 : vector<64x128xi8> to vector<64x128xf32>
    %c0_3 = arith.constant 0 : index
    %c0_4 = arith.constant 0 : index
    %3 = vector.load %arg3[%c0_3, %c0_4] : memref<128x32xf32, #tpu.memory_space<vmem>>, vector<128x32xf32>
    %c0_5 = arith.constant 0 : index
    %c0_6 = arith.constant 0 : index
    %4 = vector.load %arg7[%c0_5, %c0_6] : memref<1x32xf32, #tpu.memory_space<vmem>>, vector<1x32xf32>
    %c0_7 = arith.constant 0 : index
    %c0_8 = arith.constant 0 : index
    %5 = vector.load %arg8[%c0_7, %c0_8] : memref<1x32xf32, #tpu.memory_space<vmem>>, vector<1x32xf32>
    %cst = arith.constant dense<0.000000e+00> : vector<64xf32>
    %6 = vector.multi_reduction <add>, %0, %cst [1] : vector<64x32xf32> to vector<64xf32>
    %7 = vector.shape_cast %6 : vector<64xf32> to vector<64x1xf32>
    %cst_9 = arith.constant 3.200000e+01 : f32
    %8 = vector.broadcast %cst_9 : f32 to vector<64x1xf32>
    %9 = arith.divf %7, %8 : vector<64x1xf32>
    %10 = vector.broadcast %9 : vector<64x1xf32> to vector<64x32xf32>
    %11 = arith.subf %0, %10 : vector<64x32xf32>
    %12 = arith.mulf %11, %11 : vector<64x32xf32>
    %cst_10 = arith.constant dense<0.000000e+00> : vector<64xf32>
    %13 = vector.multi_reduction <add>, %12, %cst_10 [1] : vector<64x32xf32> to vector<64xf32>
    %14 = vector.shape_cast %13 : vector<64xf32> to vector<64x1xf32>
    %cst_11 = arith.constant 3.200000e+01 : f32
    %15 = vector.broadcast %cst_11 : f32 to vector<64x1xf32>
    %16 = arith.divf %14, %15 : vector<64x1xf32>
    %cst_12 = arith.constant 9.99999974E-6 : f32
    %17 = vector.broadcast %cst_12 : f32 to vector<64x1xf32>
    %18 = arith.addf %16, %17 : vector<64x1xf32>
    %19 = math.rsqrt %18 : vector<64x1xf32>
    %20 = vector.broadcast %9 : vector<64x1xf32> to vector<64x32xf32>
    %21 = arith.subf %0, %20 : vector<64x32xf32>
    %22 = vector.broadcast %19 : vector<64x1xf32> to vector<64x32xf32>
    %23 = arith.mulf %21, %22 : vector<64x32xf32>
    %24 = vector.broadcast %4 : vector<1x32xf32> to vector<64x32xf32>
    %25 = arith.mulf %23, %24 : vector<64x32xf32>
    %26 = vector.broadcast %5 : vector<1x32xf32> to vector<64x32xf32>
    %27 = arith.addf %25, %26 : vector<64x32xf32>
    %c0_13 = arith.constant 0 : index
    %c0_14 = arith.constant 0 : index
    %28 = vector.load %arg5[%c0_13, %c0_14] : memref<32x32xf32, #tpu.memory_space<vmem>>, vector<32x32xf32>
    %cst_15 = arith.constant dense<0.000000e+00> : vector<64x32xf32>
    %29 = tpu.matmul %27, %28, %cst_15 {dimension_numbers = #tpu.dot_dimension_numbers<[1], [0], [0], [1], [0, 0, 1, 1], [], []>} : vector<64x32xf32>, vector<32x32xf32>, vector<64x32xf32> -> vector<64x32xf32>
    %c0_16 = arith.constant 0 : index
    %c0_17 = arith.constant 0 : index
    %30 = vector.load %arg6[%c0_16, %c0_17] : memref<1x32xf32, #tpu.memory_space<vmem>>, vector<1x32xf32>
    %31 = vector.broadcast %30 : vector<1x32xf32> to vector<64x32xf32>
    %32 = arith.addf %29, %31 : vector<64x32xf32>
    %33 = vector.extract_strided_slice %32 {offsets = [0, 0], sizes = [64, 8], strides = [1, 1]} : vector<64x32xf32> to vector<64x8xf32>
    %34 = vector.extract_strided_slice %3 {offsets = [0, 0], sizes = [128, 8], strides = [1, 1]} : vector<128x32xf32> to vector<128x8xf32>
    %cst_18 = arith.constant dense<0.000000e+00> : vector<64x128xf32>
    %35 = tpu.matmul %33, %34, %cst_18 {dimension_numbers = #tpu.dot_dimension_numbers<[1], [1], [0], [0], [0, 0, 1, 0], [], []>} : vector<64x8xf32>, vector<128x8xf32>, vector<64x128xf32> -> vector<64x128xf32>
    %36 = vector.extract_strided_slice %32 {offsets = [0, 8], sizes = [64, 8], strides = [1, 1]} : vector<64x32xf32> to vector<64x8xf32>
    %37 = vector.extract_strided_slice %3 {offsets = [0, 8], sizes = [128, 8], strides = [1, 1]} : vector<128x32xf32> to vector<128x8xf32>
    %cst_19 = arith.constant dense<0.000000e+00> : vector<64x128xf32>
    %38 = tpu.matmul %36, %37, %cst_19 {dimension_numbers = #tpu.dot_dimension_numbers<[1], [1], [0], [0], [0, 0, 1, 0], [], []>} : vector<64x8xf32>, vector<128x8xf32>, vector<64x128xf32> -> vector<64x128xf32>
    %39 = vector.extract_strided_slice %32 {offsets = [0, 16], sizes = [64, 8], strides = [1, 1]} : vector<64x32xf32> to vector<64x8xf32>
    %40 = vector.extract_strided_slice %3 {offsets = [0, 16], sizes = [128, 8], strides = [1, 1]} : vector<128x32xf32> to vector<128x8xf32>
    %cst_20 = arith.constant dense<0.000000e+00> : vector<64x128xf32>
    %41 = tpu.matmul %39, %40, %cst_20 {dimension_numbers = #tpu.dot_dimension_numbers<[1], [1], [0], [0], [0, 0, 1, 0], [], []>} : vector<64x8xf32>, vector<128x8xf32>, vector<64x128xf32> -> vector<64x128xf32>
    %42 = vector.extract_strided_slice %32 {offsets = [0, 24], sizes = [64, 8], strides = [1, 1]} : vector<64x32xf32> to vector<64x8xf32>
    %43 = vector.extract_strided_slice %3 {offsets = [0, 24], sizes = [128, 8], strides = [1, 1]} : vector<128x32xf32> to vector<128x8xf32>
    %cst_21 = arith.constant dense<0.000000e+00> : vector<64x128xf32>
    %44 = tpu.matmul %42, %43, %cst_21 {dimension_numbers = #tpu.dot_dimension_numbers<[1], [1], [0], [0], [0, 0, 1, 0], [], []>} : vector<64x8xf32>, vector<128x8xf32>, vector<64x128xf32> -> vector<64x128xf32>
    %45 = tpu.concatenate %35, %38, %41, %44 in 0 : vector<64x128xf32>, vector<64x128xf32>, vector<64x128xf32>, vector<64x128xf32> -> vector<256x128xf32>
    %cst_22 = arith.constant 0.353553385 : f32
    %46 = vector.broadcast %cst_22 : f32 to vector<256x128xf32>
    %47 = arith.mulf %45, %46 : vector<256x128xf32>
    %48 = tpu.concatenate %2, %2, %2, %2 in 0 : vector<64x128xf32>, vector<64x128xf32>, vector<64x128xf32>, vector<64x128xf32> -> vector<256x128xf32>
    %cst_23 = arith.constant 0.000000e+00 : f32
    %49 = vector.broadcast %cst_23 : f32 to vector<256x128xf32>
    %50 = arith.cmpf ogt, %48, %49 : vector<256x128xf32>
    %cst_24 = arith.constant -1.000000e+30 : f32
    %51 = vector.broadcast %cst_24 : f32 to vector<256x128xf32>
    %52 = arith.select %50, %47, %51 : vector<256x128xi1>, vector<256x128xf32>
    %cst_25 = arith.constant dense<0xFF800000> : vector<256xf32>
    %53 = vector.multi_reduction <maximumf>, %52, %cst_25 [1] : vector<256x128xf32> to vector<256xf32>
    %54 = vector.shape_cast %53 : vector<256xf32> to vector<256x1xf32>
    %55 = vector.broadcast %54 : vector<256x1xf32> to vector<256x128xf32>
    %56 = arith.subf %52, %55 : vector<256x128xf32>
    %57 = math.exp %56 : vector<256x128xf32>
    %58 = arith.mulf %48, %57 : vector<256x128xf32>
    %cst_26 = arith.constant dense<0.000000e+00> : vector<256xf32>
    %59 = vector.multi_reduction <add>, %58, %cst_26 [1] : vector<256x128xf32> to vector<256xf32>
    %60 = vector.shape_cast %59 : vector<256xf32> to vector<256x1xf32>
    %cst_27 = arith.constant 0.000000e+00 : f32
    %61 = vector.broadcast %cst_27 : f32 to vector<256x1xf32>
    %62 = arith.cmpf ogt, %60, %61 : vector<256x1xf32>
    %cst_28 = arith.constant 1.000000e+00 : f32
    %63 = vector.broadcast %cst_28 : f32 to vector<256x1xf32>
    %64 = arith.select %62, %60, %63 : vector<256x1xi1>, vector<256x1xf32>
    %65 = tpu.reciprocal %64 : vector<256x1xf32> -> vector<256x1xf32>
    %66 = vector.broadcast %65 : vector<256x1xf32> to vector<256x128xf32>
    %67 = arith.mulf %58, %66 : vector<256x128xf32>
    %cst_29 = arith.constant 0.000000e+00 : f32
    %68 = vector.broadcast %cst_29 : f32 to vector<64x32xf32>
    %69 = vector.extract_strided_slice %67 {offsets = [0, 0], sizes = [64, 128], strides = [1, 1]} : vector<256x128xf32> to vector<64x128xf32>
    %c0_30 = arith.constant 0 : index
    %c0_31 = arith.constant 0 : index
    %70 = vector.load %arg4[%c0_30, %c0_31] : memref<512x32xf32, #tpu.memory_space<vmem>>, vector<128x32xf32>
    %cst_32 = arith.constant dense<0.000000e+00> : vector<64x32xf32>
    %71 = tpu.matmul %69, %70, %cst_32 {dimension_numbers = #tpu.dot_dimension_numbers<[1], [0], [0], [1], [0, 0, 1, 1], [], []>} : vector<64x128xf32>, vector<128x32xf32>, vector<64x32xf32> -> vector<64x32xf32>
    %72 = arith.addf %68, %71 : vector<64x32xf32>
    %73 = vector.extract_strided_slice %67 {offsets = [64, 0], sizes = [64, 128], strides = [1, 1]} : vector<256x128xf32> to vector<64x128xf32>
    %c128 = arith.constant 128 : index
    %c0_33 = arith.constant 0 : index
    %74 = vector.load %arg4[%c128, %c0_33] : memref<512x32xf32, #tpu.memory_space<vmem>>, vector<128x32xf32>
    %cst_34 = arith.constant dense<0.000000e+00> : vector<64x32xf32>
    %75 = tpu.matmul %73, %74, %cst_34 {dimension_numbers = #tpu.dot_dimension_numbers<[1], [0], [0], [1], [0, 0, 1, 1], [], []>} : vector<64x128xf32>, vector<128x32xf32>, vector<64x32xf32> -> vector<64x32xf32>
    %76 = arith.addf %72, %75 : vector<64x32xf32>
    %77 = vector.extract_strided_slice %67 {offsets = [128, 0], sizes = [64, 128], strides = [1, 1]} : vector<256x128xf32> to vector<64x128xf32>
    %c256 = arith.constant 256 : index
    %c0_35 = arith.constant 0 : index
    %78 = vector.load %arg4[%c256, %c0_35] : memref<512x32xf32, #tpu.memory_space<vmem>>, vector<128x32xf32>
    %cst_36 = arith.constant dense<0.000000e+00> : vector<64x32xf32>
    %79 = tpu.matmul %77, %78, %cst_36 {dimension_numbers = #tpu.dot_dimension_numbers<[1], [0], [0], [1], [0, 0, 1, 1], [], []>} : vector<64x128xf32>, vector<128x32xf32>, vector<64x32xf32> -> vector<64x32xf32>
    %80 = arith.addf %76, %79 : vector<64x32xf32>
    %81 = vector.extract_strided_slice %67 {offsets = [192, 0], sizes = [64, 128], strides = [1, 1]} : vector<256x128xf32> to vector<64x128xf32>
    %c384 = arith.constant 384 : index
    %c0_37 = arith.constant 0 : index
    %82 = vector.load %arg4[%c384, %c0_37] : memref<512x32xf32, #tpu.memory_space<vmem>>, vector<128x32xf32>
    %cst_38 = arith.constant dense<0.000000e+00> : vector<64x32xf32>
    %83 = tpu.matmul %81, %82, %cst_38 {dimension_numbers = #tpu.dot_dimension_numbers<[1], [0], [0], [1], [0, 0, 1, 1], [], []>} : vector<64x128xf32>, vector<128x32xf32>, vector<64x32xf32> -> vector<64x32xf32>
    %84 = arith.addf %80, %83 : vector<64x32xf32>
    %c0_39 = arith.constant 0 : index
    %c0_40 = arith.constant 0 : index
    %85 = vector.load %arg9[%c0_39, %c0_40] : memref<1x32xf32, #tpu.memory_space<vmem>>, vector<1x32xf32>
    %86 = vector.broadcast %85 : vector<1x32xf32> to vector<64x32xf32>
    %87 = arith.addf %84, %86 : vector<64x32xf32>
    %88 = arith.addf %87, %0 : vector<64x32xf32>
    %c0_41 = arith.constant 0 : index
    %c0_42 = arith.constant 0 : index
    %89 = vector.load %arg14[%c0_41, %c0_42] : memref<1x32xf32, #tpu.memory_space<vmem>>, vector<1x32xf32>
    %c0_43 = arith.constant 0 : index
    %c0_44 = arith.constant 0 : index
    %90 = vector.load %arg15[%c0_43, %c0_44] : memref<1x32xf32, #tpu.memory_space<vmem>>, vector<1x32xf32>
    %cst_45 = arith.constant dense<0.000000e+00> : vector<64xf32>
    %91 = vector.multi_reduction <add>, %88, %cst_45 [1] : vector<64x32xf32> to vector<64xf32>
    %92 = vector.shape_cast %91 : vector<64xf32> to vector<64x1xf32>
    %cst_46 = arith.constant 3.200000e+01 : f32
    %93 = vector.broadcast %cst_46 : f32 to vector<64x1xf32>
    %94 = arith.divf %92, %93 : vector<64x1xf32>
    %95 = vector.broadcast %94 : vector<64x1xf32> to vector<64x32xf32>
    %96 = arith.subf %88, %95 : vector<64x32xf32>
    %97 = arith.mulf %96, %96 : vector<64x32xf32>
    %cst_47 = arith.constant dense<0.000000e+00> : vector<64xf32>
    %98 = vector.multi_reduction <add>, %97, %cst_47 [1] : vector<64x32xf32> to vector<64xf32>
    %99 = vector.shape_cast %98 : vector<64xf32> to vector<64x1xf32>
    %cst_48 = arith.constant 3.200000e+01 : f32
    %100 = vector.broadcast %cst_48 : f32 to vector<64x1xf32>
    %101 = arith.divf %99, %100 : vector<64x1xf32>
    %cst_49 = arith.constant 9.99999974E-6 : f32
    %102 = vector.broadcast %cst_49 : f32 to vector<64x1xf32>
    %103 = arith.addf %101, %102 : vector<64x1xf32>
    %104 = math.rsqrt %103 : vector<64x1xf32>
    %105 = vector.broadcast %94 : vector<64x1xf32> to vector<64x32xf32>
    %106 = arith.subf %88, %105 : vector<64x32xf32>
    %107 = vector.broadcast %104 : vector<64x1xf32> to vector<64x32xf32>
    %108 = arith.mulf %106, %107 : vector<64x32xf32>
    %109 = vector.broadcast %89 : vector<1x32xf32> to vector<64x32xf32>
    %110 = arith.mulf %108, %109 : vector<64x32xf32>
    %111 = vector.broadcast %90 : vector<1x32xf32> to vector<64x32xf32>
    %112 = arith.addf %110, %111 : vector<64x32xf32>
    %c0_50 = arith.constant 0 : index
    %c0_51 = arith.constant 0 : index
    %113 = vector.load %arg10[%c0_50, %c0_51] : memref<32x64xf32, #tpu.memory_space<vmem>>, vector<32x64xf32>
    %cst_52 = arith.constant dense<0.000000e+00> : vector<64x64xf32>
    %114 = tpu.matmul %112, %113, %cst_52 {dimension_numbers = #tpu.dot_dimension_numbers<[1], [0], [0], [1], [0, 0, 1, 1], [], []>} : vector<64x32xf32>, vector<32x64xf32>, vector<64x64xf32> -> vector<64x64xf32>
    %c0_53 = arith.constant 0 : index
    %c0_54 = arith.constant 0 : index
    %115 = vector.load %arg11[%c0_53, %c0_54] : memref<1x64xf32, #tpu.memory_space<vmem>>, vector<1x64xf32>
    %116 = vector.broadcast %115 : vector<1x64xf32> to vector<64x64xf32>
    %117 = arith.addf %114, %116 : vector<64x64xf32>
    %cst_55 = arith.constant 0.000000e+00 : f32
    %118 = vector.broadcast %cst_55 : f32 to vector<64x64xf32>
    %119 = arith.maximumf %117, %118 : vector<64x64xf32>
    %c0_56 = arith.constant 0 : index
    %c0_57 = arith.constant 0 : index
    %120 = vector.load %arg12[%c0_56, %c0_57] : memref<64x32xf32, #tpu.memory_space<vmem>>, vector<64x32xf32>
    %cst_58 = arith.constant dense<0.000000e+00> : vector<64x32xf32>
    %121 = tpu.matmul %119, %120, %cst_58 {dimension_numbers = #tpu.dot_dimension_numbers<[1], [0], [0], [1], [0, 0, 1, 1], [], []>} : vector<64x64xf32>, vector<64x32xf32>, vector<64x32xf32> -> vector<64x32xf32>
    %c0_59 = arith.constant 0 : index
    %c0_60 = arith.constant 0 : index
    %122 = vector.load %arg13[%c0_59, %c0_60] : memref<1x32xf32, #tpu.memory_space<vmem>>, vector<1x32xf32>
    %123 = vector.broadcast %122 : vector<1x32xf32> to vector<64x32xf32>
    %124 = arith.addf %121, %123 : vector<64x32xf32>
    %125 = arith.addf %124, %88 : vector<64x32xf32>
    %c0_61 = arith.constant 0 : index
    %c0_62 = arith.constant 0 : index
    %126 = vector.load %arg16[%c0_61, %c0_62] : memref<64x32xf32, #tpu.memory_space<vmem>>, vector<64x32xf32>
    tpu.vector_store %arg16[%c0_61, %c0_62], %125 {strides = array<i32>} : memref<64x32xf32, #tpu.memory_space<vmem>>, vector<64x32xf32>,
    return
  }
  func.func @transform_0(%arg0: i32) -> (i32, i32) {
    %c0_i32 = arith.constant 0 : i32
    %c0_i32_0 = arith.constant 0 : i32
    return %arg0, %c0_i32 : i32, i32
  }
  func.func @transform_1(%arg0: i32) -> (i32, i32) {
    %c0_i32 = arith.constant 0 : i32
    %c0_i32_0 = arith.constant 0 : i32
    return %arg0, %c0_i32 : i32, i32
  }
  func.func @transform_2(%arg0: i32) -> (i32, i32) {
    %c0_i32 = arith.constant 0 : i32
    %c0_i32_0 = arith.constant 0 : i32
    %c0_i32_1 = arith.constant 0 : i32
    return %c0_i32, %c0_i32_0 : i32, i32
  }
  func.func @transform_3(%arg0: i32) -> (i32, i32) {
    %c0_i32 = arith.constant 0 : i32
    %c0_i32_0 = arith.constant 0 : i32
    %c0_i32_1 = arith.constant 0 : i32
    return %c0_i32, %c0_i32_0 : i32, i32
  }
  func.func @transform_4(%arg0: i32) -> (i32, i32) {
    %c0_i32 = arith.constant 0 : i32
    %c0_i32_0 = arith.constant 0 : i32
    %c0_i32_1 = arith.constant 0 : i32
    return %c0_i32, %c0_i32_0 : i32, i32
  }
  func.func @transform_5(%arg0: i32) -> (i32, i32) {
    %c0_i32 = arith.constant 0 : i32
    %c0_i32_0 = arith.constant 0 : i32
    %c0_i32_1 = arith.constant 0 : i32
    return %c0_i32, %c0_i32_0 : i32, i32
  }
  func.func @transform_6(%arg0: i32) -> (i32, i32) {
    %c0_i32 = arith.constant 0 : i32
    %c0_i32_0 = arith.constant 0 : i32
    %c0_i32_1 = arith.constant 0 : i32
    return %c0_i32, %c0_i32_0 : i32, i32
  }
  func.func @transform_7(%arg0: i32) -> (i32, i32) {
    %c0_i32 = arith.constant 0 : i32
    %c0_i32_0 = arith.constant 0 : i32
    %c0_i32_1 = arith.constant 0 : i32
    return %c0_i32, %c0_i32_0 : i32, i32
  }
  func.func @transform_8(%arg0: i32) -> (i32, i32) {
    %c0_i32 = arith.constant 0 : i32
    %c0_i32_0 = arith.constant 0 : i32
    %c0_i32_1 = arith.constant 0 : i32
    return %c0_i32, %c0_i32_0 : i32, i32
  }
  func.func @transform_9(%arg0: i32) -> (i32, i32) {
    %c0_i32 = arith.constant 0 : i32
    %c0_i32_0 = arith.constant 0 : i32
    %c0_i32_1 = arith.constant 0 : i32
    return %c0_i32, %c0_i32_0 : i32, i32
  }
  func.func @transform_10(%arg0: i32) -> (i32, i32) {
    %c0_i32 = arith.constant 0 : i32
    %c0_i32_0 = arith.constant 0 : i32
    %c0_i32_1 = arith.constant 0 : i32
    return %c0_i32, %c0_i32_0 : i32, i32
  }
  func.func @transform_11(%arg0: i32) -> (i32, i32) {
    %c0_i32 = arith.constant 0 : i32
    %c0_i32_0 = arith.constant 0 : i32
    %c0_i32_1 = arith.constant 0 : i32
    return %c0_i32, %c0_i32_0 : i32, i32
  }
  func.func @transform_12(%arg0: i32) -> (i32, i32) {
    %c0_i32 = arith.constant 0 : i32
    %c0_i32_0 = arith.constant 0 : i32
    %c0_i32_1 = arith.constant 0 : i32
    return %c0_i32, %c0_i32_0 : i32, i32
  }
  func.func @transform_13(%arg0: i32) -> (i32, i32) {
    %c0_i32 = arith.constant 0 : i32
    %c0_i32_0 = arith.constant 0 : i32
    %c0_i32_1 = arith.constant 0 : i32
    return %c0_i32, %c0_i32_0 : i32, i32
  }
  func.func @transform_14(%arg0: i32) -> (i32, i32) {
    %c0_i32 = arith.constant 0 : i32
    %c0_i32_0 = arith.constant 0 : i32
    %c0_i32_1 = arith.constant 0 : i32
    return %c0_i32, %c0_i32_0 : i32, i32
  }
  func.func @transform_15(%arg0: i32) -> (i32, i32) {
    %c0_i32 = arith.constant 0 : i32
    %c0_i32_0 = arith.constant 0 : i32
    return %arg0, %c0_i32 : i32, i32
  }
}

module attributes {stable_mosaic.version = 11 : i64} {
  func.func @encoder_layer_kernel(%arg0: i32, %arg1: memref<64x128xi8, #tpu.memory_space<vmem>>, %arg2: memref<64x32xf32, #tpu.memory_space<vmem>>, %arg3: memref<128x32xf32, #tpu.memory_space<vmem>>, %arg4: memref<512x32xf32, #tpu.memory_space<vmem>>, %arg5: memref<32x32xf32, #tpu.memory_space<vmem>>, %arg6: memref<1x32xf32, #tpu.memory_space<vmem>>, %arg7: memref<1x32xf32, #tpu.memory_space<vmem>>, %arg8: memref<1x32xf32, #tpu.memory_space<vmem>>, %arg9: memref<1x32xf32, #tpu.memory_space<vmem>>, %arg10: memref<32x64xf32, #tpu.memory_space<vmem>>, %arg11: memref<1x64xf32, #tpu.memory_space<vmem>>, %arg12: memref<64x32xf32, #tpu.memory_space<vmem>>, %arg13: memref<1x32xf32, #tpu.memory_space<vmem>>, %arg14: memref<1x32xf32, #tpu.memory_space<vmem>>, %arg15: memref<1x32xf32, #tpu.memory_space<vmem>>, %arg16: memref<64x32xf32, #tpu.memory_space<vmem>>) attributes {dimension_semantics = [#tpu.dimension_semantics<parallel>], iteration_bounds = array<i64: 2>, scalar_prefetch = 0 : i64, scratch_operands = 0 : i64, tpu.core_type = #tpu.core_type<tc>, window_params = [{transform_indices = @transform_0, window_bounds = array<i64: 64, 128>}, {transform_indices = @transform_1, window_bounds = array<i64: 64, 32>}, {pipeline_mode = #tpu.pipeline_mode<synchronous>, transform_indices = @transform_2, window_bounds = array<i64: 128, 32>}, {pipeline_mode = #tpu.pipeline_mode<synchronous>, transform_indices = @transform_3, window_bounds = array<i64: 512, 32>}, {pipeline_mode = #tpu.pipeline_mode<synchronous>, transform_indices = @transform_4, window_bounds = array<i64: 32, 32>}, {pipeline_mode = #tpu.pipeline_mode<synchronous>, transform_indices = @transform_5, window_bounds = array<i64: 1, 32>}, {pipeline_mode = #tpu.pipeline_mode<synchronous>, transform_indices = @transform_6, window_bounds = array<i64: 1, 32>}, {pipeline_mode = #tpu.pipeline_mode<synchronous>, transform_indices = @transform_7, window_bounds = array<i64: 1, 32>}, {pipeline_mode = #tpu.pipeline_mode<synchronous>, transform_indices = @transform_8, window_bounds = array<i64: 1, 32>}, {pipeline_mode = #tpu.pipeline_mode<synchronous>, transform_indices = @transform_9, window_bounds = array<i64: 32, 64>}, {pipeline_mode = #tpu.pipeline_mode<synchronous>, transform_indices = @transform_10, window_bounds = array<i64: 1, 64>}, {pipeline_mode = #tpu.pipeline_mode<synchronous>, transform_indices = @transform_11, window_bounds = array<i64: 64, 32>}, {pipeline_mode = #tpu.pipeline_mode<synchronous>, transform_indices = @transform_12, window_bounds = array<i64: 1, 32>}, {pipeline_mode = #tpu.pipeline_mode<synchronous>, transform_indices = @transform_13, window_bounds = array<i64: 1, 32>}, {pipeline_mode = #tpu.pipeline_mode<synchronous>, transform_indices = @transform_14, window_bounds = array<i64: 1, 32>}, {transform_indices = @transform_15, window_bounds = array<i64: 64, 32>}]} {
    %c0 = arith.constant 0 : index
    %c0_0 = arith.constant 0 : index
    %0 = vector.load %arg2[%c0, %c0_0] : memref<64x32xf32, #tpu.memory_space<vmem>>, vector<64x32xf32>
    %c0_1 = arith.constant 0 : index
    %c0_2 = arith.constant 0 : index
    %1 = vector.load %arg1[%c0_1, %c0_2] : memref<64x128xi8, #tpu.memory_space<vmem>>, vector<64x128xi8>
    %2 = arith.sitofp %1 : vector<64x128xi8> to vector<64x128xf32>
    %c0_3 = arith.constant 0 : index
    %c0_4 = arith.constant 0 : index
    %3 = vector.load %arg3[%c0_3, %c0_4] : memref<128x32xf32, #tpu.memory_space<vmem>>, vector<128x32xf32>
    %c0_5 = arith.constant 0 : index
    %c0_6 = arith.constant 0 : index
    %4 = vector.load %arg7[%c0_5, %c0_6] : memref<1x32xf32, #tpu.memory_space<vmem>>, vector<1x32xf32>
    %c0_7 = arith.constant 0 : index
    %c0_8 = arith.constant 0 : index
    %5 = vector.load %arg8[%c0_7, %c0_8] : memref<1x32xf32, #tpu.memory_space<vmem>>, vector<1x32xf32>
    %cst = arith.constant dense<0.000000e+00> : vector<64xf32>
    %6 = vector.multi_reduction <add>, %0, %cst [1] : vector<64x32xf32> to vector<64xf32>
    %7 = vector.shape_cast %6 : vector<64xf32> to vector<64x1xf32>
    %cst_9 = arith.constant 3.200000e+01 : f32
    %8 = vector.broadcast %cst_9 : f32 to vector<64x1xf32>
    %9 = arith.divf %7, %8 : vector<64x1xf32>
    %10 = vector.broadcast %9 : vector<64x1xf32> to vector<64x32xf32>
    %11 = arith.subf %0, %10 : vector<64x32xf32>
    %12 = arith.mulf %11, %11 : vector<64x32xf32>
    %cst_10 = arith.constant dense<0.000000e+00> : vector<64xf32>
    %13 = vector.multi_reduction <add>, %12, %cst_10 [1] : vector<64x32xf32> to vector<64xf32>
    %14 = vector.shape_cast %13 : vector<64xf32> to vector<64x1xf32>
    %cst_11 = arith.constant 3.200000e+01 : f32
    %15 = vector.broadcast %cst_11 : f32 to vector<64x1xf32>
    %16 = arith.divf %14, %15 : vector<64x1xf32>
    %cst_12 = arith.constant 9.99999974E-6 : f32
    %17 = vector.broadcast %cst_12 : f32 to vector<64x1xf32>
    %18 = arith.addf %16, %17 : vector<64x1xf32>
    %19 = math.rsqrt %18 : vector<64x1xf32>
    %20 = vector.broadcast %9 : vector<64x1xf32> to vector<64x32xf32>
    %21 = arith.subf %0, %20 : vector<64x32xf32>
    %22 = vector.broadcast %19 : vector<64x1xf32> to vector<64x32xf32>
    %23 = arith.mulf %21, %22 : vector<64x32xf32>
    %24 = vector.broadcast %4 : vector<1x32xf32> to vector<64x32xf32>
    %25 = arith.mulf %23, %24 : vector<64x32xf32>
    %26 = vector.broadcast %5 : vector<1x32xf32> to vector<64x32xf32>
    %27 = arith.addf %25, %26 : vector<64x32xf32>
    %c0_13 = arith.constant 0 : index
    %c0_14 = arith.constant 0 : index
    %28 = vector.load %arg5[%c0_13, %c0_14] : memref<32x32xf32, #tpu.memory_space<vmem>>, vector<32x32xf32>
    %cst_15 = arith.constant dense<0.000000e+00> : vector<64x32xf32>
    %29 = tpu.matmul %27, %28, %cst_15 {dimension_numbers = #tpu.dot_dimension_numbers<[1], [0], [0], [1], [0, 0, 1, 1], [], []>} : vector<64x32xf32>, vector<32x32xf32>, vector<64x32xf32> -> vector<64x32xf32>
    %c0_16 = arith.constant 0 : index
    %c0_17 = arith.constant 0 : index
    %30 = vector.load %arg6[%c0_16, %c0_17] : memref<1x32xf32, #tpu.memory_space<vmem>>, vector<1x32xf32>
    %31 = vector.broadcast %30 : vector<1x32xf32> to vector<64x32xf32>
    %32 = arith.addf %29, %31 : vector<64x32xf32>
    %33 = vector.extract_strided_slice %32 {offsets = [0, 0], sizes = [64, 8], strides = [1, 1]} : vector<64x32xf32> to vector<64x8xf32>
    %34 = vector.extract_strided_slice %3 {offsets = [0, 0], sizes = [128, 8], strides = [1, 1]} : vector<128x32xf32> to vector<128x8xf32>
    %cst_18 = arith.constant dense<0.000000e+00> : vector<64x128xf32>
    %35 = tpu.matmul %33, %34, %cst_18 {dimension_numbers = #tpu.dot_dimension_numbers<[1], [1], [0], [0], [0, 0, 1, 0], [], []>} : vector<64x8xf32>, vector<128x8xf32>, vector<64x128xf32> -> vector<64x128xf32>
    %36 = vector.extract_strided_slice %32 {offsets = [0, 8], sizes = [64, 8], strides = [1, 1]} : vector<64x32xf32> to vector<64x8xf32>
    %37 = vector.extract_strided_slice %3 {offsets = [0, 8], sizes = [128, 8], strides = [1, 1]} : vector<128x32xf32> to vector<128x8xf32>
    %cst_19 = arith.constant dense<0.000000e+00> : vector<64x128xf32>
    %38 = tpu.matmul %36, %37, %cst_19 {dimension_numbers = #tpu.dot_dimension_numbers<[1], [1], [0], [0], [0, 0, 1, 0], [], []>} : vector<64x8xf32>, vector<128x8xf32>, vector<64x128xf32> -> vector<64x128xf32>
    %39 = vector.extract_strided_slice %32 {offsets = [0, 16], sizes = [64, 8], strides = [1, 1]} : vector<64x32xf32> to vector<64x8xf32>
    %40 = vector.extract_strided_slice %3 {offsets = [0, 16], sizes = [128, 8], strides = [1, 1]} : vector<128x32xf32> to vector<128x8xf32>
    %cst_20 = arith.constant dense<0.000000e+00> : vector<64x128xf32>
    %41 = tpu.matmul %39, %40, %cst_20 {dimension_numbers = #tpu.dot_dimension_numbers<[1], [1], [0], [0], [0, 0, 1, 0], [], []>} : vector<64x8xf32>, vector<128x8xf32>, vector<64x128xf32> -> vector<64x128xf32>
    %42 = vector.extract_strided_slice %32 {offsets = [0, 24], sizes = [64, 8], strides = [1, 1]} : vector<64x32xf32> to vector<64x8xf32>
    %43 = vector.extract_strided_slice %3 {offsets = [0, 24], sizes = [128, 8], strides = [1, 1]} : vector<128x32xf32> to vector<128x8xf32>
    %cst_21 = arith.constant dense<0.000000e+00> : vector<64x128xf32>
    %44 = tpu.matmul %42, %43, %cst_21 {dimension_numbers = #tpu.dot_dimension_numbers<[1], [1], [0], [0], [0, 0, 1, 0], [], []>} : vector<64x8xf32>, vector<128x8xf32>, vector<64x128xf32> -> vector<64x128xf32>
    %45 = tpu.concatenate %35, %38, %41, %44 in 0 : vector<64x128xf32>, vector<64x128xf32>, vector<64x128xf32>, vector<64x128xf32> -> vector<256x128xf32>
    %cst_22 = arith.constant 0.353553385 : f32
    %46 = vector.broadcast %cst_22 : f32 to vector<256x128xf32>
    %47 = arith.mulf %45, %46 : vector<256x128xf32>
    %48 = tpu.concatenate %2, %2, %2, %2 in 0 : vector<64x128xf32>, vector<64x128xf32>, vector<64x128xf32>, vector<64x128xf32> -> vector<256x128xf32>
    %cst_23 = arith.constant 0.000000e+00 : f32
    %49 = vector.broadcast %cst_23 : f32 to vector<256x128xf32>
    %50 = arith.cmpf ogt, %48, %49 : vector<256x128xf32>
    %cst_24 = arith.constant -1.000000e+30 : f32
    %51 = vector.broadcast %cst_24 : f32 to vector<256x128xf32>
    %52 = arith.select %50, %47, %51 : vector<256x128xi1>, vector<256x128xf32>
    %cst_25 = arith.constant dense<0xFF800000> : vector<256xf32>
    %53 = vector.multi_reduction <maximumf>, %52, %cst_25 [1] : vector<256x128xf32> to vector<256xf32>
    %54 = vector.shape_cast %53 : vector<256xf32> to vector<256x1xf32>
    %55 = vector.broadcast %54 : vector<256x1xf32> to vector<256x128xf32>
    %56 = arith.subf %52, %55 : vector<256x128xf32>
    %57 = math.exp %56 : vector<256x128xf32>
    %58 = arith.mulf %48, %57 : vector<256x128xf32>
    %cst_26 = arith.constant dense<0.000000e+00> : vector<256xf32>
    %59 = vector.multi_reduction <add>, %58, %cst_26 [1] : vector<256x128xf32> to vector<256xf32>
    %60 = vector.shape_cast %59 : vector<256xf32> to vector<256x1xf32>
    %cst_27 = arith.constant 0.000000e+00 : f32
    %61 = vector.broadcast %cst_27 : f32 to vector<256x1xf32>
    %62 = arith.cmpf ogt, %60, %61 : vector<256x1xf32>
    %cst_28 = arith.constant 1.000000e+00 : f32
    %63 = vector.broadcast %cst_28 : f32 to vector<256x1xf32>
    %64 = arith.select %62, %60, %63 : vector<256x1xi1>, vector<256x1xf32>
    %65 = tpu.reciprocal %64 : vector<256x1xf32> -> vector<256x1xf32>
    %66 = vector.broadcast %65 : vector<256x1xf32> to vector<256x128xf32>
    %67 = arith.mulf %58, %66 : vector<256x128xf32>
    %cst_29 = arith.constant 0.000000e+00 : f32
    %68 = vector.broadcast %cst_29 : f32 to vector<64x32xf32>
    %69 = vector.extract_strided_slice %67 {offsets = [0, 0], sizes = [64, 128], strides = [1, 1]} : vector<256x128xf32> to vector<64x128xf32>
    %c0_30 = arith.constant 0 : index
    %c0_31 = arith.constant 0 : index
    %70 = vector.load %arg4[%c0_30, %c0_31] : memref<512x32xf32, #tpu.memory_space<vmem>>, vector<128x32xf32>
    %cst_32 = arith.constant dense<0.000000e+00> : vector<64x32xf32>
    %71 = tpu.matmul %69, %70, %cst_32 {dimension_numbers = #tpu.dot_dimension_numbers<[1], [0], [0], [1], [0, 0, 1, 1], [], []>} : vector<64x128xf32>, vector<128x32xf32>, vector<64x32xf32> -> vector<64x32xf32>
    %72 = arith.addf %68, %71 : vector<64x32xf32>
    %73 = vector.extract_strided_slice %67 {offsets = [64, 0], sizes = [64, 128], strides = [1, 1]} : vector<256x128xf32> to vector<64x128xf32>
    %c128 = arith.constant 128 : index
    %c0_33 = arith.constant 0 : index
    %74 = vector.load %arg4[%c128, %c0_33] : memref<512x32xf32, #tpu.memory_space<vmem>>, vector<128x32xf32>
    %cst_34 = arith.constant dense<0.000000e+00> : vector<64x32xf32>
    %75 = tpu.matmul %73, %74, %cst_34 {dimension_numbers = #tpu.dot_dimension_numbers<[1], [0], [0], [1], [0, 0, 1, 1], [], []>} : vector<64x128xf32>, vector<128x32xf32>, vector<64x32xf32> -> vector<64x32xf32>
    %76 = arith.addf %72, %75 : vector<64x32xf32>
    %77 = vector.extract_strided_slice %67 {offsets = [128, 0], sizes = [64, 128], strides = [1, 1]} : vector<256x128xf32> to vector<64x128xf32>
    %c256 = arith.constant 256 : index
    %c0_35 = arith.constant 0 : index
    %78 = vector.load %arg4[%c256, %c0_35] : memref<512x32xf32, #tpu.memory_space<vmem>>, vector<128x32xf32>
    %cst_36 = arith.constant dense<0.000000e+00> : vector<64x32xf32>
    %79 = tpu.matmul %77, %78, %cst_36 {dimension_numbers = #tpu.dot_dimension_numbers<[1], [0], [0], [1], [0, 0, 1, 1], [], []>} : vector<64x128xf32>, vector<128x32xf32>, vector<64x32xf32> -> vector<64x32xf32>
    %80 = arith.addf %76, %79 : vector<64x32xf32>
    %81 = vector.extract_strided_slice %67 {offsets = [192, 0], sizes = [64, 128], strides = [1, 1]} : vector<256x128xf32> to vector<64x128xf32>
    %c384 = arith.constant 384 : index
    %c0_37 = arith.constant 0 : index
    %82 = vector.load %arg4[%c384, %c0_37] : memref<512x32xf32, #tpu.memory_space<vmem>>, vector<128x32xf32>
    %cst_38 = arith.constant dense<0.000000e+00> : vector<64x32xf32>
    %83 = tpu.matmul %81, %82, %cst_38 {dimension_numbers = #tpu.dot_dimension_numbers<[1], [0], [0], [1], [0, 0, 1, 1], [], []>} : vector<64x128xf32>, vector<128x32xf32>, vector<64x32xf32> -> vector<64x32xf32>
    %84 = arith.addf %80, %83 : vector<64x32xf32>
    %c0_39 = arith.constant 0 : index
    %c0_40 = arith.constant 0 : index
    %85 = vector.load %arg9[%c0_39, %c0_40] : memref<1x32xf32, #tpu.memory_space<vmem>>, vector<1x32xf32>
    %86 = vector.broadcast %85 : vector<1x32xf32> to vector<64x32xf32>
    %87 = arith.addf %84, %86 : vector<64x32xf32>
    %88 = arith.addf %87, %0 : vector<64x32xf32>
    %c0_41 = arith.constant 0 : index
    %c0_42 = arith.constant 0 : index
    %89 = vector.load %arg14[%c0_41, %c0_42] : memref<1x32xf32, #tpu.memory_space<vmem>>, vector<1x32xf32>
    %c0_43 = arith.constant 0 : index
    %c0_44 = arith.constant 0 : index
    %90 = vector.load %arg15[%c0_43, %c0_44] : memref<1x32xf32, #tpu.memory_space<vmem>>, vector<1x32xf32>
    %cst_45 = arith.constant dense<0.000000e+00> : vector<64xf32>
    %91 = vector.multi_reduction <add>, %88, %cst_45 [1] : vector<64x32xf32> to vector<64xf32>
    %92 = vector.shape_cast %91 : vector<64xf32> to vector<64x1xf32>
    %cst_46 = arith.constant 3.200000e+01 : f32
    %93 = vector.broadcast %cst_46 : f32 to vector<64x1xf32>
    %94 = arith.divf %92, %93 : vector<64x1xf32>
    %95 = vector.broadcast %94 : vector<64x1xf32> to vector<64x32xf32>
    %96 = arith.subf %88, %95 : vector<64x32xf32>
    %97 = arith.mulf %96, %96 : vector<64x32xf32>
    %cst_47 = arith.constant dense<0.000000e+00> : vector<64xf32>
    %98 = vector.multi_reduction <add>, %97, %cst_47 [1] : vector<64x32xf32> to vector<64xf32>
    %99 = vector.shape_cast %98 : vector<64xf32> to vector<64x1xf32>
    %cst_48 = arith.constant 3.200000e+01 : f32
    %100 = vector.broadcast %cst_48 : f32 to vector<64x1xf32>
    %101 = arith.divf %99, %100 : vector<64x1xf32>
    %cst_49 = arith.constant 9.99999974E-6 : f32
    %102 = vector.broadcast %cst_49 : f32 to vector<64x1xf32>
    %103 = arith.addf %101, %102 : vector<64x1xf32>
    %104 = math.rsqrt %103 : vector<64x1xf32>
    %105 = vector.broadcast %94 : vector<64x1xf32> to vector<64x32xf32>
    %106 = arith.subf %88, %105 : vector<64x32xf32>
    %107 = vector.broadcast %104 : vector<64x1xf32> to vector<64x32xf32>
    %108 = arith.mulf %106, %107 : vector<64x32xf32>
    %109 = vector.broadcast %89 : vector<1x32xf32> to vector<64x32xf32>
    %110 = arith.mulf %108, %109 : vector<64x32xf32>
    %111 = vector.broadcast %90 : vector<1x32xf32> to vector<64x32xf32>
    %112 = arith.addf %110, %111 : vector<64x32xf32>
    %c0_50 = arith.constant 0 : index
    %c0_51 = arith.constant 0 : index
    %113 = vector.load %arg10[%c0_50, %c0_51] : memref<32x64xf32, #tpu.memory_space<vmem>>, vector<32x64xf32>
    %cst_52 = arith.constant dense<0.000000e+00> : vector<64x64xf32>
    %114 = tpu.matmul %112, %113, %cst_52 {dimension_numbers = #tpu.dot_dimension_numbers<[1], [0], [0], [1], [0, 0, 1, 1], [], []>} : vector<64x32xf32>, vector<32x64xf32>, vector<64x64xf32> -> vector<64x64xf32>
    %c0_53 = arith.constant 0 : index
    %c0_54 = arith.constant 0 : index
    %115 = vector.load %arg11[%c0_53, %c0_54] : memref<1x64xf32, #tpu.memory_space<vmem>>, vector<1x64xf32>
    %116 = vector.broadcast %115 : vector<1x64xf32> to vector<64x64xf32>
    %117 = arith.addf %114, %116 : vector<64x64xf32>
    %cst_55 = arith.constant 0.000000e+00 : f32
    %118 = vector.broadcast %cst_55 : f32 to vector<64x64xf32>
    %119 = arith.maximumf %117, %118 : vector<64x64xf32>
    %c0_56 = arith.constant 0 : index
    %c0_57 = arith.constant 0 : index
    %120 = vector.load %arg12[%c0_56, %c0_57] : memref<64x32xf32, #tpu.memory_space<vmem>>, vector<64x32xf32>
    %cst_58 = arith.constant dense<0.000000e+00> : vector<64x32xf32>
    %121 = tpu.matmul %119, %120, %cst_58 {dimension_numbers = #tpu.dot_dimension_numbers<[1], [0], [0], [1], [0, 0, 1, 1], [], []>} : vector<64x64xf32>, vector<64x32xf32>, vector<64x32xf32> -> vector<64x32xf32>
    %c0_59 = arith.constant 0 : index
    %c0_60 = arith.constant 0 : index
    %122 = vector.load %arg13[%c0_59, %c0_60] : memref<1x32xf32, #tpu.memory_space<vmem>>, vector<1x32xf32>
    %123 = vector.broadcast %122 : vector<1x32xf32> to vector<64x32xf32>
    %124 = arith.addf %121, %123 : vector<64x32xf32>
    %125 = arith.addf %124, %88 : vector<64x32xf32>
    %c0_61 = arith.constant 0 : index
    %c0_62 = arith.constant 0 : index
    %126 = vector.load %arg16[%c0_61, %c0_62] : memref<64x32xf32, #tpu.memory_space<vmem>>, vector<64x32xf32>
    tpu.vector_store %arg16[%c0_61, %c0_62], %125 {strides = array<i32>} : memref<64x32xf32, #tpu.memory_space<vmem>>, vector<64x32xf32>,
    return
  }
  func.func @transform_0(%arg0: i32) -> (i32, i32) {
    %c0_i32 = arith.constant 0 : i32
    %c0_i32_0 = arith.constant 0 : i32
    return %arg0, %c0_i32 : i32, i32
  }
  func.func @transform_1(%arg0: i32) -> (i32, i32) {
    %c0_i32 = arith.constant 0 : i32
    %c0_i32_0 = arith.constant 0 : i32
    return %arg0, %c0_i32 : i32, i32
  }
  func.func @transform_2(%arg0: i32) -> (i32, i32) {
    %c0_i32 = arith.constant 0 : i32
    %c0_i32_0 = arith.constant 0 : i32
    %c0_i32_1 = arith.constant 0 : i32
    return %c0_i32, %c0_i32_0 : i32, i32
  }
  func.func @transform_3(%arg0: i32) -> (i32, i32) {
    %c0_i32 = arith.constant 0 : i32
    %c0_i32_0 = arith.constant 0 : i32
    %c0_i32_1 = arith.constant 0 : i32
    return %c0_i32, %c0_i32_0 : i32, i32
  }
  func.func @transform_4(%arg0: i32) -> (i32, i32) {
    %c0_i32 = arith.constant 0 : i32
    %c0_i32_0 = arith.constant 0 : i32
    %c0_i32_1 = arith.constant 0 : i32
    return %c0_i32, %c0_i32_0 : i32, i32
  }
  func.func @transform_5(%arg0: i32) -> (i32, i32) {
    %c0_i32 = arith.constant 0 : i32
    %c0_i32_0 = arith.constant 0 : i32
    %c0_i32_1 = arith.constant 0 : i32
    return %c0_i32, %c0_i32_0 : i32, i32
  }
  func.func @transform_6(%arg0: i32) -> (i32, i32) {
    %c0_i32 = arith.constant 0 : i32
    %c0_i32_0 = arith.constant 0 : i32
    %c0_i32_1 = arith.constant 0 : i32
    return %c0_i32, %c0_i32_0 : i32, i32
  }
  func.func @transform_7(%arg0: i32) -> (i32, i32) {
    %c0_i32 = arith.constant 0 : i32
    %c0_i32_0 = arith.constant 0 : i32
    %c0_i32_1 = arith.constant 0 : i32
    return %c0_i32, %c0_i32_0 : i32, i32
  }
  func.func @transform_8(%arg0: i32) -> (i32, i32) {
    %c0_i32 = arith.constant 0 : i32
    %c0_i32_0 = arith.constant 0 : i32
    %c0_i32_1 = arith.constant 0 : i32
    return %c0_i32, %c0_i32_0 : i32, i32
  }
  func.func @transform_9(%arg0: i32) -> (i32, i32) {
    %c0_i32 = arith.constant 0 : i32
    %c0_i32_0 = arith.constant 0 : i32
    %c0_i32_1 = arith.constant 0 : i32
    return %c0_i32, %c0_i32_0 : i32, i32
  }
  func.func @transform_10(%arg0: i32) -> (i32, i32) {
    %c0_i32 = arith.constant 0 : i32
    %c0_i32_0 = arith.constant 0 : i32
    %c0_i32_1 = arith.constant 0 : i32
    return %c0_i32, %c0_i32_0 : i32, i32
  }
  func.func @transform_11(%arg0: i32) -> (i32, i32) {
    %c0_i32 = arith.constant 0 : i32
    %c0_i32_0 = arith.constant 0 : i32
    %c0_i32_1 = arith.constant 0 : i32
    return %c0_i32, %c0_i32_0 : i32, i32
  }
  func.func @transform_12(%arg0: i32) -> (i32, i32) {
    %c0_i32 = arith.constant 0 : i32
    %c0_i32_0 = arith.constant 0 : i32
    %c0_i32_1 = arith.constant 0 : i32
    return %c0_i32, %c0_i32_0 : i32, i32
  }
  func.func @transform_13(%arg0: i32) -> (i32, i32) {
    %c0_i32 = arith.constant 0 : i32
    %c0_i32_0 = arith.constant 0 : i32
    %c0_i32_1 = arith.constant 0 : i32
    return %c0_i32, %c0_i32_0 : i32, i32
  }
  func.func @transform_14(%arg0: i32) -> (i32, i32) {
    %c0_i32 = arith.constant 0 : i32
    %c0_i32_0 = arith.constant 0 : i32
    %c0_i32_1 = arith.constant 0 : i32
    return %c0_i32, %c0_i32_0 : i32, i32
  }
  func.func @transform_15(%arg0: i32) -> (i32, i32) {
    %c0_i32 = arith.constant 0 : i32
    %c0_i32_0 = arith.constant 0 : i32
    return %arg0, %c0_i32 : i32, i32
  }
}

</mosaic_0001>

<llo_original>
// kernel: tpu_custom_call.1
$region0: #{tpu_custom_call.1}
  #allocation0 [shape = 'u32[]', space=smem, size = 0x4, offset = 0x4, fixed_abs, tag = 'smem constant byte address 0x4 - core index']
  #allocation1 [shape = 'u32[144,128]{1,0:T(1,128)}', space=vmem, size = 0x12000, scoped, tag = 'internal scratch']
  %s0 = inlined_call_operand.vmem [shape: s8[128,128], index: 0, kind: input, shape index: {}]
  %s1 = inlined_call_operand.vmem [shape: f32[128,32], index: 1, kind: input, shape index: {}]
  %s2 = inlined_call_operand.vmem [shape: f32[128,32], index: 2, kind: input, shape index: {}]
  %s3 = inlined_call_operand.vmem [shape: f32[512,32], index: 3, kind: input, shape index: {}]
  %s4 = inlined_call_operand.vmem [shape: f32[32,32], index: 4, kind: input, shape index: {}]
  %s5 = inlined_call_operand.vmem [shape: f32[1,32], index: 5, kind: input, shape index: {}]
  %s6 = inlined_call_operand.vmem [shape: f32[1,32], index: 6, kind: input, shape index: {}]
  %s7 = inlined_call_operand.vmem [shape: f32[1,32], index: 7, kind: input, shape index: {}]
  %s8 = inlined_call_operand.vmem [shape: f32[1,32], index: 8, kind: input, shape index: {}]
  %s9 = inlined_call_operand.vmem [shape: f32[32,64], index: 9, kind: input, shape index: {}]
  %s10 = inlined_call_operand.vmem [shape: f32[1,64], index: 10, kind: input, shape index: {}]
  %s11 = inlined_call_operand.vmem [shape: f32[64,32], index: 11, kind: input, shape index: {}]
  %s12 = inlined_call_operand.vmem [shape: f32[1,32], index: 12, kind: input, shape index: {}]
  %s13 = inlined_call_operand.vmem [shape: f32[1,32], index: 13, kind: input, shape index: {}]
  %s14 = inlined_call_operand.vmem [shape: f32[1,32], index: 14, kind: input, shape index: {}]
  %s15 = inlined_call_operand.vmem [shape: f32[128,32], index: 15, kind: output, shape index: {}]
  %s16 = sld [smem:[#allocation0]]
  $region93: #{tpu_custom_call.1} parent=0
    _
  %s18 = ssub.s32 1, %s16
  %s19 = scalar_select 0, %s18, %s16
  loop: start=0, step=1, limit=4
  $region2: #{tpu_custom_call.1} parent=0 // loop_pre_header
    _
  $region3: #{tpu_custom_call.1} parent=0 // loop_header
    %s21 = sphi 0, %s25
    %p22 = scmp.ge.s32.totalorder %s21, 4
    %s31 = sphi 0, %s33
    %s34 = sphi 0, %s31
    %s35 = sphi 0, %s34
    %s51 = sphi 0, %s35
    %s57 = sphi 0, %s59
    %s60 = sphi 0, %s57
    %s61 = sphi 0, %s60
    %s77 = sphi 0, %s61
    %s81 = sphi 0, %s81
    %s83 = sphi 0, %s81
    %s84 = sphi 0, %s83
    %s98 = sphi 0, %s84
    %s102 = sphi 0, %s102
    %s104 = sphi 0, %s102
    %s105 = sphi 0, %s104
    %s119 = sphi 0, %s105
    %s123 = sphi 0, %s123
    %s125 = sphi 0, %s123
    %s126 = sphi 0, %s125
    %s140 = sphi 0, %s126
    %s144 = sphi 0, %s144
    %s146 = sphi 0, %s144
    %s147 = sphi 0, %s146
    %s161 = sphi 0, %s147
    %s165 = sphi 0, %s165
    %s167 = sphi 0, %s165
    %s168 = sphi 0, %s167
    %s182 = sphi 0, %s168
    %s186 = sphi 0, %s186
    %s188 = sphi 0, %s186
    %s189 = sphi 0, %s188
    %s203 = sphi 0, %s189
    %s207 = sphi 0, %s207
    %s209 = sphi 0, %s207
    %s210 = sphi 0, %s209
    %s224 = sphi 0, %s210
    %s228 = sphi 0, %s228
    %s230 = sphi 0, %s228
    %s231 = sphi 0, %s230
    %s245 = sphi 0, %s231
    %s249 = sphi 0, %s249
    %s251 = sphi 0, %s249
    %s252 = sphi 0, %s251
    %s266 = sphi 0, %s252
    %s270 = sphi 0, %s270
    %s272 = sphi 0, %s270
    %s273 = sphi 0, %s272
    %s287 = sphi 0, %s273
    %s291 = sphi 0, %s291
    %s293 = sphi 0, %s291
    %s294 = sphi 0, %s293
    %s308 = sphi 0, %s294
    %s312 = sphi 0, %s312
    %s314 = sphi 0, %s312
    %s315 = sphi 0, %s314
    %s329 = sphi 0, %s315
    %s333 = sphi 0, %s333
    %s335 = sphi 0, %s333
    %s336 = sphi 0, %s335
    %s350 = sphi 0, %s336
    %s356 = sphi 0, %s358
    %s359 = sphi 0, %s356
    %s360 = sphi 0, %s359
    %s376 = sphi 0, %s360
  $region4: #{tpu_custom_call.1} parent=0 // loop_header_branch
    %24 = sbr.rel (%p22) target = $region8
  $region5: #{tpu_custom_call.1} parent=0 // loop_body
    %s26 = ssub.s32 %s21, 1
    %s27 = ssub.s32 %s21, 2
    %s28 = sadd.s32 %s21, 1
    %s29 = ssub.s32 %s21, %s28
    %p30 = scmp.eq.s32.totalorder %s29, 0
    %s32 = sadd.s32 %s31, 1
    %s33 = scalar_select %p30, %s31, %s32
    %p36 = pneg %p30
    %p37 = scmp.eq.s32.totalorder %s21, 1
    %p38 = por %p36, %p37
    %p39 = scmp.ne.s32.totalorder %s31, %s34
    %p40 = scmp.eq.s32.totalorder %s21, 0
    %p41 = por %p39, %p40
    %p42 = scmp.ne.s32.totalorder %s31, %s34
    %p43 = scmp.eq.s32.totalorder %s26, 1
    %p44 = por %p42, %p43
    %p45 = scmp.ne.s32.totalorder %s34, %s35
    %p46 = scmp.eq.s32.totalorder %s26, 0
    %p47 = por %p45, %p46
    %p48 = scmp.ne.s32.totalorder %s34, %s35
    %p49 = scmp.eq.s32.totalorder %s27, 1
    %p50 = por %p48, %p49
    %p52 = scmp.ne.s32.totalorder %s35, %s51
    %p53 = scmp.eq.s32.totalorder %s27, 0
    %p54 = por %p52, %p53
    %s55 = ssub.s32 %s21, %s28
    %p56 = scmp.eq.s32.totalorder %s55, 0
    %s58 = sadd.s32 %s57, 1
    %s59 = scalar_select %p56, %s57, %s58
    %p62 = pneg %p56
    %p63 = scmp.eq.s32.totalorder %s21, 1
    %p64 = por %p62, %p63
    %p65 = scmp.ne.s32.totalorder %s57, %s60
    %p66 = scmp.eq.s32.totalorder %s21, 0
    %p67 = por %p65, %p66
    %p68 = scmp.ne.s32.totalorder %s57, %s60
    %p69 = scmp.eq.s32.totalorder %s26, 1
    %p70 = por %p68, %p69
    %p71 = scmp.ne.s32.totalorder %s60, %s61
    %p72 = scmp.eq.s32.totalorder %s26, 0
    %p73 = por %p71, %p72
    %p74 = scmp.ne.s32.totalorder %s60, %s61
    %p75 = scmp.eq.s32.totalorder %s27, 1
    %p76 = por %p74, %p75
    %p78 = scmp.ne.s32.totalorder %s61, %s77
    %p79 = scmp.eq.s32.totalorder %s27, 0
    %p80 = por %p78, %p79
    %s82 = sadd.s32 %s81, 1
    %p85 = scmp.eq.s32.totalorder %s21, 1
    %p86 = scmp.ne.s32.totalorder %s81, %s83
    %p87 = scmp.eq.s32.totalorder %s21, 0
    %p88 = por %p86, %p87
    %p89 = scmp.ne.s32.totalorder %s81, %s83
    %p90 = scmp.eq.s32.totalorder %s26, 1
    %p91 = por %p89, %p90
    %p92 = scmp.ne.s32.totalorder %s83, %s84
    %p93 = scmp.eq.s32.totalorder %s26, 0
    %p94 = por %p92, %p93
    %p95 = scmp.ne.s32.totalorder %s83, %s84
    %p96 = scmp.eq.s32.totalorder %s27, 1
    %p97 = por %p95, %p96
    %p99 = scmp.ne.s32.totalorder %s84, %s98
    %p100 = scmp.eq.s32.totalorder %s27, 0
    %p101 = por %p99, %p100
    %s103 = sadd.s32 %s102, 1
    %p106 = scmp.eq.s32.totalorder %s21, 1
    %p107 = scmp.ne.s32.totalorder %s102, %s104
    %p108 = scmp.eq.s32.totalorder %s21, 0
    %p109 = por %p107, %p108
    %p110 = scmp.ne.s32.totalorder %s102, %s104
    %p111 = scmp.eq.s32.totalorder %s26, 1
    %p112 = por %p110, %p111
    %p113 = scmp.ne.s32.totalorder %s104, %s105
    %p114 = scmp.eq.s32.totalorder %s26, 0
    %p115 = por %p113, %p114
    %p116 = scmp.ne.s32.totalorder %s104, %s105
    %p117 = scmp.eq.s32.totalorder %s27, 1
    %p118 = por %p116, %p117
    %p120 = scmp.ne.s32.totalorder %s105, %s119
    %p121 = scmp.eq.s32.totalorder %s27, 0
    %p122 = por %p120, %p121
    %s124 = sadd.s32 %s123, 1
    %p127 = scmp.eq.s32.totalorder %s21, 1
    %p128 = scmp.ne.s32.totalorder %s123, %s125
    %p129 = scmp.eq.s32.totalorder %s21, 0
    %p130 = por %p128, %p129
    %p131 = scmp.ne.s32.totalorder %s123, %s125
    %p132 = scmp.eq.s32.totalorder %s26, 1
    %p133 = por %p131, %p132
    %p134 = scmp.ne.s32.totalorder %s125, %s126
    %p135 = scmp.eq.s32.totalorder %s26, 0
    %p136 = por %p134, %p135
    %p137 = scmp.ne.s32.totalorder %s125, %s126
    %p138 = scmp.eq.s32.totalorder %s27, 1
    %p139 = por %p137, %p138
    %p141 = scmp.ne.s32.totalorder %s126, %s140
    %p142 = scmp.eq.s32.totalorder %s27, 0
    %p143 = por %p141, %p142
    %s145 = sadd.s32 %s144, 1
    %p148 = scmp.eq.s32.totalorder %s21, 1
    %p149 = scmp.ne.s32.totalorder %s144, %s146
    %p150 = scmp.eq.s32.totalorder %s21, 0
    %p151 = por %p149, %p150
    %p152 = scmp.ne.s32.totalorder %s144, %s146
    %p153 = scmp.eq.s32.totalorder %s26, 1
    %p154 = por %p152, %p153
    %p155 = scmp.ne.s32.totalorder %s146, %s147
    %p156 = scmp.eq.s32.totalorder %s26, 0
    %p157 = por %p155, %p156
    %p158 = scmp.ne.s32.totalorder %s146, %s147
    %p159 = scmp.eq.s32.totalorder %s27, 1
    %p160 = por %p158, %p159
    %p162 = scmp.ne.s32.totalorder %s147, %s161
    %p163 = scmp.eq.s32.totalorder %s27, 0
    %p164 = por %p162, %p163
    %s166 = sadd.s32 %s165, 1
    %p169 = scmp.eq.s32.totalorder %s21, 1
    %p170 = scmp.ne.s32.totalorder %s165, %s167
    %p171 = scmp.eq.s32.totalorder %s21, 0
    %p172 = por %p170, %p171
    %p173 = scmp.ne.s32.totalorder %s165, %s167
    %p174 = scmp.eq.s32.totalorder %s26, 1
    %p175 = por %p173, %p174
    %p176 = scmp.ne.s32.totalorder %s167, %s168
    %p177 = scmp.eq.s32.totalorder %s26, 0
    %p178 = por %p176, %p177
    %p179 = scmp.ne.s32.totalorder %s167, %s168
    %p180 = scmp.eq.s32.totalorder %s27, 1
    %p181 = por %p179, %p180
    %p183 = scmp.ne.s32.totalorder %s168, %s182
    %p184 = scmp.eq.s32.totalorder %s27, 0
    %p185 = por %p183, %p184
    %s187 = sadd.s32 %s186, 1
    %p190 = scmp.eq.s32.totalorder %s21, 1
    %p191 = scmp.ne.s32.totalorder %s186, %s188
    %p192 = scmp.eq.s32.totalorder %s21, 0
    %p193 = por %p191, %p192
    %p194 = scmp.ne.s32.totalorder %s186, %s188
    %p195 = scmp.eq.s32.totalorder %s26, 1
    %p196 = por %p194, %p195
    %p197 = scmp.ne.s32.totalorder %s188, %s189
    %p198 = scmp.eq.s32.totalorder %s26, 0
    %p199 = por %p197, %p198
    %p200 = scmp.ne.s32.totalorder %s188, %s189
    %p201 = scmp.eq.s32.totalorder %s27, 1
    %p202 = por %p200, %p201
    %p204 = scmp.ne.s32.totalorder %s189, %s203
    %p205 = scmp.eq.s32.totalorder %s27, 0
    %p206 = por %p204, %p205
    %s208 = sadd.s32 %s207, 1
    %p211 = scmp.eq.s32.totalorder %s21, 1
    %p212 = scmp.ne.s32.totalorder %s207, %s209
    %p213 = scmp.eq.s32.totalorder %s21, 0
    %p214 = por %p212, %p213
    %p215 = scmp.ne.s32.totalorder %s207, %s209
    %p216 = scmp.eq.s32.totalorder %s26, 1
    %p217 = por %p215, %p216
    %p218 = scmp.ne.s32.totalorder %s209, %s210
    %p219 = scmp.eq.s32.totalorder %s26, 0
    %p220 = por %p218, %p219
    %p221 = scmp.ne.s32.totalorder %s209, %s210
    %p222 = scmp.eq.s32.totalorder %s27, 1
    %p223 = por %p221, %p222
    %p225 = scmp.ne.s32.totalorder %s210, %s224
    %p226 = scmp.eq.s32.totalorder %s27, 0
    %p227 = por %p225, %p226
    %s229 = sadd.s32 %s228, 1
    %p232 = scmp.eq.s32.totalorder %s21, 1
    %p233 = scmp.ne.s32.totalorder %s228, %s230
    %p234 = scmp.eq.s32.totalorder %s21, 0
    %p235 = por %p233, %p234
    %p236 = scmp.ne.s32.totalorder %s228, %s230
    %p237 = scmp.eq.s32.totalorder %s26, 1
    %p238 = por %p236, %p237
    %p239 = scmp.ne.s32.totalorder %s230, %s231
    %p240 = scmp.eq.s32.totalorder %s26, 0
    %p241 = por %p239, %p240
    %p242 = scmp.ne.s32.totalorder %s230, %s231
    %p243 = scmp.eq.s32.totalorder %s27, 1
    %p244 = por %p242, %p243
    %p246 = scmp.ne.s32.totalorder %s231, %s245
    %p247 = scmp.eq.s32.totalorder %s27, 0
    %p248 = por %p246, %p247
    %s250 = sadd.s32 %s249, 1
    %p253 = scmp.eq.s32.totalorder %s21, 1
    %p254 = scmp.ne.s32.totalorder %s249, %s251
    %p255 = scmp.eq.s32.totalorder %s21, 0
    %p256 = por %p254, %p255
    %p257 = scmp.ne.s32.totalorder %s249, %s251
    %p258 = scmp.eq.s32.totalorder %s26, 1
    %p259 = por %p257, %p258
    %p260 = scmp.ne.s32.totalorder %s251, %s252
    %p261 = scmp.eq.s32.totalorder %s26, 0
    %p262 = por %p260, %p261
    %p263 = scmp.ne.s32.totalorder %s251, %s252
    %p264 = scmp.eq.s32.totalorder %s27, 1
    %p265 = por %p263, %p264
    %p267 = scmp.ne.s32.totalorder %s252, %s266
    %p268 = scmp.eq.s32.totalorder %s27, 0
    %p269 = por %p267, %p268
    %s271 = sadd.s32 %s270, 1
    %p274 = scmp.eq.s32.totalorder %s21, 1
    %p275 = scmp.ne.s32.totalorder %s270, %s272
    %p276 = scmp.eq.s32.totalorder %s21, 0
    %p277 = por %p275, %p276
    %p278 = scmp.ne.s32.totalorder %s270, %s272
    %p279 = scmp.eq.s32.totalorder %s26, 1
    %p280 = por %p278, %p279
    %p281 = scmp.ne.s32.totalorder %s272, %s273
    %p282 = scmp.eq.s32.totalorder %s26, 0
    %p283 = por %p281, %p282
    %p284 = scmp.ne.s32.totalorder %s272, %s273
    %p285 = scmp.eq.s32.totalorder %s27, 1
    %p286 = por %p284, %p285
    %p288 = scmp.ne.s32.totalorder %s273, %s287
    %p289 = scmp.eq.s32.totalorder %s27, 0
    %p290 = por %p288, %p289
    %s292 = sadd.s32 %s291, 1
    %p295 = scmp.eq.s32.totalorder %s21, 1
    %p296 = scmp.ne.s32.totalorder %s291, %s293
    %p297 = scmp.eq.s32.totalorder %s21, 0
    %p298 = por %p296, %p297
    %p299 = scmp.ne.s32.totalorder %s291, %s293
    %p300 = scmp.eq.s32.totalorder %s26, 1
    %p301 = por %p299, %p300
    %p302 = scmp.ne.s32.totalorder %s293, %s294
    %p303 = scmp.eq.s32.totalorder %s26, 0
    %p304 = por %p302, %p303
    %p305 = scmp.ne.s32.totalorder %s293, %s294
    %p306 = scmp.eq.s32.totalorder %s27, 1
    %p307 = por %p305, %p306
    %p309 = scmp.ne.s32.totalorder %s294, %s308
    %p310 = scmp.eq.s32.totalorder %s27, 0
    %p311 = por %p309, %p310
    %s313 = sadd.s32 %s312, 1
    %p316 = scmp.eq.s32.totalorder %s21, 1
    %p317 = scmp.ne.s32.totalorder %s312, %s314
    %p318 = scmp.eq.s32.totalorder %s21, 0
    %p319 = por %p317, %p318
    %p320 = scmp.ne.s32.totalorder %s312, %s314
    %p321 = scmp.eq.s32.totalorder %s26, 1
    %p322 = por %p320, %p321
    %p323 = scmp.ne.s32.totalorder %s314, %s315
    %p324 = scmp.eq.s32.totalorder %s26, 0
    %p325 = por %p323, %p324
    %p326 = scmp.ne.s32.totalorder %s314, %s315
    %p327 = scmp.eq.s32.totalorder %s27, 1
    %p328 = por %p326, %p327
    %p330 = scmp.ne.s32.totalorder %s315, %s329
    %p331 = scmp.eq.s32.totalorder %s27, 0
    %p332 = por %p330, %p331
    %s334 = sadd.s32 %s333, 1
    %p337 = scmp.eq.s32.totalorder %s21, 1
    %p338 = scmp.ne.s32.totalorder %s333, %s335
    %p339 = scmp.eq.s32.totalorder %s21, 0
    %p340 = por %p338, %p339
    %p341 = scmp.ne.s32.totalorder %s333, %s335
    %p342 = scmp.eq.s32.totalorder %s26, 1
    %p343 = por %p341, %p342
    %p344 = scmp.ne.s32.totalorder %s335, %s336
    %p345 = scmp.eq.s32.totalorder %s26, 0
    %p346 = por %p344, %p345
    %p347 = scmp.ne.s32.totalorder %s335, %s336
    %p348 = scmp.eq.s32.totalorder %s27, 1
    %p349 = por %p347, %p348
    %p351 = scmp.ne.s32.totalorder %s336, %s350
    %p352 = scmp.eq.s32.totalorder %s27, 0
    %p353 = por %p351, %p352
    %s354 = ssub.s32 %s21, %s28
    %p355 = scmp.eq.s32.totalorder %s354, 0
    %s357 = sadd.s32 %s356, 1
    %s358 = scalar_select %p355, %s356, %s357
    %p361 = pneg %p355
    %p362 = scmp.eq.s32.totalorder %s21, 1
    %p363 = por %p361, %p362
    %p364 = scmp.ne.s32.totalorder %s356, %s359
    %p365 = scmp.eq.s32.totalorder %s21, 0
    %p366 = por %p364, %p365
    %p367 = scmp.ne.s32.totalorder %s356, %s359
    %p368 = scmp.eq.s32.totalorder %s26, 1
    %p369 = por %p367, %p368
    %p370 = scmp.ne.s32.totalorder %s359, %s360
    %p371 = scmp.eq.s32.totalorder %s26, 0
    %p372 = por %p370, %p371
    %p373 = scmp.ne.s32.totalorder %s359, %s360
    %p374 = scmp.eq.s32.totalorder %s27, 1
    %p375 = por %p373, %p374
    %p377 = scmp.ne.s32.totalorder %s360, %s376
    %p378 = scmp.eq.s32.totalorder %s27, 0
    %p379 = por %p377, %p378
    %p380 = scmp.le.s32.totalorder 1, %s21
    %p381 = scmp.lt.s32.totalorder %s21, 3
    %p382 = pnand %p380, %p381
    %p383 = pneg %p382
    // Predicated region
    $region9: #{tpu_custom_call.1} parent=5 // pred_check
      _
    $region10: #{tpu_custom_call.1} parent=5 // pred_check_branch
      %385 = sbr.rel (%p382) target = $region12
    $region11: #{tpu_custom_call.1} parent=5 // pred_region
      %s386 = ssub.s32 %s21, 1
      // Predicated region
      $region13: #{tpu_custom_call.1} parent=11 // pred_check
        %p387 = pneg %p94
      $region14: #{tpu_custom_call.1} parent=11 // pred_check_branch
        %389 = sbr.rel (%p387) target = $region16
      $region15: #{tpu_custom_call.1} parent=11 // pred_region
        _
      $region16: #{tpu_custom_call.1} parent=11 // pred_fallthru
        _
      // Predicated region
      $region17: #{tpu_custom_call.1} parent=11 // pred_check
        %p390 = pneg %p115
      $region18: #{tpu_custom_call.1} parent=11 // pred_check_branch
        %392 = sbr.rel (%p390) target = $region20
      $region19: #{tpu_custom_call.1} parent=11 // pred_region
        _
      $region20: #{tpu_custom_call.1} parent=11 // pred_fallthru
        _
      // Predicated region
      $region21: #{tpu_custom_call.1} parent=11 // pred_check
        %p393 = pneg %p136
      $region22: #{tpu_custom_call.1} parent=11 // pred_check_branch
        %395 = sbr.rel (%p393) target = $region24
      $region23: #{tpu_custom_call.1} parent=11 // pred_region
        _
      $region24: #{tpu_custom_call.1} parent=11 // pred_fallthru
        _
      // Predicated region
      $region25: #{tpu_custom_call.1} parent=11 // pred_check
        %p396 = pneg %p157
      $region26: #{tpu_custom_call.1} parent=11 // pred_check_branch
        %398 = sbr.rel (%p396) target = $region28
      $region27: #{tpu_custom_call.1} parent=11 // pred_region
        _
      $region28: #{tpu_custom_call.1} parent=11 // pred_fallthru
        _
      // Predicated region
      $region29: #{tpu_custom_call.1} parent=11 // pred_check
        %p399 = pneg %p178
      $region30: #{tpu_custom_call.1} parent=11 // pred_check_branch
        %401 = sbr.rel (%p399) target = $region32
      $region31: #{tpu_custom_call.1} parent=11 // pred_region
        _
      $region32: #{tpu_custom_call.1} parent=11 // pred_fallthru
        _
      // Predicated region
      $region33: #{tpu_custom_call.1} parent=11 // pred_check
        %p402 = pneg %p199
      $region34: #{tpu_custom_call.1} parent=11 // pred_check_branch
        %404 = sbr.rel (%p402) target = $region36
      $region35: #{tpu_custom_call.1} parent=11 // pred_region
        _
      $region36: #{tpu_custom_call.1} parent=11 // pred_fallthru
        _
      // Predicated region
      $region37: #{tpu_custom_call.1} parent=11 // pred_check
        %p405 = pneg %p220
      $region38: #{tpu_custom_call.1} parent=11 // pred_check_branch
        %407 = sbr.rel (%p405) target = $region40
      $region39: #{tpu_custom_call.1} parent=11 // pred_region
        _
      $region40: #{tpu_custom_call.1} parent=11 // pred_fallthru
        _
      // Predicated region
      $region41: #{tpu_custom_call.1} parent=11 // pred_check
        %p408 = pneg %p241
      $region42: #{tpu_custom_call.1} parent=11 // pred_check_branch
        %410 = sbr.rel (%p408) target = $region44
      $region43: #{tpu_custom_call.1} parent=11 // pred_region
        _
      $region44: #{tpu_custom_call.1} parent=11 // pred_fallthru
        _
      // Predicated region
      $region45: #{tpu_custom_call.1} parent=11 // pred_check
        %p411 = pneg %p262
      $region46: #{tpu_custom_call.1} parent=11 // pred_check_branch
        %413 = sbr.rel (%p411) target = $region48
      $region47: #{tpu_custom_call.1} parent=11 // pred_region
        _
      $region48: #{tpu_custom_call.1} parent=11 // pred_fallthru
        _
      // Predicated region
      $region49: #{tpu_custom_call.1} parent=11 // pred_check
        %p414 = pneg %p283
      $region50: #{tpu_custom_call.1} parent=11 // pred_check_branch
        %416 = sbr.rel (%p414) target = $region52
      $region51: #{tpu_custom_call.1} parent=11 // pred_region
        _
      $region52: #{tpu_custom_call.1} parent=11 // pred_fallthru
        _
      // Predicated region
      $region53: #{tpu_custom_call.1} parent=11 // pred_check
        %p417 = pneg %p304
      $region54: #{tpu_custom_call.1} parent=11 // pred_check_branch
        %419 = sbr.rel (%p417) target = $region56
      $region55: #{tpu_custom_call.1} parent=11 // pred_region
        _
      $region56: #{tpu_custom_call.1} parent=11 // pred_fallthru
        _
      // Predicated region
      $region57: #{tpu_custom_call.1} parent=11 // pred_check
        %p420 = pneg %p325
      $region58: #{tpu_custom_call.1} parent=11 // pred_check_branch
        %422 = sbr.rel (%p420) target = $region60
      $region59: #{tpu_custom_call.1} parent=11 // pred_region
        _
      $region60: #{tpu_custom_call.1} parent=11 // pred_fallthru
        _
      // Predicated region
      $region61: #{tpu_custom_call.1} parent=11 // pred_check
        %p423 = pneg %p346
      $region62: #{tpu_custom_call.1} parent=11 // pred_check_branch
        %425 = sbr.rel (%p423) target = $region64
      $region63: #{tpu_custom_call.1} parent=11 // pred_region
        _
      $region64: #{tpu_custom_call.1} parent=11 // pred_fallthru
        _
    $region12: #{tpu_custom_call.1} parent=5 // pred_fallthru
      _
    %p426 = scmp.lt.s32.totalorder %s21, 2
    // Predicated region
    $region65: #{tpu_custom_call.1} parent=5 // pred_check
      %p427 = pneg %p426
    $region66: #{tpu_custom_call.1} parent=5 // pred_check_branch
      %429 = sbr.rel (%p427) target = $region68
    $region67: #{tpu_custom_call.1} parent=5 // pred_region
      // Predicated region
      $region69: #{tpu_custom_call.1} parent=67 // pred_check
        %p430 = pneg %p41
      $region70: #{tpu_custom_call.1} parent=67 // pred_check_branch
        %432 = sbr.rel (%p430) target = $region72
      $region71: #{tpu_custom_call.1} parent=67 // pred_region
        %s433 = smul.u32 2, %s21
        %p434 = scmp.lt.s32.totalorder %s433, 3
        %s435 = scalar_select %p434, %s433, 3
        %s436 = smul.addr %s435, 8
        %s437 = scalar_lea.vmem %s0, %s436
        %s438 = smul.u32 2, %s21
      $region72: #{tpu_custom_call.1} parent=67 // pred_fallthru
        _
      // Predicated region
      $region73: #{tpu_custom_call.1} parent=67 // pred_check
        %p439 = pneg %p67
      $region74: #{tpu_custom_call.1} parent=67 // pred_check_branch
        %441 = sbr.rel (%p439) target = $region76
      $region75: #{tpu_custom_call.1} parent=67 // pred_region
        %s442 = smul.u32 8, %s21
        %p443 = scmp.lt.s32.totalorder %s442, 15
        %s444 = scalar_select %p443, %s442, 15
        %s445 = smul.addr %s444, 8
        %s446 = scalar_lea.vmem %s1, %s445
        %s447 = smul.u32 8, %s21
      $region76: #{tpu_custom_call.1} parent=67 // pred_fallthru
        _
    $region68: #{tpu_custom_call.1} parent=5 // pred_fallthru
      _
    %p448 = scmp.le.s32.totalorder 1, %s21
    %p449 = scmp.lt.s32.totalorder %s21, 3
    %p450 = pnand %p448, %p449
    %p451 = pneg %p450
    // Predicated region
    $region77: #{tpu_custom_call.1} parent=5 // pred_check
      _
    $region78: #{tpu_custom_call.1} parent=5 // pred_check_branch
      %453 = sbr.rel (%p450) target = $region80
    $region79: #{tpu_custom_call.1} parent=5 // pred_region
      %s454 = ssub.s32 %s21, 1
      %s455 = smul.u32 2, %s26
      %p456 = scmp.lt.s32.totalorder %s455, 3
      %s457 = scalar_select %p456, %s455, 3
      %s458 = smul.addr %s457, 8
      %s459 = scalar_lea.vmem %s0, %s458
      %p460 = pneg %p47
      %p461 = pneg %p44
      %s462 = smul.u32 8, %s26
      %p463 = scmp.lt.s32.totalorder %s462, 15
      %s464 = scalar_select %p463, %s462, 15
      %s465 = smul.addr %s464, 8
      %s466 = scalar_lea.vmem %s1, %s465
      %p467 = pneg %p73
      %p468 = pneg %p70
      %p469 = pneg %p94
      %p470 = pneg %p91
      %p471 = pneg %p115
      %p472 = pneg %p112
      %p473 = pneg %p136
      %p474 = pneg %p133
      %p475 = pneg %p157
      %p476 = pneg %p154
      %p477 = pneg %p178
      %p478 = pneg %p175
      %p479 = pneg %p199
      %p480 = pneg %p196
      %p481 = pneg %p220
      %p482 = pneg %p217
      %p483 = pneg %p241
      %p484 = pneg %p238
      %p485 = pneg %p262
      %p486 = pneg %p259
      %p487 = pneg %p283
      %p488 = pneg %p280
      %p489 = pneg %p304
      %p490 = pneg %p301
      %p491 = pneg %p325
      %p492 = pneg %p322
      %p493 = pneg %p346
      %p494 = pneg %p343
      %p495 = pneg %p372
      %p496 = pneg %p369
      %s497 = smul.u32 8, %s26
      %p498 = scmp.lt.s32.totalorder %s497, 15
      %s499 = scalar_select %p498, %s497, 15
      %s500 = smul.addr %s499, 8
      %s501 = scalar_lea.vmem %s15, %s500
      %s502 = smul.u32 2, %s26
      %p503 = scmp.lt.s32.totalorder %s502, 3
      %s504 = scalar_select %p503, %s502, 3
      %s505 = smul.addr %s504, 8
      %s506 = scalar_lea.vmem %s0, %s505
      %s507 = smul.u32 2, %s26
      %s508 = smul.u32 8, %s26
      %p509 = scmp.lt.s32.totalorder %s508, 15
      %s510 = scalar_select %p509, %s508, 15
      %s511 = smul.addr %s510, 8
      %s512 = scalar_lea.vmem %s1, %s511
      %s513 = smul.u32 8, %s26
      %s514 = smul.u32 8, %s26
      %p515 = scmp.lt.s32.totalorder %s514, 15
      %s516 = scalar_select %p515, %s514, 15
      %s517 = smul.addr %s516, 8
      %s518 = scalar_lea.vmem %s15, %s517
      %s519 = smul.u32 8, %s26
      %v520 = vld [vmem:[%s512] sm:$0xff]
      %v521 = vld [vmem:[%s512 + $0x8] sm:$0xff]
      %v522 = vld [vmem:[%s512 + $0x10] sm:$0xff]
      %v523 = vld [vmem:[%s512 + $0x18] sm:$0xff]
      %v524 = vld [vmem:[%s512 + $0x20] sm:$0xff]
      %v525 = vld [vmem:[%s512 + $0x28] sm:$0xff]
      %v526 = vld [vmem:[%s512 + $0x30] sm:$0xff]
      %v527 = vld [vmem:[%s512 + $0x38] sm:$0xff]
      %v528 = vld [vmem:[%s506] sm:$0xff]
      %v529 = vld [vmem:[%s506 + $0x8] sm:$0xff]
      %v530 = vunpack.c.0.s8 %v528
      %v531 = vunpack.c.1.s8 %v528
      %v532 = vunpack.c.2.s8 %v528
      %v533 = vunpack.c.3.s8 %v528
      %v534 = vunpack.c.0.s8 %v529
      %v535 = vunpack.c.1.s8 %v529
      %v536 = vunpack.c.2.s8 %v529
      %v537 = vunpack.c.3.s8 %v529
      %v538 = vcvt.s32.f32 %v530
      %v539 = vcvt.s32.f32 %v531
      %v540 = vcvt.s32.f32 %v532
      %v541 = vcvt.s32.f32 %v533
      %v542 = vcvt.s32.f32 %v534
      %v543 = vcvt.s32.f32 %v535
      %v544 = vcvt.s32.f32 %v536
      %v545 = vcvt.s32.f32 %v537
      %v546 = vld [vmem:[%s2] sm:$0xff]
      %v547 = vld [vmem:[%s2 + $0x8] sm:$0xff]
      %v548 = vld [vmem:[%s2 + $0x10] sm:$0xff]
      %v549 = vld [vmem:[%s2 + $0x18] sm:$0xff]
      %v550 = vld [vmem:[%s2 + $0x20] sm:$0xff]
      %v551 = vld [vmem:[%s2 + $0x28] sm:$0xff]
      %v552 = vld [vmem:[%s2 + $0x30] sm:$0xff]
      %v553 = vld [vmem:[%s2 + $0x38] sm:$0xff]
      %v554 = vld [vmem:[%s2 + $0x40] sm:$0xff]
      %v555 = vld [vmem:[%s2 + $0x48] sm:$0xff]
      %v556 = vld [vmem:[%s2 + $0x50] sm:$0xff]
      %v557 = vld [vmem:[%s2 + $0x58] sm:$0xff]
      %v558 = vld [vmem:[%s2 + $0x60] sm:$0xff]
      %v559 = vld [vmem:[%s2 + $0x68] sm:$0xff]
      %v560 = vld [vmem:[%s2 + $0x70] sm:$0xff]
      %v561 = vld [vmem:[%s2 + $0x78] sm:$0xff]
      %v562 = vld [vmem:[%s6] sm:$0x1]
      %v563 = vld [vmem:[%s7] sm:$0x1]
      %vm564 = vcmask 261120
      %v565 = vsel %vm564, %v520, 0.0
      %566 = vadd.xlane.f32.xlu0 %v565
      %v567 = vpop.xlane.xlu0 %566
      %v568 = vsel %vm564, %v521, 0.0
      %569 = vadd.xlane.f32.xlu0 %v568
      %v570 = vpop.xlane.xlu0 %569
      %v571 = vsel %vm564, %v522, 0.0
      %572 = vadd.xlane.f32.xlu0 %v571
      %v573 = vpop.xlane.xlu0 %572
      %v574 = vsel %vm564, %v523, 0.0
      %575 = vadd.xlane.f32.xlu0 %v574
      %v576 = vpop.xlane.xlu0 %575
      %v577 = vsel %vm564, %v524, 0.0
      %578 = vadd.xlane.f32.xlu0 %v577
      %v579 = vpop.xlane.xlu0 %578
      %v580 = vsel %vm564, %v525, 0.0
      %581 = vadd.xlane.f32.xlu0 %v580
      %v582 = vpop.xlane.xlu0 %581
      %v583 = vsel %vm564, %v526, 0.0
      %584 = vadd.xlane.f32.xlu0 %v583
      %v585 = vpop.xlane.xlu0 %584
      %v586 = vsel %vm564, %v527, 0.0
      %587 = vadd.xlane.f32.xlu0 %v586
      %v588 = vpop.xlane.xlu0 %587
      %v589 = vrcp.pop 32.0
      %v590 = vmul.f32 %v567, %v589
      %v591 = vmul.f32 %v570, %v589
      %v592 = vmul.f32 %v573, %v589
      %v593 = vmul.f32 %v576, %v589
      %v594 = vmul.f32 %v579, %v589
      %v595 = vmul.f32 %v582, %v589
      %v596 = vmul.f32 %v585, %v589
      %v597 = vmul.f32 %v588, %v589
      %v598 = vsub.f32 %v520, %v590
      %v599 = vsub.f32 %v521, %v591
      %v600 = vsub.f32 %v522, %v592
      %v601 = vsub.f32 %v523, %v593
      %v602 = vsub.f32 %v524, %v594
      %v603 = vsub.f32 %v525, %v595
      %v604 = vsub.f32 %v526, %v596
      %v605 = vsub.f32 %v527, %v597
      %v606 = vmul.f32 %v598, %v598
      %v607 = vmul.f32 %v599, %v599
      %v608 = vmul.f32 %v600, %v600
      %v609 = vmul.f32 %v601, %v601
      %v610 = vmul.f32 %v602, %v602
      %v611 = vmul.f32 %v603, %v603
      %v612 = vmul.f32 %v604, %v604
      %v613 = vmul.f32 %v605, %v605
      %v614 = vsel %vm564, %v606, 0.0
      %615 = vadd.xlane.f32.xlu0 %v614
      %v616 = vpop.xlane.xlu0 %615
      %v617 = vsel %vm564, %v607, 0.0
      %618 = vadd.xlane.f32.xlu0 %v617
      %v619 = vpop.xlane.xlu0 %618
      %v620 = vsel %vm564, %v608, 0.0
      %621 = vadd.xlane.f32.xlu0 %v620
      %v622 = vpop.xlane.xlu0 %621
      %v623 = vsel %vm564, %v609, 0.0
      %624 = vadd.xlane.f32.xlu0 %v623
      %v625 = vpop.xlane.xlu0 %624
      %v626 = vsel %vm564, %v610, 0.0
      %627 = vadd.xlane.f32.xlu0 %v626
      %v628 = vpop.xlane.xlu0 %627
      %v629 = vsel %vm564, %v611, 0.0
      %630 = vadd.xlane.f32.xlu0 %v629
      %v631 = vpop.xlane.xlu0 %630
      %v632 = vsel %vm564, %v612, 0.0
      %633 = vadd.xlane.f32.xlu0 %v632
      %v634 = vpop.xlane.xlu0 %633
      %v635 = vsel %vm564, %v613, 0.0
      %636 = vadd.xlane.f32.xlu0 %v635
      %v637 = vpop.xlane.xlu0 %636
      %v638 = vmul.f32 %v616, %v589
      %v639 = vmul.f32 %v619, %v589
      %v640 = vmul.f32 %v622, %v589
      %v641 = vmul.f32 %v625, %v589
      %v642 = vmul.f32 %v628, %v589
      %v643 = vmul.f32 %v631, %v589
      %v644 = vmul.f32 %v634, %v589
      %v645 = vmul.f32 %v637, %v589
      %v646 = vadd.f32 %v638, 1e-05
      %v647 = vadd.f32 %v639, 1e-05
      %v648 = vadd.f32 %v640, 1e-05
      %v649 = vadd.f32 %v641, 1e-05
      %v650 = vadd.f32 %v642, 1e-05
      %v651 = vadd.f32 %v643, 1e-05
      %v652 = vadd.f32 %v644, 1e-05
      %v653 = vadd.f32 %v645, 1e-05
      %v654 = vrsqrt.pop %v646
      %v655 = vrsqrt.pop %v647
      %v656 = vrsqrt.pop %v648
      %v657 = vrsqrt.pop %v649
      %v658 = vrsqrt.pop %v650
      %v659 = vrsqrt.pop %v651
      %v660 = vrsqrt.pop %v652
      %v661 = vrsqrt.pop %v653
      %v662 = vmul.f32 %v598, %v654
      %v663 = vmul.f32 %v599, %v655
      %v664 = vmul.f32 %v600, %v656
      %v665 = vmul.f32 %v601, %v657
      %v666 = vmul.f32 %v602, %v658
      %v667 = vmul.f32 %v603, %v659
      %v668 = vmul.f32 %v604, %v660
      %v669 = vmul.f32 %v605, %v661
      %v671 = vlaneseq
      %v672 = vshrl.u32 %v671, 7
      %v673 = vsub.s32 0, %v672
      %v674 = vrot.slane %v562, %v673
      %v676 = vmul.f32 %v662, %v674
      %v677 = vmul.f32 %v663, %v674
      %v678 = vmul.f32 %v664, %v674
      %v679 = vmul.f32 %v665, %v674
      %v680 = vmul.f32 %v666, %v674
      %v681 = vmul.f32 %v667, %v674
      %v682 = vmul.f32 %v668, %v674
      %v683 = vmul.f32 %v669, %v674
      %v685 = vlaneseq
      %v686 = vshrl.u32 %v685, 7
      %v687 = vsub.s32 0, %v686
      %v688 = vrot.slane %v563, %v687
      %v690 = vadd.f32 %v676, %v688
      %v691 = vadd.f32 %v677, %v688
      %v692 = vadd.f32 %v678, %v688
      %v693 = vadd.f32 %v679, %v688
      %v694 = vadd.f32 %v680, %v688
      %v695 = vadd.f32 %v681, %v688
      %v696 = vadd.f32 %v682, %v688
      %v697 = vadd.f32 %v683, %v688
      %v698 = vld [vmem:[%s4] sm:$0xff]
      %v699 = vld [vmem:[%s4 + $0x8] sm:$0xff]
      %v700 = vld [vmem:[%s4 + $0x10] sm:$0xff]
      %v701 = vld [vmem:[%s4 + $0x18] sm:$0xff]
      %v702 = vld [vmem:[%s5] sm:$0x1]
      %v704 = vlaneseq
      %v705 = vshrl.u32 %v704, 7
      %v706 = vsub.s32 0, %v705
      %v707 = vrot.slane %v702, %v706
      %v710 = vsel %vm564, %v690, 0
      %v713 = vsel %vm564, %v691, 0
      %v716 = vsel %vm564, %v692, 0
      %v719 = vsel %vm564, %v693, 0
      %v722 = vsel %vm564, %v694, 0
      %v725 = vsel %vm564, %v695, 0
      %v728 = vsel %vm564, %v696, 0
      %v731 = vsel %vm564, %v697, 0
      %733 = vmatprep.subr.mxu0 0.0
      %734 = vmatpush1.msra.mxu0 0.0
      %735 = vmatprep.subr.mxu0 0.0
      %736 = vmatpush1.msra.mxu0 0.0
      %737 = vmatprep.subr.mxu0 0.0
      %738 = vmatpush1.msra.mxu0 0.0
      %739 = vmatprep.subr.mxu0 0.0
      %740 = vmatpush1.msra.mxu0 0.0
      %741 = vmatprep.subr.mxu0 0.0
      %742 = vmatpush1.msra.mxu0 0.0
      %743 = vmatprep.subr.mxu0 0.0
      %744 = vmatpush1.msra.mxu0 0.0
      %745 = vmatprep.subr.mxu0 0.0
      %746 = vmatpush1.msra.mxu0 0.0
      %747 = vmatprep.subr.mxu0 0.0
      %748 = vmatpush1.msra.mxu0 0.0
      %749 = vmatprep.subr.mxu0 0.0
      %750 = vmatpush1.msra.mxu0 0.0
      %751 = vmatprep.subr.mxu0 0.0
      %752 = vmatpush1.msra.mxu0 0.0
      %753 = vmatprep.subr.mxu0 0.0
      %754 = vmatpush1.msra.mxu0 0.0
      %755 = vmatprep.subr.mxu0 0.0
      %756 = vmatpush1.msra.mxu0 0.0
      %757 = vmatprep.subr.mxu0 0.0
      %758 = vmatpush1.msra.mxu0 %v701
      %759 = vmatprep.subr.mxu0 0.0
      %760 = vmatpush1.msra.mxu0 %v700
      %761 = vmatprep.subr.mxu0 0.0
      %762 = vmatpush1.msra.mxu0 %v699
      %763 = vmatprep.subr.mxu0 0.0
      %764 = vmatpush1.msra.mxu0 %v698
      %765 = vmatprep.subr.mxu0 0.0
      %766 = vmatpush2.msra.mxu0 0.0
      %767 = vmatprep.subr.mxu0 0.0
      %768 = vmatpush2.msra.mxu0 0.0
      %769 = vmatprep.subr.mxu0 0.0
      %770 = vmatpush2.msra.mxu0 0.0
      %771 = vmatprep.subr.mxu0 0.0
      %772 = vmatpush2.msra.mxu0 0.0
      %773 = vmatprep.subr.mxu0 0.0
      %774 = vmatpush2.msra.mxu0 0.0
      %775 = vmatprep.subr.mxu0 0.0
      %776 = vmatpush2.msra.mxu0 0.0
      %777 = vmatprep.subr.mxu0 0.0
      %778 = vmatpush2.msra.mxu0 0.0
      %779 = vmatprep.subr.mxu0 0.0
      %780 = vmatpush2.msra.mxu0 0.0
      %781 = vmatprep.subr.mxu0 0.0
      %782 = vmatpush2.msra.mxu0 0.0
      %783 = vmatprep.subr.mxu0 0.0
      %784 = vmatpush2.msra.mxu0 0.0
      %785 = vmatprep.subr.mxu0 0.0
      %786 = vmatpush2.msra.mxu0 0.0
      %787 = vmatprep.subr.mxu0 0.0
      %788 = vmatpush2.msra.mxu0 0.0
      %789 = vmatprep.subr.mxu0 0.0
      %790 = vmatpush2.msra.mxu0 0.0
      %791 = vmatprep.subr.mxu0 0.0
      %792 = vmatpush2.msra.mxu0 0.0
      %793 = vmatprep.subr.mxu0 0.0
      %794 = vmatpush2.msra.mxu0 0.0
      %795 = vmatprep.subr.mxu0 0.0
      %796 = vmatpush2.msra.mxu0 0.0
      %797 = vmatprep.mubr.f32.mxu0 0.0
      %798 = vmatmul.mubr.f32.gmra.mxu0 %v710
      %v799 = vpop.f32.mrf.mxu0
      %v800 = vadd.f32 %v707, %v799
      %v801 = vpop.f32.mrf.mxu0
      %802 = vmatprep.mubr.f32.mxu0 0.0
      %803 = vmatmul.mubr.f32.gmra.mxu0 %v713
      %v804 = vpop.f32.mrf.mxu0
      %v805 = vadd.f32 %v707, %v804
      %v806 = vpop.f32.mrf.mxu0
      %807 = vmatprep.mubr.f32.mxu0 0.0
      %808 = vmatmul.mubr.f32.gmra.mxu0 %v716
      %v809 = vpop.f32.mrf.mxu0
      %v810 = vadd.f32 %v707, %v809
      %v811 = vpop.f32.mrf.mxu0
      %812 = vmatprep.mubr.f32.mxu0 0.0
      %813 = vmatmul.mubr.f32.gmra.mxu0 %v719
      %v814 = vpop.f32.mrf.mxu0
      %v815 = vadd.f32 %v707, %v814
      %v816 = vpop.f32.mrf.mxu0
      %817 = vmatprep.mubr.f32.mxu0 0.0
      %818 = vmatmul.mubr.f32.gmra.mxu0 %v722
      %v819 = vpop.f32.mrf.mxu0
      %v820 = vadd.f32 %v707, %v819
      %v821 = vpop.f32.mrf.mxu0
      %822 = vmatprep.mubr.f32.mxu0 0.0
      %823 = vmatmul.mubr.f32.gmra.mxu0 %v725
      %v824 = vpop.f32.mrf.mxu0
      %v825 = vadd.f32 %v707, %v824
      %v826 = vpop.f32.mrf.mxu0
      %827 = vmatprep.mubr.f32.mxu0 0.0
      %828 = vmatmul.mubr.f32.gmra.mxu0 %v728
      %v829 = vpop.f32.mrf.mxu0
      %v830 = vadd.f32 %v707, %v829
      %v831 = vpop.f32.mrf.mxu0
      %832 = vmatprep.mubr.f32.mxu0 0.0
      %833 = vmatmul.mubr.f32.gmra.mxu0 %v731
      %v834 = vpop.f32.mrf.mxu0
      %v835 = vadd.f32 %v707, %v834
      %v836 = vpop.f32.mrf.mxu0
      %837 = vdwg.mxu0
      %vm838 = vcmask 64512
      %v840 = vsel %vm838, %v800, 0
      %v843 = vsel %vm838, %v805, 0
      %v846 = vsel %vm838, %v810, 0
      %v849 = vsel %vm838, %v815, 0
      %v852 = vsel %vm838, %v820, 0
      %v855 = vsel %vm838, %v825, 0
      %v858 = vsel %vm838, %v830, 0
      %v861 = vsel %vm838, %v835, 0
      %v864 = vsel %vm838, %v546, 0
      %v867 = vsel %vm838, %v547, 0
      %v870 = vsel %vm838, %v548, 0
      %v873 = vsel %vm838, %v549, 0
      %v876 = vsel %vm838, %v550, 0
      %v879 = vsel %vm838, %v551, 0
      %v882 = vsel %vm838, %v552, 0
      %v885 = vsel %vm838, %v553, 0
      %v888 = vsel %vm838, %v554, 0
      %v891 = vsel %vm838, %v555, 0
      %v894 = vsel %vm838, %v556, 0
      %v897 = vsel %vm838, %v557, 0
      %v900 = vsel %vm838, %v558, 0
      %v903 = vsel %vm838, %v559, 0
      %v906 = vsel %vm838, %v560, 0
      %v909 = vsel %vm838, %v561, 0
      %911 = vmatprep.subr.mxu0 0.0
      %912 = vmatpush1.xpose.msra.mxu0 %v909
      %913 = vmatprep.subr.mxu0 0.0
      %914 = vmatpush1.xpose.msra.mxu0 %v906
      %915 = vmatprep.subr.mxu0 0.0
      %916 = vmatpush1.xpose.msra.mxu0 %v903
      %917 = vmatprep.subr.mxu0 0.0
      %918 = vmatpush1.xpose.msra.mxu0 %v900
      %919 = vmatprep.subr.mxu0 0.0
      %920 = vmatpush1.xpose.msra.mxu0 %v897
      %921 = vmatprep.subr.mxu0 0.0
      %922 = vmatpush1.xpose.msra.mxu0 %v894
      %923 = vmatprep.subr.mxu0 0.0
      %924 = vmatpush1.xpose.msra.mxu0 %v891
      %925 = vmatprep.subr.mxu0 0.0
      %926 = vmatpush1.xpose.msra.mxu0 %v888
      %927 = vmatprep.subr.mxu0 0.0
      %928 = vmatpush1.xpose.msra.mxu0 %v885
      %929 = vmatprep.subr.mxu0 0.0
      %930 = vmatpush1.xpose.msra.mxu0 %v882
      %931 = vmatprep.subr.mxu0 0.0
      %932 = vmatpush1.xpose.msra.mxu0 %v879
      %933 = vmatprep.subr.mxu0 0.0
      %934 = vmatpush1.xpose.msra.mxu0 %v876
      %935 = vmatprep.subr.mxu0 0.0
      %936 = vmatpush1.xpose.msra.mxu0 %v873
      %937 = vmatprep.subr.mxu0 0.0
      %938 = vmatpush1.xpose.msra.mxu0 %v870
      %939 = vmatprep.subr.mxu0 0.0
      %940 = vmatpush1.xpose.msra.mxu0 %v867
      %941 = vmatprep.subr.mxu0 0.0
      %942 = vmatpush1.xpose.msra.mxu0 %v864
      %943 = vmatprep.subr.mxu0 0.0
      %944 = vmatpush2.xpose.msra.mxu0 0.0
      %945 = vmatprep.subr.mxu0 0.0
      %946 = vmatpush2.xpose.msra.mxu0 0.0
      %947 = vmatprep.subr.mxu0 0.0
      %948 = vmatpush2.xpose.msra.mxu0 0.0
      %949 = vmatprep.subr.mxu0 0.0
      %950 = vmatpush2.xpose.msra.mxu0 0.0
      %951 = vmatprep.subr.mxu0 0.0
      %952 = vmatpush2.xpose.msra.mxu0 0.0
      %953 = vmatprep.subr.mxu0 0.0
      %954 = vmatpush2.xpose.msra.mxu0 0.0
      %955 = vmatprep.subr.mxu0 0.0
      %956 = vmatpush2.xpose.msra.mxu0 0.0
      %957 = vmatprep.subr.mxu0 0.0
      %958 = vmatpush2.xpose.msra.mxu0 0.0
      %959 = vmatprep.subr.mxu0 0.0
      %960 = vmatpush2.xpose.msra.mxu0 0.0
      %961 = vmatprep.subr.mxu0 0.0
      %962 = vmatpush2.xpose.msra.mxu0 0.0
      %963 = vmatprep.subr.mxu0 0.0
      %964 = vmatpush2.xpose.msra.mxu0 0.0
      %965 = vmatprep.subr.mxu0 0.0
      %966 = vmatpush2.xpose.msra.mxu0 0.0
      %967 = vmatprep.subr.mxu0 0.0
      %968 = vmatpush2.xpose.msra.mxu0 0.0
      %969 = vmatprep.subr.mxu0 0.0
      %970 = vmatpush2.xpose.msra.mxu0 0.0
      %971 = vmatprep.subr.mxu0 0.0
      %972 = vmatpush2.xpose.msra.mxu0 0.0
      %973 = vmatprep.subr.mxu0 0.0
      %974 = vmatpush2.xpose.msra.mxu0 0.0
      %975 = vmatprep.mubr.f32.mxu0 0.0
      %976 = vmatmul.mubr.f32.gmra.mxu0 %v840
      %v977 = vpop.f32.mrf.mxu0
      %v978 = vadd.f32 0.0, %v977
      %v979 = vpop.f32.mrf.mxu0
      %980 = vmatprep.mubr.f32.mxu0 0.0
      %981 = vmatmul.mubr.f32.gmra.mxu0 %v843
      %v982 = vpop.f32.mrf.mxu0
      %v983 = vadd.f32 0.0, %v982
      %v984 = vpop.f32.mrf.mxu0
      %985 = vmatprep.mubr.f32.mxu0 0.0
      %986 = vmatmul.mubr.f32.gmra.mxu0 %v846
      %v987 = vpop.f32.mrf.mxu0
      %v988 = vadd.f32 0.0, %v987
      %v989 = vpop.f32.mrf.mxu0
      %990 = vmatprep.mubr.f32.mxu0 0.0
      %991 = vmatmul.mubr.f32.gmra.mxu0 %v849
      %v992 = vpop.f32.mrf.mxu0
      %v993 = vadd.f32 0.0, %v992
      %v994 = vpop.f32.mrf.mxu0
      %995 = vmatprep.mubr.f32.mxu0 0.0
      %996 = vmatmul.mubr.f32.gmra.mxu0 %v852
      %v997 = vpop.f32.mrf.mxu0
      %v998 = vadd.f32 0.0, %v997
      %v999 = vpop.f32.mrf.mxu0
      %1000 = vmatprep.mubr.f32.mxu0 0.0
      %1001 = vmatmul.mubr.f32.gmra.mxu0 %v855
      %v1002 = vpop.f32.mrf.mxu0
      %v1003 = vadd.f32 0.0, %v1002
      %v1004 = vpop.f32.mrf.mxu0
      %1005 = vmatprep.mubr.f32.mxu0 0.0
      %1006 = vmatmul.mubr.f32.gmra.mxu0 %v858
      %v1007 = vpop.f32.mrf.mxu0
      %v1008 = vadd.f32 0.0, %v1007
      %v1009 = vpop.f32.mrf.mxu0
      %1010 = vmatprep.mubr.f32.mxu0 0.0
      %1011 = vmatmul.mubr.f32.gmra.mxu0 %v861
      %v1012 = vpop.f32.mrf.mxu0
      %v1013 = vadd.f32 0.0, %v1012
      %v1014 = vpop.f32.mrf.mxu0
      %1015 = vdwg.mxu0
      %1016 = vrot.lane.b32.xlu0 %v800, 120
      %v1017 = vpop.permute.xlu0 %1016
      %1018 = vrot.lane.b32.xlu0 %v805, 120
      %v1019 = vpop.permute.xlu0 %1018
      %1020 = vrot.lane.b32.xlu0 %v810, 120
      %v1021 = vpop.permute.xlu0 %1020
      %1022 = vrot.lane.b32.xlu0 %v815, 120
      %v1023 = vpop.permute.xlu0 %1022
      %1024 = vrot.lane.b32.xlu0 %v820, 120
      %v1025 = vpop.permute.xlu0 %1024
      %1026 = vrot.lane.b32.xlu0 %v825, 120
      %v1027 = vpop.permute.xlu0 %1026
      %1028 = vrot.lane.b32.xlu0 %v830, 120
      %v1029 = vpop.permute.xlu0 %1028
      %1030 = vrot.lane.b32.xlu0 %v835, 120
      %v1031 = vpop.permute.xlu0 %1030
      %1032 = vrot.lane.b32.xlu0 %v546, 120
      %v1033 = vpop.permute.xlu0 %1032
      %1034 = vrot.lane.b32.xlu0 %v547, 120
      %v1035 = vpop.permute.xlu0 %1034
      %1036 = vrot.lane.b32.xlu0 %v548, 120
      %v1037 = vpop.permute.xlu0 %1036
      %1038 = vrot.lane.b32.xlu0 %v549, 120
      %v1039 = vpop.permute.xlu0 %1038
      %1040 = vrot.lane.b32.xlu0 %v550, 120
      %v1041 = vpop.permute.xlu0 %1040
      %1042 = vrot.lane.b32.xlu0 %v551, 120
      %v1043 = vpop.permute.xlu0 %1042
      %1044 = vrot.lane.b32.xlu0 %v552, 120
      %v1045 = vpop.permute.xlu0 %1044
      %1046 = vrot.lane.b32.xlu0 %v553, 120
      %v1047 = vpop.permute.xlu0 %1046
      %1048 = vrot.lane.b32.xlu0 %v554, 120
      %v1049 = vpop.permute.xlu0 %1048
      %1050 = vrot.lane.b32.xlu0 %v555, 120
      %v1051 = vpop.permute.xlu0 %1050
      %1052 = vrot.lane.b32.xlu0 %v556, 120
      %v1053 = vpop.permute.xlu0 %1052
      %1054 = vrot.lane.b32.xlu0 %v557, 120
      %v1055 = vpop.permute.xlu0 %1054
      %1056 = vrot.lane.b32.xlu0 %v558, 120
      %v1057 = vpop.permute.xlu0 %1056
      %1058 = vrot.lane.b32.xlu0 %v559, 120
      %v1059 = vpop.permute.xlu0 %1058
      %1060 = vrot.lane.b32.xlu0 %v560, 120
      %v1061 = vpop.permute.xlu0 %1060
      %1062 = vrot.lane.b32.xlu0 %v561, 120
      %v1063 = vpop.permute.xlu0 %1062
      %v1064 = vsel %vm838, %v1017, 0
      %v1066 = vsel %vm838, %v1019, 0
      %v1068 = vsel %vm838, %v1021, 0
      %v1070 = vsel %vm838, %v1023, 0
      %v1072 = vsel %vm838, %v1025, 0
      %v1074 = vsel %vm838, %v1027, 0
      %v1076 = vsel %vm838, %v1029, 0
      %v1078 = vsel %vm838, %v1031, 0
      %v1080 = vsel %vm838, %v1033, 0
      %v1082 = vsel %vm838, %v1035, 0
      %v1084 = vsel %vm838, %v1037, 0
      %v1086 = vsel %vm838, %v1039, 0
      %v1088 = vsel %vm838, %v1041, 0
      %v1090 = vsel %vm838, %v1043, 0
      %v1092 = vsel %vm838, %v1045, 0
      %v1094 = vsel %vm838, %v1047, 0
      %v1096 = vsel %vm838, %v1049, 0
      %v1098 = vsel %vm838, %v1051, 0
      %v1100 = vsel %vm838, %v1053, 0
      %v1102 = vsel %vm838, %v1055, 0
      %v1104 = vsel %vm838, %v1057, 0
      %v1106 = vsel %vm838, %v1059, 0
      %v1108 = vsel %vm838, %v1061, 0
      %v1110 = vsel %vm838, %v1063, 0
      %1112 = vmatprep.subr.mxu0 0.0
      %1113 = vmatpush1.xpose.msra.mxu0 %v1110
      %1114 = vmatprep.subr.mxu0 0.0
      %1115 = vmatpush1.xpose.msra.mxu0 %v1108
      %1116 = vmatprep.subr.mxu0 0.0
      %1117 = vmatpush1.xpose.msra.mxu0 %v1106
      %1118 = vmatprep.subr.mxu0 0.0
      %1119 = vmatpush1.xpose.msra.mxu0 %v1104
      %1120 = vmatprep.subr.mxu0 0.0
      %1121 = vmatpush1.xpose.msra.mxu0 %v1102
      %1122 = vmatprep.subr.mxu0 0.0
      %1123 = vmatpush1.xpose.msra.mxu0 %v1100
      %1124 = vmatprep.subr.mxu0 0.0
      %1125 = vmatpush1.xpose.msra.mxu0 %v1098
      %1126 = vmatprep.subr.mxu0 0.0
      %1127 = vmatpush1.xpose.msra.mxu0 %v1096
      %1128 = vmatprep.subr.mxu0 0.0
      %1129 = vmatpush1.xpose.msra.mxu0 %v1094
      %1130 = vmatprep.subr.mxu0 0.0
      %1131 = vmatpush1.xpose.msra.mxu0 %v1092
      %1132 = vmatprep.subr.mxu0 0.0
      %1133 = vmatpush1.xpose.msra.mxu0 %v1090
      %1134 = vmatprep.subr.mxu0 0.0
      %1135 = vmatpush1.xpose.msra.mxu0 %v1088
      %1136 = vmatprep.subr.mxu0 0.0
      %1137 = vmatpush1.xpose.msra.mxu0 %v1086
      %1138 = vmatprep.subr.mxu0 0.0
      %1139 = vmatpush1.xpose.msra.mxu0 %v1084
      %1140 = vmatprep.subr.mxu0 0.0
      %1141 = vmatpush1.xpose.msra.mxu0 %v1082
      %1142 = vmatprep.subr.mxu0 0.0
      %1143 = vmatpush1.xpose.msra.mxu0 %v1080
      %1144 = vmatprep.subr.mxu0 0.0
      %1145 = vmatpush2.xpose.msra.mxu0 0.0
      %1146 = vmatprep.subr.mxu0 0.0
      %1147 = vmatpush2.xpose.msra.mxu0 0.0
      %1148 = vmatprep.subr.mxu0 0.0
      %1149 = vmatpush2.xpose.msra.mxu0 0.0
      %1150 = vmatprep.subr.mxu0 0.0
      %1151 = vmatpush2.xpose.msra.mxu0 0.0
      %1152 = vmatprep.subr.mxu0 0.0
      %1153 = vmatpush2.xpose.msra.mxu0 0.0
      %1154 = vmatprep.subr.mxu0 0.0
      %1155 = vmatpush2.xpose.msra.mxu0 0.0
      %1156 = vmatprep.subr.mxu0 0.0
      %1157 = vmatpush2.xpose.msra.mxu0 0.0
      %1158 = vmatprep.subr.mxu0 0.0
      %1159 = vmatpush2.xpose.msra.mxu0 0.0
      %1160 = vmatprep.subr.mxu0 0.0
      %1161 = vmatpush2.xpose.msra.mxu0 0.0
      %1162 = vmatprep.subr.mxu0 0.0
      %1163 = vmatpush2.xpose.msra.mxu0 0.0
      %1164 = vmatprep.subr.mxu0 0.0
      %1165 = vmatpush2.xpose.msra.mxu0 0.0
      %1166 = vmatprep.subr.mxu0 0.0
      %1167 = vmatpush2.xpose.msra.mxu0 0.0
      %1168 = vmatprep.subr.mxu0 0.0
      %1169 = vmatpush2.xpose.msra.mxu0 0.0
      %1170 = vmatprep.subr.mxu0 0.0
      %1171 = vmatpush2.xpose.msra.mxu0 0.0
      %1172 = vmatprep.subr.mxu0 0.0
      %1173 = vmatpush2.xpose.msra.mxu0 0.0
      %1174 = vmatprep.subr.mxu0 0.0
      %1175 = vmatpush2.xpose.msra.mxu0 0.0
      %1176 = vmatprep.mubr.f32.mxu0 0.0
      %1177 = vmatmul.mubr.f32.gmra.mxu0 %v1064
      %v1178 = vpop.f32.mrf.mxu0
      %v1179 = vadd.f32 0.0, %v1178
      %v1180 = vpop.f32.mrf.mxu0
      %1181 = vmatprep.mubr.f32.mxu0 0.0
      %1182 = vmatmul.mubr.f32.gmra.mxu0 %v1066
      %v1183 = vpop.f32.mrf.mxu0
      %v1184 = vadd.f32 0.0, %v1183
      %v1185 = vpop.f32.mrf.mxu0
      %1186 = vmatprep.mubr.f32.mxu0 0.0
      %1187 = vmatmul.mubr.f32.gmra.mxu0 %v1068
      %v1188 = vpop.f32.mrf.mxu0
      %v1189 = vadd.f32 0.0, %v1188
      %v1190 = vpop.f32.mrf.mxu0
      %1191 = vmatprep.mubr.f32.mxu0 0.0
      %1192 = vmatmul.mubr.f32.gmra.mxu0 %v1070
      %v1193 = vpop.f32.mrf.mxu0
      %v1194 = vadd.f32 0.0, %v1193
      %v1195 = vpop.f32.mrf.mxu0
      %1196 = vmatprep.mubr.f32.mxu0 0.0
      %1197 = vmatmul.mubr.f32.gmra.mxu0 %v1072
      %v1198 = vpop.f32.mrf.mxu0
      %v1199 = vadd.f32 0.0, %v1198
      %v1200 = vpop.f32.mrf.mxu0
      %1201 = vmatprep.mubr.f32.mxu0 0.0
      %1202 = vmatmul.mubr.f32.gmra.mxu0 %v1074
      %v1203 = vpop.f32.mrf.mxu0
      %v1204 = vadd.f32 0.0, %v1203
      %v1205 = vpop.f32.mrf.mxu0
      %1206 = vmatprep.mubr.f32.mxu0 0.0
      %1207 = vmatmul.mubr.f32.gmra.mxu0 %v1076
      %v1208 = vpop.f32.mrf.mxu0
      %v1209 = vadd.f32 0.0, %v1208
      %v1210 = vpop.f32.mrf.mxu0
      %1211 = vmatprep.mubr.f32.mxu0 0.0
      %1212 = vmatmul.mubr.f32.gmra.mxu0 %v1078
      %v1213 = vpop.f32.mrf.mxu0
      %v1214 = vadd.f32 0.0, %v1213
      %v1215 = vpop.f32.mrf.mxu0
      %1216 = vdwg.mxu0
      %1217 = vrot.lane.b32.xlu0 %v800, 112
      %v1218 = vpop.permute.xlu0 %1217
      %1219 = vrot.lane.b32.xlu0 %v805, 112
      %v1220 = vpop.permute.xlu0 %1219
      %1221 = vrot.lane.b32.xlu0 %v810, 112
      %v1222 = vpop.permute.xlu0 %1221
      %1223 = vrot.lane.b32.xlu0 %v815, 112
      %v1224 = vpop.permute.xlu0 %1223
      %1225 = vrot.lane.b32.xlu0 %v820, 112
      %v1226 = vpop.permute.xlu0 %1225
      %1227 = vrot.lane.b32.xlu0 %v825, 112
      %v1228 = vpop.permute.xlu0 %1227
      %1229 = vrot.lane.b32.xlu0 %v830, 112
      %v1230 = vpop.permute.xlu0 %1229
      %1231 = vrot.lane.b32.xlu0 %v835, 112
      %v1232 = vpop.permute.xlu0 %1231
      %1233 = vrot.lane.b32.xlu0 %v546, 112
      %v1234 = vpop.permute.xlu0 %1233
      %1235 = vrot.lane.b32.xlu0 %v547, 112
      %v1236 = vpop.permute.xlu0 %1235
      %1237 = vrot.lane.b32.xlu0 %v548, 112
      %v1238 = vpop.permute.xlu0 %1237
      %1239 = vrot.lane.b32.xlu0 %v549, 112
      %v1240 = vpop.permute.xlu0 %1239
      %1241 = vrot.lane.b32.xlu0 %v550, 112
      %v1242 = vpop.permute.xlu0 %1241
      %1243 = vrot.lane.b32.xlu0 %v551, 112
      %v1244 = vpop.permute.xlu0 %1243
      %1245 = vrot.lane.b32.xlu0 %v552, 112
      %v1246 = vpop.permute.xlu0 %1245
      %1247 = vrot.lane.b32.xlu0 %v553, 112
      %v1248 = vpop.permute.xlu0 %1247
      %1249 = vrot.lane.b32.xlu0 %v554, 112
      %v1250 = vpop.permute.xlu0 %1249
      %1251 = vrot.lane.b32.xlu0 %v555, 112
      %v1252 = vpop.permute.xlu0 %1251
      %1253 = vrot.lane.b32.xlu0 %v556, 112
      %v1254 = vpop.permute.xlu0 %1253
      %1255 = vrot.lane.b32.xlu0 %v557, 112
      %v1256 = vpop.permute.xlu0 %1255
      %1257 = vrot.lane.b32.xlu0 %v558, 112
      %v1258 = vpop.permute.xlu0 %1257
      %1259 = vrot.lane.b32.xlu0 %v559, 112
      %v1260 = vpop.permute.xlu0 %1259
      %1261 = vrot.lane.b32.xlu0 %v560, 112
      %v1262 = vpop.permute.xlu0 %1261
      %1263 = vrot.lane.b32.xlu0 %v561, 112
      %v1264 = vpop.permute.xlu0 %1263
      %v1265 = vsel %vm838, %v1218, 0
      %v1267 = vsel %vm838, %v1220, 0
      %v1269 = vsel %vm838, %v1222, 0
      %v1271 = vsel %vm838, %v1224, 0
      %v1273 = vsel %vm838, %v1226, 0
      %v1275 = vsel %vm838, %v1228, 0
      %v1277 = vsel %vm838, %v1230, 0
      %v1279 = vsel %vm838, %v1232, 0
      %v1281 = vsel %vm838, %v1234, 0
      %v1283 = vsel %vm838, %v1236, 0
      %v1285 = vsel %vm838, %v1238, 0
      %v1287 = vsel %vm838, %v1240, 0
      %v1289 = vsel %vm838, %v1242, 0
      %v1291 = vsel %vm838, %v1244, 0
      %v1293 = vsel %vm838, %v1246, 0
      %v1295 = vsel %vm838, %v1248, 0
      %v1297 = vsel %vm838, %v1250, 0
      %v1299 = vsel %vm838, %v1252, 0
      %v1301 = vsel %vm838, %v1254, 0
      %v1303 = vsel %vm838, %v1256, 0
      %v1305 = vsel %vm838, %v1258, 0
      %v1307 = vsel %vm838, %v1260, 0
      %v1309 = vsel %vm838, %v1262, 0
      %v1311 = vsel %vm838, %v1264, 0
      %1313 = vmatprep.subr.mxu0 0.0
      %1314 = vmatpush1.xpose.msra.mxu0 %v1311
      %1315 = vmatprep.subr.mxu0 0.0
      %1316 = vmatpush1.xpose.msra.mxu0 %v1309
      %1317 = vmatprep.subr.mxu0 0.0
      %1318 = vmatpush1.xpose.msra.mxu0 %v1307
      %1319 = vmatprep.subr.mxu0 0.0
      %1320 = vmatpush1.xpose.msra.mxu0 %v1305
      %1321 = vmatprep.subr.mxu0 0.0
      %1322 = vmatpush1.xpose.msra.mxu0 %v1303
      %1323 = vmatprep.subr.mxu0 0.0
      %1324 = vmatpush1.xpose.msra.mxu0 %v1301
      %1325 = vmatprep.subr.mxu0 0.0
      %1326 = vmatpush1.xpose.msra.mxu0 %v1299
      %1327 = vmatprep.subr.mxu0 0.0
      %1328 = vmatpush1.xpose.msra.mxu0 %v1297
      %1329 = vmatprep.subr.mxu0 0.0
      %1330 = vmatpush1.xpose.msra.mxu0 %v1295
      %1331 = vmatprep.subr.mxu0 0.0
      %1332 = vmatpush1.xpose.msra.mxu0 %v1293
      %1333 = vmatprep.subr.mxu0 0.0
      %1334 = vmatpush1.xpose.msra.mxu0 %v1291
      %1335 = vmatprep.subr.mxu0 0.0
      %1336 = vmatpush1.xpose.msra.mxu0 %v1289
      %1337 = vmatprep.subr.mxu0 0.0
      %1338 = vmatpush1.xpose.msra.mxu0 %v1287
      %1339 = vmatprep.subr.mxu0 0.0
      %1340 = vmatpush1.xpose.msra.mxu0 %v1285
      %1341 = vmatprep.subr.mxu0 0.0
      %1342 = vmatpush1.xpose.msra.mxu0 %v1283
      %1343 = vmatprep.subr.mxu0 0.0
      %1344 = vmatpush1.xpose.msra.mxu0 %v1281
      %1345 = vmatprep.subr.mxu0 0.0
      %1346 = vmatpush2.xpose.msra.mxu0 0.0
      %1347 = vmatprep.subr.mxu0 0.0
      %1348 = vmatpush2.xpose.msra.mxu0 0.0
      %1349 = vmatprep.subr.mxu0 0.0
      %1350 = vmatpush2.xpose.msra.mxu0 0.0
      %1351 = vmatprep.subr.mxu0 0.0
      %1352 = vmatpush2.xpose.msra.mxu0 0.0
      %1353 = vmatprep.subr.mxu0 0.0
      %1354 = vmatpush2.xpose.msra.mxu0 0.0
      %1355 = vmatprep.subr.mxu0 0.0
      %1356 = vmatpush2.xpose.msra.mxu0 0.0
      %1357 = vmatprep.subr.mxu0 0.0
      %1358 = vmatpush2.xpose.msra.mxu0 0.0
      %1359 = vmatprep.subr.mxu0 0.0
      %1360 = vmatpush2.xpose.msra.mxu0 0.0
      %1361 = vmatprep.subr.mxu0 0.0
      %1362 = vmatpush2.xpose.msra.mxu0 0.0
      %1363 = vmatprep.subr.mxu0 0.0
      %1364 = vmatpush2.xpose.msra.mxu0 0.0
      %1365 = vmatprep.subr.mxu0 0.0
      %1366 = vmatpush2.xpose.msra.mxu0 0.0
      %1367 = vmatprep.subr.mxu0 0.0
      %1368 = vmatpush2.xpose.msra.mxu0 0.0
      %1369 = vmatprep.subr.mxu0 0.0
      %1370 = vmatpush2.xpose.msra.mxu0 0.0
      %1371 = vmatprep.subr.mxu0 0.0
      %1372 = vmatpush2.xpose.msra.mxu0 0.0
      %1373 = vmatprep.subr.mxu0 0.0
      %1374 = vmatpush2.xpose.msra.mxu0 0.0
      %1375 = vmatprep.subr.mxu0 0.0
      %1376 = vmatpush2.xpose.msra.mxu0 0.0
      %1377 = vmatprep.mubr.f32.mxu0 0.0
      %1378 = vmatmul.mubr.f32.gmra.mxu0 %v1265
      %v1379 = vpop.f32.mrf.mxu0
      %v1380 = vadd.f32 0.0, %v1379
      %v1381 = vpop.f32.mrf.mxu0
      %1382 = vmatprep.mubr.f32.mxu0 0.0
      %1383 = vmatmul.mubr.f32.gmra.mxu0 %v1267
      %v1384 = vpop.f32.mrf.mxu0
      %v1385 = vadd.f32 0.0, %v1384
      %v1386 = vpop.f32.mrf.mxu0
      %1387 = vmatprep.mubr.f32.mxu0 0.0
      %1388 = vmatmul.mubr.f32.gmra.mxu0 %v1269
      %v1389 = vpop.f32.mrf.mxu0
      %v1390 = vadd.f32 0.0, %v1389
      %v1391 = vpop.f32.mrf.mxu0
      %1392 = vmatprep.mubr.f32.mxu0 0.0
      %1393 = vmatmul.mubr.f32.gmra.mxu0 %v1271
      %v1394 = vpop.f32.mrf.mxu0
      %v1395 = vadd.f32 0.0, %v1394
      %v1396 = vpop.f32.mrf.mxu0
      %1397 = vmatprep.mubr.f32.mxu0 0.0
      %1398 = vmatmul.mubr.f32.gmra.mxu0 %v1273
      %v1399 = vpop.f32.mrf.mxu0
      %v1400 = vadd.f32 0.0, %v1399
      %v1401 = vpop.f32.mrf.mxu0
      %1402 = vmatprep.mubr.f32.mxu0 0.0
      %1403 = vmatmul.mubr.f32.gmra.mxu0 %v1275
      %v1404 = vpop.f32.mrf.mxu0
      %v1405 = vadd.f32 0.0, %v1404
      %v1406 = vpop.f32.mrf.mxu0
      %1407 = vmatprep.mubr.f32.mxu0 0.0
      %1408 = vmatmul.mubr.f32.gmra.mxu0 %v1277
      %v1409 = vpop.f32.mrf.mxu0
      %v1410 = vadd.f32 0.0, %v1409
      %v1411 = vpop.f32.mrf.mxu0
      %1412 = vmatprep.mubr.f32.mxu0 0.0
      %1413 = vmatmul.mubr.f32.gmra.mxu0 %v1279
      %v1414 = vpop.f32.mrf.mxu0
      %v1415 = vadd.f32 0.0, %v1414
      %v1416 = vpop.f32.mrf.mxu0
      %1417 = vdwg.mxu0
      %1418 = vrot.lane.b32.xlu0 %v800, 104
      %v1419 = vpop.permute.xlu0 %1418
      %1420 = vrot.lane.b32.xlu0 %v805, 104
      %v1421 = vpop.permute.xlu0 %1420
      %1422 = vrot.lane.b32.xlu0 %v810, 104
      %v1423 = vpop.permute.xlu0 %1422
      %1424 = vrot.lane.b32.xlu0 %v815, 104
      %v1425 = vpop.permute.xlu0 %1424
      %1426 = vrot.lane.b32.xlu0 %v820, 104
      %v1427 = vpop.permute.xlu0 %1426
      %1428 = vrot.lane.b32.xlu0 %v825, 104
      %v1429 = vpop.permute.xlu0 %1428
      %1430 = vrot.lane.b32.xlu0 %v830, 104
      %v1431 = vpop.permute.xlu0 %1430
      %1432 = vrot.lane.b32.xlu0 %v835, 104
      %v1433 = vpop.permute.xlu0 %1432
      %1434 = vrot.lane.b32.xlu0 %v546, 104
      %v1435 = vpop.permute.xlu0 %1434
      %1436 = vrot.lane.b32.xlu0 %v547, 104
      %v1437 = vpop.permute.xlu0 %1436
      %1438 = vrot.lane.b32.xlu0 %v548, 104
      %v1439 = vpop.permute.xlu0 %1438
      %1440 = vrot.lane.b32.xlu0 %v549, 104
      %v1441 = vpop.permute.xlu0 %1440
      %1442 = vrot.lane.b32.xlu0 %v550, 104
      %v1443 = vpop.permute.xlu0 %1442
      %1444 = vrot.lane.b32.xlu0 %v551, 104
      %v1445 = vpop.permute.xlu0 %1444
      %1446 = vrot.lane.b32.xlu0 %v552, 104
      %v1447 = vpop.permute.xlu0 %1446
      %1448 = vrot.lane.b32.xlu0 %v553, 104
      %v1449 = vpop.permute.xlu0 %1448
      %1450 = vrot.lane.b32.xlu0 %v554, 104
      %v1451 = vpop.permute.xlu0 %1450
      %1452 = vrot.lane.b32.xlu0 %v555, 104
      %v1453 = vpop.permute.xlu0 %1452
      %1454 = vrot.lane.b32.xlu0 %v556, 104
      %v1455 = vpop.permute.xlu0 %1454
      %1456 = vrot.lane.b32.xlu0 %v557, 104
      %v1457 = vpop.permute.xlu0 %1456
      %1458 = vrot.lane.b32.xlu0 %v558, 104
      %v1459 = vpop.permute.xlu0 %1458
      %1460 = vrot.lane.b32.xlu0 %v559, 104
      %v1461 = vpop.permute.xlu0 %1460
      %1462 = vrot.lane.b32.xlu0 %v560, 104
      %v1463 = vpop.permute.xlu0 %1462
      %1464 = vrot.lane.b32.xlu0 %v561, 104
      %v1465 = vpop.permute.xlu0 %1464
      %v1466 = vsel %vm838, %v1419, 0
      %v1468 = vsel %vm838, %v1421, 0
      %v1470 = vsel %vm838, %v1423, 0
      %v1472 = vsel %vm838, %v1425, 0
      %v1474 = vsel %vm838, %v1427, 0
      %v1476 = vsel %vm838, %v1429, 0
      %v1478 = vsel %vm838, %v1431, 0
      %v1480 = vsel %vm838, %v1433, 0
      %v1482 = vsel %vm838, %v1435, 0
      %v1484 = vsel %vm838, %v1437, 0
      %v1486 = vsel %vm838, %v1439, 0
      %v1488 = vsel %vm838, %v1441, 0
      %v1490 = vsel %vm838, %v1443, 0
      %v1492 = vsel %vm838, %v1445, 0
      %v1494 = vsel %vm838, %v1447, 0
      %v1496 = vsel %vm838, %v1449, 0
      %v1498 = vsel %vm838, %v1451, 0
      %v1500 = vsel %vm838, %v1453, 0
      %v1502 = vsel %vm838, %v1455, 0
      %v1504 = vsel %vm838, %v1457, 0
      %v1506 = vsel %vm838, %v1459, 0
      %v1508 = vsel %vm838, %v1461, 0
      %v1510 = vsel %vm838, %v1463, 0
      %v1512 = vsel %vm838, %v1465, 0
      %1514 = vmatprep.subr.mxu0 0.0
      %1515 = vmatpush1.xpose.msra.mxu0 %v1512
      %1516 = vmatprep.subr.mxu0 0.0
      %1517 = vmatpush1.xpose.msra.mxu0 %v1510
      %1518 = vmatprep.subr.mxu0 0.0
      %1519 = vmatpush1.xpose.msra.mxu0 %v1508
      %1520 = vmatprep.subr.mxu0 0.0
      %1521 = vmatpush1.xpose.msra.mxu0 %v1506
      %1522 = vmatprep.subr.mxu0 0.0
      %1523 = vmatpush1.xpose.msra.mxu0 %v1504
      %1524 = vmatprep.subr.mxu0 0.0
      %1525 = vmatpush1.xpose.msra.mxu0 %v1502
      %1526 = vmatprep.subr.mxu0 0.0
      %1527 = vmatpush1.xpose.msra.mxu0 %v1500
      %1528 = vmatprep.subr.mxu0 0.0
      %1529 = vmatpush1.xpose.msra.mxu0 %v1498
      %1530 = vmatprep.subr.mxu0 0.0
      %1531 = vmatpush1.xpose.msra.mxu0 %v1496
      %1532 = vmatprep.subr.mxu0 0.0
      %1533 = vmatpush1.xpose.msra.mxu0 %v1494
      %1534 = vmatprep.subr.mxu0 0.0
      %1535 = vmatpush1.xpose.msra.mxu0 %v1492
      %1536 = vmatprep.subr.mxu0 0.0
      %1537 = vmatpush1.xpose.msra.mxu0 %v1490
      %1538 = vmatprep.subr.mxu0 0.0
      %1539 = vmatpush1.xpose.msra.mxu0 %v1488
      %1540 = vmatprep.subr.mxu0 0.0
      %1541 = vmatpush1.xpose.msra.mxu0 %v1486
      %1542 = vmatprep.subr.mxu0 0.0
      %1543 = vmatpush1.xpose.msra.mxu0 %v1484
      %1544 = vmatprep.subr.mxu0 0.0
      %1545 = vmatpush1.xpose.msra.mxu0 %v1482
      %1546 = vmatprep.subr.mxu0 0.0
      %1547 = vmatpush2.xpose.msra.mxu0 0.0
      %1548 = vmatprep.subr.mxu0 0.0
      %1549 = vmatpush2.xpose.msra.mxu0 0.0
      %1550 = vmatprep.subr.mxu0 0.0
      %1551 = vmatpush2.xpose.msra.mxu0 0.0
      %1552 = vmatprep.subr.mxu0 0.0
      %1553 = vmatpush2.xpose.msra.mxu0 0.0
      %1554 = vmatprep.subr.mxu0 0.0
      %1555 = vmatpush2.xpose.msra.mxu0 0.0
      %1556 = vmatprep.subr.mxu0 0.0
      %1557 = vmatpush2.xpose.msra.mxu0 0.0
      %1558 = vmatprep.subr.mxu0 0.0
      %1559 = vmatpush2.xpose.msra.mxu0 0.0
      %1560 = vmatprep.subr.mxu0 0.0
      %1561 = vmatpush2.xpose.msra.mxu0 0.0
      %1562 = vmatprep.subr.mxu0 0.0
      %1563 = vmatpush2.xpose.msra.mxu0 0.0
      %1564 = vmatprep.subr.mxu0 0.0
      %1565 = vmatpush2.xpose.msra.mxu0 0.0
      %1566 = vmatprep.subr.mxu0 0.0
      %1567 = vmatpush2.xpose.msra.mxu0 0.0
      %1568 = vmatprep.subr.mxu0 0.0
      %1569 = vmatpush2.xpose.msra.mxu0 0.0
      %1570 = vmatprep.subr.mxu0 0.0
      %1571 = vmatpush2.xpose.msra.mxu0 0.0
      %1572 = vmatprep.subr.mxu0 0.0
      %1573 = vmatpush2.xpose.msra.mxu0 0.0
      %1574 = vmatprep.subr.mxu0 0.0
      %1575 = vmatpush2.xpose.msra.mxu0 0.0
      %1576 = vmatprep.subr.mxu0 0.0
      %1577 = vmatpush2.xpose.msra.mxu0 0.0
      %1578 = vmatprep.mubr.f32.mxu0 0.0
      %1579 = vmatmul.mubr.f32.gmra.mxu0 %v1466
      %v1580 = vpop.f32.mrf.mxu0
      %v1581 = vadd.f32 0.0, %v1580
      %v1582 = vpop.f32.mrf.mxu0
      %1583 = vmatprep.mubr.f32.mxu0 0.0
      %1584 = vmatmul.mubr.f32.gmra.mxu0 %v1468
      %v1585 = vpop.f32.mrf.mxu0
      %v1586 = vadd.f32 0.0, %v1585
      %v1587 = vpop.f32.mrf.mxu0
      %1588 = vmatprep.mubr.f32.mxu0 0.0
      %1589 = vmatmul.mubr.f32.gmra.mxu0 %v1470
      %v1590 = vpop.f32.mrf.mxu0
      %v1591 = vadd.f32 0.0, %v1590
      %v1592 = vpop.f32.mrf.mxu0
      %1593 = vmatprep.mubr.f32.mxu0 0.0
      %1594 = vmatmul.mubr.f32.gmra.mxu0 %v1472
      %v1595 = vpop.f32.mrf.mxu0
      %v1596 = vadd.f32 0.0, %v1595
      %v1597 = vpop.f32.mrf.mxu0
      %1598 = vmatprep.mubr.f32.mxu0 0.0
      %1599 = vmatmul.mubr.f32.gmra.mxu0 %v1474
      %v1600 = vpop.f32.mrf.mxu0
      %v1601 = vadd.f32 0.0, %v1600
      %v1602 = vpop.f32.mrf.mxu0
      %1603 = vmatprep.mubr.f32.mxu0 0.0
      %1604 = vmatmul.mubr.f32.gmra.mxu0 %v1476
      %v1605 = vpop.f32.mrf.mxu0
      %v1606 = vadd.f32 0.0, %v1605
      %v1607 = vpop.f32.mrf.mxu0
      %1608 = vmatprep.mubr.f32.mxu0 0.0
      %1609 = vmatmul.mubr.f32.gmra.mxu0 %v1478
      %v1610 = vpop.f32.mrf.mxu0
      %v1611 = vadd.f32 0.0, %v1610
      %v1612 = vpop.f32.mrf.mxu0
      %1613 = vmatprep.mubr.f32.mxu0 0.0
      %1614 = vmatmul.mubr.f32.gmra.mxu0 %v1480
      %v1615 = vpop.f32.mrf.mxu0
      %v1616 = vadd.f32 0.0, %v1615
      %v1617 = vpop.f32.mrf.mxu0
      %1618 = vdwg.mxu0
      %v1619 = vmul.f32 %v978, 0.35355338
      %v1620 = vmul.f32 %v983, 0.35355338
      %v1621 = vmul.f32 %v988, 0.35355338
      %v1622 = vmul.f32 %v993, 0.35355338
      %v1623 = vmul.f32 %v998, 0.35355338
      %v1624 = vmul.f32 %v1003, 0.35355338
      %v1625 = vmul.f32 %v1008, 0.35355338
      %v1626 = vmul.f32 %v1013, 0.35355338
      %v1627 = vmul.f32 %v1179, 0.35355338
      %v1628 = vmul.f32 %v1184, 0.35355338
      %v1629 = vmul.f32 %v1189, 0.35355338
      %v1630 = vmul.f32 %v1194, 0.35355338
      %v1631 = vmul.f32 %v1199, 0.35355338
      %v1632 = vmul.f32 %v1204, 0.35355338
      %v1633 = vmul.f32 %v1209, 0.35355338
      %v1634 = vmul.f32 %v1214, 0.35355338
      %v1635 = vmul.f32 %v1380, 0.35355338
      %v1636 = vmul.f32 %v1385, 0.35355338
      %v1637 = vmul.f32 %v1390, 0.35355338
      %v1638 = vmul.f32 %v1395, 0.35355338
      %v1639 = vmul.f32 %v1400, 0.35355338
      %v1640 = vmul.f32 %v1405, 0.35355338
      %v1641 = vmul.f32 %v1410, 0.35355338
      %v1642 = vmul.f32 %v1415, 0.35355338
      %v1643 = vmul.f32 %v1581, 0.35355338
      %v1644 = vmul.f32 %v1586, 0.35355338
      %v1645 = vmul.f32 %v1591, 0.35355338
      %v1646 = vmul.f32 %v1596, 0.35355338
      %v1647 = vmul.f32 %v1601, 0.35355338
      %v1648 = vmul.f32 %v1606, 0.35355338
      %v1649 = vmul.f32 %v1611, 0.35355338
      %v1650 = vmul.f32 %v1616, 0.35355338
      %vm1651 = vcmp.gt.f32.partialorder %v538, 0.0
      %vm1652 = vcmp.gt.f32.partialorder %v539, 0.0
      %vm1653 = vcmp.gt.f32.partialorder %v540, 0.0
      %vm1654 = vcmp.gt.f32.partialorder %v541, 0.0
      %vm1655 = vcmp.gt.f32.partialorder %v542, 0.0
      %vm1656 = vcmp.gt.f32.partialorder %v543, 0.0
      %vm1657 = vcmp.gt.f32.partialorder %v544, 0.0
      %vm1658 = vcmp.gt.f32.partialorder %v545, 0.0
      %v1659 = vsel %vm1651, %v1619, -1e+30
      %v1660 = vsel %vm1652, %v1620, -1e+30
      %v1661 = vsel %vm1653, %v1621, -1e+30
      %v1662 = vsel %vm1654, %v1622, -1e+30
      %v1663 = vsel %vm1655, %v1623, -1e+30
      %v1664 = vsel %vm1656, %v1624, -1e+30
      %v1665 = vsel %vm1657, %v1625, -1e+30
      %v1666 = vsel %vm1658, %v1626, -1e+30
      %v1667 = vsel %vm1651, %v1627, -1e+30
      %v1668 = vsel %vm1652, %v1628, -1e+30
      %v1669 = vsel %vm1653, %v1629, -1e+30
      %v1670 = vsel %vm1654, %v1630, -1e+30
      %v1671 = vsel %vm1655, %v1631, -1e+30
      %v1672 = vsel %vm1656, %v1632, -1e+30
      %v1673 = vsel %vm1657, %v1633, -1e+30
      %v1674 = vsel %vm1658, %v1634, -1e+30
      %v1675 = vsel %vm1651, %v1635, -1e+30
      %v1676 = vsel %vm1652, %v1636, -1e+30
      %v1677 = vsel %vm1653, %v1637, -1e+30
      %v1678 = vsel %vm1654, %v1638, -1e+30
      %v1679 = vsel %vm1655, %v1639, -1e+30
      %v1680 = vsel %vm1656, %v1640, -1e+30
      %v1681 = vsel %vm1657, %v1641, -1e+30
      %v1682 = vsel %vm1658, %v1642, -1e+30
      %v1683 = vsel %vm1651, %v1643, -1e+30
      %v1684 = vsel %vm1652, %v1644, -1e+30
      %v1685 = vsel %vm1653, %v1645, -1e+30
      %v1686 = vsel %vm1654, %v1646, -1e+30
      %v1687 = vsel %vm1655, %v1647, -1e+30
      %v1688 = vsel %vm1656, %v1648, -1e+30
      %v1689 = vsel %vm1657, %v1649, -1e+30
      %v1690 = vsel %vm1658, %v1650, -1e+30
      %1691 = vmax.xlane.f32.xlu0 %v1659
      %v1692 = vpop.xlane.xlu0 %1691
      %1693 = vmax.xlane.f32.xlu0 %v1660
      %v1694 = vpop.xlane.xlu0 %1693
      %1695 = vmax.xlane.f32.xlu0 %v1661
      %v1696 = vpop.xlane.xlu0 %1695
      %1697 = vmax.xlane.f32.xlu0 %v1662
      %v1698 = vpop.xlane.xlu0 %1697
      %1699 = vmax.xlane.f32.xlu0 %v1663
      %v1700 = vpop.xlane.xlu0 %1699
      %1701 = vmax.xlane.f32.xlu0 %v1664
      %v1702 = vpop.xlane.xlu0 %1701
      %1703 = vmax.xlane.f32.xlu0 %v1665
      %v1704 = vpop.xlane.xlu0 %1703
      %1705 = vmax.xlane.f32.xlu0 %v1666
      %v1706 = vpop.xlane.xlu0 %1705
      %1707 = vmax.xlane.f32.xlu0 %v1667
      %v1708 = vpop.xlane.xlu0 %1707
      %1709 = vmax.xlane.f32.xlu0 %v1668
      %v1710 = vpop.xlane.xlu0 %1709
      %1711 = vmax.xlane.f32.xlu0 %v1669
      %v1712 = vpop.xlane.xlu0 %1711
      %1713 = vmax.xlane.f32.xlu0 %v1670
      %v1714 = vpop.xlane.xlu0 %1713
      %1715 = vmax.xlane.f32.xlu0 %v1671
      %v1716 = vpop.xlane.xlu0 %1715
      %1717 = vmax.xlane.f32.xlu0 %v1672
      %v1718 = vpop.xlane.xlu0 %1717
      %1719 = vmax.xlane.f32.xlu0 %v1673
      %v1720 = vpop.xlane.xlu0 %1719
      %1721 = vmax.xlane.f32.xlu0 %v1674
      %v1722 = vpop.xlane.xlu0 %1721
      %1723 = vmax.xlane.f32.xlu0 %v1675
      %v1724 = vpop.xlane.xlu0 %1723
      %1725 = vmax.xlane.f32.xlu0 %v1676
      %v1726 = vpop.xlane.xlu0 %1725
      %1727 = vmax.xlane.f32.xlu0 %v1677
      %v1728 = vpop.xlane.xlu0 %1727
      %1729 = vmax.xlane.f32.xlu0 %v1678
      %v1730 = vpop.xlane.xlu0 %1729
      %1731 = vmax.xlane.f32.xlu0 %v1679
      %v1732 = vpop.xlane.xlu0 %1731
      %1733 = vmax.xlane.f32.xlu0 %v1680
      %v1734 = vpop.xlane.xlu0 %1733
      %1735 = vmax.xlane.f32.xlu0 %v1681
      %v1736 = vpop.xlane.xlu0 %1735
      %1737 = vmax.xlane.f32.xlu0 %v1682
      %v1738 = vpop.xlane.xlu0 %1737
      %1739 = vmax.xlane.f32.xlu0 %v1683
      %v1740 = vpop.xlane.xlu0 %1739
      %1741 = vmax.xlane.f32.xlu0 %v1684
      %v1742 = vpop.xlane.xlu0 %1741
      %1743 = vmax.xlane.f32.xlu0 %v1685
      %v1744 = vpop.xlane.xlu0 %1743
      %1745 = vmax.xlane.f32.xlu0 %v1686
      %v1746 = vpop.xlane.xlu0 %1745
      %1747 = vmax.xlane.f32.xlu0 %v1687
      %v1748 = vpop.xlane.xlu0 %1747
      %1749 = vmax.xlane.f32.xlu0 %v1688
      %v1750 = vpop.xlane.xlu0 %1749
      %1751 = vmax.xlane.f32.xlu0 %v1689
      %v1752 = vpop.xlane.xlu0 %1751
      %1753 = vmax.xlane.f32.xlu0 %v1690
      %v1754 = vpop.xlane.xlu0 %1753
      %v1755 = vsub.f32 %v1659, %v1692
      %v1756 = vsub.f32 %v1660, %v1694
      %v1757 = vsub.f32 %v1661, %v1696
      %v1758 = vsub.f32 %v1662, %v1698
      %v1759 = vsub.f32 %v1663, %v1700
      %v1760 = vsub.f32 %v1664, %v1702
      %v1761 = vsub.f32 %v1665, %v1704
      %v1762 = vsub.f32 %v1666, %v1706
      %v1763 = vsub.f32 %v1667, %v1708
      %v1764 = vsub.f32 %v1668, %v1710
      %v1765 = vsub.f32 %v1669, %v1712
      %v1766 = vsub.f32 %v1670, %v1714
      %v1767 = vsub.f32 %v1671, %v1716
      %v1768 = vsub.f32 %v1672, %v1718
      %v1769 = vsub.f32 %v1673, %v1720
      %v1770 = vsub.f32 %v1674, %v1722
      %v1771 = vsub.f32 %v1675, %v1724
      %v1772 = vsub.f32 %v1676, %v1726
      %v1773 = vsub.f32 %v1677, %v1728
      %v1774 = vsub.f32 %v1678, %v1730
      %v1775 = vsub.f32 %v1679, %v1732
      %v1776 = vsub.f32 %v1680, %v1734
      %v1777 = vsub.f32 %v1681, %v1736
      %v1778 = vsub.f32 %v1682, %v1738
      %v1779 = vsub.f32 %v1683, %v1740
      %v1780 = vsub.f32 %v1684, %v1742
      %v1781 = vsub.f32 %v1685, %v1744
      %v1782 = vsub.f32 %v1686, %v1746
      %v1783 = vsub.f32 %v1687, %v1748
      %v1784 = vsub.f32 %v1688, %v1750
      %v1785 = vsub.f32 %v1689, %v1752
      %v1786 = vsub.f32 %v1690, %v1754
      %v1787 = vmul.f32 %v1755, 1.442695
      %v1788 = vpow.pop %v1787
      %v1789 = vmul.f32 %v1756, 1.442695
      %v1790 = vpow.pop %v1789
      %v1791 = vmul.f32 %v1757, 1.442695
      %v1792 = vpow.pop %v1791
      %v1793 = vmul.f32 %v1758, 1.442695
      %v1794 = vpow.pop %v1793
      %v1795 = vmul.f32 %v1759, 1.442695
      %v1796 = vpow.pop %v1795
      %v1797 = vmul.f32 %v1760, 1.442695
      %v1798 = vpow.pop %v1797
      %v1799 = vmul.f32 %v1761, 1.442695
      %v1800 = vpow.pop %v1799
      %v1801 = vmul.f32 %v1762, 1.442695
      %v1802 = vpow.pop %v1801
      %v1803 = vmul.f32 %v1763, 1.442695
      %v1804 = vpow.pop %v1803
      %v1805 = vmul.f32 %v1764, 1.442695
      %v1806 = vpow.pop %v1805
      %v1807 = vmul.f32 %v1765, 1.442695
      %v1808 = vpow.pop %v1807
      %v1809 = vmul.f32 %v1766, 1.442695
      %v1810 = vpow.pop %v1809
      %v1811 = vmul.f32 %v1767, 1.442695
      %v1812 = vpow.pop %v1811
      %v1813 = vmul.f32 %v1768, 1.442695
      %v1814 = vpow.pop %v1813
      %v1815 = vmul.f32 %v1769, 1.442695
      %v1816 = vpow.pop %v1815
      %v1817 = vmul.f32 %v1770, 1.442695
      %v1818 = vpow.pop %v1817
      %v1819 = vmul.f32 %v1771, 1.442695
      %v1820 = vpow.pop %v1819
      %v1821 = vmul.f32 %v1772, 1.442695
      %v1822 = vpow.pop %v1821
      %v1823 = vmul.f32 %v1773, 1.442695
      %v1824 = vpow.pop %v1823
      %v1825 = vmul.f32 %v1774, 1.442695
      %v1826 = vpow.pop %v1825
      %v1827 = vmul.f32 %v1775, 1.442695
      %v1828 = vpow.pop %v1827
      %v1829 = vmul.f32 %v1776, 1.442695
      %v1830 = vpow.pop %v1829
      %v1831 = vmul.f32 %v1777, 1.442695
      %v1832 = vpow.pop %v1831
      %v1833 = vmul.f32 %v1778, 1.442695
      %v1834 = vpow.pop %v1833
      %v1835 = vmul.f32 %v1779, 1.442695
      %v1836 = vpow.pop %v1835
      %v1837 = vmul.f32 %v1780, 1.442695
      %v1838 = vpow.pop %v1837
      %v1839 = vmul.f32 %v1781, 1.442695
      %v1840 = vpow.pop %v1839
      %v1841 = vmul.f32 %v1782, 1.442695
      %v1842 = vpow.pop %v1841
      %v1843 = vmul.f32 %v1783, 1.442695
      %v1844 = vpow.pop %v1843
      %v1845 = vmul.f32 %v1784, 1.442695
      %v1846 = vpow.pop %v1845
      %v1847 = vmul.f32 %v1785, 1.442695
      %v1848 = vpow.pop %v1847
      %v1849 = vmul.f32 %v1786, 1.442695
      %v1850 = vpow.pop %v1849
      %v1851 = vmul.f32 %v538, %v1788
      %v1852 = vmul.f32 %v539, %v1790
      %v1853 = vmul.f32 %v540, %v1792
      %v1854 = vmul.f32 %v541, %v1794
      %v1855 = vmul.f32 %v542, %v1796
      %v1856 = vmul.f32 %v543, %v1798
      %v1857 = vmul.f32 %v544, %v1800
      %v1858 = vmul.f32 %v545, %v1802
      %v1859 = vmul.f32 %v538, %v1804
      %v1860 = vmul.f32 %v539, %v1806
      %v1861 = vmul.f32 %v540, %v1808
      %v1862 = vmul.f32 %v541, %v1810
      %v1863 = vmul.f32 %v542, %v1812
      %v1864 = vmul.f32 %v543, %v1814
      %v1865 = vmul.f32 %v544, %v1816
      %v1866 = vmul.f32 %v545, %v1818
      %v1867 = vmul.f32 %v538, %v1820
      %v1868 = vmul.f32 %v539, %v1822
      %v1869 = vmul.f32 %v540, %v1824
      %v1870 = vmul.f32 %v541, %v1826
      %v1871 = vmul.f32 %v542, %v1828
      %v1872 = vmul.f32 %v543, %v1830
      %v1873 = vmul.f32 %v544, %v1832
      %v1874 = vmul.f32 %v545, %v1834
      %v1875 = vmul.f32 %v538, %v1836
      %v1876 = vmul.f32 %v539, %v1838
      %v1877 = vmul.f32 %v540, %v1840
      %v1878 = vmul.f32 %v541, %v1842
      %v1879 = vmul.f32 %v542, %v1844
      %v1880 = vmul.f32 %v543, %v1846
      %v1881 = vmul.f32 %v544, %v1848
      %v1882 = vmul.f32 %v545, %v1850
      %1883 = vadd.xlane.f32.xlu0 %v1851
      %v1884 = vpop.xlane.xlu0 %1883
      %1885 = vadd.xlane.f32.xlu0 %v1852
      %v1886 = vpop.xlane.xlu0 %1885
      %1887 = vadd.xlane.f32.xlu0 %v1853
      %v1888 = vpop.xlane.xlu0 %1887
      %1889 = vadd.xlane.f32.xlu0 %v1854
      %v1890 = vpop.xlane.xlu0 %1889
      %1891 = vadd.xlane.f32.xlu0 %v1855
      %v1892 = vpop.xlane.xlu0 %1891
      %1893 = vadd.xlane.f32.xlu0 %v1856
      %v1894 = vpop.xlane.xlu0 %1893
      %1895 = vadd.xlane.f32.xlu0 %v1857
      %v1896 = vpop.xlane.xlu0 %1895
      %1897 = vadd.xlane.f32.xlu0 %v1858
      %v1898 = vpop.xlane.xlu0 %1897
      %1899 = vadd.xlane.f32.xlu0 %v1859
      %v1900 = vpop.xlane.xlu0 %1899
      %1901 = vadd.xlane.f32.xlu0 %v1860
      %v1902 = vpop.xlane.xlu0 %1901
      %1903 = vadd.xlane.f32.xlu0 %v1861
      %v1904 = vpop.xlane.xlu0 %1903
      %1905 = vadd.xlane.f32.xlu0 %v1862
      %v1906 = vpop.xlane.xlu0 %1905
      %1907 = vadd.xlane.f32.xlu0 %v1863
      %v1908 = vpop.xlane.xlu0 %1907
      %1909 = vadd.xlane.f32.xlu0 %v1864
      %v1910 = vpop.xlane.xlu0 %1909
      %1911 = vadd.xlane.f32.xlu0 %v1865
      %v1912 = vpop.xlane.xlu0 %1911
      %1913 = vadd.xlane.f32.xlu0 %v1866
      %v1914 = vpop.xlane.xlu0 %1913
      %1915 = vadd.xlane.f32.xlu0 %v1867
      %v1916 = vpop.xlane.xlu0 %1915
      %1917 = vadd.xlane.f32.xlu0 %v1868
      %v1918 = vpop.xlane.xlu0 %1917
      %1919 = vadd.xlane.f32.xlu0 %v1869
      %v1920 = vpop.xlane.xlu0 %1919
      %1921 = vadd.xlane.f32.xlu0 %v1870
      %v1922 = vpop.xlane.xlu0 %1921
      %1923 = vadd.xlane.f32.xlu0 %v1871
      %v1924 = vpop.xlane.xlu0 %1923
      %1925 = vadd.xlane.f32.xlu0 %v1872
      %v1926 = vpop.xlane.xlu0 %1925
      %1927 = vadd.xlane.f32.xlu0 %v1873
      %v1928 = vpop.xlane.xlu0 %1927
      %1929 = vadd.xlane.f32.xlu0 %v1874
      %v1930 = vpop.xlane.xlu0 %1929
      %1931 = vadd.xlane.f32.xlu0 %v1875
      %v1932 = vpop.xlane.xlu0 %1931
      %1933 = vadd.xlane.f32.xlu0 %v1876
      %v1934 = vpop.xlane.xlu0 %1933
      %1935 = vadd.xlane.f32.xlu0 %v1877
      %v1936 = vpop.xlane.xlu0 %1935
      %1937 = vadd.xlane.f32.xlu0 %v1878
      %v1938 = vpop.xlane.xlu0 %1937
      %1939 = vadd.xlane.f32.xlu0 %v1879
      %v1940 = vpop.xlane.xlu0 %1939
      %1941 = vadd.xlane.f32.xlu0 %v1880
      %v1942 = vpop.xlane.xlu0 %1941
      %1943 = vadd.xlane.f32.xlu0 %v1881
      %v1944 = vpop.xlane.xlu0 %1943
      %1945 = vadd.xlane.f32.xlu0 %v1882
      %v1946 = vpop.xlane.xlu0 %1945
      %vm1947 = vcmp.gt.f32.partialorder %v1884, 0.0
      %vm1948 = vcmp.gt.f32.partialorder %v1886, 0.0
      %vm1949 = vcmp.gt.f32.partialorder %v1888, 0.0
      %vm1950 = vcmp.gt.f32.partialorder %v1890, 0.0
      %vm1951 = vcmp.gt.f32.partialorder %v1892, 0.0
      %vm1952 = vcmp.gt.f32.partialorder %v1894, 0.0
      %vm1953 = vcmp.gt.f32.partialorder %v1896, 0.0
      %vm1954 = vcmp.gt.f32.partialorder %v1898, 0.0
      %vm1955 = vcmp.gt.f32.partialorder %v1900, 0.0
      %vm1956 = vcmp.gt.f32.partialorder %v1902, 0.0
      %vm1957 = vcmp.gt.f32.partialorder %v1904, 0.0
      %vm1958 = vcmp.gt.f32.partialorder %v1906, 0.0
      %vm1959 = vcmp.gt.f32.partialorder %v1908, 0.0
      %vm1960 = vcmp.gt.f32.partialorder %v1910, 0.0
      %vm1961 = vcmp.gt.f32.partialorder %v1912, 0.0
      %vm1962 = vcmp.gt.f32.partialorder %v1914, 0.0
      %vm1963 = vcmp.gt.f32.partialorder %v1916, 0.0
      %vm1964 = vcmp.gt.f32.partialorder %v1918, 0.0
      %vm1965 = vcmp.gt.f32.partialorder %v1920, 0.0
      %vm1966 = vcmp.gt.f32.partialorder %v1922, 0.0
      %vm1967 = vcmp.gt.f32.partialorder %v1924, 0.0
      %vm1968 = vcmp.gt.f32.partialorder %v1926, 0.0
      %vm1969 = vcmp.gt.f32.partialorder %v1928, 0.0
      %vm1970 = vcmp.gt.f32.partialorder %v1930, 0.0
      %vm1971 = vcmp.gt.f32.partialorder %v1932, 0.0
      %vm1972 = vcmp.gt.f32.partialorder %v1934, 0.0
      %vm1973 = vcmp.gt.f32.partialorder %v1936, 0.0
      %vm1974 = vcmp.gt.f32.partialorder %v1938, 0.0
      %vm1975 = vcmp.gt.f32.partialorder %v1940, 0.0
      %vm1976 = vcmp.gt.f32.partialorder %v1942, 0.0
      %vm1977 = vcmp.gt.f32.partialorder %v1944, 0.0
      %vm1978 = vcmp.gt.f32.partialorder %v1946, 0.0
      %v1979 = vsel %vm1947, %v1884, 1.0
      %v1980 = vsel %vm1948, %v1886, 1.0
      %v1981 = vsel %vm1949, %v1888, 1.0
      %v1982 = vsel %vm1950, %v1890, 1.0
      %v1983 = vsel %vm1951, %v1892, 1.0
      %v1984 = vsel %vm1952, %v1894, 1.0
      %v1985 = vsel %vm1953, %v1896, 1.0
      %v1986 = vsel %vm1954, %v1898, 1.0
      %v1987 = vsel %vm1955, %v1900, 1.0
      %v1988 = vsel %vm1956, %v1902, 1.0
      %v1989 = vsel %vm1957, %v1904, 1.0
      %v1990 = vsel %vm1958, %v1906, 1.0
      %v1991 = vsel %vm1959, %v1908, 1.0
      %v1992 = vsel %vm1960, %v1910, 1.0
      %v1993 = vsel %vm1961, %v1912, 1.0
      %v1994 = vsel %vm1962, %v1914, 1.0
      %v1995 = vsel %vm1963, %v1916, 1.0
      %v1996 = vsel %vm1964, %v1918, 1.0
      %v1997 = vsel %vm1965, %v1920, 1.0
      %v1998 = vsel %vm1966, %v1922, 1.0
      %v1999 = vsel %vm1967, %v1924, 1.0
      %v2000 = vsel %vm1968, %v1926, 1.0
      %v2001 = vsel %vm1969, %v1928, 1.0
      %v2002 = vsel %vm1970, %v1930, 1.0
      %v2003 = vsel %vm1971, %v1932, 1.0
      %v2004 = vsel %vm1972, %v1934, 1.0
      %v2005 = vsel %vm1973, %v1936, 1.0
      %v2006 = vsel %vm1974, %v1938, 1.0
      %v2007 = vsel %vm1975, %v1940, 1.0
      %v2008 = vsel %vm1976, %v1942, 1.0
      %v2009 = vsel %vm1977, %v1944, 1.0
      %v2010 = vsel %vm1978, %v1946, 1.0
      %v2011 = vrcp.pop %v1979
      %v2012 = vrcp.pop %v1980
      %v2013 = vrcp.pop %v1981
      %v2014 = vrcp.pop %v1982
      %v2015 = vrcp.pop %v1983
      %v2016 = vrcp.pop %v1984
      %v2017 = vrcp.pop %v1985
      %v2018 = vrcp.pop %v1986
      %v2019 = vrcp.pop %v1987
      %v2020 = vrcp.pop %v1988
      %v2021 = vrcp.pop %v1989
      %v2022 = vrcp.pop %v1990
      %v2023 = vrcp.pop %v1991
      %v2024 = vrcp.pop %v1992
      %v2025 = vrcp.pop %v1993
      %v2026 = vrcp.pop %v1994
      %v2027 = vrcp.pop %v1995
      %v2028 = vrcp.pop %v1996
      %v2029 = vrcp.pop %v1997
      %v2030 = vrcp.pop %v1998
      %v2031 = vrcp.pop %v1999
      %v2032 = vrcp.pop %v2000
      %v2033 = vrcp.pop %v2001
      %v2034 = vrcp.pop %v2002
      %v2035 = vrcp.pop %v2003
      %v2036 = vrcp.pop %v2004
      %v2037 = vrcp.pop %v2005
      %v2038 = vrcp.pop %v2006
      %v2039 = vrcp.pop %v2007
      %v2040 = vrcp.pop %v2008
      %v2041 = vrcp.pop %v2009
      %v2042 = vrcp.pop %v2010
      %v2043 = vmul.f32 %v1851, %v2011
      %v2044 = vmul.f32 %v1852, %v2012
      %v2045 = vmul.f32 %v1853, %v2013
      %v2046 = vmul.f32 %v1854, %v2014
      %v2047 = vmul.f32 %v1855, %v2015
      %v2048 = vmul.f32 %v1856, %v2016
      %v2049 = vmul.f32 %v1857, %v2017
      %v2050 = vmul.f32 %v1858, %v2018
      %v2051 = vmul.f32 %v1859, %v2019
      %v2052 = vmul.f32 %v1860, %v2020
      %v2053 = vmul.f32 %v1861, %v2021
      %v2054 = vmul.f32 %v1862, %v2022
      %v2055 = vmul.f32 %v1863, %v2023
      %v2056 = vmul.f32 %v1864, %v2024
      %v2057 = vmul.f32 %v1865, %v2025
      %v2058 = vmul.f32 %v1866, %v2026
      %v2059 = vmul.f32 %v1867, %v2027
      %v2060 = vmul.f32 %v1868, %v2028
      %v2061 = vmul.f32 %v1869, %v2029
      %v2062 = vmul.f32 %v1870, %v2030
      %v2063 = vmul.f32 %v1871, %v2031
      %v2064 = vmul.f32 %v1872, %v2032
      %v2065 = vmul.f32 %v1873, %v2033
      %v2066 = vmul.f32 %v1874, %v2034
      %v2067 = vmul.f32 %v1875, %v2035
      %v2068 = vmul.f32 %v1876, %v2036
      %v2069 = vmul.f32 %v1877, %v2037
      %v2070 = vmul.f32 %v1878, %v2038
      %v2071 = vmul.f32 %v1879, %v2039
      %v2072 = vmul.f32 %v1880, %v2040
      %v2073 = vmul.f32 %v1881, %v2041
      %v2074 = vmul.f32 %v1882, %v2042
      %v2075 = vld [vmem:[%s3] sm:$0xff]
      %v2076 = vld [vmem:[%s3 + $0x8] sm:$0xff]
      %v2077 = vld [vmem:[%s3 + $0x10] sm:$0xff]
      %v2078 = vld [vmem:[%s3 + $0x18] sm:$0xff]
      %v2079 = vld [vmem:[%s3 + $0x20] sm:$0xff]
      %v2080 = vld [vmem:[%s3 + $0x28] sm:$0xff]
      %v2081 = vld [vmem:[%s3 + $0x30] sm:$0xff]
      %v2082 = vld [vmem:[%s3 + $0x38] sm:$0xff]
      %v2083 = vld [vmem:[%s3 + $0x40] sm:$0xff]
      %v2084 = vld [vmem:[%s3 + $0x48] sm:$0xff]
      %v2085 = vld [vmem:[%s3 + $0x50] sm:$0xff]
      %v2086 = vld [vmem:[%s3 + $0x58] sm:$0xff]
      %v2087 = vld [vmem:[%s3 + $0x60] sm:$0xff]
      %v2088 = vld [vmem:[%s3 + $0x68] sm:$0xff]
      %v2089 = vld [vmem:[%s3 + $0x70] sm:$0xff]
      %v2090 = vld [vmem:[%s3 + $0x78] sm:$0xff]
      %v2091 = vld [vmem:[%s3 + $0x80] sm:$0xff]
      %v2092 = vld [vmem:[%s3 + $0x88] sm:$0xff]
      %v2093 = vld [vmem:[%s3 + $0x90] sm:$0xff]
      %v2094 = vld [vmem:[%s3 + $0x98] sm:$0xff]
      %v2095 = vld [vmem:[%s3 + $0xa0] sm:$0xff]
      %v2096 = vld [vmem:[%s3 + $0xa8] sm:$0xff]
      %v2097 = vld [vmem:[%s3 + $0xb0] sm:$0xff]
      %v2098 = vld [vmem:[%s3 + $0xb8] sm:$0xff]
      %v2099 = vld [vmem:[%s3 + $0xc0] sm:$0xff]
      %v2100 = vld [vmem:[%s3 + $0xc8] sm:$0xff]
      %v2101 = vld [vmem:[%s3 + $0xd0] sm:$0xff]
      %v2102 = vld [vmem:[%s3 + $0xd8] sm:$0xff]
      %v2103 = vld [vmem:[%s3 + $0xe0] sm:$0xff]
      %v2104 = vld [vmem:[%s3 + $0xe8] sm:$0xff]
      %v2105 = vld [vmem:[%s3 + $0xf0] sm:$0xff]
      %v2106 = vld [vmem:[%s3 + $0xf8] sm:$0xff]
      %2107 = vmatprep.subr.mxu0 0.0
      %2108 = vmatpush1.msra.mxu0 %v2106
      %2109 = vmatprep.subr.mxu0 0.0
      %2110 = vmatpush1.msra.mxu0 %v2105
      %2111 = vmatprep.subr.mxu0 0.0
      %2112 = vmatpush1.msra.mxu0 %v2104
      %2113 = vmatprep.subr.mxu0 0.0
      %2114 = vmatpush1.msra.mxu0 %v2103
      %2115 = vmatprep.subr.mxu0 0.0
      %2116 = vmatpush1.msra.mxu0 %v2102
      %2117 = vmatprep.subr.mxu0 0.0
      %2118 = vmatpush1.msra.mxu0 %v2101
      %2119 = vmatprep.subr.mxu0 0.0
      %2120 = vmatpush1.msra.mxu0 %v2100
      %2121 = vmatprep.subr.mxu0 0.0
      %2122 = vmatpush1.msra.mxu0 %v2099
      %2123 = vmatprep.subr.mxu0 0.0
      %2124 = vmatpush1.msra.mxu0 %v2098
      %2125 = vmatprep.subr.mxu0 0.0
      %2126 = vmatpush1.msra.mxu0 %v2097
      %2127 = vmatprep.subr.mxu0 0.0
      %2128 = vmatpush1.msra.mxu0 %v2096
      %2129 = vmatprep.subr.mxu0 0.0
      %2130 = vmatpush1.msra.mxu0 %v2095
      %2131 = vmatprep.subr.mxu0 0.0
      %2132 = vmatpush1.msra.mxu0 %v2094
      %2133 = vmatprep.subr.mxu0 0.0
      %2134 = vmatpush1.msra.mxu0 %v2093
      %2135 = vmatprep.subr.mxu0 0.0
      %2136 = vmatpush1.msra.mxu0 %v2092
      %2137 = vmatprep.subr.mxu0 0.0
      %2138 = vmatpush1.msra.mxu0 %v2091
      %2139 = vmatprep.subr.mxu0 0.0
      %2140 = vmatpush2.msra.mxu0 0.0
      %2141 = vmatprep.subr.mxu0 0.0
      %2142 = vmatpush2.msra.mxu0 0.0
      %2143 = vmatprep.subr.mxu0 0.0
      %2144 = vmatpush2.msra.mxu0 0.0
      %2145 = vmatprep.subr.mxu0 0.0
      %2146 = vmatpush2.msra.mxu0 0.0
      %2147 = vmatprep.subr.mxu0 0.0
      %2148 = vmatpush2.msra.mxu0 0.0
      %2149 = vmatprep.subr.mxu0 0.0
      %2150 = vmatpush2.msra.mxu0 0.0
      %2151 = vmatprep.subr.mxu0 0.0
      %2152 = vmatpush2.msra.mxu0 0.0
      %2153 = vmatprep.subr.mxu0 0.0
      %2154 = vmatpush2.msra.mxu0 0.0
      %2155 = vmatprep.subr.mxu0 0.0
      %2156 = vmatpush2.msra.mxu0 0.0
      %2157 = vmatprep.subr.mxu0 0.0
      %2158 = vmatpush2.msra.mxu0 0.0
      %2159 = vmatprep.subr.mxu0 0.0
      %2160 = vmatpush2.msra.mxu0 0.0
      %2161 = vmatprep.subr.mxu0 0.0
      %2162 = vmatpush2.msra.mxu0 0.0
      %2163 = vmatprep.subr.mxu0 0.0
      %2164 = vmatpush2.msra.mxu0 0.0
      %2165 = vmatprep.subr.mxu0 0.0
      %2166 = vmatpush2.msra.mxu0 0.0
      %2167 = vmatprep.subr.mxu0 0.0
      %2168 = vmatpush2.msra.mxu0 0.0
      %2169 = vmatprep.subr.mxu0 0.0
      %2170 = vmatpush2.msra.mxu0 0.0
      %2171 = vmatprep.mubr.f32.mxu0 0.0
      %2172 = vmatmul.mubr.f32.gmra.mxu0 %v2051
      %v2173 = vpop.f32.mrf.mxu0
      %v2174 = vadd.f32 0.0, %v2173
      %v2175 = vpop.f32.mrf.mxu0
      %2176 = vmatprep.mubr.f32.mxu0 0.0
      %2177 = vmatmul.mubr.f32.gmra.mxu0 %v2052
      %v2178 = vpop.f32.mrf.mxu0
      %v2179 = vadd.f32 0.0, %v2178
      %v2180 = vpop.f32.mrf.mxu0
      %2181 = vmatprep.mubr.f32.mxu0 0.0
      %2182 = vmatmul.mubr.f32.gmra.mxu0 %v2053
      %v2183 = vpop.f32.mrf.mxu0
      %v2184 = vadd.f32 0.0, %v2183
      %v2185 = vpop.f32.mrf.mxu0
      %2186 = vmatprep.mubr.f32.mxu0 0.0
      %2187 = vmatmul.mubr.f32.gmra.mxu0 %v2054
      %v2188 = vpop.f32.mrf.mxu0
      %v2189 = vadd.f32 0.0, %v2188
      %v2190 = vpop.f32.mrf.mxu0
      %2191 = vmatprep.mubr.f32.mxu0 0.0
      %2192 = vmatmul.mubr.f32.gmra.mxu0 %v2055
      %v2193 = vpop.f32.mrf.mxu0
      %v2194 = vadd.f32 0.0, %v2193
      %v2195 = vpop.f32.mrf.mxu0
      %2196 = vmatprep.mubr.f32.mxu0 0.0
      %2197 = vmatmul.mubr.f32.gmra.mxu0 %v2056
      %v2198 = vpop.f32.mrf.mxu0
      %v2199 = vadd.f32 0.0, %v2198
      %v2200 = vpop.f32.mrf.mxu0
      %2201 = vmatprep.mubr.f32.mxu0 0.0
      %2202 = vmatmul.mubr.f32.gmra.mxu0 %v2057
      %v2203 = vpop.f32.mrf.mxu0
      %v2204 = vadd.f32 0.0, %v2203
      %v2205 = vpop.f32.mrf.mxu0
      %2206 = vmatprep.mubr.f32.mxu0 0.0
      %2207 = vmatmul.mubr.f32.gmra.mxu0 %v2058
      %v2208 = vpop.f32.mrf.mxu0
      %v2209 = vadd.f32 0.0, %v2208
      %v2210 = vpop.f32.mrf.mxu0
      %2211 = vdwg.mxu0
      %2212 = vmatprep.subr.mxu0 0.0
      %2213 = vmatpush1.msra.mxu0 %v2090
      %2214 = vmatprep.subr.mxu0 0.0
      %2215 = vmatpush1.msra.mxu0 %v2089
      %2216 = vmatprep.subr.mxu0 0.0
      %2217 = vmatpush1.msra.mxu0 %v2088
      %2218 = vmatprep.subr.mxu0 0.0
      %2219 = vmatpush1.msra.mxu0 %v2087
      %2220 = vmatprep.subr.mxu0 0.0
      %2221 = vmatpush1.msra.mxu0 %v2086
      %2222 = vmatprep.subr.mxu0 0.0
      %2223 = vmatpush1.msra.mxu0 %v2085
      %2224 = vmatprep.subr.mxu0 0.0
      %2225 = vmatpush1.msra.mxu0 %v2084
      %2226 = vmatprep.subr.mxu0 0.0
      %2227 = vmatpush1.msra.mxu0 %v2083
      %2228 = vmatprep.subr.mxu0 0.0
      %2229 = vmatpush1.msra.mxu0 %v2082
      %2230 = vmatprep.subr.mxu0 0.0
      %2231 = vmatpush1.msra.mxu0 %v2081
      %2232 = vmatprep.subr.mxu0 0.0
      %2233 = vmatpush1.msra.mxu0 %v2080
      %2234 = vmatprep.subr.mxu0 0.0
      %2235 = vmatpush1.msra.mxu0 %v2079
      %2236 = vmatprep.subr.mxu0 0.0
      %2237 = vmatpush1.msra.mxu0 %v2078
      %2238 = vmatprep.subr.mxu0 0.0
      %2239 = vmatpush1.msra.mxu0 %v2077
      %2240 = vmatprep.subr.mxu0 0.0
      %2241 = vmatpush1.msra.mxu0 %v2076
      %2242 = vmatprep.subr.mxu0 0.0
      %2243 = vmatpush1.msra.mxu0 %v2075
      %2244 = vmatprep.subr.mxu0 0.0
      %2245 = vmatpush2.msra.mxu0 0.0
      %2246 = vmatprep.subr.mxu0 0.0
      %2247 = vmatpush2.msra.mxu0 0.0
      %2248 = vmatprep.subr.mxu0 0.0
      %2249 = vmatpush2.msra.mxu0 0.0
      %2250 = vmatprep.subr.mxu0 0.0
      %2251 = vmatpush2.msra.mxu0 0.0
      %2252 = vmatprep.subr.mxu0 0.0
      %2253 = vmatpush2.msra.mxu0 0.0
      %2254 = vmatprep.subr.mxu0 0.0
      %2255 = vmatpush2.msra.mxu0 0.0
      %2256 = vmatprep.subr.mxu0 0.0
      %2257 = vmatpush2.msra.mxu0 0.0
      %2258 = vmatprep.subr.mxu0 0.0
      %2259 = vmatpush2.msra.mxu0 0.0
      %2260 = vmatprep.subr.mxu0 0.0
      %2261 = vmatpush2.msra.mxu0 0.0
      %2262 = vmatprep.subr.mxu0 0.0
      %2263 = vmatpush2.msra.mxu0 0.0
      %2264 = vmatprep.subr.mxu0 0.0
      %2265 = vmatpush2.msra.mxu0 0.0
      %2266 = vmatprep.subr.mxu0 0.0
      %2267 = vmatpush2.msra.mxu0 0.0
      %2268 = vmatprep.subr.mxu0 0.0
      %2269 = vmatpush2.msra.mxu0 0.0
      %2270 = vmatprep.subr.mxu0 0.0
      %2271 = vmatpush2.msra.mxu0 0.0
      %2272 = vmatprep.subr.mxu0 0.0
      %2273 = vmatpush2.msra.mxu0 0.0
      %2274 = vmatprep.subr.mxu0 0.0
      %2275 = vmatpush2.msra.mxu0 0.0
      %2276 = vmatprep.mubr.f32.mxu0 0.0
      %2277 = vmatmul.mubr.f32.gmra.mxu0 %v2043
      %v2278 = vpop.f32.mrf.mxu0
      %v2279 = vadd.f32 %v2174, %v2278
      %v2280 = vpop.f32.mrf.mxu0
      %2281 = vmatprep.mubr.f32.mxu0 0.0
      %2282 = vmatmul.mubr.f32.gmra.mxu0 %v2044
      %v2283 = vpop.f32.mrf.mxu0
      %v2284 = vadd.f32 %v2179, %v2283
      %v2285 = vpop.f32.mrf.mxu0
      %2286 = vmatprep.mubr.f32.mxu0 0.0
      %2287 = vmatmul.mubr.f32.gmra.mxu0 %v2045
      %v2288 = vpop.f32.mrf.mxu0
      %v2289 = vadd.f32 %v2184, %v2288
      %v2290 = vpop.f32.mrf.mxu0
      %2291 = vmatprep.mubr.f32.mxu0 0.0
      %2292 = vmatmul.mubr.f32.gmra.mxu0 %v2046
      %v2293 = vpop.f32.mrf.mxu0
      %v2294 = vadd.f32 %v2189, %v2293
      %v2295 = vpop.f32.mrf.mxu0
      %2296 = vmatprep.mubr.f32.mxu0 0.0
      %2297 = vmatmul.mubr.f32.gmra.mxu0 %v2047
      %v2298 = vpop.f32.mrf.mxu0
      %v2299 = vadd.f32 %v2194, %v2298
      %v2300 = vpop.f32.mrf.mxu0
      %2301 = vmatprep.mubr.f32.mxu0 0.0
      %2302 = vmatmul.mubr.f32.gmra.mxu0 %v2048
      %v2303 = vpop.f32.mrf.mxu0
      %v2304 = vadd.f32 %v2199, %v2303
      %v2305 = vpop.f32.mrf.mxu0
      %2306 = vmatprep.mubr.f32.mxu0 0.0
      %2307 = vmatmul.mubr.f32.gmra.mxu0 %v2049
      %v2308 = vpop.f32.mrf.mxu0
      %v2309 = vadd.f32 %v2204, %v2308
      %v2310 = vpop.f32.mrf.mxu0
      %2311 = vmatprep.mubr.f32.mxu0 0.0
      %2312 = vmatmul.mubr.f32.gmra.mxu0 %v2050
      %v2313 = vpop.f32.mrf.mxu0
      %v2314 = vadd.f32 %v2209, %v2313
      %v2315 = vpop.f32.mrf.mxu0
      %2316 = vdwg.mxu0
      %v2317 = vld [vmem:[%s3 + $0x100] sm:$0xff]
      %v2318 = vld [vmem:[%s3 + $0x108] sm:$0xff]
      %v2319 = vld [vmem:[%s3 + $0x110] sm:$0xff]
      %v2320 = vld [vmem:[%s3 + $0x118] sm:$0xff]
      %v2321 = vld [vmem:[%s3 + $0x120] sm:$0xff]
      %v2322 = vld [vmem:[%s3 + $0x128] sm:$0xff]
      %v2323 = vld [vmem:[%s3 + $0x130] sm:$0xff]
      %v2324 = vld [vmem:[%s3 + $0x138] sm:$0xff]
      %v2325 = vld [vmem:[%s3 + $0x140] sm:$0xff]
      %v2326 = vld [vmem:[%s3 + $0x148] sm:$0xff]
      %v2327 = vld [vmem:[%s3 + $0x150] sm:$0xff]
      %v2328 = vld [vmem:[%s3 + $0x158] sm:$0xff]
      %v2329 = vld [vmem:[%s3 + $0x160] sm:$0xff]
      %v2330 = vld [vmem:[%s3 + $0x168] sm:$0xff]
      %v2331 = vld [vmem:[%s3 + $0x170] sm:$0xff]
      %v2332 = vld [vmem:[%s3 + $0x178] sm:$0xff]
      %2333 = vmatprep.subr.mxu0 0.0
      %2334 = vmatpush1.msra.mxu0 %v2332
      %2335 = vmatprep.subr.mxu0 0.0
      %2336 = vmatpush1.msra.mxu0 %v2331
      %2337 = vmatprep.subr.mxu0 0.0
      %2338 = vmatpush1.msra.mxu0 %v2330
      %2339 = vmatprep.subr.mxu0 0.0
      %2340 = vmatpush1.msra.mxu0 %v2329
      %2341 = vmatprep.subr.mxu0 0.0
      %2342 = vmatpush1.msra.mxu0 %v2328
      %2343 = vmatprep.subr.mxu0 0.0
      %2344 = vmatpush1.msra.mxu0 %v2327
      %2345 = vmatprep.subr.mxu0 0.0
      %2346 = vmatpush1.msra.mxu0 %v2326
      %2347 = vmatprep.subr.mxu0 0.0
      %2348 = vmatpush1.msra.mxu0 %v2325
      %2349 = vmatprep.subr.mxu0 0.0
      %2350 = vmatpush1.msra.mxu0 %v2324
      %2351 = vmatprep.subr.mxu0 0.0
      %2352 = vmatpush1.msra.mxu0 %v2323
      %2353 = vmatprep.subr.mxu0 0.0
      %2354 = vmatpush1.msra.mxu0 %v2322
      %2355 = vmatprep.subr.mxu0 0.0
      %2356 = vmatpush1.msra.mxu0 %v2321
      %2357 = vmatprep.subr.mxu0 0.0
      %2358 = vmatpush1.msra.mxu0 %v2320
      %2359 = vmatprep.subr.mxu0 0.0
      %2360 = vmatpush1.msra.mxu0 %v2319
      %2361 = vmatprep.subr.mxu0 0.0
      %2362 = vmatpush1.msra.mxu0 %v2318
      %2363 = vmatprep.subr.mxu0 0.0
      %2364 = vmatpush1.msra.mxu0 %v2317
      %2365 = vmatprep.subr.mxu0 0.0
      %2366 = vmatpush2.msra.mxu0 0.0
      %2367 = vmatprep.subr.mxu0 0.0
      %2368 = vmatpush2.msra.mxu0 0.0
      %2369 = vmatprep.subr.mxu0 0.0
      %2370 = vmatpush2.msra.mxu0 0.0
      %2371 = vmatprep.subr.mxu0 0.0
      %2372 = vmatpush2.msra.mxu0 0.0
      %2373 = vmatprep.subr.mxu0 0.0
      %2374 = vmatpush2.msra.mxu0 0.0
      %2375 = vmatprep.subr.mxu0 0.0
      %2376 = vmatpush2.msra.mxu0 0.0
      %2377 = vmatprep.subr.mxu0 0.0
      %2378 = vmatpush2.msra.mxu0 0.0
      %2379 = vmatprep.subr.mxu0 0.0
      %2380 = vmatpush2.msra.mxu0 0.0
      %2381 = vmatprep.subr.mxu0 0.0
      %2382 = vmatpush2.msra.mxu0 0.0
      %2383 = vmatprep.subr.mxu0 0.0
      %2384 = vmatpush2.msra.mxu0 0.0
      %2385 = vmatprep.subr.mxu0 0.0
      %2386 = vmatpush2.msra.mxu0 0.0
      %2387 = vmatprep.subr.mxu0 0.0
      %2388 = vmatpush2.msra.mxu0 0.0
      %2389 = vmatprep.subr.mxu0 0.0
      %2390 = vmatpush2.msra.mxu0 0.0
      %2391 = vmatprep.subr.mxu0 0.0
      %2392 = vmatpush2.msra.mxu0 0.0
      %2393 = vmatprep.subr.mxu0 0.0
      %2394 = vmatpush2.msra.mxu0 0.0
      %2395 = vmatprep.subr.mxu0 0.0
      %2396 = vmatpush2.msra.mxu0 0.0
      %2397 = vmatprep.mubr.f32.mxu0 0.0
      %2398 = vmatmul.mubr.f32.gmra.mxu0 %v2059
      %v2399 = vpop.f32.mrf.mxu0
      %v2400 = vadd.f32 0.0, %v2399
      %v2401 = vpop.f32.mrf.mxu0
      %2402 = vmatprep.mubr.f32.mxu0 0.0
      %2403 = vmatmul.mubr.f32.gmra.mxu0 %v2060
      %v2404 = vpop.f32.mrf.mxu0
      %v2405 = vadd.f32 0.0, %v2404
      %v2406 = vpop.f32.mrf.mxu0
      %2407 = vmatprep.mubr.f32.mxu0 0.0
      %2408 = vmatmul.mubr.f32.gmra.mxu0 %v2061
      %v2409 = vpop.f32.mrf.mxu0
      %v2410 = vadd.f32 0.0, %v2409
      %v2411 = vpop.f32.mrf.mxu0
      %2412 = vmatprep.mubr.f32.mxu0 0.0
      %2413 = vmatmul.mubr.f32.gmra.mxu0 %v2062
      %v2414 = vpop.f32.mrf.mxu0
      %v2415 = vadd.f32 0.0, %v2414
      %v2416 = vpop.f32.mrf.mxu0
      %2417 = vmatprep.mubr.f32.mxu0 0.0
      %2418 = vmatmul.mubr.f32.gmra.mxu0 %v2063
      %v2419 = vpop.f32.mrf.mxu0
      %v2420 = vadd.f32 0.0, %v2419
      %v2421 = vpop.f32.mrf.mxu0
      %2422 = vmatprep.mubr.f32.mxu0 0.0
      %2423 = vmatmul.mubr.f32.gmra.mxu0 %v2064
      %v2424 = vpop.f32.mrf.mxu0
      %v2425 = vadd.f32 0.0, %v2424
      %v2426 = vpop.f32.mrf.mxu0
      %2427 = vmatprep.mubr.f32.mxu0 0.0
      %2428 = vmatmul.mubr.f32.gmra.mxu0 %v2065
      %v2429 = vpop.f32.mrf.mxu0
      %v2430 = vadd.f32 0.0, %v2429
      %v2431 = vpop.f32.mrf.mxu0
      %2432 = vmatprep.mubr.f32.mxu0 0.0
      %2433 = vmatmul.mubr.f32.gmra.mxu0 %v2066
      %v2434 = vpop.f32.mrf.mxu0
      %v2435 = vadd.f32 0.0, %v2434
      %v2436 = vpop.f32.mrf.mxu0
      %2437 = vdwg.mxu0
      %v2438 = vadd.f32 %v2279, %v2400
      %v2439 = vadd.f32 %v2284, %v2405
      %v2440 = vadd.f32 %v2289, %v2410
      %v2441 = vadd.f32 %v2294, %v2415
      %v2442 = vadd.f32 %v2299, %v2420
      %v2443 = vadd.f32 %v2304, %v2425
      %v2444 = vadd.f32 %v2309, %v2430
      %v2445 = vadd.f32 %v2314, %v2435
      %v2446 = vld [vmem:[%s3 + $0x180] sm:$0xff]
      %v2447 = vld [vmem:[%s3 + $0x188] sm:$0xff]
      %v2448 = vld [vmem:[%s3 + $0x190] sm:$0xff]
      %v2449 = vld [vmem:[%s3 + $0x198] sm:$0xff]
      %v2450 = vld [vmem:[%s3 + $0x1a0] sm:$0xff]
      %v2451 = vld [vmem:[%s3 + $0x1a8] sm:$0xff]
      %v2452 = vld [vmem:[%s3 + $0x1b0] sm:$0xff]
      %v2453 = vld [vmem:[%s3 + $0x1b8] sm:$0xff]
      %v2454 = vld [vmem:[%s3 + $0x1c0] sm:$0xff]
      %v2455 = vld [vmem:[%s3 + $0x1c8] sm:$0xff]
      %v2456 = vld [vmem:[%s3 + $0x1d0] sm:$0xff]
      %v2457 = vld [vmem:[%s3 + $0x1d8] sm:$0xff]
      %v2458 = vld [vmem:[%s3 + $0x1e0] sm:$0xff]
      %v2459 = vld [vmem:[%s3 + $0x1e8] sm:$0xff]
      %v2460 = vld [vmem:[%s3 + $0x1f0] sm:$0xff]
      %v2461 = vld [vmem:[%s3 + $0x1f8] sm:$0xff]
      %2462 = vmatprep.subr.mxu0 0.0
      %2463 = vmatpush1.msra.mxu0 %v2461
      %2464 = vmatprep.subr.mxu0 0.0
      %2465 = vmatpush1.msra.mxu0 %v2460
      %2466 = vmatprep.subr.mxu0 0.0
      %2467 = vmatpush1.msra.mxu0 %v2459
      %2468 = vmatprep.subr.mxu0 0.0
      %2469 = vmatpush1.msra.mxu0 %v2458
      %2470 = vmatprep.subr.mxu0 0.0
      %2471 = vmatpush1.msra.mxu0 %v2457
      %2472 = vmatprep.subr.mxu0 0.0
      %2473 = vmatpush1.msra.mxu0 %v2456
      %2474 = vmatprep.subr.mxu0 0.0
      %2475 = vmatpush1.msra.mxu0 %v2455
      %2476 = vmatprep.subr.mxu0 0.0
      %2477 = vmatpush1.msra.mxu0 %v2454
      %2478 = vmatprep.subr.mxu0 0.0
      %2479 = vmatpush1.msra.mxu0 %v2453
      %2480 = vmatprep.subr.mxu0 0.0
      %2481 = vmatpush1.msra.mxu0 %v2452
      %2482 = vmatprep.subr.mxu0 0.0
      %2483 = vmatpush1.msra.mxu0 %v2451
      %2484 = vmatprep.subr.mxu0 0.0
      %2485 = vmatpush1.msra.mxu0 %v2450
      %2486 = vmatprep.subr.mxu0 0.0
      %2487 = vmatpush1.msra.mxu0 %v2449
      %2488 = vmatprep.subr.mxu0 0.0
      %2489 = vmatpush1.msra.mxu0 %v2448
      %2490 = vmatprep.subr.mxu0 0.0
      %2491 = vmatpush1.msra.mxu0 %v2447
      %2492 = vmatprep.subr.mxu0 0.0
      %2493 = vmatpush1.msra.mxu0 %v2446
      %2494 = vmatprep.subr.mxu0 0.0
      %2495 = vmatpush2.msra.mxu0 0.0
      %2496 = vmatprep.subr.mxu0 0.0
      %2497 = vmatpush2.msra.mxu0 0.0
      %2498 = vmatprep.subr.mxu0 0.0
      %2499 = vmatpush2.msra.mxu0 0.0
      %2500 = vmatprep.subr.mxu0 0.0
      %2501 = vmatpush2.msra.mxu0 0.0
      %2502 = vmatprep.subr.mxu0 0.0
      %2503 = vmatpush2.msra.mxu0 0.0
      %2504 = vmatprep.subr.mxu0 0.0
      %2505 = vmatpush2.msra.mxu0 0.0
      %2506 = vmatprep.subr.mxu0 0.0
      %2507 = vmatpush2.msra.mxu0 0.0
      %2508 = vmatprep.subr.mxu0 0.0
      %2509 = vmatpush2.msra.mxu0 0.0
      %2510 = vmatprep.subr.mxu0 0.0
      %2511 = vmatpush2.msra.mxu0 0.0
      %2512 = vmatprep.subr.mxu0 0.0
      %2513 = vmatpush2.msra.mxu0 0.0
      %2514 = vmatprep.subr.mxu0 0.0
      %2515 = vmatpush2.msra.mxu0 0.0
      %2516 = vmatprep.subr.mxu0 0.0
      %2517 = vmatpush2.msra.mxu0 0.0
      %2518 = vmatprep.subr.mxu0 0.0
      %2519 = vmatpush2.msra.mxu0 0.0
      %2520 = vmatprep.subr.mxu0 0.0
      %2521 = vmatpush2.msra.mxu0 0.0
      %2522 = vmatprep.subr.mxu0 0.0
      %2523 = vmatpush2.msra.mxu0 0.0
      %2524 = vmatprep.subr.mxu0 0.0
      %2525 = vmatpush2.msra.mxu0 0.0
      %2526 = vmatprep.mubr.f32.mxu0 0.0
      %2527 = vmatmul.mubr.f32.gmra.mxu0 %v2067
      %v2528 = vpop.f32.mrf.mxu0
      %v2529 = vadd.f32 0.0, %v2528
      %v2530 = vpop.f32.mrf.mxu0
      %2531 = vmatprep.mubr.f32.mxu0 0.0
      %2532 = vmatmul.mubr.f32.gmra.mxu0 %v2068
      %v2533 = vpop.f32.mrf.mxu0
      %v2534 = vadd.f32 0.0, %v2533
      %v2535 = vpop.f32.mrf.mxu0
      %2536 = vmatprep.mubr.f32.mxu0 0.0
      %2537 = vmatmul.mubr.f32.gmra.mxu0 %v2069
      %v2538 = vpop.f32.mrf.mxu0
      %v2539 = vadd.f32 0.0, %v2538
      %v2540 = vpop.f32.mrf.mxu0
      %2541 = vmatprep.mubr.f32.mxu0 0.0
      %2542 = vmatmul.mubr.f32.gmra.mxu0 %v2070
      %v2543 = vpop.f32.mrf.mxu0
      %v2544 = vadd.f32 0.0, %v2543
      %v2545 = vpop.f32.mrf.mxu0
      %2546 = vmatprep.mubr.f32.mxu0 0.0
      %2547 = vmatmul.mubr.f32.gmra.mxu0 %v2071
      %v2548 = vpop.f32.mrf.mxu0
      %v2549 = vadd.f32 0.0, %v2548
      %v2550 = vpop.f32.mrf.mxu0
      %2551 = vmatprep.mubr.f32.mxu0 0.0
      %2552 = vmatmul.mubr.f32.gmra.mxu0 %v2072
      %v2553 = vpop.f32.mrf.mxu0
      %v2554 = vadd.f32 0.0, %v2553
      %v2555 = vpop.f32.mrf.mxu0
      %2556 = vmatprep.mubr.f32.mxu0 0.0
      %2557 = vmatmul.mubr.f32.gmra.mxu0 %v2073
      %v2558 = vpop.f32.mrf.mxu0
      %v2559 = vadd.f32 0.0, %v2558
      %v2560 = vpop.f32.mrf.mxu0
      %2561 = vmatprep.mubr.f32.mxu0 0.0
      %2562 = vmatmul.mubr.f32.gmra.mxu0 %v2074
      %v2563 = vpop.f32.mrf.mxu0
      %v2564 = vadd.f32 0.0, %v2563
      %v2565 = vpop.f32.mrf.mxu0
      %2566 = vdwg.mxu0
      %v2567 = vadd.f32 %v2438, %v2529
      %v2568 = vadd.f32 %v2439, %v2534
      %v2569 = vadd.f32 %v2440, %v2539
      %v2570 = vadd.f32 %v2441, %v2544
      %v2571 = vadd.f32 %v2442, %v2549
      %v2572 = vadd.f32 %v2443, %v2554
      %v2573 = vadd.f32 %v2444, %v2559
      %v2574 = vadd.f32 %v2445, %v2564
      %v2575 = vld [vmem:[%s8] sm:$0x1]
      %v2577 = vlaneseq
      %v2578 = vshrl.u32 %v2577, 7
      %v2579 = vsub.s32 0, %v2578
      %v2580 = vrot.slane %v2575, %v2579
      %v2582 = vadd.f32 %v2567, %v2580
      %v2583 = vadd.f32 %v2568, %v2580
      %v2584 = vadd.f32 %v2569, %v2580
      %v2585 = vadd.f32 %v2570, %v2580
      %v2586 = vadd.f32 %v2571, %v2580
      %v2587 = vadd.f32 %v2572, %v2580
      %v2588 = vadd.f32 %v2573, %v2580
      %v2589 = vadd.f32 %v2574, %v2580
      %v2590 = vadd.f32 %v2582, %v520
      %v2591 = vadd.f32 %v2583, %v521
      %v2592 = vadd.f32 %v2584, %v522
      %v2593 = vadd.f32 %v2585, %v523
      %v2594 = vadd.f32 %v2586, %v524
      %v2595 = vadd.f32 %v2587, %v525
      %v2596 = vadd.f32 %v2588, %v526
      %v2597 = vadd.f32 %v2589, %v527
      %v2598 = vld [vmem:[%s13] sm:$0x1]
      %v2599 = vld [vmem:[%s14] sm:$0x1]
      %v2600 = vsel %vm564, %v2590, 0.0
      %2601 = vadd.xlane.f32.xlu0 %v2600
      %v2602 = vpop.xlane.xlu0 %2601
      %v2603 = vsel %vm564, %v2591, 0.0
      %2604 = vadd.xlane.f32.xlu0 %v2603
      %v2605 = vpop.xlane.xlu0 %2604
      %v2606 = vsel %vm564, %v2592, 0.0
      %2607 = vadd.xlane.f32.xlu0 %v2606
      %v2608 = vpop.xlane.xlu0 %2607
      %v2609 = vsel %vm564, %v2593, 0.0
      %2610 = vadd.xlane.f32.xlu0 %v2609
      %v2611 = vpop.xlane.xlu0 %2610
      %v2612 = vsel %vm564, %v2594, 0.0
      %2613 = vadd.xlane.f32.xlu0 %v2612
      %v2614 = vpop.xlane.xlu0 %2613
      %v2615 = vsel %vm564, %v2595, 0.0
      %2616 = vadd.xlane.f32.xlu0 %v2615
      %v2617 = vpop.xlane.xlu0 %2616
      %v2618 = vsel %vm564, %v2596, 0.0
      %2619 = vadd.xlane.f32.xlu0 %v2618
      %v2620 = vpop.xlane.xlu0 %2619
      %v2621 = vsel %vm564, %v2597, 0.0
      %2622 = vadd.xlane.f32.xlu0 %v2621
      %v2623 = vpop.xlane.xlu0 %2622
      %v2624 = vmul.f32 %v2602, %v589
      %v2625 = vmul.f32 %v2605, %v589
      %v2626 = vmul.f32 %v2608, %v589
      %v2627 = vmul.f32 %v2611, %v589
      %v2628 = vmul.f32 %v2614, %v589
      %v2629 = vmul.f32 %v2617, %v589
      %v2630 = vmul.f32 %v2620, %v589
      %v2631 = vmul.f32 %v2623, %v589
      %v2632 = vsub.f32 %v2590, %v2624
      %v2633 = vsub.f32 %v2591, %v2625
      %v2634 = vsub.f32 %v2592, %v2626
      %v2635 = vsub.f32 %v2593, %v2627
      %v2636 = vsub.f32 %v2594, %v2628
      %v2637 = vsub.f32 %v2595, %v2629
      %v2638 = vsub.f32 %v2596, %v2630
      %v2639 = vsub.f32 %v2597, %v2631
      %v2640 = vmul.f32 %v2632, %v2632
      %v2641 = vmul.f32 %v2633, %v2633
      %v2642 = vmul.f32 %v2634, %v2634
      %v2643 = vmul.f32 %v2635, %v2635
      %v2644 = vmul.f32 %v2636, %v2636
      %v2645 = vmul.f32 %v2637, %v2637
      %v2646 = vmul.f32 %v2638, %v2638
      %v2647 = vmul.f32 %v2639, %v2639
      %v2648 = vsel %vm564, %v2640, 0.0
      %2649 = vadd.xlane.f32.xlu0 %v2648
      %v2650 = vpop.xlane.xlu0 %2649
      %v2651 = vsel %vm564, %v2641, 0.0
      %2652 = vadd.xlane.f32.xlu0 %v2651
      %v2653 = vpop.xlane.xlu0 %2652
      %v2654 = vsel %vm564, %v2642, 0.0
      %2655 = vadd.xlane.f32.xlu0 %v2654
      %v2656 = vpop.xlane.xlu0 %2655
      %v2657 = vsel %vm564, %v2643, 0.0
      %2658 = vadd.xlane.f32.xlu0 %v2657
      %v2659 = vpop.xlane.xlu0 %2658
      %v2660 = vsel %vm564, %v2644, 0.0
      %2661 = vadd.xlane.f32.xlu0 %v2660
      %v2662 = vpop.xlane.xlu0 %2661
      %v2663 = vsel %vm564, %v2645, 0.0
      %2664 = vadd.xlane.f32.xlu0 %v2663
      %v2665 = vpop.xlane.xlu0 %2664
      %v2666 = vsel %vm564, %v2646, 0.0
      %2667 = vadd.xlane.f32.xlu0 %v2666
      %v2668 = vpop.xlane.xlu0 %2667
      %v2669 = vsel %vm564, %v2647, 0.0
      %2670 = vadd.xlane.f32.xlu0 %v2669
      %v2671 = vpop.xlane.xlu0 %2670
      %v2672 = vmul.f32 %v2650, %v589
      %v2673 = vmul.f32 %v2653, %v589
      %v2674 = vmul.f32 %v2656, %v589
      %v2675 = vmul.f32 %v2659, %v589
      %v2676 = vmul.f32 %v2662, %v589
      %v2677 = vmul.f32 %v2665, %v589
      %v2678 = vmul.f32 %v2668, %v589
      %v2679 = vmul.f32 %v2671, %v589
      %v2680 = vadd.f32 %v2672, 1e-05
      %v2681 = vadd.f32 %v2673, 1e-05
      %v2682 = vadd.f32 %v2674, 1e-05
      %v2683 = vadd.f32 %v2675, 1e-05
      %v2684 = vadd.f32 %v2676, 1e-05
      %v2685 = vadd.f32 %v2677, 1e-05
      %v2686 = vadd.f32 %v2678, 1e-05
      %v2687 = vadd.f32 %v2679, 1e-05
      %v2688 = vrsqrt.pop %v2680
      %v2689 = vrsqrt.pop %v2681
      %v2690 = vrsqrt.pop %v2682
      %v2691 = vrsqrt.pop %v2683
      %v2692 = vrsqrt.pop %v2684
      %v2693 = vrsqrt.pop %v2685
      %v2694 = vrsqrt.pop %v2686
      %v2695 = vrsqrt.pop %v2687
      %v2696 = vmul.f32 %v2632, %v2688
      %v2697 = vmul.f32 %v2633, %v2689
      %v2698 = vmul.f32 %v2634, %v2690
      %v2699 = vmul.f32 %v2635, %v2691
      %v2700 = vmul.f32 %v2636, %v2692
      %v2701 = vmul.f32 %v2637, %v2693
      %v2702 = vmul.f32 %v2638, %v2694
      %v2703 = vmul.f32 %v2639, %v2695
      %v2705 = vlaneseq
      %v2706 = vshrl.u32 %v2705, 7
      %v2707 = vsub.s32 0, %v2706
      %v2708 = vrot.slane %v2598, %v2707
      %v2710 = vmul.f32 %v2696, %v2708
      %v2711 = vmul.f32 %v2697, %v2708
      %v2712 = vmul.f32 %v2698, %v2708
      %v2713 = vmul.f32 %v2699, %v2708
      %v2714 = vmul.f32 %v2700, %v2708
      %v2715 = vmul.f32 %v2701, %v2708
      %v2716 = vmul.f32 %v2702, %v2708
      %v2717 = vmul.f32 %v2703, %v2708
      %v2719 = vlaneseq
      %v2720 = vshrl.u32 %v2719, 7
      %v2721 = vsub.s32 0, %v2720
      %v2722 = vrot.slane %v2599, %v2721
      %v2724 = vadd.f32 %v2710, %v2722
      %v2725 = vadd.f32 %v2711, %v2722
      %v2726 = vadd.f32 %v2712, %v2722
      %v2727 = vadd.f32 %v2713, %v2722
      %v2728 = vadd.f32 %v2714, %v2722
      %v2729 = vadd.f32 %v2715, %v2722
      %v2730 = vadd.f32 %v2716, %v2722
      %v2731 = vadd.f32 %v2717, %v2722
      %v2732 = vld [vmem:[%s9] sm:$0xff]
      %v2733 = vld [vmem:[%s9 + $0x8] sm:$0xff]
      %v2734 = vld [vmem:[%s9 + $0x10] sm:$0xff]
      %v2735 = vld [vmem:[%s9 + $0x18] sm:$0xff]
      %v2736 = vld [vmem:[%s10] sm:$0x1]
      %v2738 = vlaneseq
      %v2739 = vshrl.u32 %v2738, 7
      %v2740 = vsub.s32 0, %v2739
      %v2741 = vrot.slane %v2736, %v2740
      %v2744 = vsel %vm564, %v2724, 0
      %v2747 = vsel %vm564, %v2725, 0
      %v2750 = vsel %vm564, %v2726, 0
      %v2753 = vsel %vm564, %v2727, 0
      %v2756 = vsel %vm564, %v2728, 0
      %v2759 = vsel %vm564, %v2729, 0
      %v2762 = vsel %vm564, %v2730, 0
      %v2765 = vsel %vm564, %v2731, 0
      %2767 = vmatprep.subr.mxu0 0.0
      %2768 = vmatpush1.msra.mxu0 0.0
      %2769 = vmatprep.subr.mxu0 0.0
      %2770 = vmatpush1.msra.mxu0 0.0
      %2771 = vmatprep.subr.mxu0 0.0
      %2772 = vmatpush1.msra.mxu0 0.0
      %2773 = vmatprep.subr.mxu0 0.0
      %2774 = vmatpush1.msra.mxu0 0.0
      %2775 = vmatprep.subr.mxu0 0.0
      %2776 = vmatpush1.msra.mxu0 0.0
      %2777 = vmatprep.subr.mxu0 0.0
      %2778 = vmatpush1.msra.mxu0 0.0
      %2779 = vmatprep.subr.mxu0 0.0
      %2780 = vmatpush1.msra.mxu0 0.0
      %2781 = vmatprep.subr.mxu0 0.0
      %2782 = vmatpush1.msra.mxu0 0.0
      %2783 = vmatprep.subr.mxu0 0.0
      %2784 = vmatpush1.msra.mxu0 0.0
      %2785 = vmatprep.subr.mxu0 0.0
      %2786 = vmatpush1.msra.mxu0 0.0
      %2787 = vmatprep.subr.mxu0 0.0
      %2788 = vmatpush1.msra.mxu0 0.0
      %2789 = vmatprep.subr.mxu0 0.0
      %2790 = vmatpush1.msra.mxu0 0.0
      %2791 = vmatprep.subr.mxu0 0.0
      %2792 = vmatpush1.msra.mxu0 %v2735
      %2793 = vmatprep.subr.mxu0 0.0
      %2794 = vmatpush1.msra.mxu0 %v2734
      %2795 = vmatprep.subr.mxu0 0.0
      %2796 = vmatpush1.msra.mxu0 %v2733
      %2797 = vmatprep.subr.mxu0 0.0
      %2798 = vmatpush1.msra.mxu0 %v2732
      %2799 = vmatprep.subr.mxu0 0.0
      %2800 = vmatpush2.msra.mxu0 0.0
      %2801 = vmatprep.subr.mxu0 0.0
      %2802 = vmatpush2.msra.mxu0 0.0
      %2803 = vmatprep.subr.mxu0 0.0
      %2804 = vmatpush2.msra.mxu0 0.0
      %2805 = vmatprep.subr.mxu0 0.0
      %2806 = vmatpush2.msra.mxu0 0.0
      %2807 = vmatprep.subr.mxu0 0.0
      %2808 = vmatpush2.msra.mxu0 0.0
      %2809 = vmatprep.subr.mxu0 0.0
      %2810 = vmatpush2.msra.mxu0 0.0
      %2811 = vmatprep.subr.mxu0 0.0
      %2812 = vmatpush2.msra.mxu0 0.0
      %2813 = vmatprep.subr.mxu0 0.0
      %2814 = vmatpush2.msra.mxu0 0.0
      %2815 = vmatprep.subr.mxu0 0.0
      %2816 = vmatpush2.msra.mxu0 0.0
      %2817 = vmatprep.subr.mxu0 0.0
      %2818 = vmatpush2.msra.mxu0 0.0
      %2819 = vmatprep.subr.mxu0 0.0
      %2820 = vmatpush2.msra.mxu0 0.0
      %2821 = vmatprep.subr.mxu0 0.0
      %2822 = vmatpush2.msra.mxu0 0.0
      %2823 = vmatprep.subr.mxu0 0.0
      %2824 = vmatpush2.msra.mxu0 0.0
      %2825 = vmatprep.subr.mxu0 0.0
      %2826 = vmatpush2.msra.mxu0 0.0
      %2827 = vmatprep.subr.mxu0 0.0
      %2828 = vmatpush2.msra.mxu0 0.0
      %2829 = vmatprep.subr.mxu0 0.0
      %2830 = vmatpush2.msra.mxu0 0.0
      %2831 = vmatprep.mubr.f32.mxu0 0.0
      %2832 = vmatmul.mubr.f32.gmra.mxu0 %v2744
      %v2833 = vpop.f32.mrf.mxu0
      %v2834 = vadd.f32 %v2741, %v2833
      %v2835 = vpop.f32.mrf.mxu0
      %2836 = vmatprep.mubr.f32.mxu0 0.0
      %2837 = vmatmul.mubr.f32.gmra.mxu0 %v2747
      %v2838 = vpop.f32.mrf.mxu0
      %v2839 = vadd.f32 %v2741, %v2838
      %v2840 = vpop.f32.mrf.mxu0
      %2841 = vmatprep.mubr.f32.mxu0 0.0
      %2842 = vmatmul.mubr.f32.gmra.mxu0 %v2750
      %v2843 = vpop.f32.mrf.mxu0
      %v2844 = vadd.f32 %v2741, %v2843
      %v2845 = vpop.f32.mrf.mxu0
      %2846 = vmatprep.mubr.f32.mxu0 0.0
      %2847 = vmatmul.mubr.f32.gmra.mxu0 %v2753
      %v2848 = vpop.f32.mrf.mxu0
      %v2849 = vadd.f32 %v2741, %v2848
      %v2850 = vpop.f32.mrf.mxu0
      %2851 = vmatprep.mubr.f32.mxu0 0.0
      %2852 = vmatmul.mubr.f32.gmra.mxu0 %v2756
      %v2853 = vpop.f32.mrf.mxu0
      %v2854 = vadd.f32 %v2741, %v2853
      %v2855 = vpop.f32.mrf.mxu0
      %2856 = vmatprep.mubr.f32.mxu0 0.0
      %2857 = vmatmul.mubr.f32.gmra.mxu0 %v2759
      %v2858 = vpop.f32.mrf.mxu0
      %v2859 = vadd.f32 %v2741, %v2858
      %v2860 = vpop.f32.mrf.mxu0
      %2861 = vmatprep.mubr.f32.mxu0 0.0
      %2862 = vmatmul.mubr.f32.gmra.mxu0 %v2762
      %v2863 = vpop.f32.mrf.mxu0
      %v2864 = vadd.f32 %v2741, %v2863
      %v2865 = vpop.f32.mrf.mxu0
      %2866 = vmatprep.mubr.f32.mxu0 0.0
      %2867 = vmatmul.mubr.f32.gmra.mxu0 %v2765
      %v2868 = vpop.f32.mrf.mxu0
      %v2869 = vadd.f32 %v2741, %v2868
      %v2870 = vpop.f32.mrf.mxu0
      %2871 = vdwg.mxu0
      %v2872 = vmax.f32 %v2834, 0.0
      %v2873 = vmax.f32 %v2839, 0.0
      %v2874 = vmax.f32 %v2844, 0.0
      %v2875 = vmax.f32 %v2849, 0.0
      %v2876 = vmax.f32 %v2854, 0.0
      %v2877 = vmax.f32 %v2859, 0.0
      %v2878 = vmax.f32 %v2864, 0.0
      %v2879 = vmax.f32 %v2869, 0.0
      %v2880 = vld [vmem:[%s11] sm:$0xff]
      %v2881 = vld [vmem:[%s11 + $0x8] sm:$0xff]
      %v2882 = vld [vmem:[%s11 + $0x10] sm:$0xff]
      %v2883 = vld [vmem:[%s11 + $0x18] sm:$0xff]
      %v2884 = vld [vmem:[%s11 + $0x20] sm:$0xff]
      %v2885 = vld [vmem:[%s11 + $0x28] sm:$0xff]
      %v2886 = vld [vmem:[%s11 + $0x30] sm:$0xff]
      %v2887 = vld [vmem:[%s11 + $0x38] sm:$0xff]
      %v2888 = vld [vmem:[%s12] sm:$0x1]
      %v2890 = vlaneseq
      %v2891 = vshrl.u32 %v2890, 7
      %v2892 = vsub.s32 0, %v2891
      %v2893 = vrot.slane %v2888, %v2892
      %vm2895 = vcmask 523264
      %v2897 = vsel %vm2895, %v2872, 0
      %v2900 = vsel %vm2895, %v2873, 0
      %v2903 = vsel %vm2895, %v2874, 0
      %v2906 = vsel %vm2895, %v2875, 0
      %v2909 = vsel %vm2895, %v2876, 0
      %v2912 = vsel %vm2895, %v2877, 0
      %v2915 = vsel %vm2895, %v2878, 0
      %v2918 = vsel %vm2895, %v2879, 0
      %2920 = vmatprep.subr.mxu0 0.0
      %2921 = vmatpush1.msra.mxu0 0.0
      %2922 = vmatprep.subr.mxu0 0.0
      %2923 = vmatpush1.msra.mxu0 0.0
      %2924 = vmatprep.subr.mxu0 0.0
      %2925 = vmatpush1.msra.mxu0 0.0
      %2926 = vmatprep.subr.mxu0 0.0
      %2927 = vmatpush1.msra.mxu0 0.0
      %2928 = vmatprep.subr.mxu0 0.0
      %2929 = vmatpush1.msra.mxu0 0.0
      %2930 = vmatprep.subr.mxu0 0.0
      %2931 = vmatpush1.msra.mxu0 0.0
      %2932 = vmatprep.subr.mxu0 0.0
      %2933 = vmatpush1.msra.mxu0 0.0
      %2934 = vmatprep.subr.mxu0 0.0
      %2935 = vmatpush1.msra.mxu0 0.0
      %2936 = vmatprep.subr.mxu0 0.0
      %2937 = vmatpush1.msra.mxu0 %v2887
      %2938 = vmatprep.subr.mxu0 0.0
      %2939 = vmatpush1.msra.mxu0 %v2886
      %2940 = vmatprep.subr.mxu0 0.0
      %2941 = vmatpush1.msra.mxu0 %v2885
      %2942 = vmatprep.subr.mxu0 0.0
      %2943 = vmatpush1.msra.mxu0 %v2884
      %2944 = vmatprep.subr.mxu0 0.0
      %2945 = vmatpush1.msra.mxu0 %v2883
      %2946 = vmatprep.subr.mxu0 0.0
      %2947 = vmatpush1.msra.mxu0 %v2882
      %2948 = vmatprep.subr.mxu0 0.0
      %2949 = vmatpush1.msra.mxu0 %v2881
      %2950 = vmatprep.subr.mxu0 0.0
      %2951 = vmatpush1.msra.mxu0 %v2880
      %2952 = vmatprep.subr.mxu0 0.0
      %2953 = vmatpush2.msra.mxu0 0.0
      %2954 = vmatprep.subr.mxu0 0.0
      %2955 = vmatpush2.msra.mxu0 0.0
      %2956 = vmatprep.subr.mxu0 0.0
      %2957 = vmatpush2.msra.mxu0 0.0
      %2958 = vmatprep.subr.mxu0 0.0
      %2959 = vmatpush2.msra.mxu0 0.0
      %2960 = vmatprep.subr.mxu0 0.0
      %2961 = vmatpush2.msra.mxu0 0.0
      %2962 = vmatprep.subr.mxu0 0.0
      %2963 = vmatpush2.msra.mxu0 0.0
      %2964 = vmatprep.subr.mxu0 0.0
      %2965 = vmatpush2.msra.mxu0 0.0
      %2966 = vmatprep.subr.mxu0 0.0
      %2967 = vmatpush2.msra.mxu0 0.0
      %2968 = vmatprep.subr.mxu0 0.0
      %2969 = vmatpush2.msra.mxu0 0.0
      %2970 = vmatprep.subr.mxu0 0.0
      %2971 = vmatpush2.msra.mxu0 0.0
      %2972 = vmatprep.subr.mxu0 0.0
      %2973 = vmatpush2.msra.mxu0 0.0
      %2974 = vmatprep.subr.mxu0 0.0
      %2975 = vmatpush2.msra.mxu0 0.0
      %2976 = vmatprep.subr.mxu0 0.0
      %2977 = vmatpush2.msra.mxu0 0.0
      %2978 = vmatprep.subr.mxu0 0.0
      %2979 = vmatpush2.msra.mxu0 0.0
      %2980 = vmatprep.subr.mxu0 0.0
      %2981 = vmatpush2.msra.mxu0 0.0
      %2982 = vmatprep.subr.mxu0 0.0
      %2983 = vmatpush2.msra.mxu0 0.0
      %2984 = vmatprep.mubr.f32.mxu0 0.0
      %2985 = vmatmul.mubr.f32.gmra.mxu0 %v2897
      %v2986 = vpop.f32.mrf.mxu0
      %v2987 = vadd.f32 %v2893, %v2986
      %v2988 = vpop.f32.mrf.mxu0
      %2989 = vmatprep.mubr.f32.mxu0 0.0
      %2990 = vmatmul.mubr.f32.gmra.mxu0 %v2900
      %v2991 = vpop.f32.mrf.mxu0
      %v2992 = vadd.f32 %v2893, %v2991
      %v2993 = vpop.f32.mrf.mxu0
      %2994 = vmatprep.mubr.f32.mxu0 0.0
      %2995 = vmatmul.mubr.f32.gmra.mxu0 %v2903
      %v2996 = vpop.f32.mrf.mxu0
      %v2997 = vadd.f32 %v2893, %v2996
      %v2998 = vpop.f32.mrf.mxu0
      %2999 = vmatprep.mubr.f32.mxu0 0.0
      %3000 = vmatmul.mubr.f32.gmra.mxu0 %v2906
      %v3001 = vpop.f32.mrf.mxu0
      %v3002 = vadd.f32 %v2893, %v3001
      %v3003 = vpop.f32.mrf.mxu0
      %3004 = vmatprep.mubr.f32.mxu0 0.0
      %3005 = vmatmul.mubr.f32.gmra.mxu0 %v2909
      %v3006 = vpop.f32.mrf.mxu0
      %v3007 = vadd.f32 %v2893, %v3006
      %v3008 = vpop.f32.mrf.mxu0
      %3009 = vmatprep.mubr.f32.mxu0 0.0
      %3010 = vmatmul.mubr.f32.gmra.mxu0 %v2912
      %v3011 = vpop.f32.mrf.mxu0
      %v3012 = vadd.f32 %v2893, %v3011
      %v3013 = vpop.f32.mrf.mxu0
      %3014 = vmatprep.mubr.f32.mxu0 0.0
      %3015 = vmatmul.mubr.f32.gmra.mxu0 %v2915
      %v3016 = vpop.f32.mrf.mxu0
      %v3017 = vadd.f32 %v2893, %v3016
      %v3018 = vpop.f32.mrf.mxu0
      %3019 = vmatprep.mubr.f32.mxu0 0.0
      %3020 = vmatmul.mubr.f32.gmra.mxu0 %v2918
      %v3021 = vpop.f32.mrf.mxu0
      %v3022 = vadd.f32 %v2893, %v3021
      %v3023 = vpop.f32.mrf.mxu0
      %3024 = vdwg.mxu0
      %v3025 = vadd.f32 %v2987, %v2590
      %v3026 = vadd.f32 %v2992, %v2591
      %v3027 = vadd.f32 %v2997, %v2592
      %v3028 = vadd.f32 %v3002, %v2593
      %v3029 = vadd.f32 %v3007, %v2594
      %v3030 = vadd.f32 %v3012, %v2595
      %v3031 = vadd.f32 %v3017, %v2596
      %v3032 = vadd.f32 %v3022, %v2597
      %3033 = vst.msk [vmem:[%s518] sm:$0xff] %vm564, %v3025
      %3034 = vst.msk [vmem:[%s518 + $0x8] sm:$0xff] %vm564, %v3026
      %3035 = vst.msk [vmem:[%s518 + $0x10] sm:$0xff] %vm564, %v3027
      %3036 = vst.msk [vmem:[%s518 + $0x18] sm:$0xff] %vm564, %v3028
      %3037 = vst.msk [vmem:[%s518 + $0x20] sm:$0xff] %vm564, %v3029
      %3038 = vst.msk [vmem:[%s518 + $0x28] sm:$0xff] %vm564, %v3030
      %3039 = vst.msk [vmem:[%s518 + $0x30] sm:$0xff] %vm564, %v3031
      %3040 = vst.msk [vmem:[%s518 + $0x38] sm:$0xff] %vm564, %v3032
      %s3041 = smul.u32 8, %s26
      %p3042 = scmp.lt.s32.totalorder %s3041, 15
      %s3043 = scalar_select %p3042, %s3041, 15
      %s3044 = smul.addr %s3043, 8
      %s3045 = scalar_lea.vmem %s15, %s3044
      // Predicated region
      $region81: #{tpu_custom_call.1} parent=79 // pred_check
        %p3046 = pneg %p369
      $region82: #{tpu_custom_call.1} parent=79 // pred_check_branch
        %3048 = sbr.rel (%p3046) target = $region84
      $region83: #{tpu_custom_call.1} parent=79 // pred_region
        %s3049 = smul.u32 8, %s26
      $region84: #{tpu_custom_call.1} parent=79 // pred_fallthru
        _
    $region80: #{tpu_custom_call.1} parent=5 // pred_fallthru
      _
    %p3050 = scmp.le.s32.totalorder 2, %s21
    // Predicated region
    $region85: #{tpu_custom_call.1} parent=5 // pred_check
      %p3051 = pneg %p3050
    $region86: #{tpu_custom_call.1} parent=5 // pred_check_branch
      %3053 = sbr.rel (%p3051) target = $region88
    $region87: #{tpu_custom_call.1} parent=5 // pred_region
      %s3054 = ssub.s32 %s21, 2
      // Predicated region
      $region89: #{tpu_custom_call.1} parent=87 // pred_check
        %p3055 = pneg %p375
      $region90: #{tpu_custom_call.1} parent=87 // pred_check_branch
        %3057 = sbr.rel (%p3055) target = $region92
      $region91: #{tpu_custom_call.1} parent=87 // pred_region
        %s3058 = smul.u32 8, %s27
        %p3059 = scmp.lt.s32.totalorder %s3058, 15
        %s3060 = scalar_select %p3059, %s3058, 15
        %s3061 = smul.addr %s3060, 8
        %s3062 = scalar_lea.vmem %s15, %s3061
      $region92: #{tpu_custom_call.1} parent=87 // pred_fallthru
        _
    $region88: #{tpu_custom_call.1} parent=5 // pred_fallthru
      _
  $region6: #{tpu_custom_call.1} parent=0 // loop_footer
    %s25 = sadd.s32 1, %s21
  $region7: #{tpu_custom_call.1} parent=0 // loop_footer_branch
    %20 = sbr.rel target = $region3
  $region8: #{tpu_custom_call.1} parent=0 // loop_exit
    _

// kernel: tpu_custom_call.1
$region0: #{tpu_custom_call.1}
  #allocation0 [shape = 'u32[]', space=smem, size = 0x4, offset = 0x4, fixed_abs, tag = 'smem constant byte address 0x4 - core index']
  #allocation1 [shape = 'u32[144,128]{1,0:T(1,128)}', space=vmem, size = 0x12000, scoped, tag = 'internal scratch']
  %s0 = inlined_call_operand.vmem [shape: s8[128,128], index: 0, kind: input, shape index: {}]
  %s1 = inlined_call_operand.vmem [shape: f32[128,32], index: 1, kind: input, shape index: {}]
  %s2 = inlined_call_operand.vmem [shape: f32[128,32], index: 2, kind: input, shape index: {}]
  %s3 = inlined_call_operand.vmem [shape: f32[512,32], index: 3, kind: input, shape index: {}]
  %s4 = inlined_call_operand.vmem [shape: f32[32,32], index: 4, kind: input, shape index: {}]
  %s5 = inlined_call_operand.vmem [shape: f32[1,32], index: 5, kind: input, shape index: {}]
  %s6 = inlined_call_operand.vmem [shape: f32[1,32], index: 6, kind: input, shape index: {}]
  %s7 = inlined_call_operand.vmem [shape: f32[1,32], index: 7, kind: input, shape index: {}]
  %s8 = inlined_call_operand.vmem [shape: f32[1,32], index: 8, kind: input, shape index: {}]
  %s9 = inlined_call_operand.vmem [shape: f32[32,64], index: 9, kind: input, shape index: {}]
  %s10 = inlined_call_operand.vmem [shape: f32[1,64], index: 10, kind: input, shape index: {}]
  %s11 = inlined_call_operand.vmem [shape: f32[64,32], index: 11, kind: input, shape index: {}]
  %s12 = inlined_call_operand.vmem [shape: f32[1,32], index: 12, kind: input, shape index: {}]
  %s13 = inlined_call_operand.vmem [shape: f32[1,32], index: 13, kind: input, shape index: {}]
  %s14 = inlined_call_operand.vmem [shape: f32[1,32], index: 14, kind: input, shape index: {}]
  %s15 = inlined_call_operand.vmem [shape: f32[128,32], index: 15, kind: output, shape index: {}]
  %s16 = sld [smem:[#allocation0]]
  $region93: #{tpu_custom_call.1} parent=0
    _
  %s18 = ssub.s32 1, %s16
  %s19 = scalar_select 0, %s18, %s16
  loop: start=0, step=1, limit=4
  $region2: #{tpu_custom_call.1} parent=0 // loop_pre_header
    _
  $region3: #{tpu_custom_call.1} parent=0 // loop_header
    %s21 = sphi 0, %s25
    %p22 = scmp.ge.s32.totalorder %s21, 4
    %s31 = sphi 0, %s33
    %s34 = sphi 0, %s31
    %s35 = sphi 0, %s34
    %s51 = sphi 0, %s35
    %s57 = sphi 0, %s59
    %s60 = sphi 0, %s57
    %s61 = sphi 0, %s60
    %s77 = sphi 0, %s61
    %s81 = sphi 0, %s81
    %s83 = sphi 0, %s81
    %s84 = sphi 0, %s83
    %s98 = sphi 0, %s84
    %s102 = sphi 0, %s102
    %s104 = sphi 0, %s102
    %s105 = sphi 0, %s104
    %s119 = sphi 0, %s105
    %s123 = sphi 0, %s123
    %s125 = sphi 0, %s123
    %s126 = sphi 0, %s125
    %s140 = sphi 0, %s126
    %s144 = sphi 0, %s144
    %s146 = sphi 0, %s144
    %s147 = sphi 0, %s146
    %s161 = sphi 0, %s147
    %s165 = sphi 0, %s165
    %s167 = sphi 0, %s165
    %s168 = sphi 0, %s167
    %s182 = sphi 0, %s168
    %s186 = sphi 0, %s186
    %s188 = sphi 0, %s186
    %s189 = sphi 0, %s188
    %s203 = sphi 0, %s189
    %s207 = sphi 0, %s207
    %s209 = sphi 0, %s207
    %s210 = sphi 0, %s209
    %s224 = sphi 0, %s210
    %s228 = sphi 0, %s228
    %s230 = sphi 0, %s228
    %s231 = sphi 0, %s230
    %s245 = sphi 0, %s231
    %s249 = sphi 0, %s249
    %s251 = sphi 0, %s249
    %s252 = sphi 0, %s251
    %s266 = sphi 0, %s252
    %s270 = sphi 0, %s270
    %s272 = sphi 0, %s270
    %s273 = sphi 0, %s272
    %s287 = sphi 0, %s273
    %s291 = sphi 0, %s291
    %s293 = sphi 0, %s291
    %s294 = sphi 0, %s293
    %s308 = sphi 0, %s294
    %s312 = sphi 0, %s312
    %s314 = sphi 0, %s312
    %s315 = sphi 0, %s314
    %s329 = sphi 0, %s315
    %s333 = sphi 0, %s333
    %s335 = sphi 0, %s333
    %s336 = sphi 0, %s335
    %s350 = sphi 0, %s336
    %s356 = sphi 0, %s358
    %s359 = sphi 0, %s356
    %s360 = sphi 0, %s359
    %s376 = sphi 0, %s360
  $region4: #{tpu_custom_call.1} parent=0 // loop_header_branch
    %24 = sbr.rel (%p22) target = $region8
  $region5: #{tpu_custom_call.1} parent=0 // loop_body
    %s26 = ssub.s32 %s21, 1
    %s27 = ssub.s32 %s21, 2
    %s28 = sadd.s32 %s21, 1
    %s29 = ssub.s32 %s21, %s28
    %p30 = scmp.eq.s32.totalorder %s29, 0
    %s32 = sadd.s32 %s31, 1
    %s33 = scalar_select %p30, %s31, %s32
    %p36 = pneg %p30
    %p37 = scmp.eq.s32.totalorder %s21, 1
    %p38 = por %p36, %p37
    %p39 = scmp.ne.s32.totalorder %s31, %s34
    %p40 = scmp.eq.s32.totalorder %s21, 0
    %p41 = por %p39, %p40
    %p42 = scmp.ne.s32.totalorder %s31, %s34
    %p43 = scmp.eq.s32.totalorder %s26, 1
    %p44 = por %p42, %p43
    %p45 = scmp.ne.s32.totalorder %s34, %s35
    %p46 = scmp.eq.s32.totalorder %s26, 0
    %p47 = por %p45, %p46
    %p48 = scmp.ne.s32.totalorder %s34, %s35
    %p49 = scmp.eq.s32.totalorder %s27, 1
    %p50 = por %p48, %p49
    %p52 = scmp.ne.s32.totalorder %s35, %s51
    %p53 = scmp.eq.s32.totalorder %s27, 0
    %p54 = por %p52, %p53
    %s55 = ssub.s32 %s21, %s28
    %p56 = scmp.eq.s32.totalorder %s55, 0
    %s58 = sadd.s32 %s57, 1
    %s59 = scalar_select %p56, %s57, %s58
    %p62 = pneg %p56
    %p63 = scmp.eq.s32.totalorder %s21, 1
    %p64 = por %p62, %p63
    %p65 = scmp.ne.s32.totalorder %s57, %s60
    %p66 = scmp.eq.s32.totalorder %s21, 0
    %p67 = por %p65, %p66
    %p68 = scmp.ne.s32.totalorder %s57, %s60
    %p69 = scmp.eq.s32.totalorder %s26, 1
    %p70 = por %p68, %p69
    %p71 = scmp.ne.s32.totalorder %s60, %s61
    %p72 = scmp.eq.s32.totalorder %s26, 0
    %p73 = por %p71, %p72
    %p74 = scmp.ne.s32.totalorder %s60, %s61
    %p75 = scmp.eq.s32.totalorder %s27, 1
    %p76 = por %p74, %p75
    %p78 = scmp.ne.s32.totalorder %s61, %s77
    %p79 = scmp.eq.s32.totalorder %s27, 0
    %p80 = por %p78, %p79
    %s82 = sadd.s32 %s81, 1
    %p85 = scmp.eq.s32.totalorder %s21, 1
    %p86 = scmp.ne.s32.totalorder %s81, %s83
    %p87 = scmp.eq.s32.totalorder %s21, 0
    %p88 = por %p86, %p87
    %p89 = scmp.ne.s32.totalorder %s81, %s83
    %p90 = scmp.eq.s32.totalorder %s26, 1
    %p91 = por %p89, %p90
    %p92 = scmp.ne.s32.totalorder %s83, %s84
    %p93 = scmp.eq.s32.totalorder %s26, 0
    %p94 = por %p92, %p93
    %p95 = scmp.ne.s32.totalorder %s83, %s84
    %p96 = scmp.eq.s32.totalorder %s27, 1
    %p97 = por %p95, %p96
    %p99 = scmp.ne.s32.totalorder %s84, %s98
    %p100 = scmp.eq.s32.totalorder %s27, 0
    %p101 = por %p99, %p100
    %s103 = sadd.s32 %s102, 1
    %p106 = scmp.eq.s32.totalorder %s21, 1
    %p107 = scmp.ne.s32.totalorder %s102, %s104
    %p108 = scmp.eq.s32.totalorder %s21, 0
    %p109 = por %p107, %p108
    %p110 = scmp.ne.s32.totalorder %s102, %s104
    %p111 = scmp.eq.s32.totalorder %s26, 1
    %p112 = por %p110, %p111
    %p113 = scmp.ne.s32.totalorder %s104, %s105
    %p114 = scmp.eq.s32.totalorder %s26, 0
    %p115 = por %p113, %p114
    %p116 = scmp.ne.s32.totalorder %s104, %s105
    %p117 = scmp.eq.s32.totalorder %s27, 1
    %p118 = por %p116, %p117
    %p120 = scmp.ne.s32.totalorder %s105, %s119
    %p121 = scmp.eq.s32.totalorder %s27, 0
    %p122 = por %p120, %p121
    %s124 = sadd.s32 %s123, 1
    %p127 = scmp.eq.s32.totalorder %s21, 1
    %p128 = scmp.ne.s32.totalorder %s123, %s125
    %p129 = scmp.eq.s32.totalorder %s21, 0
    %p130 = por %p128, %p129
    %p131 = scmp.ne.s32.totalorder %s123, %s125
    %p132 = scmp.eq.s32.totalorder %s26, 1
    %p133 = por %p131, %p132
    %p134 = scmp.ne.s32.totalorder %s125, %s126
    %p135 = scmp.eq.s32.totalorder %s26, 0
    %p136 = por %p134, %p135
    %p137 = scmp.ne.s32.totalorder %s125, %s126
    %p138 = scmp.eq.s32.totalorder %s27, 1
    %p139 = por %p137, %p138
    %p141 = scmp.ne.s32.totalorder %s126, %s140
    %p142 = scmp.eq.s32.totalorder %s27, 0
    %p143 = por %p141, %p142
    %s145 = sadd.s32 %s144, 1
    %p148 = scmp.eq.s32.totalorder %s21, 1
    %p149 = scmp.ne.s32.totalorder %s144, %s146
    %p150 = scmp.eq.s32.totalorder %s21, 0
    %p151 = por %p149, %p150
    %p152 = scmp.ne.s32.totalorder %s144, %s146
    %p153 = scmp.eq.s32.totalorder %s26, 1
    %p154 = por %p152, %p153
    %p155 = scmp.ne.s32.totalorder %s146, %s147
    %p156 = scmp.eq.s32.totalorder %s26, 0
    %p157 = por %p155, %p156
    %p158 = scmp.ne.s32.totalorder %s146, %s147
    %p159 = scmp.eq.s32.totalorder %s27, 1
    %p160 = por %p158, %p159
    %p162 = scmp.ne.s32.totalorder %s147, %s161
    %p163 = scmp.eq.s32.totalorder %s27, 0
    %p164 = por %p162, %p163
    %s166 = sadd.s32 %s165, 1
    %p169 = scmp.eq.s32.totalorder %s21, 1
    %p170 = scmp.ne.s32.totalorder %s165, %s167
    %p171 = scmp.eq.s32.totalorder %s21, 0
    %p172 = por %p170, %p171
    %p173 = scmp.ne.s32.totalorder %s165, %s167
    %p174 = scmp.eq.s32.totalorder %s26, 1
    %p175 = por %p173, %p174
    %p176 = scmp.ne.s32.totalorder %s167, %s168
    %p177 = scmp.eq.s32.totalorder %s26, 0
    %p178 = por %p176, %p177
    %p179 = scmp.ne.s32.totalorder %s167, %s168
    %p180 = scmp.eq.s32.totalorder %s27, 1
    %p181 = por %p179, %p180
    %p183 = scmp.ne.s32.totalorder %s168, %s182
    %p184 = scmp.eq.s32.totalorder %s27, 0
    %p185 = por %p183, %p184
    %s187 = sadd.s32 %s186, 1
    %p190 = scmp.eq.s32.totalorder %s21, 1
    %p191 = scmp.ne.s32.totalorder %s186, %s188
    %p192 = scmp.eq.s32.totalorder %s21, 0
    %p193 = por %p191, %p192
    %p194 = scmp.ne.s32.totalorder %s186, %s188
    %p195 = scmp.eq.s32.totalorder %s26, 1
    %p196 = por %p194, %p195
    %p197 = scmp.ne.s32.totalorder %s188, %s189
    %p198 = scmp.eq.s32.totalorder %s26, 0
    %p199 = por %p197, %p198
    %p200 = scmp.ne.s32.totalorder %s188, %s189
    %p201 = scmp.eq.s32.totalorder %s27, 1
    %p202 = por %p200, %p201
    %p204 = scmp.ne.s32.totalorder %s189, %s203
    %p205 = scmp.eq.s32.totalorder %s27, 0
    %p206 = por %p204, %p205
    %s208 = sadd.s32 %s207, 1
    %p211 = scmp.eq.s32.totalorder %s21, 1
    %p212 = scmp.ne.s32.totalorder %s207, %s209
    %p213 = scmp.eq.s32.totalorder %s21, 0
    %p214 = por %p212, %p213
    %p215 = scmp.ne.s32.totalorder %s207, %s209
    %p216 = scmp.eq.s32.totalorder %s26, 1
    %p217 = por %p215, %p216
    %p218 = scmp.ne.s32.totalorder %s209, %s210
    %p219 = scmp.eq.s32.totalorder %s26, 0
    %p220 = por %p218, %p219
    %p221 = scmp.ne.s32.totalorder %s209, %s210
    %p222 = scmp.eq.s32.totalorder %s27, 1
    %p223 = por %p221, %p222
    %p225 = scmp.ne.s32.totalorder %s210, %s224
    %p226 = scmp.eq.s32.totalorder %s27, 0
    %p227 = por %p225, %p226
    %s229 = sadd.s32 %s228, 1
    %p232 = scmp.eq.s32.totalorder %s21, 1
    %p233 = scmp.ne.s32.totalorder %s228, %s230
    %p234 = scmp.eq.s32.totalorder %s21, 0
    %p235 = por %p233, %p234
    %p236 = scmp.ne.s32.totalorder %s228, %s230
    %p237 = scmp.eq.s32.totalorder %s26, 1
    %p238 = por %p236, %p237
    %p239 = scmp.ne.s32.totalorder %s230, %s231
    %p240 = scmp.eq.s32.totalorder %s26, 0
    %p241 = por %p239, %p240
    %p242 = scmp.ne.s32.totalorder %s230, %s231
    %p243 = scmp.eq.s32.totalorder %s27, 1
    %p244 = por %p242, %p243
    %p246 = scmp.ne.s32.totalorder %s231, %s245
    %p247 = scmp.eq.s32.totalorder %s27, 0
    %p248 = por %p246, %p247
    %s250 = sadd.s32 %s249, 1
    %p253 = scmp.eq.s32.totalorder %s21, 1
    %p254 = scmp.ne.s32.totalorder %s249, %s251
    %p255 = scmp.eq.s32.totalorder %s21, 0
    %p256 = por %p254, %p255
    %p257 = scmp.ne.s32.totalorder %s249, %s251
    %p258 = scmp.eq.s32.totalorder %s26, 1
    %p259 = por %p257, %p258
    %p260 = scmp.ne.s32.totalorder %s251, %s252
    %p261 = scmp.eq.s32.totalorder %s26, 0
    %p262 = por %p260, %p261
    %p263 = scmp.ne.s32.totalorder %s251, %s252
    %p264 = scmp.eq.s32.totalorder %s27, 1
    %p265 = por %p263, %p264
    %p267 = scmp.ne.s32.totalorder %s252, %s266
    %p268 = scmp.eq.s32.totalorder %s27, 0
    %p269 = por %p267, %p268
    %s271 = sadd.s32 %s270, 1
    %p274 = scmp.eq.s32.totalorder %s21, 1
    %p275 = scmp.ne.s32.totalorder %s270, %s272
    %p276 = scmp.eq.s32.totalorder %s21, 0
    %p277 = por %p275, %p276
    %p278 = scmp.ne.s32.totalorder %s270, %s272
    %p279 = scmp.eq.s32.totalorder %s26, 1
    %p280 = por %p278, %p279
    %p281 = scmp.ne.s32.totalorder %s272, %s273
    %p282 = scmp.eq.s32.totalorder %s26, 0
    %p283 = por %p281, %p282
    %p284 = scmp.ne.s32.totalorder %s272, %s273
    %p285 = scmp.eq.s32.totalorder %s27, 1
    %p286 = por %p284, %p285
    %p288 = scmp.ne.s32.totalorder %s273, %s287
    %p289 = scmp.eq.s32.totalorder %s27, 0
    %p290 = por %p288, %p289
    %s292 = sadd.s32 %s291, 1
    %p295 = scmp.eq.s32.totalorder %s21, 1
    %p296 = scmp.ne.s32.totalorder %s291, %s293
    %p297 = scmp.eq.s32.totalorder %s21, 0
    %p298 = por %p296, %p297
    %p299 = scmp.ne.s32.totalorder %s291, %s293
    %p300 = scmp.eq.s32.totalorder %s26, 1
    %p301 = por %p299, %p300
    %p302 = scmp.ne.s32.totalorder %s293, %s294
    %p303 = scmp.eq.s32.totalorder %s26, 0
    %p304 = por %p302, %p303
    %p305 = scmp.ne.s32.totalorder %s293, %s294
    %p306 = scmp.eq.s32.totalorder %s27, 1
    %p307 = por %p305, %p306
    %p309 = scmp.ne.s32.totalorder %s294, %s308
    %p310 = scmp.eq.s32.totalorder %s27, 0
    %p311 = por %p309, %p310
    %s313 = sadd.s32 %s312, 1
    %p316 = scmp.eq.s32.totalorder %s21, 1
    %p317 = scmp.ne.s32.totalorder %s312, %s314
    %p318 = scmp.eq.s32.totalorder %s21, 0
    %p319 = por %p317, %p318
    %p320 = scmp.ne.s32.totalorder %s312, %s314
    %p321 = scmp.eq.s32.totalorder %s26, 1
    %p322 = por %p320, %p321
    %p323 = scmp.ne.s32.totalorder %s314, %s315
    %p324 = scmp.eq.s32.totalorder %s26, 0
    %p325 = por %p323, %p324
    %p326 = scmp.ne.s32.totalorder %s314, %s315
    %p327 = scmp.eq.s32.totalorder %s27, 1
    %p328 = por %p326, %p327
    %p330 = scmp.ne.s32.totalorder %s315, %s329
    %p331 = scmp.eq.s32.totalorder %s27, 0
    %p332 = por %p330, %p331
    %s334 = sadd.s32 %s333, 1
    %p337 = scmp.eq.s32.totalorder %s21, 1
    %p338 = scmp.ne.s32.totalorder %s333, %s335
    %p339 = scmp.eq.s32.totalorder %s21, 0
    %p340 = por %p338, %p339
    %p341 = scmp.ne.s32.totalorder %s333, %s335
    %p342 = scmp.eq.s32.totalorder %s26, 1
    %p343 = por %p341, %p342
    %p344 = scmp.ne.s32.totalorder %s335, %s336
    %p345 = scmp.eq.s32.totalorder %s26, 0
    %p346 = por %p344, %p345
    %p347 = scmp.ne.s32.totalorder %s335, %s336
    %p348 = scmp.eq.s32.totalorder %s27, 1
    %p349 = por %p347, %p348
    %p351 = scmp.ne.s32.totalorder %s336, %s350
    %p352 = scmp.eq.s32.totalorder %s27, 0
    %p353 = por %p351, %p352
    %s354 = ssub.s32 %s21, %s28
    %p355 = scmp.eq.s32.totalorder %s354, 0
    %s357 = sadd.s32 %s356, 1
    %s358 = scalar_select %p355, %s356, %s357
    %p361 = pneg %p355
    %p362 = scmp.eq.s32.totalorder %s21, 1
    %p363 = por %p361, %p362
    %p364 = scmp.ne.s32.totalorder %s356, %s359
    %p365 = scmp.eq.s32.totalorder %s21, 0
    %p366 = por %p364, %p365
    %p367 = scmp.ne.s32.totalorder %s356, %s359
    %p368 = scmp.eq.s32.totalorder %s26, 1
    %p369 = por %p367, %p368
    %p370 = scmp.ne.s32.totalorder %s359, %s360
    %p371 = scmp.eq.s32.totalorder %s26, 0
    %p372 = por %p370, %p371
    %p373 = scmp.ne.s32.totalorder %s359, %s360
    %p374 = scmp.eq.s32.totalorder %s27, 1
    %p375 = por %p373, %p374
    %p377 = scmp.ne.s32.totalorder %s360, %s376
    %p378 = scmp.eq.s32.totalorder %s27, 0
    %p379 = por %p377, %p378
    %p380 = scmp.le.s32.totalorder 1, %s21
    %p381 = scmp.lt.s32.totalorder %s21, 3
    %p382 = pnand %p380, %p381
    %p383 = pneg %p382
    // Predicated region
    $region9: #{tpu_custom_call.1} parent=5 // pred_check
      _
    $region10: #{tpu_custom_call.1} parent=5 // pred_check_branch
      %385 = sbr.rel (%p382) target = $region12
    $region11: #{tpu_custom_call.1} parent=5 // pred_region
      %s386 = ssub.s32 %s21, 1
      // Predicated region
      $region13: #{tpu_custom_call.1} parent=11 // pred_check
        %p387 = pneg %p94
      $region14: #{tpu_custom_call.1} parent=11 // pred_check_branch
        %389 = sbr.rel (%p387) target = $region16
      $region15: #{tpu_custom_call.1} parent=11 // pred_region
        _
      $region16: #{tpu_custom_call.1} parent=11 // pred_fallthru
        _
      // Predicated region
      $region17: #{tpu_custom_call.1} parent=11 // pred_check
        %p390 = pneg %p115
      $region18: #{tpu_custom_call.1} parent=11 // pred_check_branch
        %392 = sbr.rel (%p390) target = $region20
      $region19: #{tpu_custom_call.1} parent=11 // pred_region
        _
      $region20: #{tpu_custom_call.1} parent=11 // pred_fallthru
        _
      // Predicated region
      $region21: #{tpu_custom_call.1} parent=11 // pred_check
        %p393 = pneg %p136
      $region22: #{tpu_custom_call.1} parent=11 // pred_check_branch
        %395 = sbr.rel (%p393) target = $region24
      $region23: #{tpu_custom_call.1} parent=11 // pred_region
        _
      $region24: #{tpu_custom_call.1} parent=11 // pred_fallthru
        _
      // Predicated region
      $region25: #{tpu_custom_call.1} parent=11 // pred_check
        %p396 = pneg %p157
      $region26: #{tpu_custom_call.1} parent=11 // pred_check_branch
        %398 = sbr.rel (%p396) target = $region28
      $region27: #{tpu_custom_call.1} parent=11 // pred_region
        _
      $region28: #{tpu_custom_call.1} parent=11 // pred_fallthru
        _
      // Predicated region
      $region29: #{tpu_custom_call.1} parent=11 // pred_check
        %p399 = pneg %p178
      $region30: #{tpu_custom_call.1} parent=11 // pred_check_branch
        %401 = sbr.rel (%p399) target = $region32
      $region31: #{tpu_custom_call.1} parent=11 // pred_region
        _
      $region32: #{tpu_custom_call.1} parent=11 // pred_fallthru
        _
      // Predicated region
      $region33: #{tpu_custom_call.1} parent=11 // pred_check
        %p402 = pneg %p199
      $region34: #{tpu_custom_call.1} parent=11 // pred_check_branch
        %404 = sbr.rel (%p402) target = $region36
      $region35: #{tpu_custom_call.1} parent=11 // pred_region
        _
      $region36: #{tpu_custom_call.1} parent=11 // pred_fallthru
        _
      // Predicated region
      $region37: #{tpu_custom_call.1} parent=11 // pred_check
        %p405 = pneg %p220
      $region38: #{tpu_custom_call.1} parent=11 // pred_check_branch
        %407 = sbr.rel (%p405) target = $region40
      $region39: #{tpu_custom_call.1} parent=11 // pred_region
        _
      $region40: #{tpu_custom_call.1} parent=11 // pred_fallthru
        _
      // Predicated region
      $region41: #{tpu_custom_call.1} parent=11 // pred_check
        %p408 = pneg %p241
      $region42: #{tpu_custom_call.1} parent=11 // pred_check_branch
        %410 = sbr.rel (%p408) target = $region44
      $region43: #{tpu_custom_call.1} parent=11 // pred_region
        _
      $region44: #{tpu_custom_call.1} parent=11 // pred_fallthru
        _
      // Predicated region
      $region45: #{tpu_custom_call.1} parent=11 // pred_check
        %p411 = pneg %p262
      $region46: #{tpu_custom_call.1} parent=11 // pred_check_branch
        %413 = sbr.rel (%p411) target = $region48
      $region47: #{tpu_custom_call.1} parent=11 // pred_region
        _
      $region48: #{tpu_custom_call.1} parent=11 // pred_fallthru
        _
      // Predicated region
      $region49: #{tpu_custom_call.1} parent=11 // pred_check
        %p414 = pneg %p283
      $region50: #{tpu_custom_call.1} parent=11 // pred_check_branch
        %416 = sbr.rel (%p414) target = $region52
      $region51: #{tpu_custom_call.1} parent=11 // pred_region
        _
      $region52: #{tpu_custom_call.1} parent=11 // pred_fallthru
        _
      // Predicated region
      $region53: #{tpu_custom_call.1} parent=11 // pred_check
        %p417 = pneg %p304
      $region54: #{tpu_custom_call.1} parent=11 // pred_check_branch
        %419 = sbr.rel (%p417) target = $region56
      $region55: #{tpu_custom_call.1} parent=11 // pred_region
        _
      $region56: #{tpu_custom_call.1} parent=11 // pred_fallthru
        _
      // Predicated region
      $region57: #{tpu_custom_call.1} parent=11 // pred_check
        %p420 = pneg %p325
      $region58: #{tpu_custom_call.1} parent=11 // pred_check_branch
        %422 = sbr.rel (%p420) target = $region60
      $region59: #{tpu_custom_call.1} parent=11 // pred_region
        _
      $region60: #{tpu_custom_call.1} parent=11 // pred_fallthru
        _
      // Predicated region
      $region61: #{tpu_custom_call.1} parent=11 // pred_check
        %p423 = pneg %p346
      $region62: #{tpu_custom_call.1} parent=11 // pred_check_branch
        %425 = sbr.rel (%p423) target = $region64
      $region63: #{tpu_custom_call.1} parent=11 // pred_region
        _
      $region64: #{tpu_custom_call.1} parent=11 // pred_fallthru
        _
    $region12: #{tpu_custom_call.1} parent=5 // pred_fallthru
      _
    %p426 = scmp.lt.s32.totalorder %s21, 2
    // Predicated region
    $region65: #{tpu_custom_call.1} parent=5 // pred_check
      %p427 = pneg %p426
    $region66: #{tpu_custom_call.1} parent=5 // pred_check_branch
      %429 = sbr.rel (%p427) target = $region68
    $region67: #{tpu_custom_call.1} parent=5 // pred_region
      // Predicated region
      $region69: #{tpu_custom_call.1} parent=67 // pred_check
        %p430 = pneg %p41
      $region70: #{tpu_custom_call.1} parent=67 // pred_check_branch
        %432 = sbr.rel (%p430) target = $region72
      $region71: #{tpu_custom_call.1} parent=67 // pred_region
        %s433 = smul.u32 2, %s21
        %p434 = scmp.lt.s32.totalorder %s433, 3
        %s435 = scalar_select %p434, %s433, 3
        %s436 = smul.addr %s435, 8
        %s437 = scalar_lea.vmem %s0, %s436
        %s438 = smul.u32 2, %s21
      $region72: #{tpu_custom_call.1} parent=67 // pred_fallthru
        _
      // Predicated region
      $region73: #{tpu_custom_call.1} parent=67 // pred_check
        %p439 = pneg %p67
      $region74: #{tpu_custom_call.1} parent=67 // pred_check_branch
        %441 = sbr.rel (%p439) target = $region76
      $region75: #{tpu_custom_call.1} parent=67 // pred_region
        %s442 = smul.u32 8, %s21
        %p443 = scmp.lt.s32.totalorder %s442, 15
        %s444 = scalar_select %p443, %s442, 15
        %s445 = smul.addr %s444, 8
        %s446 = scalar_lea.vmem %s1, %s445
        %s447 = smul.u32 8, %s21
      $region76: #{tpu_custom_call.1} parent=67 // pred_fallthru
        _
    $region68: #{tpu_custom_call.1} parent=5 // pred_fallthru
      _
    %p448 = scmp.le.s32.totalorder 1, %s21
    %p449 = scmp.lt.s32.totalorder %s21, 3
    %p450 = pnand %p448, %p449
    %p451 = pneg %p450
    // Predicated region
    $region77: #{tpu_custom_call.1} parent=5 // pred_check
      _
    $region78: #{tpu_custom_call.1} parent=5 // pred_check_branch
      %453 = sbr.rel (%p450) target = $region80
    $region79: #{tpu_custom_call.1} parent=5 // pred_region
      %s454 = ssub.s32 %s21, 1
      %s455 = smul.u32 2, %s26
      %p456 = scmp.lt.s32.totalorder %s455, 3
      %s457 = scalar_select %p456, %s455, 3
      %s458 = smul.addr %s457, 8
      %s459 = scalar_lea.vmem %s0, %s458
      %p460 = pneg %p47
      %p461 = pneg %p44
      %s462 = smul.u32 8, %s26
      %p463 = scmp.lt.s32.totalorder %s462, 15
      %s464 = scalar_select %p463, %s462, 15
      %s465 = smul.addr %s464, 8
      %s466 = scalar_lea.vmem %s1, %s465
      %p467 = pneg %p73
      %p468 = pneg %p70
      %p469 = pneg %p94
      %p470 = pneg %p91
      %p471 = pneg %p115
      %p472 = pneg %p112
      %p473 = pneg %p136
      %p474 = pneg %p133
      %p475 = pneg %p157
      %p476 = pneg %p154
      %p477 = pneg %p178
      %p478 = pneg %p175
      %p479 = pneg %p199
      %p480 = pneg %p196
      %p481 = pneg %p220
      %p482 = pneg %p217
      %p483 = pneg %p241
      %p484 = pneg %p238
      %p485 = pneg %p262
      %p486 = pneg %p259
      %p487 = pneg %p283
      %p488 = pneg %p280
      %p489 = pneg %p304
      %p490 = pneg %p301
      %p491 = pneg %p325
      %p492 = pneg %p322
      %p493 = pneg %p346
      %p494 = pneg %p343
      %p495 = pneg %p372
      %p496 = pneg %p369
      %s497 = smul.u32 8, %s26
      %p498 = scmp.lt.s32.totalorder %s497, 15
      %s499 = scalar_select %p498, %s497, 15
      %s500 = smul.addr %s499, 8
      %s501 = scalar_lea.vmem %s15, %s500
      %s502 = smul.u32 2, %s26
      %p503 = scmp.lt.s32.totalorder %s502, 3
      %s504 = scalar_select %p503, %s502, 3
      %s505 = smul.addr %s504, 8
      %s506 = scalar_lea.vmem %s0, %s505
      %s507 = smul.u32 2, %s26
      %s508 = smul.u32 8, %s26
      %p509 = scmp.lt.s32.totalorder %s508, 15
      %s510 = scalar_select %p509, %s508, 15
      %s511 = smul.addr %s510, 8
      %s512 = scalar_lea.vmem %s1, %s511
      %s513 = smul.u32 8, %s26
      %s514 = smul.u32 8, %s26
      %p515 = scmp.lt.s32.totalorder %s514, 15
      %s516 = scalar_select %p515, %s514, 15
      %s517 = smul.addr %s516, 8
      %s518 = scalar_lea.vmem %s15, %s517
      %s519 = smul.u32 8, %s26
      %v520 = vld [vmem:[%s512] sm:$0xff]
      %v521 = vld [vmem:[%s512 + $0x8] sm:$0xff]
      %v522 = vld [vmem:[%s512 + $0x10] sm:$0xff]
      %v523 = vld [vmem:[%s512 + $0x18] sm:$0xff]
      %v524 = vld [vmem:[%s512 + $0x20] sm:$0xff]
      %v525 = vld [vmem:[%s512 + $0x28] sm:$0xff]
      %v526 = vld [vmem:[%s512 + $0x30] sm:$0xff]
      %v527 = vld [vmem:[%s512 + $0x38] sm:$0xff]
      %v528 = vld [vmem:[%s506] sm:$0xff]
      %v529 = vld [vmem:[%s506 + $0x8] sm:$0xff]
      %v530 = vunpack.c.0.s8 %v528
      %v531 = vunpack.c.1.s8 %v528
      %v532 = vunpack.c.2.s8 %v528
      %v533 = vunpack.c.3.s8 %v528
      %v534 = vunpack.c.0.s8 %v529
      %v535 = vunpack.c.1.s8 %v529
      %v536 = vunpack.c.2.s8 %v529
      %v537 = vunpack.c.3.s8 %v529
      %v538 = vcvt.s32.f32 %v530
      %v539 = vcvt.s32.f32 %v531
      %v540 = vcvt.s32.f32 %v532
      %v541 = vcvt.s32.f32 %v533
      %v542 = vcvt.s32.f32 %v534
      %v543 = vcvt.s32.f32 %v535
      %v544 = vcvt.s32.f32 %v536
      %v545 = vcvt.s32.f32 %v537
      %v546 = vld [vmem:[%s2] sm:$0xff]
      %v547 = vld [vmem:[%s2 + $0x8] sm:$0xff]
      %v548 = vld [vmem:[%s2 + $0x10] sm:$0xff]
      %v549 = vld [vmem:[%s2 + $0x18] sm:$0xff]
      %v550 = vld [vmem:[%s2 + $0x20] sm:$0xff]
      %v551 = vld [vmem:[%s2 + $0x28] sm:$0xff]
      %v552 = vld [vmem:[%s2 + $0x30] sm:$0xff]
      %v553 = vld [vmem:[%s2 + $0x38] sm:$0xff]
      %v554 = vld [vmem:[%s2 + $0x40] sm:$0xff]
      %v555 = vld [vmem:[%s2 + $0x48] sm:$0xff]
      %v556 = vld [vmem:[%s2 + $0x50] sm:$0xff]
      %v557 = vld [vmem:[%s2 + $0x58] sm:$0xff]
      %v558 = vld [vmem:[%s2 + $0x60] sm:$0xff]
      %v559 = vld [vmem:[%s2 + $0x68] sm:$0xff]
      %v560 = vld [vmem:[%s2 + $0x70] sm:$0xff]
      %v561 = vld [vmem:[%s2 + $0x78] sm:$0xff]
      %v562 = vld [vmem:[%s6] sm:$0x1]
      %v563 = vld [vmem:[%s7] sm:$0x1]
      %vm564 = vcmask 261120
      %v565 = vsel %vm564, %v520, 0.0
      %566 = vadd.xlane.f32.xlu0 %v565
      %v567 = vpop.xlane.xlu0 %566
      %v568 = vsel %vm564, %v521, 0.0
      %569 = vadd.xlane.f32.xlu0 %v568
      %v570 = vpop.xlane.xlu0 %569
      %v571 = vsel %vm564, %v522, 0.0
      %572 = vadd.xlane.f32.xlu0 %v571
      %v573 = vpop.xlane.xlu0 %572
      %v574 = vsel %vm564, %v523, 0.0
      %575 = vadd.xlane.f32.xlu0 %v574
      %v576 = vpop.xlane.xlu0 %575
      %v577 = vsel %vm564, %v524, 0.0
      %578 = vadd.xlane.f32.xlu0 %v577
      %v579 = vpop.xlane.xlu0 %578
      %v580 = vsel %vm564, %v525, 0.0
      %581 = vadd.xlane.f32.xlu0 %v580
      %v582 = vpop.xlane.xlu0 %581
      %v583 = vsel %vm564, %v526, 0.0
      %584 = vadd.xlane.f32.xlu0 %v583
      %v585 = vpop.xlane.xlu0 %584
      %v586 = vsel %vm564, %v527, 0.0
      %587 = vadd.xlane.f32.xlu0 %v586
      %v588 = vpop.xlane.xlu0 %587
      %v589 = vrcp.pop 32.0
      %v590 = vmul.f32 %v567, %v589
      %v591 = vmul.f32 %v570, %v589
      %v592 = vmul.f32 %v573, %v589
      %v593 = vmul.f32 %v576, %v589
      %v594 = vmul.f32 %v579, %v589
      %v595 = vmul.f32 %v582, %v589
      %v596 = vmul.f32 %v585, %v589
      %v597 = vmul.f32 %v588, %v589
      %v598 = vsub.f32 %v520, %v590
      %v599 = vsub.f32 %v521, %v591
      %v600 = vsub.f32 %v522, %v592
      %v601 = vsub.f32 %v523, %v593
      %v602 = vsub.f32 %v524, %v594
      %v603 = vsub.f32 %v525, %v595
      %v604 = vsub.f32 %v526, %v596
      %v605 = vsub.f32 %v527, %v597
      %v606 = vmul.f32 %v598, %v598
      %v607 = vmul.f32 %v599, %v599
      %v608 = vmul.f32 %v600, %v600
      %v609 = vmul.f32 %v601, %v601
      %v610 = vmul.f32 %v602, %v602
      %v611 = vmul.f32 %v603, %v603
      %v612 = vmul.f32 %v604, %v604
      %v613 = vmul.f32 %v605, %v605
      %v614 = vsel %vm564, %v606, 0.0
      %615 = vadd.xlane.f32.xlu0 %v614
      %v616 = vpop.xlane.xlu0 %615
      %v617 = vsel %vm564, %v607, 0.0
      %618 = vadd.xlane.f32.xlu0 %v617
      %v619 = vpop.xlane.xlu0 %618
      %v620 = vsel %vm564, %v608, 0.0
      %621 = vadd.xlane.f32.xlu0 %v620
      %v622 = vpop.xlane.xlu0 %621
      %v623 = vsel %vm564, %v609, 0.0
      %624 = vadd.xlane.f32.xlu0 %v623
      %v625 = vpop.xlane.xlu0 %624
      %v626 = vsel %vm564, %v610, 0.0
      %627 = vadd.xlane.f32.xlu0 %v626
      %v628 = vpop.xlane.xlu0 %627
      %v629 = vsel %vm564, %v611, 0.0
      %630 = vadd.xlane.f32.xlu0 %v629
      %v631 = vpop.xlane.xlu0 %630
      %v632 = vsel %vm564, %v612, 0.0
      %633 = vadd.xlane.f32.xlu0 %v632
      %v634 = vpop.xlane.xlu0 %633
      %v635 = vsel %vm564, %v613, 0.0
      %636 = vadd.xlane.f32.xlu0 %v635
      %v637 = vpop.xlane.xlu0 %636
      %v638 = vmul.f32 %v616, %v589
      %v639 = vmul.f32 %v619, %v589
      %v640 = vmul.f32 %v622, %v589
      %v641 = vmul.f32 %v625, %v589
      %v642 = vmul.f32 %v628, %v589
      %v643 = vmul.f32 %v631, %v589
      %v644 = vmul.f32 %v634, %v589
      %v645 = vmul.f32 %v637, %v589
      %v646 = vadd.f32 %v638, 1e-05
      %v647 = vadd.f32 %v639, 1e-05
      %v648 = vadd.f32 %v640, 1e-05
      %v649 = vadd.f32 %v641, 1e-05
      %v650 = vadd.f32 %v642, 1e-05
      %v651 = vadd.f32 %v643, 1e-05
      %v652 = vadd.f32 %v644, 1e-05
      %v653 = vadd.f32 %v645, 1e-05
      %v654 = vrsqrt.pop %v646
      %v655 = vrsqrt.pop %v647
      %v656 = vrsqrt.pop %v648
      %v657 = vrsqrt.pop %v649
      %v658 = vrsqrt.pop %v650
      %v659 = vrsqrt.pop %v651
      %v660 = vrsqrt.pop %v652
      %v661 = vrsqrt.pop %v653
      %v662 = vmul.f32 %v598, %v654
      %v663 = vmul.f32 %v599, %v655
      %v664 = vmul.f32 %v600, %v656
      %v665 = vmul.f32 %v601, %v657
      %v666 = vmul.f32 %v602, %v658
      %v667 = vmul.f32 %v603, %v659
      %v668 = vmul.f32 %v604, %v660
      %v669 = vmul.f32 %v605, %v661
      %v671 = vlaneseq
      %v672 = vshrl.u32 %v671, 7
      %v673 = vsub.s32 0, %v672
      %v674 = vrot.slane %v562, %v673
      %v676 = vmul.f32 %v662, %v674
      %v677 = vmul.f32 %v663, %v674
      %v678 = vmul.f32 %v664, %v674
      %v679 = vmul.f32 %v665, %v674
      %v680 = vmul.f32 %v666, %v674
      %v681 = vmul.f32 %v667, %v674
      %v682 = vmul.f32 %v668, %v674
      %v683 = vmul.f32 %v669, %v674
      %v685 = vlaneseq
      %v686 = vshrl.u32 %v685, 7
      %v687 = vsub.s32 0, %v686
      %v688 = vrot.slane %v563, %v687
      %v690 = vadd.f32 %v676, %v688
      %v691 = vadd.f32 %v677, %v688
      %v692 = vadd.f32 %v678, %v688
      %v693 = vadd.f32 %v679, %v688
      %v694 = vadd.f32 %v680, %v688
      %v695 = vadd.f32 %v681, %v688
      %v696 = vadd.f32 %v682, %v688
      %v697 = vadd.f32 %v683, %v688
      %v698 = vld [vmem:[%s4] sm:$0xff]
      %v699 = vld [vmem:[%s4 + $0x8] sm:$0xff]
      %v700 = vld [vmem:[%s4 + $0x10] sm:$0xff]
      %v701 = vld [vmem:[%s4 + $0x18] sm:$0xff]
      %v702 = vld [vmem:[%s5] sm:$0x1]
      %v704 = vlaneseq
      %v705 = vshrl.u32 %v704, 7
      %v706 = vsub.s32 0, %v705
      %v707 = vrot.slane %v702, %v706
      %v710 = vsel %vm564, %v690, 0
      %v713 = vsel %vm564, %v691, 0
      %v716 = vsel %vm564, %v692, 0
      %v719 = vsel %vm564, %v693, 0
      %v722 = vsel %vm564, %v694, 0
      %v725 = vsel %vm564, %v695, 0
      %v728 = vsel %vm564, %v696, 0
      %v731 = vsel %vm564, %v697, 0
      %733 = vmatprep.subr.mxu0 0.0
      %734 = vmatpush1.msra.mxu0 0.0
      %735 = vmatprep.subr.mxu0 0.0
      %736 = vmatpush1.msra.mxu0 0.0
      %737 = vmatprep.subr.mxu0 0.0
      %738 = vmatpush1.msra.mxu0 0.0
      %739 = vmatprep.subr.mxu0 0.0
      %740 = vmatpush1.msra.mxu0 0.0
      %741 = vmatprep.subr.mxu0 0.0
      %742 = vmatpush1.msra.mxu0 0.0
      %743 = vmatprep.subr.mxu0 0.0
      %744 = vmatpush1.msra.mxu0 0.0
      %745 = vmatprep.subr.mxu0 0.0
      %746 = vmatpush1.msra.mxu0 0.0
      %747 = vmatprep.subr.mxu0 0.0
      %748 = vmatpush1.msra.mxu0 0.0
      %749 = vmatprep.subr.mxu0 0.0
      %750 = vmatpush1.msra.mxu0 0.0
      %751 = vmatprep.subr.mxu0 0.0
      %752 = vmatpush1.msra.mxu0 0.0
      %753 = vmatprep.subr.mxu0 0.0
      %754 = vmatpush1.msra.mxu0 0.0
      %755 = vmatprep.subr.mxu0 0.0
      %756 = vmatpush1.msra.mxu0 0.0
      %757 = vmatprep.subr.mxu0 0.0
      %758 = vmatpush1.msra.mxu0 %v701
      %759 = vmatprep.subr.mxu0 0.0
      %760 = vmatpush1.msra.mxu0 %v700
      %761 = vmatprep.subr.mxu0 0.0
      %762 = vmatpush1.msra.mxu0 %v699
      %763 = vmatprep.subr.mxu0 0.0
      %764 = vmatpush1.msra.mxu0 %v698
      %765 = vmatprep.subr.mxu0 0.0
      %766 = vmatpush2.msra.mxu0 0.0
      %767 = vmatprep.subr.mxu0 0.0
      %768 = vmatpush2.msra.mxu0 0.0
      %769 = vmatprep.subr.mxu0 0.0
      %770 = vmatpush2.msra.mxu0 0.0
      %771 = vmatprep.subr.mxu0 0.0
      %772 = vmatpush2.msra.mxu0 0.0
      %773 = vmatprep.subr.mxu0 0.0
      %774 = vmatpush2.msra.mxu0 0.0
      %775 = vmatprep.subr.mxu0 0.0
      %776 = vmatpush2.msra.mxu0 0.0
      %777 = vmatprep.subr.mxu0 0.0
      %778 = vmatpush2.msra.mxu0 0.0
      %779 = vmatprep.subr.mxu0 0.0
      %780 = vmatpush2.msra.mxu0 0.0
      %781 = vmatprep.subr.mxu0 0.0
      %782 = vmatpush2.msra.mxu0 0.0
      %783 = vmatprep.subr.mxu0 0.0
      %784 = vmatpush2.msra.mxu0 0.0
      %785 = vmatprep.subr.mxu0 0.0
      %786 = vmatpush2.msra.mxu0 0.0
      %787 = vmatprep.subr.mxu0 0.0
      %788 = vmatpush2.msra.mxu0 0.0
      %789 = vmatprep.subr.mxu0 0.0
      %790 = vmatpush2.msra.mxu0 0.0
      %791 = vmatprep.subr.mxu0 0.0
      %792 = vmatpush2.msra.mxu0 0.0
      %793 = vmatprep.subr.mxu0 0.0
      %794 = vmatpush2.msra.mxu0 0.0
      %795 = vmatprep.subr.mxu0 0.0
      %796 = vmatpush2.msra.mxu0 0.0
      %797 = vmatprep.mubr.f32.mxu0 0.0
      %798 = vmatmul.mubr.f32.gmra.mxu0 %v710
      %v799 = vpop.f32.mrf.mxu0
      %v800 = vadd.f32 %v707, %v799
      %v801 = vpop.f32.mrf.mxu0
      %802 = vmatprep.mubr.f32.mxu0 0.0
      %803 = vmatmul.mubr.f32.gmra.mxu0 %v713
      %v804 = vpop.f32.mrf.mxu0
      %v805 = vadd.f32 %v707, %v804
      %v806 = vpop.f32.mrf.mxu0
      %807 = vmatprep.mubr.f32.mxu0 0.0
      %808 = vmatmul.mubr.f32.gmra.mxu0 %v716
      %v809 = vpop.f32.mrf.mxu0
      %v810 = vadd.f32 %v707, %v809
      %v811 = vpop.f32.mrf.mxu0
      %812 = vmatprep.mubr.f32.mxu0 0.0
      %813 = vmatmul.mubr.f32.gmra.mxu0 %v719
      %v814 = vpop.f32.mrf.mxu0
      %v815 = vadd.f32 %v707, %v814
      %v816 = vpop.f32.mrf.mxu0
      %817 = vmatprep.mubr.f32.mxu0 0.0
      %818 = vmatmul.mubr.f32.gmra.mxu0 %v722
      %v819 = vpop.f32.mrf.mxu0
      %v820 = vadd.f32 %v707, %v819
      %v821 = vpop.f32.mrf.mxu0
      %822 = vmatprep.mubr.f32.mxu0 0.0
      %823 = vmatmul.mubr.f32.gmra.mxu0 %v725
      %v824 = vpop.f32.mrf.mxu0
      %v825 = vadd.f32 %v707, %v824
      %v826 = vpop.f32.mrf.mxu0
      %827 = vmatprep.mubr.f32.mxu0 0.0
      %828 = vmatmul.mubr.f32.gmra.mxu0 %v728
      %v829 = vpop.f32.mrf.mxu0
      %v830 = vadd.f32 %v707, %v829
      %v831 = vpop.f32.mrf.mxu0
      %832 = vmatprep.mubr.f32.mxu0 0.0
      %833 = vmatmul.mubr.f32.gmra.mxu0 %v731
      %v834 = vpop.f32.mrf.mxu0
      %v835 = vadd.f32 %v707, %v834
      %v836 = vpop.f32.mrf.mxu0
      %837 = vdwg.mxu0
      %vm838 = vcmask 64512
      %v840 = vsel %vm838, %v800, 0
      %v843 = vsel %vm838, %v805, 0
      %v846 = vsel %vm838, %v810, 0
      %v849 = vsel %vm838, %v815, 0
      %v852 = vsel %vm838, %v820, 0
      %v855 = vsel %vm838, %v825, 0
      %v858 = vsel %vm838, %v830, 0
      %v861 = vsel %vm838, %v835, 0
      %v864 = vsel %vm838, %v546, 0
      %v867 = vsel %vm838, %v547, 0
      %v870 = vsel %vm838, %v548, 0
      %v873 = vsel %vm838, %v549, 0
      %v876 = vsel %vm838, %v550, 0
      %v879 = vsel %vm838, %v551, 0
      %v882 = vsel %vm838, %v552, 0
      %v885 = vsel %vm838, %v553, 0
      %v888 = vsel %vm838, %v554, 0
      %v891 = vsel %vm838, %v555, 0
      %v894 = vsel %vm838, %v556, 0
      %v897 = vsel %vm838, %v557, 0
      %v900 = vsel %vm838, %v558, 0
      %v903 = vsel %vm838, %v559, 0
      %v906 = vsel %vm838, %v560, 0
      %v909 = vsel %vm838, %v561, 0
      %911 = vmatprep.subr.mxu0 0.0
      %912 = vmatpush1.xpose.msra.mxu0 %v909
      %913 = vmatprep.subr.mxu0 0.0
      %914 = vmatpush1.xpose.msra.mxu0 %v906
      %915 = vmatprep.subr.mxu0 0.0
      %916 = vmatpush1.xpose.msra.mxu0 %v903
      %917 = vmatprep.subr.mxu0 0.0
      %918 = vmatpush1.xpose.msra.mxu0 %v900
      %919 = vmatprep.subr.mxu0 0.0
      %920 = vmatpush1.xpose.msra.mxu0 %v897
      %921 = vmatprep.subr.mxu0 0.0
      %922 = vmatpush1.xpose.msra.mxu0 %v894
      %923 = vmatprep.subr.mxu0 0.0
      %924 = vmatpush1.xpose.msra.mxu0 %v891
      %925 = vmatprep.subr.mxu0 0.0
      %926 = vmatpush1.xpose.msra.mxu0 %v888
      %927 = vmatprep.subr.mxu0 0.0
      %928 = vmatpush1.xpose.msra.mxu0 %v885
      %929 = vmatprep.subr.mxu0 0.0
      %930 = vmatpush1.xpose.msra.mxu0 %v882
      %931 = vmatprep.subr.mxu0 0.0
      %932 = vmatpush1.xpose.msra.mxu0 %v879
      %933 = vmatprep.subr.mxu0 0.0
      %934 = vmatpush1.xpose.msra.mxu0 %v876
      %935 = vmatprep.subr.mxu0 0.0
      %936 = vmatpush1.xpose.msra.mxu0 %v873
      %937 = vmatprep.subr.mxu0 0.0
      %938 = vmatpush1.xpose.msra.mxu0 %v870
      %939 = vmatprep.subr.mxu0 0.0
      %940 = vmatpush1.xpose.msra.mxu0 %v867
      %941 = vmatprep.subr.mxu0 0.0
      %942 = vmatpush1.xpose.msra.mxu0 %v864
      %943 = vmatprep.subr.mxu0 0.0
      %944 = vmatpush2.xpose.msra.mxu0 0.0
      %945 = vmatprep.subr.mxu0 0.0
      %946 = vmatpush2.xpose.msra.mxu0 0.0
      %947 = vmatprep.subr.mxu0 0.0
      %948 = vmatpush2.xpose.msra.mxu0 0.0
      %949 = vmatprep.subr.mxu0 0.0
      %950 = vmatpush2.xpose.msra.mxu0 0.0
      %951 = vmatprep.subr.mxu0 0.0
      %952 = vmatpush2.xpose.msra.mxu0 0.0
      %953 = vmatprep.subr.mxu0 0.0
      %954 = vmatpush2.xpose.msra.mxu0 0.0
      %955 = vmatprep.subr.mxu0 0.0
      %956 = vmatpush2.xpose.msra.mxu0 0.0
      %957 = vmatprep.subr.mxu0 0.0
      %958 = vmatpush2.xpose.msra.mxu0 0.0
      %959 = vmatprep.subr.mxu0 0.0
      %960 = vmatpush2.xpose.msra.mxu0 0.0
      %961 = vmatprep.subr.mxu0 0.0
      %962 = vmatpush2.xpose.msra.mxu0 0.0
      %963 = vmatprep.subr.mxu0 0.0
      %964 = vmatpush2.xpose.msra.mxu0 0.0
      %965 = vmatprep.subr.mxu0 0.0
      %966 = vmatpush2.xpose.msra.mxu0 0.0
      %967 = vmatprep.subr.mxu0 0.0
      %968 = vmatpush2.xpose.msra.mxu0 0.0
      %969 = vmatprep.subr.mxu0 0.0
      %970 = vmatpush2.xpose.msra.mxu0 0.0
      %971 = vmatprep.subr.mxu0 0.0
      %972 = vmatpush2.xpose.msra.mxu0 0.0
      %973 = vmatprep.subr.mxu0 0.0
      %974 = vmatpush2.xpose.msra.mxu0 0.0
      %975 = vmatprep.mubr.f32.mxu0 0.0
      %976 = vmatmul.mubr.f32.gmra.mxu0 %v840
      %v977 = vpop.f32.mrf.mxu0
      %v978 = vadd.f32 0.0, %v977
      %v979 = vpop.f32.mrf.mxu0
      %980 = vmatprep.mubr.f32.mxu0 0.0
      %981 = vmatmul.mubr.f32.gmra.mxu0 %v843
      %v982 = vpop.f32.mrf.mxu0
      %v983 = vadd.f32 0.0, %v982
      %v984 = vpop.f32.mrf.mxu0
      %985 = vmatprep.mubr.f32.mxu0 0.0
      %986 = vmatmul.mubr.f32.gmra.mxu0 %v846
      %v987 = vpop.f32.mrf.mxu0
      %v988 = vadd.f32 0.0, %v987
      %v989 = vpop.f32.mrf.mxu0
      %990 = vmatprep.mubr.f32.mxu0 0.0
      %991 = vmatmul.mubr.f32.gmra.mxu0 %v849
      %v992 = vpop.f32.mrf.mxu0
      %v993 = vadd.f32 0.0, %v992
      %v994 = vpop.f32.mrf.mxu0
      %995 = vmatprep.mubr.f32.mxu0 0.0
      %996 = vmatmul.mubr.f32.gmra.mxu0 %v852
      %v997 = vpop.f32.mrf.mxu0
      %v998 = vadd.f32 0.0, %v997
      %v999 = vpop.f32.mrf.mxu0
      %1000 = vmatprep.mubr.f32.mxu0 0.0
      %1001 = vmatmul.mubr.f32.gmra.mxu0 %v855
      %v1002 = vpop.f32.mrf.mxu0
      %v1003 = vadd.f32 0.0, %v1002
      %v1004 = vpop.f32.mrf.mxu0
      %1005 = vmatprep.mubr.f32.mxu0 0.0
      %1006 = vmatmul.mubr.f32.gmra.mxu0 %v858
      %v1007 = vpop.f32.mrf.mxu0
      %v1008 = vadd.f32 0.0, %v1007
      %v1009 = vpop.f32.mrf.mxu0
      %1010 = vmatprep.mubr.f32.mxu0 0.0
      %1011 = vmatmul.mubr.f32.gmra.mxu0 %v861
      %v1012 = vpop.f32.mrf.mxu0
      %v1013 = vadd.f32 0.0, %v1012
      %v1014 = vpop.f32.mrf.mxu0
      %1015 = vdwg.mxu0
      %1016 = vrot.lane.b32.xlu0 %v800, 120
      %v1017 = vpop.permute.xlu0 %1016
      %1018 = vrot.lane.b32.xlu0 %v805, 120
      %v1019 = vpop.permute.xlu0 %1018
      %1020 = vrot.lane.b32.xlu0 %v810, 120
      %v1021 = vpop.permute.xlu0 %1020
      %1022 = vrot.lane.b32.xlu0 %v815, 120
      %v1023 = vpop.permute.xlu0 %1022
      %1024 = vrot.lane.b32.xlu0 %v820, 120
      %v1025 = vpop.permute.xlu0 %1024
      %1026 = vrot.lane.b32.xlu0 %v825, 120
      %v1027 = vpop.permute.xlu0 %1026
      %1028 = vrot.lane.b32.xlu0 %v830, 120
      %v1029 = vpop.permute.xlu0 %1028
      %1030 = vrot.lane.b32.xlu0 %v835, 120
      %v1031 = vpop.permute.xlu0 %1030
      %1032 = vrot.lane.b32.xlu0 %v546, 120
      %v1033 = vpop.permute.xlu0 %1032
      %1034 = vrot.lane.b32.xlu0 %v547, 120
      %v1035 = vpop.permute.xlu0 %1034
      %1036 = vrot.lane.b32.xlu0 %v548, 120
      %v1037 = vpop.permute.xlu0 %1036
      %1038 = vrot.lane.b32.xlu0 %v549, 120
      %v1039 = vpop.permute.xlu0 %1038
      %1040 = vrot.lane.b32.xlu0 %v550, 120
      %v1041 = vpop.permute.xlu0 %1040
      %1042 = vrot.lane.b32.xlu0 %v551, 120
      %v1043 = vpop.permute.xlu0 %1042
      %1044 = vrot.lane.b32.xlu0 %v552, 120
      %v1045 = vpop.permute.xlu0 %1044
      %1046 = vrot.lane.b32.xlu0 %v553, 120
      %v1047 = vpop.permute.xlu0 %1046
      %1048 = vrot.lane.b32.xlu0 %v554, 120
      %v1049 = vpop.permute.xlu0 %1048
      %1050 = vrot.lane.b32.xlu0 %v555, 120
      %v1051 = vpop.permute.xlu0 %1050
      %1052 = vrot.lane.b32.xlu0 %v556, 120
      %v1053 = vpop.permute.xlu0 %1052
      %1054 = vrot.lane.b32.xlu0 %v557, 120
      %v1055 = vpop.permute.xlu0 %1054
      %1056 = vrot.lane.b32.xlu0 %v558, 120
      %v1057 = vpop.permute.xlu0 %1056
      %1058 = vrot.lane.b32.xlu0 %v559, 120
      %v1059 = vpop.permute.xlu0 %1058
      %1060 = vrot.lane.b32.xlu0 %v560, 120
      %v1061 = vpop.permute.xlu0 %1060
      %1062 = vrot.lane.b32.xlu0 %v561, 120
      %v1063 = vpop.permute.xlu0 %1062
      %v1064 = vsel %vm838, %v1017, 0
      %v1066 = vsel %vm838, %v1019, 0
      %v1068 = vsel %vm838, %v1021, 0
      %v1070 = vsel %vm838, %v1023, 0
      %v1072 = vsel %vm838, %v1025, 0
      %v1074 = vsel %vm838, %v1027, 0
      %v1076 = vsel %vm838, %v1029, 0
      %v1078 = vsel %vm838, %v1031, 0
      %v1080 = vsel %vm838, %v1033, 0
      %v1082 = vsel %vm838, %v1035, 0
      %v1084 = vsel %vm838, %v1037, 0
      %v1086 = vsel %vm838, %v1039, 0
      %v1088 = vsel %vm838, %v1041, 0
      %v1090 = vsel %vm838, %v1043, 0
      %v1092 = vsel %vm838, %v1045, 0
      %v1094 = vsel %vm838, %v1047, 0
      %v1096 = vsel %vm838, %v1049, 0
      %v1098 = vsel %vm838, %v1051, 0
      %v1100 = vsel %vm838, %v1053, 0
      %v1102 = vsel %vm838, %v1055, 0
      %v1104 = vsel %vm838, %v1057, 0
      %v1106 = vsel %vm838, %v1059, 0
      %v1108 = vsel %vm838, %v1061, 0
      %v1110 = vsel %vm838, %v1063, 0
      %1112 = vmatprep.subr.mxu0 0.0
      %1113 = vmatpush1.xpose.msra.mxu0 %v1110
      %1114 = vmatprep.subr.mxu0 0.0
      %1115 = vmatpush1.xpose.msra.mxu0 %v1108
      %1116 = vmatprep.subr.mxu0 0.0
      %1117 = vmatpush1.xpose.msra.mxu0 %v1106
      %1118 = vmatprep.subr.mxu0 0.0
      %1119 = vmatpush1.xpose.msra.mxu0 %v1104
      %1120 = vmatprep.subr.mxu0 0.0
      %1121 = vmatpush1.xpose.msra.mxu0 %v1102
      %1122 = vmatprep.subr.mxu0 0.0
      %1123 = vmatpush1.xpose.msra.mxu0 %v1100
      %1124 = vmatprep.subr.mxu0 0.0
      %1125 = vmatpush1.xpose.msra.mxu0 %v1098
      %1126 = vmatprep.subr.mxu0 0.0
      %1127 = vmatpush1.xpose.msra.mxu0 %v1096
      %1128 = vmatprep.subr.mxu0 0.0
      %1129 = vmatpush1.xpose.msra.mxu0 %v1094
      %1130 = vmatprep.subr.mxu0 0.0
      %1131 = vmatpush1.xpose.msra.mxu0 %v1092
      %1132 = vmatprep.subr.mxu0 0.0
      %1133 = vmatpush1.xpose.msra.mxu0 %v1090
      %1134 = vmatprep.subr.mxu0 0.0
      %1135 = vmatpush1.xpose.msra.mxu0 %v1088
      %1136 = vmatprep.subr.mxu0 0.0
      %1137 = vmatpush1.xpose.msra.mxu0 %v1086
      %1138 = vmatprep.subr.mxu0 0.0
      %1139 = vmatpush1.xpose.msra.mxu0 %v1084
      %1140 = vmatprep.subr.mxu0 0.0
      %1141 = vmatpush1.xpose.msra.mxu0 %v1082
      %1142 = vmatprep.subr.mxu0 0.0
      %1143 = vmatpush1.xpose.msra.mxu0 %v1080
      %1144 = vmatprep.subr.mxu0 0.0
      %1145 = vmatpush2.xpose.msra.mxu0 0.0
      %1146 = vmatprep.subr.mxu0 0.0
      %1147 = vmatpush2.xpose.msra.mxu0 0.0
      %1148 = vmatprep.subr.mxu0 0.0
      %1149 = vmatpush2.xpose.msra.mxu0 0.0
      %1150 = vmatprep.subr.mxu0 0.0
      %1151 = vmatpush2.xpose.msra.mxu0 0.0
      %1152 = vmatprep.subr.mxu0 0.0
      %1153 = vmatpush2.xpose.msra.mxu0 0.0
      %1154 = vmatprep.subr.mxu0 0.0
      %1155 = vmatpush2.xpose.msra.mxu0 0.0
      %1156 = vmatprep.subr.mxu0 0.0
      %1157 = vmatpush2.xpose.msra.mxu0 0.0
      %1158 = vmatprep.subr.mxu0 0.0
      %1159 = vmatpush2.xpose.msra.mxu0 0.0
      %1160 = vmatprep.subr.mxu0 0.0
      %1161 = vmatpush2.xpose.msra.mxu0 0.0
      %1162 = vmatprep.subr.mxu0 0.0
      %1163 = vmatpush2.xpose.msra.mxu0 0.0
      %1164 = vmatprep.subr.mxu0 0.0
      %1165 = vmatpush2.xpose.msra.mxu0 0.0
      %1166 = vmatprep.subr.mxu0 0.0
      %1167 = vmatpush2.xpose.msra.mxu0 0.0
      %1168 = vmatprep.subr.mxu0 0.0
      %1169 = vmatpush2.xpose.msra.mxu0 0.0
      %1170 = vmatprep.subr.mxu0 0.0
      %1171 = vmatpush2.xpose.msra.mxu0 0.0
      %1172 = vmatprep.subr.mxu0 0.0
      %1173 = vmatpush2.xpose.msra.mxu0 0.0
      %1174 = vmatprep.subr.mxu0 0.0
      %1175 = vmatpush2.xpose.msra.mxu0 0.0
      %1176 = vmatprep.mubr.f32.mxu0 0.0
      %1177 = vmatmul.mubr.f32.gmra.mxu0 %v1064
      %v1178 = vpop.f32.mrf.mxu0
      %v1179 = vadd.f32 0.0, %v1178
      %v1180 = vpop.f32.mrf.mxu0
      %1181 = vmatprep.mubr.f32.mxu0 0.0
      %1182 = vmatmul.mubr.f32.gmra.mxu0 %v1066
      %v1183 = vpop.f32.mrf.mxu0
      %v1184 = vadd.f32 0.0, %v1183
      %v1185 = vpop.f32.mrf.mxu0
      %1186 = vmatprep.mubr.f32.mxu0 0.0
      %1187 = vmatmul.mubr.f32.gmra.mxu0 %v1068
      %v1188 = vpop.f32.mrf.mxu0
      %v1189 = vadd.f32 0.0, %v1188
      %v1190 = vpop.f32.mrf.mxu0
      %1191 = vmatprep.mubr.f32.mxu0 0.0
      %1192 = vmatmul.mubr.f32.gmra.mxu0 %v1070
      %v1193 = vpop.f32.mrf.mxu0
      %v1194 = vadd.f32 0.0, %v1193
      %v1195 = vpop.f32.mrf.mxu0
      %1196 = vmatprep.mubr.f32.mxu0 0.0
      %1197 = vmatmul.mubr.f32.gmra.mxu0 %v1072
      %v1198 = vpop.f32.mrf.mxu0
      %v1199 = vadd.f32 0.0, %v1198
      %v1200 = vpop.f32.mrf.mxu0
      %1201 = vmatprep.mubr.f32.mxu0 0.0
      %1202 = vmatmul.mubr.f32.gmra.mxu0 %v1074
      %v1203 = vpop.f32.mrf.mxu0
      %v1204 = vadd.f32 0.0, %v1203
      %v1205 = vpop.f32.mrf.mxu0
      %1206 = vmatprep.mubr.f32.mxu0 0.0
      %1207 = vmatmul.mubr.f32.gmra.mxu0 %v1076
      %v1208 = vpop.f32.mrf.mxu0
      %v1209 = vadd.f32 0.0, %v1208
      %v1210 = vpop.f32.mrf.mxu0
      %1211 = vmatprep.mubr.f32.mxu0 0.0
      %1212 = vmatmul.mubr.f32.gmra.mxu0 %v1078
      %v1213 = vpop.f32.mrf.mxu0
      %v1214 = vadd.f32 0.0, %v1213
      %v1215 = vpop.f32.mrf.mxu0
      %1216 = vdwg.mxu0
      %1217 = vrot.lane.b32.xlu0 %v800, 112
      %v1218 = vpop.permute.xlu0 %1217
      %1219 = vrot.lane.b32.xlu0 %v805, 112
      %v1220 = vpop.permute.xlu0 %1219
      %1221 = vrot.lane.b32.xlu0 %v810, 112
      %v1222 = vpop.permute.xlu0 %1221
      %1223 = vrot.lane.b32.xlu0 %v815, 112
      %v1224 = vpop.permute.xlu0 %1223
      %1225 = vrot.lane.b32.xlu0 %v820, 112
      %v1226 = vpop.permute.xlu0 %1225
      %1227 = vrot.lane.b32.xlu0 %v825, 112
      %v1228 = vpop.permute.xlu0 %1227
      %1229 = vrot.lane.b32.xlu0 %v830, 112
      %v1230 = vpop.permute.xlu0 %1229
      %1231 = vrot.lane.b32.xlu0 %v835, 112
      %v1232 = vpop.permute.xlu0 %1231
      %1233 = vrot.lane.b32.xlu0 %v546, 112
      %v1234 = vpop.permute.xlu0 %1233
      %1235 = vrot.lane.b32.xlu0 %v547, 112
      %v1236 = vpop.permute.xlu0 %1235
      %1237 = vrot.lane.b32.xlu0 %v548, 112
      %v1238 = vpop.permute.xlu0 %1237
      %1239 = vrot.lane.b32.xlu0 %v549, 112
      %v1240 = vpop.permute.xlu0 %1239
      %1241 = vrot.lane.b32.xlu0 %v550, 112
      %v1242 = vpop.permute.xlu0 %1241
      %1243 = vrot.lane.b32.xlu0 %v551, 112
      %v1244 = vpop.permute.xlu0 %1243
      %1245 = vrot.lane.b32.xlu0 %v552, 112
      %v1246 = vpop.permute.xlu0 %1245
      %1247 = vrot.lane.b32.xlu0 %v553, 112
      %v1248 = vpop.permute.xlu0 %1247
      %1249 = vrot.lane.b32.xlu0 %v554, 112
      %v1250 = vpop.permute.xlu0 %1249
      %1251 = vrot.lane.b32.xlu0 %v555, 112
      %v1252 = vpop.permute.xlu0 %1251
      %1253 = vrot.lane.b32.xlu0 %v556, 112
      %v1254 = vpop.permute.xlu0 %1253
      %1255 = vrot.lane.b32.xlu0 %v557, 112
      %v1256 = vpop.permute.xlu0 %1255
      %1257 = vrot.lane.b32.xlu0 %v558, 112
      %v1258 = vpop.permute.xlu0 %1257
      %1259 = vrot.lane.b32.xlu0 %v559, 112
      %v1260 = vpop.permute.xlu0 %1259
      %1261 = vrot.lane.b32.xlu0 %v560, 112
      %v1262 = vpop.permute.xlu0 %1261
      %1263 = vrot.lane.b32.xlu0 %v561, 112
      %v1264 = vpop.permute.xlu0 %1263
      %v1265 = vsel %vm838, %v1218, 0
      %v1267 = vsel %vm838, %v1220, 0
      %v1269 = vsel %vm838, %v1222, 0
      %v1271 = vsel %vm838, %v1224, 0
      %v1273 = vsel %vm838, %v1226, 0
      %v1275 = vsel %vm838, %v1228, 0
      %v1277 = vsel %vm838, %v1230, 0
      %v1279 = vsel %vm838, %v1232, 0
      %v1281 = vsel %vm838, %v1234, 0
      %v1283 = vsel %vm838, %v1236, 0
      %v1285 = vsel %vm838, %v1238, 0
      %v1287 = vsel %vm838, %v1240, 0
      %v1289 = vsel %vm838, %v1242, 0
      %v1291 = vsel %vm838, %v1244, 0
      %v1293 = vsel %vm838, %v1246, 0
      %v1295 = vsel %vm838, %v1248, 0
      %v1297 = vsel %vm838, %v1250, 0
      %v1299 = vsel %vm838, %v1252, 0
      %v1301 = vsel %vm838, %v1254, 0
      %v1303 = vsel %vm838, %v1256, 0
      %v1305 = vsel %vm838, %v1258, 0
      %v1307 = vsel %vm838, %v1260, 0
      %v1309 = vsel %vm838, %v1262, 0
      %v1311 = vsel %vm838, %v1264, 0
      %1313 = vmatprep.subr.mxu0 0.0
      %1314 = vmatpush1.xpose.msra.mxu0 %v1311
      %1315 = vmatprep.subr.mxu0 0.0
      %1316 = vmatpush1.xpose.msra.mxu0 %v1309
      %1317 = vmatprep.subr.mxu0 0.0
      %1318 = vmatpush1.xpose.msra.mxu0 %v1307
      %1319 = vmatprep.subr.mxu0 0.0
      %1320 = vmatpush1.xpose.msra.mxu0 %v1305
      %1321 = vmatprep.subr.mxu0 0.0
      %1322 = vmatpush1.xpose.msra.mxu0 %v1303
      %1323 = vmatprep.subr.mxu0 0.0
      %1324 = vmatpush1.xpose.msra.mxu0 %v1301
      %1325 = vmatprep.subr.mxu0 0.0
      %1326 = vmatpush1.xpose.msra.mxu0 %v1299
      %1327 = vmatprep.subr.mxu0 0.0
      %1328 = vmatpush1.xpose.msra.mxu0 %v1297
      %1329 = vmatprep.subr.mxu0 0.0
      %1330 = vmatpush1.xpose.msra.mxu0 %v1295
      %1331 = vmatprep.subr.mxu0 0.0
      %1332 = vmatpush1.xpose.msra.mxu0 %v1293
      %1333 = vmatprep.subr.mxu0 0.0
      %1334 = vmatpush1.xpose.msra.mxu0 %v1291
      %1335 = vmatprep.subr.mxu0 0.0
      %1336 = vmatpush1.xpose.msra.mxu0 %v1289
      %1337 = vmatprep.subr.mxu0 0.0
      %1338 = vmatpush1.xpose.msra.mxu0 %v1287
      %1339 = vmatprep.subr.mxu0 0.0
      %1340 = vmatpush1.xpose.msra.mxu0 %v1285
      %1341 = vmatprep.subr.mxu0 0.0
      %1342 = vmatpush1.xpose.msra.mxu0 %v1283
      %1343 = vmatprep.subr.mxu0 0.0
      %1344 = vmatpush1.xpose.msra.mxu0 %v1281
      %1345 = vmatprep.subr.mxu0 0.0
      %1346 = vmatpush2.xpose.msra.mxu0 0.0
      %1347 = vmatprep.subr.mxu0 0.0
      %1348 = vmatpush2.xpose.msra.mxu0 0.0
      %1349 = vmatprep.subr.mxu0 0.0
      %1350 = vmatpush2.xpose.msra.mxu0 0.0
      %1351 = vmatprep.subr.mxu0 0.0
      %1352 = vmatpush2.xpose.msra.mxu0 0.0
      %1353 = vmatprep.subr.mxu0 0.0
      %1354 = vmatpush2.xpose.msra.mxu0 0.0
      %1355 = vmatprep.subr.mxu0 0.0
      %1356 = vmatpush2.xpose.msra.mxu0 0.0
      %1357 = vmatprep.subr.mxu0 0.0
      %1358 = vmatpush2.xpose.msra.mxu0 0.0
      %1359 = vmatprep.subr.mxu0 0.0
      %1360 = vmatpush2.xpose.msra.mxu0 0.0
      %1361 = vmatprep.subr.mxu0 0.0
      %1362 = vmatpush2.xpose.msra.mxu0 0.0
      %1363 = vmatprep.subr.mxu0 0.0
      %1364 = vmatpush2.xpose.msra.mxu0 0.0
      %1365 = vmatprep.subr.mxu0 0.0
      %1366 = vmatpush2.xpose.msra.mxu0 0.0
      %1367 = vmatprep.subr.mxu0 0.0
      %1368 = vmatpush2.xpose.msra.mxu0 0.0
      %1369 = vmatprep.subr.mxu0 0.0
      %1370 = vmatpush2.xpose.msra.mxu0 0.0
      %1371 = vmatprep.subr.mxu0 0.0
      %1372 = vmatpush2.xpose.msra.mxu0 0.0
      %1373 = vmatprep.subr.mxu0 0.0
      %1374 = vmatpush2.xpose.msra.mxu0 0.0
      %1375 = vmatprep.subr.mxu0 0.0
      %1376 = vmatpush2.xpose.msra.mxu0 0.0
      %1377 = vmatprep.mubr.f32.mxu0 0.0
      %1378 = vmatmul.mubr.f32.gmra.mxu0 %v1265
      %v1379 = vpop.f32.mrf.mxu0
      %v1380 = vadd.f32 0.0, %v1379
      %v1381 = vpop.f32.mrf.mxu0
      %1382 = vmatprep.mubr.f32.mxu0 0.0
      %1383 = vmatmul.mubr.f32.gmra.mxu0 %v1267
      %v1384 = vpop.f32.mrf.mxu0
      %v1385 = vadd.f32 0.0, %v1384
      %v1386 = vpop.f32.mrf.mxu0
      %1387 = vmatprep.mubr.f32.mxu0 0.0
      %1388 = vmatmul.mubr.f32.gmra.mxu0 %v1269
      %v1389 = vpop.f32.mrf.mxu0
      %v1390 = vadd.f32 0.0, %v1389
      %v1391 = vpop.f32.mrf.mxu0
      %1392 = vmatprep.mubr.f32.mxu0 0.0
      %1393 = vmatmul.mubr.f32.gmra.mxu0 %v1271
      %v1394 = vpop.f32.mrf.mxu0
      %v1395 = vadd.f32 0.0, %v1394
      %v1396 = vpop.f32.mrf.mxu0
      %1397 = vmatprep.mubr.f32.mxu0 0.0
      %1398 = vmatmul.mubr.f32.gmra.mxu0 %v1273
      %v1399 = vpop.f32.mrf.mxu0
      %v1400 = vadd.f32 0.0, %v1399
      %v1401 = vpop.f32.mrf.mxu0
      %1402 = vmatprep.mubr.f32.mxu0 0.0
      %1403 = vmatmul.mubr.f32.gmra.mxu0 %v1275
      %v1404 = vpop.f32.mrf.mxu0
      %v1405 = vadd.f32 0.0, %v1404
      %v1406 = vpop.f32.mrf.mxu0
      %1407 = vmatprep.mubr.f32.mxu0 0.0
      %1408 = vmatmul.mubr.f32.gmra.mxu0 %v1277
      %v1409 = vpop.f32.mrf.mxu0
      %v1410 = vadd.f32 0.0, %v1409
      %v1411 = vpop.f32.mrf.mxu0
      %1412 = vmatprep.mubr.f32.mxu0 0.0
      %1413 = vmatmul.mubr.f32.gmra.mxu0 %v1279
      %v1414 = vpop.f32.mrf.mxu0
      %v1415 = vadd.f32 0.0, %v1414
      %v1416 = vpop.f32.mrf.mxu0
      %1417 = vdwg.mxu0
      %1418 = vrot.lane.b32.xlu0 %v800, 104
      %v1419 = vpop.permute.xlu0 %1418
      %1420 = vrot.lane.b32.xlu0 %v805, 104
      %v1421 = vpop.permute.xlu0 %1420
      %1422 = vrot.lane.b32.xlu0 %v810, 104
      %v1423 = vpop.permute.xlu0 %1422
      %1424 = vrot.lane.b32.xlu0 %v815, 104
      %v1425 = vpop.permute.xlu0 %1424
      %1426 = vrot.lane.b32.xlu0 %v820, 104
      %v1427 = vpop.permute.xlu0 %1426
      %1428 = vrot.lane.b32.xlu0 %v825, 104
      %v1429 = vpop.permute.xlu0 %1428
      %1430 = vrot.lane.b32.xlu0 %v830, 104
      %v1431 = vpop.permute.xlu0 %1430
      %1432 = vrot.lane.b32.xlu0 %v835, 104
      %v1433 = vpop.permute.xlu0 %1432
      %1434 = vrot.lane.b32.xlu0 %v546, 104
      %v1435 = vpop.permute.xlu0 %1434
      %1436 = vrot.lane.b32.xlu0 %v547, 104
      %v1437 = vpop.permute.xlu0 %1436
      %1438 = vrot.lane.b32.xlu0 %v548, 104
      %v1439 = vpop.permute.xlu0 %1438
      %1440 = vrot.lane.b32.xlu0 %v549, 104
      %v1441 = vpop.permute.xlu0 %1440
      %1442 = vrot.lane.b32.xlu0 %v550, 104
      %v1443 = vpop.permute.xlu0 %1442
      %1444 = vrot.lane.b32.xlu0 %v551, 104
      %v1445 = vpop.permute.xlu0 %1444
      %1446 = vrot.lane.b32.xlu0 %v552, 104
      %v1447 = vpop.permute.xlu0 %1446
      %1448 = vrot.lane.b32.xlu0 %v553, 104
      %v1449 = vpop.permute.xlu0 %1448
      %1450 = vrot.lane.b32.xlu0 %v554, 104
      %v1451 = vpop.permute.xlu0 %1450
      %1452 = vrot.lane.b32.xlu0 %v555, 104
      %v1453 = vpop.permute.xlu0 %1452
      %1454 = vrot.lane.b32.xlu0 %v556, 104
      %v1455 = vpop.permute.xlu0 %1454
      %1456 = vrot.lane.b32.xlu0 %v557, 104
      %v1457 = vpop.permute.xlu0 %1456
      %1458 = vrot.lane.b32.xlu0 %v558, 104
      %v1459 = vpop.permute.xlu0 %1458
      %1460 = vrot.lane.b32.xlu0 %v559, 104
      %v1461 = vpop.permute.xlu0 %1460
      %1462 = vrot.lane.b32.xlu0 %v560, 104
      %v1463 = vpop.permute.xlu0 %1462
      %1464 = vrot.lane.b32.xlu0 %v561, 104
      %v1465 = vpop.permute.xlu0 %1464
      %v1466 = vsel %vm838, %v1419, 0
      %v1468 = vsel %vm838, %v1421, 0
      %v1470 = vsel %vm838, %v1423, 0
      %v1472 = vsel %vm838, %v1425, 0
      %v1474 = vsel %vm838, %v1427, 0
      %v1476 = vsel %vm838, %v1429, 0
      %v1478 = vsel %vm838, %v1431, 0
      %v1480 = vsel %vm838, %v1433, 0
      %v1482 = vsel %vm838, %v1435, 0
      %v1484 = vsel %vm838, %v1437, 0
      %v1486 = vsel %vm838, %v1439, 0
      %v1488 = vsel %vm838, %v1441, 0
      %v1490 = vsel %vm838, %v1443, 0
      %v1492 = vsel %vm838, %v1445, 0
      %v1494 = vsel %vm838, %v1447, 0
      %v1496 = vsel %vm838, %v1449, 0
      %v1498 = vsel %vm838, %v1451, 0
      %v1500 = vsel %vm838, %v1453, 0
      %v1502 = vsel %vm838, %v1455, 0
      %v1504 = vsel %vm838, %v1457, 0
      %v1506 = vsel %vm838, %v1459, 0
      %v1508 = vsel %vm838, %v1461, 0
      %v1510 = vsel %vm838, %v1463, 0
      %v1512 = vsel %vm838, %v1465, 0
      %1514 = vmatprep.subr.mxu0 0.0
      %1515 = vmatpush1.xpose.msra.mxu0 %v1512
      %1516 = vmatprep.subr.mxu0 0.0
      %1517 = vmatpush1.xpose.msra.mxu0 %v1510
      %1518 = vmatprep.subr.mxu0 0.0
      %1519 = vmatpush1.xpose.msra.mxu0 %v1508
      %1520 = vmatprep.subr.mxu0 0.0
      %1521 = vmatpush1.xpose.msra.mxu0 %v1506
      %1522 = vmatprep.subr.mxu0 0.0
      %1523 = vmatpush1.xpose.msra.mxu0 %v1504
      %1524 = vmatprep.subr.mxu0 0.0
      %1525 = vmatpush1.xpose.msra.mxu0 %v1502
      %1526 = vmatprep.subr.mxu0 0.0
      %1527 = vmatpush1.xpose.msra.mxu0 %v1500
      %1528 = vmatprep.subr.mxu0 0.0
      %1529 = vmatpush1.xpose.msra.mxu0 %v1498
      %1530 = vmatprep.subr.mxu0 0.0
      %1531 = vmatpush1.xpose.msra.mxu0 %v1496
      %1532 = vmatprep.subr.mxu0 0.0
      %1533 = vmatpush1.xpose.msra.mxu0 %v1494
      %1534 = vmatprep.subr.mxu0 0.0
      %1535 = vmatpush1.xpose.msra.mxu0 %v1492
      %1536 = vmatprep.subr.mxu0 0.0
      %1537 = vmatpush1.xpose.msra.mxu0 %v1490
      %1538 = vmatprep.subr.mxu0 0.0
      %1539 = vmatpush1.xpose.msra.mxu0 %v1488
      %1540 = vmatprep.subr.mxu0 0.0
      %1541 = vmatpush1.xpose.msra.mxu0 %v1486
      %1542 = vmatprep.subr.mxu0 0.0
      %1543 = vmatpush1.xpose.msra.mxu0 %v1484
      %1544 = vmatprep.subr.mxu0 0.0
      %1545 = vmatpush1.xpose.msra.mxu0 %v1482
      %1546 = vmatprep.subr.mxu0 0.0
      %1547 = vmatpush2.xpose.msra.mxu0 0.0
      %1548 = vmatprep.subr.mxu0 0.0
      %1549 = vmatpush2.xpose.msra.mxu0 0.0
      %1550 = vmatprep.subr.mxu0 0.0
      %1551 = vmatpush2.xpose.msra.mxu0 0.0
      %1552 = vmatprep.subr.mxu0 0.0
      %1553 = vmatpush2.xpose.msra.mxu0 0.0
      %1554 = vmatprep.subr.mxu0 0.0
      %1555 = vmatpush2.xpose.msra.mxu0 0.0
      %1556 = vmatprep.subr.mxu0 0.0
      %1557 = vmatpush2.xpose.msra.mxu0 0.0
      %1558 = vmatprep.subr.mxu0 0.0
      %1559 = vmatpush2.xpose.msra.mxu0 0.0
      %1560 = vmatprep.subr.mxu0 0.0
      %1561 = vmatpush2.xpose.msra.mxu0 0.0
      %1562 = vmatprep.subr.mxu0 0.0
      %1563 = vmatpush2.xpose.msra.mxu0 0.0
      %1564 = vmatprep.subr.mxu0 0.0
      %1565 = vmatpush2.xpose.msra.mxu0 0.0
      %1566 = vmatprep.subr.mxu0 0.0
      %1567 = vmatpush2.xpose.msra.mxu0 0.0
      %1568 = vmatprep.subr.mxu0 0.0
      %1569 = vmatpush2.xpose.msra.mxu0 0.0
      %1570 = vmatprep.subr.mxu0 0.0
      %1571 = vmatpush2.xpose.msra.mxu0 0.0
      %1572 = vmatprep.subr.mxu0 0.0
      %1573 = vmatpush2.xpose.msra.mxu0 0.0
      %1574 = vmatprep.subr.mxu0 0.0
      %1575 = vmatpush2.xpose.msra.mxu0 0.0
      %1576 = vmatprep.subr.mxu0 0.0
      %1577 = vmatpush2.xpose.msra.mxu0 0.0
      %1578 = vmatprep.mubr.f32.mxu0 0.0
      %1579 = vmatmul.mubr.f32.gmra.mxu0 %v1466
      %v1580 = vpop.f32.mrf.mxu0
      %v1581 = vadd.f32 0.0, %v1580
      %v1582 = vpop.f32.mrf.mxu0
      %1583 = vmatprep.mubr.f32.mxu0 0.0
      %1584 = vmatmul.mubr.f32.gmra.mxu0 %v1468
      %v1585 = vpop.f32.mrf.mxu0
      %v1586 = vadd.f32 0.0, %v1585
      %v1587 = vpop.f32.mrf.mxu0
      %1588 = vmatprep.mubr.f32.mxu0 0.0
      %1589 = vmatmul.mubr.f32.gmra.mxu0 %v1470
      %v1590 = vpop.f32.mrf.mxu0
      %v1591 = vadd.f32 0.0, %v1590
      %v1592 = vpop.f32.mrf.mxu0
      %1593 = vmatprep.mubr.f32.mxu0 0.0
      %1594 = vmatmul.mubr.f32.gmra.mxu0 %v1472
      %v1595 = vpop.f32.mrf.mxu0
      %v1596 = vadd.f32 0.0, %v1595
      %v1597 = vpop.f32.mrf.mxu0
      %1598 = vmatprep.mubr.f32.mxu0 0.0
      %1599 = vmatmul.mubr.f32.gmra.mxu0 %v1474
      %v1600 = vpop.f32.mrf.mxu0
      %v1601 = vadd.f32 0.0, %v1600
      %v1602 = vpop.f32.mrf.mxu0
      %1603 = vmatprep.mubr.f32.mxu0 0.0
      %1604 = vmatmul.mubr.f32.gmra.mxu0 %v1476
      %v1605 = vpop.f32.mrf.mxu0
      %v1606 = vadd.f32 0.0, %v1605
      %v1607 = vpop.f32.mrf.mxu0
      %1608 = vmatprep.mubr.f32.mxu0 0.0
      %1609 = vmatmul.mubr.f32.gmra.mxu0 %v1478
      %v1610 = vpop.f32.mrf.mxu0
      %v1611 = vadd.f32 0.0, %v1610
      %v1612 = vpop.f32.mrf.mxu0
      %1613 = vmatprep.mubr.f32.mxu0 0.0
      %1614 = vmatmul.mubr.f32.gmra.mxu0 %v1480
      %v1615 = vpop.f32.mrf.mxu0
      %v1616 = vadd.f32 0.0, %v1615
      %v1617 = vpop.f32.mrf.mxu0
      %1618 = vdwg.mxu0
      %v1619 = vmul.f32 %v978, 0.35355338
      %v1620 = vmul.f32 %v983, 0.35355338
      %v1621 = vmul.f32 %v988, 0.35355338
      %v1622 = vmul.f32 %v993, 0.35355338
      %v1623 = vmul.f32 %v998, 0.35355338
      %v1624 = vmul.f32 %v1003, 0.35355338
      %v1625 = vmul.f32 %v1008, 0.35355338
      %v1626 = vmul.f32 %v1013, 0.35355338
      %v1627 = vmul.f32 %v1179, 0.35355338
      %v1628 = vmul.f32 %v1184, 0.35355338
      %v1629 = vmul.f32 %v1189, 0.35355338
      %v1630 = vmul.f32 %v1194, 0.35355338
      %v1631 = vmul.f32 %v1199, 0.35355338
      %v1632 = vmul.f32 %v1204, 0.35355338
      %v1633 = vmul.f32 %v1209, 0.35355338
      %v1634 = vmul.f32 %v1214, 0.35355338
      %v1635 = vmul.f32 %v1380, 0.35355338
      %v1636 = vmul.f32 %v1385, 0.35355338
      %v1637 = vmul.f32 %v1390, 0.35355338
      %v1638 = vmul.f32 %v1395, 0.35355338
      %v1639 = vmul.f32 %v1400, 0.35355338
      %v1640 = vmul.f32 %v1405, 0.35355338
      %v1641 = vmul.f32 %v1410, 0.35355338
      %v1642 = vmul.f32 %v1415, 0.35355338
      %v1643 = vmul.f32 %v1581, 0.35355338
      %v1644 = vmul.f32 %v1586, 0.35355338
      %v1645 = vmul.f32 %v1591, 0.35355338
      %v1646 = vmul.f32 %v1596, 0.35355338
      %v1647 = vmul.f32 %v1601, 0.35355338
      %v1648 = vmul.f32 %v1606, 0.35355338
      %v1649 = vmul.f32 %v1611, 0.35355338
      %v1650 = vmul.f32 %v1616, 0.35355338
      %vm1651 = vcmp.gt.f32.partialorder %v538, 0.0
      %vm1652 = vcmp.gt.f32.partialorder %v539, 0.0
      %vm1653 = vcmp.gt.f32.partialorder %v540, 0.0
      %vm1654 = vcmp.gt.f32.partialorder %v541, 0.0
      %vm1655 = vcmp.gt.f32.partialorder %v542, 0.0
      %vm1656 = vcmp.gt.f32.partialorder %v543, 0.0
      %vm1657 = vcmp.gt.f32.partialorder %v544, 0.0
      %vm1658 = vcmp.gt.f32.partialorder %v545, 0.0
      %v1659 = vsel %vm1651, %v1619, -1e+30
      %v1660 = vsel %vm1652, %v1620, -1e+30
      %v1661 = vsel %vm1653, %v1621, -1e+30
      %v1662 = vsel %vm1654, %v1622, -1e+30
      %v1663 = vsel %vm1655, %v1623, -1e+30
      %v1664 = vsel %vm1656, %v1624, -1e+30
      %v1665 = vsel %vm1657, %v1625, -1e+30
      %v1666 = vsel %vm1658, %v1626, -1e+30
      %v1667 = vsel %vm1651, %v1627, -1e+30
      %v1668 = vsel %vm1652, %v1628, -1e+30
      %v1669 = vsel %vm1653, %v1629, -1e+30
      %v1670 = vsel %vm1654, %v1630, -1e+30
      %v1671 = vsel %vm1655, %v1631, -1e+30
      %v1672 = vsel %vm1656, %v1632, -1e+30
      %v1673 = vsel %vm1657, %v1633, -1e+30
      %v1674 = vsel %vm1658, %v1634, -1e+30
      %v1675 = vsel %vm1651, %v1635, -1e+30
      %v1676 = vsel %vm1652, %v1636, -1e+30
      %v1677 = vsel %vm1653, %v1637, -1e+30
      %v1678 = vsel %vm1654, %v1638, -1e+30
      %v1679 = vsel %vm1655, %v1639, -1e+30
      %v1680 = vsel %vm1656, %v1640, -1e+30
      %v1681 = vsel %vm1657, %v1641, -1e+30
      %v1682 = vsel %vm1658, %v1642, -1e+30
      %v1683 = vsel %vm1651, %v1643, -1e+30
      %v1684 = vsel %vm1652, %v1644, -1e+30
      %v1685 = vsel %vm1653, %v1645, -1e+30
      %v1686 = vsel %vm1654, %v1646, -1e+30
      %v1687 = vsel %vm1655, %v1647, -1e+30
      %v1688 = vsel %vm1656, %v1648, -1e+30
      %v1689 = vsel %vm1657, %v1649, -1e+30
      %v1690 = vsel %vm1658, %v1650, -1e+30
      %1691 = vmax.xlane.f32.xlu0 %v1659
      %v1692 = vpop.xlane.xlu0 %1691
      %1693 = vmax.xlane.f32.xlu0 %v1660
      %v1694 = vpop.xlane.xlu0 %1693
      %1695 = vmax.xlane.f32.xlu0 %v1661
      %v1696 = vpop.xlane.xlu0 %1695
      %1697 = vmax.xlane.f32.xlu0 %v1662
      %v1698 = vpop.xlane.xlu0 %1697
      %1699 = vmax.xlane.f32.xlu0 %v1663
      %v1700 = vpop.xlane.xlu0 %1699
      %1701 = vmax.xlane.f32.xlu0 %v1664
      %v1702 = vpop.xlane.xlu0 %1701
      %1703 = vmax.xlane.f32.xlu0 %v1665
      %v1704 = vpop.xlane.xlu0 %1703
      %1705 = vmax.xlane.f32.xlu0 %v1666
      %v1706 = vpop.xlane.xlu0 %1705
      %1707 = vmax.xlane.f32.xlu0 %v1667
      %v1708 = vpop.xlane.xlu0 %1707
      %1709 = vmax.xlane.f32.xlu0 %v1668
      %v1710 = vpop.xlane.xlu0 %1709
      %1711 = vmax.xlane.f32.xlu0 %v1669
      %v1712 = vpop.xlane.xlu0 %1711
      %1713 = vmax.xlane.f32.xlu0 %v1670
      %v1714 = vpop.xlane.xlu0 %1713
      %1715 = vmax.xlane.f32.xlu0 %v1671
      %v1716 = vpop.xlane.xlu0 %1715
      %1717 = vmax.xlane.f32.xlu0 %v1672
      %v1718 = vpop.xlane.xlu0 %1717
      %1719 = vmax.xlane.f32.xlu0 %v1673
      %v1720 = vpop.xlane.xlu0 %1719
      %1721 = vmax.xlane.f32.xlu0 %v1674
      %v1722 = vpop.xlane.xlu0 %1721
      %1723 = vmax.xlane.f32.xlu0 %v1675
      %v1724 = vpop.xlane.xlu0 %1723
      %1725 = vmax.xlane.f32.xlu0 %v1676
      %v1726 = vpop.xlane.xlu0 %1725
      %1727 = vmax.xlane.f32.xlu0 %v1677
      %v1728 = vpop.xlane.xlu0 %1727
      %1729 = vmax.xlane.f32.xlu0 %v1678
      %v1730 = vpop.xlane.xlu0 %1729
      %1731 = vmax.xlane.f32.xlu0 %v1679
      %v1732 = vpop.xlane.xlu0 %1731
      %1733 = vmax.xlane.f32.xlu0 %v1680
      %v1734 = vpop.xlane.xlu0 %1733
      %1735 = vmax.xlane.f32.xlu0 %v1681
      %v1736 = vpop.xlane.xlu0 %1735
      %1737 = vmax.xlane.f32.xlu0 %v1682
      %v1738 = vpop.xlane.xlu0 %1737
      %1739 = vmax.xlane.f32.xlu0 %v1683
      %v1740 = vpop.xlane.xlu0 %1739
      %1741 = vmax.xlane.f32.xlu0 %v1684
      %v1742 = vpop.xlane.xlu0 %1741
      %1743 = vmax.xlane.f32.xlu0 %v1685
      %v1744 = vpop.xlane.xlu0 %1743
      %1745 = vmax.xlane.f32.xlu0 %v1686
      %v1746 = vpop.xlane.xlu0 %1745
      %1747 = vmax.xlane.f32.xlu0 %v1687
      %v1748 = vpop.xlane.xlu0 %1747
      %1749 = vmax.xlane.f32.xlu0 %v1688
      %v1750 = vpop.xlane.xlu0 %1749
      %1751 = vmax.xlane.f32.xlu0 %v1689
      %v1752 = vpop.xlane.xlu0 %1751
      %1753 = vmax.xlane.f32.xlu0 %v1690
      %v1754 = vpop.xlane.xlu0 %1753
      %v1755 = vsub.f32 %v1659, %v1692
      %v1756 = vsub.f32 %v1660, %v1694
      %v1757 = vsub.f32 %v1661, %v1696
      %v1758 = vsub.f32 %v1662, %v1698
      %v1759 = vsub.f32 %v1663, %v1700
      %v1760 = vsub.f32 %v1664, %v1702
      %v1761 = vsub.f32 %v1665, %v1704
      %v1762 = vsub.f32 %v1666, %v1706
      %v1763 = vsub.f32 %v1667, %v1708
      %v1764 = vsub.f32 %v1668, %v1710
      %v1765 = vsub.f32 %v1669, %v1712
      %v1766 = vsub.f32 %v1670, %v1714
      %v1767 = vsub.f32 %v1671, %v1716
      %v1768 = vsub.f32 %v1672, %v1718
      %v1769 = vsub.f32 %v1673, %v1720
      %v1770 = vsub.f32 %v1674, %v1722
      %v1771 = vsub.f32 %v1675, %v1724
      %v1772 = vsub.f32 %v1676, %v1726
      %v1773 = vsub.f32 %v1677, %v1728
      %v1774 = vsub.f32 %v1678, %v1730
      %v1775 = vsub.f32 %v1679, %v1732
      %v1776 = vsub.f32 %v1680, %v1734
      %v1777 = vsub.f32 %v1681, %v1736
      %v1778 = vsub.f32 %v1682, %v1738
      %v1779 = vsub.f32 %v1683, %v1740
      %v1780 = vsub.f32 %v1684, %v1742
      %v1781 = vsub.f32 %v1685, %v1744
      %v1782 = vsub.f32 %v1686, %v1746
      %v1783 = vsub.f32 %v1687, %v1748
      %v1784 = vsub.f32 %v1688, %v1750
      %v1785 = vsub.f32 %v1689, %v1752
      %v1786 = vsub.f32 %v1690, %v1754
      %v1787 = vmul.f32 %v1755, 1.442695
      %v1788 = vpow.pop %v1787
      %v1789 = vmul.f32 %v1756, 1.442695
      %v1790 = vpow.pop %v1789
      %v1791 = vmul.f32 %v1757, 1.442695
      %v1792 = vpow.pop %v1791
      %v1793 = vmul.f32 %v1758, 1.442695
      %v1794 = vpow.pop %v1793
      %v1795 = vmul.f32 %v1759, 1.442695
      %v1796 = vpow.pop %v1795
      %v1797 = vmul.f32 %v1760, 1.442695
      %v1798 = vpow.pop %v1797
      %v1799 = vmul.f32 %v1761, 1.442695
      %v1800 = vpow.pop %v1799
      %v1801 = vmul.f32 %v1762, 1.442695
      %v1802 = vpow.pop %v1801
      %v1803 = vmul.f32 %v1763, 1.442695
      %v1804 = vpow.pop %v1803
      %v1805 = vmul.f32 %v1764, 1.442695
      %v1806 = vpow.pop %v1805
      %v1807 = vmul.f32 %v1765, 1.442695
      %v1808 = vpow.pop %v1807
      %v1809 = vmul.f32 %v1766, 1.442695
      %v1810 = vpow.pop %v1809
      %v1811 = vmul.f32 %v1767, 1.442695
      %v1812 = vpow.pop %v1811
      %v1813 = vmul.f32 %v1768, 1.442695
      %v1814 = vpow.pop %v1813
      %v1815 = vmul.f32 %v1769, 1.442695
      %v1816 = vpow.pop %v1815
      %v1817 = vmul.f32 %v1770, 1.442695
      %v1818 = vpow.pop %v1817
      %v1819 = vmul.f32 %v1771, 1.442695
      %v1820 = vpow.pop %v1819
      %v1821 = vmul.f32 %v1772, 1.442695
      %v1822 = vpow.pop %v1821
      %v1823 = vmul.f32 %v1773, 1.442695
      %v1824 = vpow.pop %v1823
      %v1825 = vmul.f32 %v1774, 1.442695
      %v1826 = vpow.pop %v1825
      %v1827 = vmul.f32 %v1775, 1.442695
      %v1828 = vpow.pop %v1827
      %v1829 = vmul.f32 %v1776, 1.442695
      %v1830 = vpow.pop %v1829
      %v1831 = vmul.f32 %v1777, 1.442695
      %v1832 = vpow.pop %v1831
      %v1833 = vmul.f32 %v1778, 1.442695
      %v1834 = vpow.pop %v1833
      %v1835 = vmul.f32 %v1779, 1.442695
      %v1836 = vpow.pop %v1835
      %v1837 = vmul.f32 %v1780, 1.442695
      %v1838 = vpow.pop %v1837
      %v1839 = vmul.f32 %v1781, 1.442695
      %v1840 = vpow.pop %v1839
      %v1841 = vmul.f32 %v1782, 1.442695
      %v1842 = vpow.pop %v1841
      %v1843 = vmul.f32 %v1783, 1.442695
      %v1844 = vpow.pop %v1843
      %v1845 = vmul.f32 %v1784, 1.442695
      %v1846 = vpow.pop %v1845
      %v1847 = vmul.f32 %v1785, 1.442695
      %v1848 = vpow.pop %v1847
      %v1849 = vmul.f32 %v1786, 1.442695
      %v1850 = vpow.pop %v1849
      %v1851 = vmul.f32 %v538, %v1788
      %v1852 = vmul.f32 %v539, %v1790
      %v1853 = vmul.f32 %v540, %v1792
      %v1854 = vmul.f32 %v541, %v1794
      %v1855 = vmul.f32 %v542, %v1796
      %v1856 = vmul.f32 %v543, %v1798
      %v1857 = vmul.f32 %v544, %v1800
      %v1858 = vmul.f32 %v545, %v1802
      %v1859 = vmul.f32 %v538, %v1804
      %v1860 = vmul.f32 %v539, %v1806
      %v1861 = vmul.f32 %v540, %v1808
      %v1862 = vmul.f32 %v541, %v1810
      %v1863 = vmul.f32 %v542, %v1812
      %v1864 = vmul.f32 %v543, %v1814
      %v1865 = vmul.f32 %v544, %v1816
      %v1866 = vmul.f32 %v545, %v1818
      %v1867 = vmul.f32 %v538, %v1820
      %v1868 = vmul.f32 %v539, %v1822
      %v1869 = vmul.f32 %v540, %v1824
      %v1870 = vmul.f32 %v541, %v1826
      %v1871 = vmul.f32 %v542, %v1828
      %v1872 = vmul.f32 %v543, %v1830
      %v1873 = vmul.f32 %v544, %v1832
      %v1874 = vmul.f32 %v545, %v1834
      %v1875 = vmul.f32 %v538, %v1836
      %v1876 = vmul.f32 %v539, %v1838
      %v1877 = vmul.f32 %v540, %v1840
      %v1878 = vmul.f32 %v541, %v1842
      %v1879 = vmul.f32 %v542, %v1844
      %v1880 = vmul.f32 %v543, %v1846
      %v1881 = vmul.f32 %v544, %v1848
      %v1882 = vmul.f32 %v545, %v1850
      %1883 = vadd.xlane.f32.xlu0 %v1851
      %v1884 = vpop.xlane.xlu0 %1883
      %1885 = vadd.xlane.f32.xlu0 %v1852
      %v1886 = vpop.xlane.xlu0 %1885
      %1887 = vadd.xlane.f32.xlu0 %v1853
      %v1888 = vpop.xlane.xlu0 %1887
      %1889 = vadd.xlane.f32.xlu0 %v1854
      %v1890 = vpop.xlane.xlu0 %1889
      %1891 = vadd.xlane.f32.xlu0 %v1855
      %v1892 = vpop.xlane.xlu0 %1891
      %1893 = vadd.xlane.f32.xlu0 %v1856
      %v1894 = vpop.xlane.xlu0 %1893
      %1895 = vadd.xlane.f32.xlu0 %v1857
      %v1896 = vpop.xlane.xlu0 %1895
      %1897 = vadd.xlane.f32.xlu0 %v1858
      %v1898 = vpop.xlane.xlu0 %1897
      %1899 = vadd.xlane.f32.xlu0 %v1859
      %v1900 = vpop.xlane.xlu0 %1899
      %1901 = vadd.xlane.f32.xlu0 %v1860
      %v1902 = vpop.xlane.xlu0 %1901
      %1903 = vadd.xlane.f32.xlu0 %v1861
      %v1904 = vpop.xlane.xlu0 %1903
      %1905 = vadd.xlane.f32.xlu0 %v1862
      %v1906 = vpop.xlane.xlu0 %1905
      %1907 = vadd.xlane.f32.xlu0 %v1863
      %v1908 = vpop.xlane.xlu0 %1907
      %1909 = vadd.xlane.f32.xlu0 %v1864
      %v1910 = vpop.xlane.xlu0 %1909
      %1911 = vadd.xlane.f32.xlu0 %v1865
      %v1912 = vpop.xlane.xlu0 %1911
      %1913 = vadd.xlane.f32.xlu0 %v1866
      %v1914 = vpop.xlane.xlu0 %1913
      %1915 = vadd.xlane.f32.xlu0 %v1867
      %v1916 = vpop.xlane.xlu0 %1915
      %1917 = vadd.xlane.f32.xlu0 %v1868
      %v1918 = vpop.xlane.xlu0 %1917
      %1919 = vadd.xlane.f32.xlu0 %v1869
      %v1920 = vpop.xlane.xlu0 %1919
      %1921 = vadd.xlane.f32.xlu0 %v1870
      %v1922 = vpop.xlane.xlu0 %1921
      %1923 = vadd.xlane.f32.xlu0 %v1871
      %v1924 = vpop.xlane.xlu0 %1923
      %1925 = vadd.xlane.f32.xlu0 %v1872
      %v1926 = vpop.xlane.xlu0 %1925
      %1927 = vadd.xlane.f32.xlu0 %v1873
      %v1928 = vpop.xlane.xlu0 %1927
      %1929 = vadd.xlane.f32.xlu0 %v1874
      %v1930 = vpop.xlane.xlu0 %1929
      %1931 = vadd.xlane.f32.xlu0 %v1875
      %v1932 = vpop.xlane.xlu0 %1931
      %1933 = vadd.xlane.f32.xlu0 %v1876
      %v1934 = vpop.xlane.xlu0 %1933
      %1935 = vadd.xlane.f32.xlu0 %v1877
      %v1936 = vpop.xlane.xlu0 %1935
      %1937 = vadd.xlane.f32.xlu0 %v1878
      %v1938 = vpop.xlane.xlu0 %1937
      %1939 = vadd.xlane.f32.xlu0 %v1879
      %v1940 = vpop.xlane.xlu0 %1939
      %1941 = vadd.xlane.f32.xlu0 %v1880
      %v1942 = vpop.xlane.xlu0 %1941
      %1943 = vadd.xlane.f32.xlu0 %v1881
      %v1944 = vpop.xlane.xlu0 %1943
      %1945 = vadd.xlane.f32.xlu0 %v1882
      %v1946 = vpop.xlane.xlu0 %1945
      %vm1947 = vcmp.gt.f32.partialorder %v1884, 0.0
      %vm1948 = vcmp.gt.f32.partialorder %v1886, 0.0
      %vm1949 = vcmp.gt.f32.partialorder %v1888, 0.0
      %vm1950 = vcmp.gt.f32.partialorder %v1890, 0.0
      %vm1951 = vcmp.gt.f32.partialorder %v1892, 0.0
      %vm1952 = vcmp.gt.f32.partialorder %v1894, 0.0
      %vm1953 = vcmp.gt.f32.partialorder %v1896, 0.0
      %vm1954 = vcmp.gt.f32.partialorder %v1898, 0.0
      %vm1955 = vcmp.gt.f32.partialorder %v1900, 0.0
      %vm1956 = vcmp.gt.f32.partialorder %v1902, 0.0
      %vm1957 = vcmp.gt.f32.partialorder %v1904, 0.0
      %vm1958 = vcmp.gt.f32.partialorder %v1906, 0.0
      %vm1959 = vcmp.gt.f32.partialorder %v1908, 0.0
      %vm1960 = vcmp.gt.f32.partialorder %v1910, 0.0
      %vm1961 = vcmp.gt.f32.partialorder %v1912, 0.0
      %vm1962 = vcmp.gt.f32.partialorder %v1914, 0.0
      %vm1963 = vcmp.gt.f32.partialorder %v1916, 0.0
      %vm1964 = vcmp.gt.f32.partialorder %v1918, 0.0
      %vm1965 = vcmp.gt.f32.partialorder %v1920, 0.0
      %vm1966 = vcmp.gt.f32.partialorder %v1922, 0.0
      %vm1967 = vcmp.gt.f32.partialorder %v1924, 0.0
      %vm1968 = vcmp.gt.f32.partialorder %v1926, 0.0
      %vm1969 = vcmp.gt.f32.partialorder %v1928, 0.0
      %vm1970 = vcmp.gt.f32.partialorder %v1930, 0.0
      %vm1971 = vcmp.gt.f32.partialorder %v1932, 0.0
      %vm1972 = vcmp.gt.f32.partialorder %v1934, 0.0
      %vm1973 = vcmp.gt.f32.partialorder %v1936, 0.0
      %vm1974 = vcmp.gt.f32.partialorder %v1938, 0.0
      %vm1975 = vcmp.gt.f32.partialorder %v1940, 0.0
      %vm1976 = vcmp.gt.f32.partialorder %v1942, 0.0
      %vm1977 = vcmp.gt.f32.partialorder %v1944, 0.0
      %vm1978 = vcmp.gt.f32.partialorder %v1946, 0.0
      %v1979 = vsel %vm1947, %v1884, 1.0
      %v1980 = vsel %vm1948, %v1886, 1.0
      %v1981 = vsel %vm1949, %v1888, 1.0
      %v1982 = vsel %vm1950, %v1890, 1.0
      %v1983 = vsel %vm1951, %v1892, 1.0
      %v1984 = vsel %vm1952, %v1894, 1.0
      %v1985 = vsel %vm1953, %v1896, 1.0
      %v1986 = vsel %vm1954, %v1898, 1.0
      %v1987 = vsel %vm1955, %v1900, 1.0
      %v1988 = vsel %vm1956, %v1902, 1.0
      %v1989 = vsel %vm1957, %v1904, 1.0
      %v1990 = vsel %vm1958, %v1906, 1.0
      %v1991 = vsel %vm1959, %v1908, 1.0
      %v1992 = vsel %vm1960, %v1910, 1.0
      %v1993 = vsel %vm1961, %v1912, 1.0
      %v1994 = vsel %vm1962, %v1914, 1.0
      %v1995 = vsel %vm1963, %v1916, 1.0
      %v1996 = vsel %vm1964, %v1918, 1.0
      %v1997 = vsel %vm1965, %v1920, 1.0
      %v1998 = vsel %vm1966, %v1922, 1.0
      %v1999 = vsel %vm1967, %v1924, 1.0
      %v2000 = vsel %vm1968, %v1926, 1.0
      %v2001 = vsel %vm1969, %v1928, 1.0
      %v2002 = vsel %vm1970, %v1930, 1.0
      %v2003 = vsel %vm1971, %v1932, 1.0
      %v2004 = vsel %vm1972, %v1934, 1.0
      %v2005 = vsel %vm1973, %v1936, 1.0
      %v2006 = vsel %vm1974, %v1938, 1.0
      %v2007 = vsel %vm1975, %v1940, 1.0
      %v2008 = vsel %vm1976, %v1942, 1.0
      %v2009 = vsel %vm1977, %v1944, 1.0
      %v2010 = vsel %vm1978, %v1946, 1.0
      %v2011 = vrcp.pop %v1979
      %v2012 = vrcp.pop %v1980
      %v2013 = vrcp.pop %v1981
      %v2014 = vrcp.pop %v1982
      %v2015 = vrcp.pop %v1983
      %v2016 = vrcp.pop %v1984
      %v2017 = vrcp.pop %v1985
      %v2018 = vrcp.pop %v1986
      %v2019 = vrcp.pop %v1987
      %v2020 = vrcp.pop %v1988
      %v2021 = vrcp.pop %v1989
      %v2022 = vrcp.pop %v1990
      %v2023 = vrcp.pop %v1991
      %v2024 = vrcp.pop %v1992
      %v2025 = vrcp.pop %v1993
      %v2026 = vrcp.pop %v1994
      %v2027 = vrcp.pop %v1995
      %v2028 = vrcp.pop %v1996
      %v2029 = vrcp.pop %v1997
      %v2030 = vrcp.pop %v1998
      %v2031 = vrcp.pop %v1999
      %v2032 = vrcp.pop %v2000
      %v2033 = vrcp.pop %v2001
      %v2034 = vrcp.pop %v2002
      %v2035 = vrcp.pop %v2003
      %v2036 = vrcp.pop %v2004
      %v2037 = vrcp.pop %v2005
      %v2038 = vrcp.pop %v2006
      %v2039 = vrcp.pop %v2007
      %v2040 = vrcp.pop %v2008
      %v2041 = vrcp.pop %v2009
      %v2042 = vrcp.pop %v2010
      %v2043 = vmul.f32 %v1851, %v2011
      %v2044 = vmul.f32 %v1852, %v2012
      %v2045 = vmul.f32 %v1853, %v2013
      %v2046 = vmul.f32 %v1854, %v2014
      %v2047 = vmul.f32 %v1855, %v2015
      %v2048 = vmul.f32 %v1856, %v2016
      %v2049 = vmul.f32 %v1857, %v2017
      %v2050 = vmul.f32 %v1858, %v2018
      %v2051 = vmul.f32 %v1859, %v2019
      %v2052 = vmul.f32 %v1860, %v2020
      %v2053 = vmul.f32 %v1861, %v2021
      %v2054 = vmul.f32 %v1862, %v2022
      %v2055 = vmul.f32 %v1863, %v2023
      %v2056 = vmul.f32 %v1864, %v2024
      %v2057 = vmul.f32 %v1865, %v2025
      %v2058 = vmul.f32 %v1866, %v2026
      %v2059 = vmul.f32 %v1867, %v2027
      %v2060 = vmul.f32 %v1868, %v2028
      %v2061 = vmul.f32 %v1869, %v2029
      %v2062 = vmul.f32 %v1870, %v2030
      %v2063 = vmul.f32 %v1871, %v2031
      %v2064 = vmul.f32 %v1872, %v2032
      %v2065 = vmul.f32 %v1873, %v2033
      %v2066 = vmul.f32 %v1874, %v2034
      %v2067 = vmul.f32 %v1875, %v2035
      %v2068 = vmul.f32 %v1876, %v2036
      %v2069 = vmul.f32 %v1877, %v2037
      %v2070 = vmul.f32 %v1878, %v2038
      %v2071 = vmul.f32 %v1879, %v2039
      %v2072 = vmul.f32 %v1880, %v2040
      %v2073 = vmul.f32 %v1881, %v2041
      %v2074 = vmul.f32 %v1882, %v2042
      %v2075 = vld [vmem:[%s3] sm:$0xff]
      %v2076 = vld [vmem:[%s3 + $0x8] sm:$0xff]
      %v2077 = vld [vmem:[%s3 + $0x10] sm:$0xff]
      %v2078 = vld [vmem:[%s3 + $0x18] sm:$0xff]
      %v2079 = vld [vmem:[%s3 + $0x20] sm:$0xff]
      %v2080 = vld [vmem:[%s3 + $0x28] sm:$0xff]
      %v2081 = vld [vmem:[%s3 + $0x30] sm:$0xff]
      %v2082 = vld [vmem:[%s3 + $0x38] sm:$0xff]
      %v2083 = vld [vmem:[%s3 + $0x40] sm:$0xff]
      %v2084 = vld [vmem:[%s3 + $0x48] sm:$0xff]
      %v2085 = vld [vmem:[%s3 + $0x50] sm:$0xff]
      %v2086 = vld [vmem:[%s3 + $0x58] sm:$0xff]
      %v2087 = vld [vmem:[%s3 + $0x60] sm:$0xff]
      %v2088 = vld [vmem:[%s3 + $0x68] sm:$0xff]
      %v2089 = vld [vmem:[%s3 + $0x70] sm:$0xff]
      %v2090 = vld [vmem:[%s3 + $0x78] sm:$0xff]
      %v2091 = vld [vmem:[%s3 + $0x80] sm:$0xff]
      %v2092 = vld [vmem:[%s3 + $0x88] sm:$0xff]
      %v2093 = vld [vmem:[%s3 + $0x90] sm:$0xff]
      %v2094 = vld [vmem:[%s3 + $0x98] sm:$0xff]
      %v2095 = vld [vmem:[%s3 + $0xa0] sm:$0xff]
      %v2096 = vld [vmem:[%s3 + $0xa8] sm:$0xff]
      %v2097 = vld [vmem:[%s3 + $0xb0] sm:$0xff]
      %v2098 = vld [vmem:[%s3 + $0xb8] sm:$0xff]
      %v2099 = vld [vmem:[%s3 + $0xc0] sm:$0xff]
      %v2100 = vld [vmem:[%s3 + $0xc8] sm:$0xff]
      %v2101 = vld [vmem:[%s3 + $0xd0] sm:$0xff]
      %v2102 = vld [vmem:[%s3 + $0xd8] sm:$0xff]
      %v2103 = vld [vmem:[%s3 + $0xe0] sm:$0xff]
      %v2104 = vld [vmem:[%s3 + $0xe8] sm:$0xff]
      %v2105 = vld [vmem:[%s3 + $0xf0] sm:$0xff]
      %v2106 = vld [vmem:[%s3 + $0xf8] sm:$0xff]
      %2107 = vmatprep.subr.mxu0 0.0
      %2108 = vmatpush1.msra.mxu0 %v2106
      %2109 = vmatprep.subr.mxu0 0.0
      %2110 = vmatpush1.msra.mxu0 %v2105
      %2111 = vmatprep.subr.mxu0 0.0
      %2112 = vmatpush1.msra.mxu0 %v2104
      %2113 = vmatprep.subr.mxu0 0.0
      %2114 = vmatpush1.msra.mxu0 %v2103
      %2115 = vmatprep.subr.mxu0 0.0
      %2116 = vmatpush1.msra.mxu0 %v2102
      %2117 = vmatprep.subr.mxu0 0.0
      %2118 = vmatpush1.msra.mxu0 %v2101
      %2119 = vmatprep.subr.mxu0 0.0
      %2120 = vmatpush1.msra.mxu0 %v2100
      %2121 = vmatprep.subr.mxu0 0.0
      %2122 = vmatpush1.msra.mxu0 %v2099
      %2123 = vmatprep.subr.mxu0 0.0
      %2124 = vmatpush1.msra.mxu0 %v2098
      %2125 = vmatprep.subr.mxu0 0.0
      %2126 = vmatpush1.msra.mxu0 %v2097
      %2127 = vmatprep.subr.mxu0 0.0
      %2128 = vmatpush1.msra.mxu0 %v2096
      %2129 = vmatprep.subr.mxu0 0.0
      %2130 = vmatpush1.msra.mxu0 %v2095
      %2131 = vmatprep.subr.mxu0 0.0
      %2132 = vmatpush1.msra.mxu0 %v2094
      %2133 = vmatprep.subr.mxu0 0.0
      %2134 = vmatpush1.msra.mxu0 %v2093
      %2135 = vmatprep.subr.mxu0 0.0
      %2136 = vmatpush1.msra.mxu0 %v2092
      %2137 = vmatprep.subr.mxu0 0.0
      %2138 = vmatpush1.msra.mxu0 %v2091
      %2139 = vmatprep.subr.mxu0 0.0
      %2140 = vmatpush2.msra.mxu0 0.0
      %2141 = vmatprep.subr.mxu0 0.0
      %2142 = vmatpush2.msra.mxu0 0.0
      %2143 = vmatprep.subr.mxu0 0.0
      %2144 = vmatpush2.msra.mxu0 0.0
      %2145 = vmatprep.subr.mxu0 0.0
      %2146 = vmatpush2.msra.mxu0 0.0
      %2147 = vmatprep.subr.mxu0 0.0
      %2148 = vmatpush2.msra.mxu0 0.0
      %2149 = vmatprep.subr.mxu0 0.0
      %2150 = vmatpush2.msra.mxu0 0.0
      %2151 = vmatprep.subr.mxu0 0.0
      %2152 = vmatpush2.msra.mxu0 0.0
      %2153 = vmatprep.subr.mxu0 0.0
      %2154 = vmatpush2.msra.mxu0 0.0
      %2155 = vmatprep.subr.mxu0 0.0
      %2156 = vmatpush2.msra.mxu0 0.0
      %2157 = vmatprep.subr.mxu0 0.0
      %2158 = vmatpush2.msra.mxu0 0.0
      %2159 = vmatprep.subr.mxu0 0.0
      %2160 = vmatpush2.msra.mxu0 0.0
      %2161 = vmatprep.subr.mxu0 0.0
      %2162 = vmatpush2.msra.mxu0 0.0
      %2163 = vmatprep.subr.mxu0 0.0
      %2164 = vmatpush2.msra.mxu0 0.0
      %2165 = vmatprep.subr.mxu0 0.0
      %2166 = vmatpush2.msra.mxu0 0.0
      %2167 = vmatprep.subr.mxu0 0.0
      %2168 = vmatpush2.msra.mxu0 0.0
      %2169 = vmatprep.subr.mxu0 0.0
      %2170 = vmatpush2.msra.mxu0 0.0
      %2171 = vmatprep.mubr.f32.mxu0 0.0
      %2172 = vmatmul.mubr.f32.gmra.mxu0 %v2051
      %v2173 = vpop.f32.mrf.mxu0
      %v2174 = vadd.f32 0.0, %v2173
      %v2175 = vpop.f32.mrf.mxu0
      %2176 = vmatprep.mubr.f32.mxu0 0.0
      %2177 = vmatmul.mubr.f32.gmra.mxu0 %v2052
      %v2178 = vpop.f32.mrf.mxu0
      %v2179 = vadd.f32 0.0, %v2178
      %v2180 = vpop.f32.mrf.mxu0
      %2181 = vmatprep.mubr.f32.mxu0 0.0
      %2182 = vmatmul.mubr.f32.gmra.mxu0 %v2053
      %v2183 = vpop.f32.mrf.mxu0
      %v2184 = vadd.f32 0.0, %v2183
      %v2185 = vpop.f32.mrf.mxu0
      %2186 = vmatprep.mubr.f32.mxu0 0.0
      %2187 = vmatmul.mubr.f32.gmra.mxu0 %v2054
      %v2188 = vpop.f32.mrf.mxu0
      %v2189 = vadd.f32 0.0, %v2188
      %v2190 = vpop.f32.mrf.mxu0
      %2191 = vmatprep.mubr.f32.mxu0 0.0
      %2192 = vmatmul.mubr.f32.gmra.mxu0 %v2055
      %v2193 = vpop.f32.mrf.mxu0
      %v2194 = vadd.f32 0.0, %v2193
      %v2195 = vpop.f32.mrf.mxu0
      %2196 = vmatprep.mubr.f32.mxu0 0.0
      %2197 = vmatmul.mubr.f32.gmra.mxu0 %v2056
      %v2198 = vpop.f32.mrf.mxu0
      %v2199 = vadd.f32 0.0, %v2198
      %v2200 = vpop.f32.mrf.mxu0
      %2201 = vmatprep.mubr.f32.mxu0 0.0
      %2202 = vmatmul.mubr.f32.gmra.mxu0 %v2057
      %v2203 = vpop.f32.mrf.mxu0
      %v2204 = vadd.f32 0.0, %v2203
      %v2205 = vpop.f32.mrf.mxu0
      %2206 = vmatprep.mubr.f32.mxu0 0.0
      %2207 = vmatmul.mubr.f32.gmra.mxu0 %v2058
      %v2208 = vpop.f32.mrf.mxu0
      %v2209 = vadd.f32 0.0, %v2208
      %v2210 = vpop.f32.mrf.mxu0
      %2211 = vdwg.mxu0
      %2212 = vmatprep.subr.mxu0 0.0
      %2213 = vmatpush1.msra.mxu0 %v2090
      %2214 = vmatprep.subr.mxu0 0.0
      %2215 = vmatpush1.msra.mxu0 %v2089
      %2216 = vmatprep.subr.mxu0 0.0
      %2217 = vmatpush1.msra.mxu0 %v2088
      %2218 = vmatprep.subr.mxu0 0.0
      %2219 = vmatpush1.msra.mxu0 %v2087
      %2220 = vmatprep.subr.mxu0 0.0
      %2221 = vmatpush1.msra.mxu0 %v2086
      %2222 = vmatprep.subr.mxu0 0.0
      %2223 = vmatpush1.msra.mxu0 %v2085
      %2224 = vmatprep.subr.mxu0 0.0
      %2225 = vmatpush1.msra.mxu0 %v2084
      %2226 = vmatprep.subr.mxu0 0.0
      %2227 = vmatpush1.msra.mxu0 %v2083
      %2228 = vmatprep.subr.mxu0 0.0
      %2229 = vmatpush1.msra.mxu0 %v2082
      %2230 = vmatprep.subr.mxu0 0.0
      %2231 = vmatpush1.msra.mxu0 %v2081
      %2232 = vmatprep.subr.mxu0 0.0
      %2233 = vmatpush1.msra.mxu0 %v2080
      %2234 = vmatprep.subr.mxu0 0.0
      %2235 = vmatpush1.msra.mxu0 %v2079
      %2236 = vmatprep.subr.mxu0 0.0
      %2237 = vmatpush1.msra.mxu0 %v2078
      %2238 = vmatprep.subr.mxu0 0.0
      %2239 = vmatpush1.msra.mxu0 %v2077
      %2240 = vmatprep.subr.mxu0 0.0
      %2241 = vmatpush1.msra.mxu0 %v2076
      %2242 = vmatprep.subr.mxu0 0.0
      %2243 = vmatpush1.msra.mxu0 %v2075
      %2244 = vmatprep.subr.mxu0 0.0
      %2245 = vmatpush2.msra.mxu0 0.0
      %2246 = vmatprep.subr.mxu0 0.0
      %2247 = vmatpush2.msra.mxu0 0.0
      %2248 = vmatprep.subr.mxu0 0.0
      %2249 = vmatpush2.msra.mxu0 0.0
      %2250 = vmatprep.subr.mxu0 0.0
      %2251 = vmatpush2.msra.mxu0 0.0
      %2252 = vmatprep.subr.mxu0 0.0
      %2253 = vmatpush2.msra.mxu0 0.0
      %2254 = vmatprep.subr.mxu0 0.0
      %2255 = vmatpush2.msra.mxu0 0.0
      %2256 = vmatprep.subr.mxu0 0.0
      %2257 = vmatpush2.msra.mxu0 0.0
      %2258 = vmatprep.subr.mxu0 0.0
      %2259 = vmatpush2.msra.mxu0 0.0
      %2260 = vmatprep.subr.mxu0 0.0
      %2261 = vmatpush2.msra.mxu0 0.0
      %2262 = vmatprep.subr.mxu0 0.0
      %2263 = vmatpush2.msra.mxu0 0.0
      %2264 = vmatprep.subr.mxu0 0.0
      %2265 = vmatpush2.msra.mxu0 0.0
      %2266 = vmatprep.subr.mxu0 0.0
      %2267 = vmatpush2.msra.mxu0 0.0
      %2268 = vmatprep.subr.mxu0 0.0
      %2269 = vmatpush2.msra.mxu0 0.0
      %2270 = vmatprep.subr.mxu0 0.0
      %2271 = vmatpush2.msra.mxu0 0.0
      %2272 = vmatprep.subr.mxu0 0.0
      %2273 = vmatpush2.msra.mxu0 0.0
      %2274 = vmatprep.subr.mxu0 0.0
      %2275 = vmatpush2.msra.mxu0 0.0
      %2276 = vmatprep.mubr.f32.mxu0 0.0
      %2277 = vmatmul.mubr.f32.gmra.mxu0 %v2043
      %v2278 = vpop.f32.mrf.mxu0
      %v2279 = vadd.f32 %v2174, %v2278
      %v2280 = vpop.f32.mrf.mxu0
      %2281 = vmatprep.mubr.f32.mxu0 0.0
      %2282 = vmatmul.mubr.f32.gmra.mxu0 %v2044
      %v2283 = vpop.f32.mrf.mxu0
      %v2284 = vadd.f32 %v2179, %v2283
      %v2285 = vpop.f32.mrf.mxu0
      %2286 = vmatprep.mubr.f32.mxu0 0.0
      %2287 = vmatmul.mubr.f32.gmra.mxu0 %v2045
      %v2288 = vpop.f32.mrf.mxu0
      %v2289 = vadd.f32 %v2184, %v2288
      %v2290 = vpop.f32.mrf.mxu0
      %2291 = vmatprep.mubr.f32.mxu0 0.0
      %2292 = vmatmul.mubr.f32.gmra.mxu0 %v2046
      %v2293 = vpop.f32.mrf.mxu0
      %v2294 = vadd.f32 %v2189, %v2293
      %v2295 = vpop.f32.mrf.mxu0
      %2296 = vmatprep.mubr.f32.mxu0 0.0
      %2297 = vmatmul.mubr.f32.gmra.mxu0 %v2047
      %v2298 = vpop.f32.mrf.mxu0
      %v2299 = vadd.f32 %v2194, %v2298
      %v2300 = vpop.f32.mrf.mxu0
      %2301 = vmatprep.mubr.f32.mxu0 0.0
      %2302 = vmatmul.mubr.f32.gmra.mxu0 %v2048
      %v2303 = vpop.f32.mrf.mxu0
      %v2304 = vadd.f32 %v2199, %v2303
      %v2305 = vpop.f32.mrf.mxu0
      %2306 = vmatprep.mubr.f32.mxu0 0.0
      %2307 = vmatmul.mubr.f32.gmra.mxu0 %v2049
      %v2308 = vpop.f32.mrf.mxu0
      %v2309 = vadd.f32 %v2204, %v2308
      %v2310 = vpop.f32.mrf.mxu0
      %2311 = vmatprep.mubr.f32.mxu0 0.0
      %2312 = vmatmul.mubr.f32.gmra.mxu0 %v2050
      %v2313 = vpop.f32.mrf.mxu0
      %v2314 = vadd.f32 %v2209, %v2313
      %v2315 = vpop.f32.mrf.mxu0
      %2316 = vdwg.mxu0
      %v2317 = vld [vmem:[%s3 + $0x100] sm:$0xff]
      %v2318 = vld [vmem:[%s3 + $0x108] sm:$0xff]
      %v2319 = vld [vmem:[%s3 + $0x110] sm:$0xff]
      %v2320 = vld [vmem:[%s3 + $0x118] sm:$0xff]
      %v2321 = vld [vmem:[%s3 + $0x120] sm:$0xff]
      %v2322 = vld [vmem:[%s3 + $0x128] sm:$0xff]
      %v2323 = vld [vmem:[%s3 + $0x130] sm:$0xff]
      %v2324 = vld [vmem:[%s3 + $0x138] sm:$0xff]
      %v2325 = vld [vmem:[%s3 + $0x140] sm:$0xff]
      %v2326 = vld [vmem:[%s3 + $0x148] sm:$0xff]
      %v2327 = vld [vmem:[%s3 + $0x150] sm:$0xff]
      %v2328 = vld [vmem:[%s3 + $0x158] sm:$0xff]
      %v2329 = vld [vmem:[%s3 + $0x160] sm:$0xff]
      %v2330 = vld [vmem:[%s3 + $0x168] sm:$0xff]
      %v2331 = vld [vmem:[%s3 + $0x170] sm:$0xff]
      %v2332 = vld [vmem:[%s3 + $0x178] sm:$0xff]
      %2333 = vmatprep.subr.mxu0 0.0
      %2334 = vmatpush1.msra.mxu0 %v2332
      %2335 = vmatprep.subr.mxu0 0.0
      %2336 = vmatpush1.msra.mxu0 %v2331
      %2337 = vmatprep.subr.mxu0 0.0
      %2338 = vmatpush1.msra.mxu0 %v2330
      %2339 = vmatprep.subr.mxu0 0.0
      %2340 = vmatpush1.msra.mxu0 %v2329
      %2341 = vmatprep.subr.mxu0 0.0
      %2342 = vmatpush1.msra.mxu0 %v2328
      %2343 = vmatprep.subr.mxu0 0.0
      %2344 = vmatpush1.msra.mxu0 %v2327
      %2345 = vmatprep.subr.mxu0 0.0
      %2346 = vmatpush1.msra.mxu0 %v2326
      %2347 = vmatprep.subr.mxu0 0.0
      %2348 = vmatpush1.msra.mxu0 %v2325
      %2349 = vmatprep.subr.mxu0 0.0
      %2350 = vmatpush1.msra.mxu0 %v2324
      %2351 = vmatprep.subr.mxu0 0.0
      %2352 = vmatpush1.msra.mxu0 %v2323
      %2353 = vmatprep.subr.mxu0 0.0
      %2354 = vmatpush1.msra.mxu0 %v2322
      %2355 = vmatprep.subr.mxu0 0.0
      %2356 = vmatpush1.msra.mxu0 %v2321
      %2357 = vmatprep.subr.mxu0 0.0
      %2358 = vmatpush1.msra.mxu0 %v2320
      %2359 = vmatprep.subr.mxu0 0.0
      %2360 = vmatpush1.msra.mxu0 %v2319
      %2361 = vmatprep.subr.mxu0 0.0
      %2362 = vmatpush1.msra.mxu0 %v2318
      %2363 = vmatprep.subr.mxu0 0.0
      %2364 = vmatpush1.msra.mxu0 %v2317
      %2365 = vmatprep.subr.mxu0 0.0
      %2366 = vmatpush2.msra.mxu0 0.0
      %2367 = vmatprep.subr.mxu0 0.0
      %2368 = vmatpush2.msra.mxu0 0.0
      %2369 = vmatprep.subr.mxu0 0.0
      %2370 = vmatpush2.msra.mxu0 0.0
      %2371 = vmatprep.subr.mxu0 0.0
      %2372 = vmatpush2.msra.mxu0 0.0
      %2373 = vmatprep.subr.mxu0 0.0
      %2374 = vmatpush2.msra.mxu0 0.0
      %2375 = vmatprep.subr.mxu0 0.0
      %2376 = vmatpush2.msra.mxu0 0.0
      %2377 = vmatprep.subr.mxu0 0.0
      %2378 = vmatpush2.msra.mxu0 0.0
      %2379 = vmatprep.subr.mxu0 0.0
      %2380 = vmatpush2.msra.mxu0 0.0
      %2381 = vmatprep.subr.mxu0 0.0
      %2382 = vmatpush2.msra.mxu0 0.0
      %2383 = vmatprep.subr.mxu0 0.0
      %2384 = vmatpush2.msra.mxu0 0.0
      %2385 = vmatprep.subr.mxu0 0.0
      %2386 = vmatpush2.msra.mxu0 0.0
      %2387 = vmatprep.subr.mxu0 0.0
      %2388 = vmatpush2.msra.mxu0 0.0
      %2389 = vmatprep.subr.mxu0 0.0
      %2390 = vmatpush2.msra.mxu0 0.0
      %2391 = vmatprep.subr.mxu0 0.0
      %2392 = vmatpush2.msra.mxu0 0.0
      %2393 = vmatprep.subr.mxu0 0.0
      %2394 = vmatpush2.msra.mxu0 0.0
      %2395 = vmatprep.subr.mxu0 0.0
      %2396 = vmatpush2.msra.mxu0 0.0
      %2397 = vmatprep.mubr.f32.mxu0 0.0
      %2398 = vmatmul.mubr.f32.gmra.mxu0 %v2059
      %v2399 = vpop.f32.mrf.mxu0
      %v2400 = vadd.f32 0.0, %v2399
      %v2401 = vpop.f32.mrf.mxu0
      %2402 = vmatprep.mubr.f32.mxu0 0.0
      %2403 = vmatmul.mubr.f32.gmra.mxu0 %v2060
      %v2404 = vpop.f32.mrf.mxu0
      %v2405 = vadd.f32 0.0, %v2404
      %v2406 = vpop.f32.mrf.mxu0
      %2407 = vmatprep.mubr.f32.mxu0 0.0
      %2408 = vmatmul.mubr.f32.gmra.mxu0 %v2061
      %v2409 = vpop.f32.mrf.mxu0
      %v2410 = vadd.f32 0.0, %v2409
      %v2411 = vpop.f32.mrf.mxu0
      %2412 = vmatprep.mubr.f32.mxu0 0.0
      %2413 = vmatmul.mubr.f32.gmra.mxu0 %v2062
      %v2414 = vpop.f32.mrf.mxu0
      %v2415 = vadd.f32 0.0, %v2414
      %v2416 = vpop.f32.mrf.mxu0
      %2417 = vmatprep.mubr.f32.mxu0 0.0
      %2418 = vmatmul.mubr.f32.gmra.mxu0 %v2063
      %v2419 = vpop.f32.mrf.mxu0
      %v2420 = vadd.f32 0.0, %v2419
      %v2421 = vpop.f32.mrf.mxu0
      %2422 = vmatprep.mubr.f32.mxu0 0.0
      %2423 = vmatmul.mubr.f32.gmra.mxu0 %v2064
      %v2424 = vpop.f32.mrf.mxu0
      %v2425 = vadd.f32 0.0, %v2424
      %v2426 = vpop.f32.mrf.mxu0
      %2427 = vmatprep.mubr.f32.mxu0 0.0
      %2428 = vmatmul.mubr.f32.gmra.mxu0 %v2065
      %v2429 = vpop.f32.mrf.mxu0
      %v2430 = vadd.f32 0.0, %v2429
      %v2431 = vpop.f32.mrf.mxu0
      %2432 = vmatprep.mubr.f32.mxu0 0.0
      %2433 = vmatmul.mubr.f32.gmra.mxu0 %v2066
      %v2434 = vpop.f32.mrf.mxu0
      %v2435 = vadd.f32 0.0, %v2434
      %v2436 = vpop.f32.mrf.mxu0
      %2437 = vdwg.mxu0
      %v2438 = vadd.f32 %v2279, %v2400
      %v2439 = vadd.f32 %v2284, %v2405
      %v2440 = vadd.f32 %v2289, %v2410
      %v2441 = vadd.f32 %v2294, %v2415
      %v2442 = vadd.f32 %v2299, %v2420
      %v2443 = vadd.f32 %v2304, %v2425
      %v2444 = vadd.f32 %v2309, %v2430
      %v2445 = vadd.f32 %v2314, %v2435
      %v2446 = vld [vmem:[%s3 + $0x180] sm:$0xff]
      %v2447 = vld [vmem:[%s3 + $0x188] sm:$0xff]
      %v2448 = vld [vmem:[%s3 + $0x190] sm:$0xff]
      %v2449 = vld [vmem:[%s3 + $0x198] sm:$0xff]
      %v2450 = vld [vmem:[%s3 + $0x1a0] sm:$0xff]
      %v2451 = vld [vmem:[%s3 + $0x1a8] sm:$0xff]
      %v2452 = vld [vmem:[%s3 + $0x1b0] sm:$0xff]
      %v2453 = vld [vmem:[%s3 + $0x1b8] sm:$0xff]
      %v2454 = vld [vmem:[%s3 + $0x1c0] sm:$0xff]
      %v2455 = vld [vmem:[%s3 + $0x1c8] sm:$0xff]
      %v2456 = vld [vmem:[%s3 + $0x1d0] sm:$0xff]
      %v2457 = vld [vmem:[%s3 + $0x1d8] sm:$0xff]
      %v2458 = vld [vmem:[%s3 + $0x1e0] sm:$0xff]
      %v2459 = vld [vmem:[%s3 + $0x1e8] sm:$0xff]
      %v2460 = vld [vmem:[%s3 + $0x1f0] sm:$0xff]
      %v2461 = vld [vmem:[%s3 + $0x1f8] sm:$0xff]
      %2462 = vmatprep.subr.mxu0 0.0
      %2463 = vmatpush1.msra.mxu0 %v2461
      %2464 = vmatprep.subr.mxu0 0.0
      %2465 = vmatpush1.msra.mxu0 %v2460
      %2466 = vmatprep.subr.mxu0 0.0
      %2467 = vmatpush1.msra.mxu0 %v2459
      %2468 = vmatprep.subr.mxu0 0.0
      %2469 = vmatpush1.msra.mxu0 %v2458
      %2470 = vmatprep.subr.mxu0 0.0
      %2471 = vmatpush1.msra.mxu0 %v2457
      %2472 = vmatprep.subr.mxu0 0.0
      %2473 = vmatpush1.msra.mxu0 %v2456
      %2474 = vmatprep.subr.mxu0 0.0
      %2475 = vmatpush1.msra.mxu0 %v2455
      %2476 = vmatprep.subr.mxu0 0.0
      %2477 = vmatpush1.msra.mxu0 %v2454
      %2478 = vmatprep.subr.mxu0 0.0
      %2479 = vmatpush1.msra.mxu0 %v2453
      %2480 = vmatprep.subr.mxu0 0.0
      %2481 = vmatpush1.msra.mxu0 %v2452
      %2482 = vmatprep.subr.mxu0 0.0
      %2483 = vmatpush1.msra.mxu0 %v2451
      %2484 = vmatprep.subr.mxu0 0.0
      %2485 = vmatpush1.msra.mxu0 %v2450
      %2486 = vmatprep.subr.mxu0 0.0
      %2487 = vmatpush1.msra.mxu0 %v2449
      %2488 = vmatprep.subr.mxu0 0.0
      %2489 = vmatpush1.msra.mxu0 %v2448
      %2490 = vmatprep.subr.mxu0 0.0
      %2491 = vmatpush1.msra.mxu0 %v2447
      %2492 = vmatprep.subr.mxu0 0.0
      %2493 = vmatpush1.msra.mxu0 %v2446
      %2494 = vmatprep.subr.mxu0 0.0
      %2495 = vmatpush2.msra.mxu0 0.0
      %2496 = vmatprep.subr.mxu0 0.0
      %2497 = vmatpush2.msra.mxu0 0.0
      %2498 = vmatprep.subr.mxu0 0.0
      %2499 = vmatpush2.msra.mxu0 0.0
      %2500 = vmatprep.subr.mxu0 0.0
      %2501 = vmatpush2.msra.mxu0 0.0
      %2502 = vmatprep.subr.mxu0 0.0
      %2503 = vmatpush2.msra.mxu0 0.0
      %2504 = vmatprep.subr.mxu0 0.0
      %2505 = vmatpush2.msra.mxu0 0.0
      %2506 = vmatprep.subr.mxu0 0.0
      %2507 = vmatpush2.msra.mxu0 0.0
      %2508 = vmatprep.subr.mxu0 0.0
      %2509 = vmatpush2.msra.mxu0 0.0
      %2510 = vmatprep.subr.mxu0 0.0
      %2511 = vmatpush2.msra.mxu0 0.0
      %2512 = vmatprep.subr.mxu0 0.0
      %2513 = vmatpush2.msra.mxu0 0.0
      %2514 = vmatprep.subr.mxu0 0.0
      %2515 = vmatpush2.msra.mxu0 0.0
      %2516 = vmatprep.subr.mxu0 0.0
      %2517 = vmatpush2.msra.mxu0 0.0
      %2518 = vmatprep.subr.mxu0 0.0
      %2519 = vmatpush2.msra.mxu0 0.0
      %2520 = vmatprep.subr.mxu0 0.0
      %2521 = vmatpush2.msra.mxu0 0.0
      %2522 = vmatprep.subr.mxu0 0.0
      %2523 = vmatpush2.msra.mxu0 0.0
      %2524 = vmatprep.subr.mxu0 0.0
      %2525 = vmatpush2.msra.mxu0 0.0
      %2526 = vmatprep.mubr.f32.mxu0 0.0
      %2527 = vmatmul.mubr.f32.gmra.mxu0 %v2067
      %v2528 = vpop.f32.mrf.mxu0
      %v2529 = vadd.f32 0.0, %v2528
      %v2530 = vpop.f32.mrf.mxu0
      %2531 = vmatprep.mubr.f32.mxu0 0.0
      %2532 = vmatmul.mubr.f32.gmra.mxu0 %v2068
      %v2533 = vpop.f32.mrf.mxu0
      %v2534 = vadd.f32 0.0, %v2533
      %v2535 = vpop.f32.mrf.mxu0
      %2536 = vmatprep.mubr.f32.mxu0 0.0
      %2537 = vmatmul.mubr.f32.gmra.mxu0 %v2069
      %v2538 = vpop.f32.mrf.mxu0
      %v2539 = vadd.f32 0.0, %v2538
      %v2540 = vpop.f32.mrf.mxu0
      %2541 = vmatprep.mubr.f32.mxu0 0.0
      %2542 = vmatmul.mubr.f32.gmra.mxu0 %v2070
      %v2543 = vpop.f32.mrf.mxu0
      %v2544 = vadd.f32 0.0, %v2543
      %v2545 = vpop.f32.mrf.mxu0
      %2546 = vmatprep.mubr.f32.mxu0 0.0
      %2547 = vmatmul.mubr.f32.gmra.mxu0 %v2071
      %v2548 = vpop.f32.mrf.mxu0
      %v2549 = vadd.f32 0.0, %v2548
      %v2550 = vpop.f32.mrf.mxu0
      %2551 = vmatprep.mubr.f32.mxu0 0.0
      %2552 = vmatmul.mubr.f32.gmra.mxu0 %v2072
      %v2553 = vpop.f32.mrf.mxu0
      %v2554 = vadd.f32 0.0, %v2553
      %v2555 = vpop.f32.mrf.mxu0
      %2556 = vmatprep.mubr.f32.mxu0 0.0
      %2557 = vmatmul.mubr.f32.gmra.mxu0 %v2073
      %v2558 = vpop.f32.mrf.mxu0
      %v2559 = vadd.f32 0.0, %v2558
      %v2560 = vpop.f32.mrf.mxu0
      %2561 = vmatprep.mubr.f32.mxu0 0.0
      %2562 = vmatmul.mubr.f32.gmra.mxu0 %v2074
      %v2563 = vpop.f32.mrf.mxu0
      %v2564 = vadd.f32 0.0, %v2563
      %v2565 = vpop.f32.mrf.mxu0
      %2566 = vdwg.mxu0
      %v2567 = vadd.f32 %v2438, %v2529
      %v2568 = vadd.f32 %v2439, %v2534
      %v2569 = vadd.f32 %v2440, %v2539
      %v2570 = vadd.f32 %v2441, %v2544
      %v2571 = vadd.f32 %v2442, %v2549
      %v2572 = vadd.f32 %v2443, %v2554
      %v2573 = vadd.f32 %v2444, %v2559
      %v2574 = vadd.f32 %v2445, %v2564
      %v2575 = vld [vmem:[%s8] sm:$0x1]
      %v2577 = vlaneseq
      %v2578 = vshrl.u32 %v2577, 7
      %v2579 = vsub.s32 0, %v2578
      %v2580 = vrot.slane %v2575, %v2579
      %v2582 = vadd.f32 %v2567, %v2580
      %v2583 = vadd.f32 %v2568, %v2580
      %v2584 = vadd.f32 %v2569, %v2580
      %v2585 = vadd.f32 %v2570, %v2580
      %v2586 = vadd.f32 %v2571, %v2580
      %v2587 = vadd.f32 %v2572, %v2580
      %v2588 = vadd.f32 %v2573, %v2580
      %v2589 = vadd.f32 %v2574, %v2580
      %v2590 = vadd.f32 %v2582, %v520
      %v2591 = vadd.f32 %v2583, %v521
      %v2592 = vadd.f32 %v2584, %v522
      %v2593 = vadd.f32 %v2585, %v523
      %v2594 = vadd.f32 %v2586, %v524
      %v2595 = vadd.f32 %v2587, %v525
      %v2596 = vadd.f32 %v2588, %v526
      %v2597 = vadd.f32 %v2589, %v527
      %v2598 = vld [vmem:[%s13] sm:$0x1]
      %v2599 = vld [vmem:[%s14] sm:$0x1]
      %v2600 = vsel %vm564, %v2590, 0.0
      %2601 = vadd.xlane.f32.xlu0 %v2600
      %v2602 = vpop.xlane.xlu0 %2601
      %v2603 = vsel %vm564, %v2591, 0.0
      %2604 = vadd.xlane.f32.xlu0 %v2603
      %v2605 = vpop.xlane.xlu0 %2604
      %v2606 = vsel %vm564, %v2592, 0.0
      %2607 = vadd.xlane.f32.xlu0 %v2606
      %v2608 = vpop.xlane.xlu0 %2607
      %v2609 = vsel %vm564, %v2593, 0.0
      %2610 = vadd.xlane.f32.xlu0 %v2609
      %v2611 = vpop.xlane.xlu0 %2610
      %v2612 = vsel %vm564, %v2594, 0.0
      %2613 = vadd.xlane.f32.xlu0 %v2612
      %v2614 = vpop.xlane.xlu0 %2613
      %v2615 = vsel %vm564, %v2595, 0.0
      %2616 = vadd.xlane.f32.xlu0 %v2615
      %v2617 = vpop.xlane.xlu0 %2616
      %v2618 = vsel %vm564, %v2596, 0.0
      %2619 = vadd.xlane.f32.xlu0 %v2618
      %v2620 = vpop.xlane.xlu0 %2619
      %v2621 = vsel %vm564, %v2597, 0.0
      %2622 = vadd.xlane.f32.xlu0 %v2621
      %v2623 = vpop.xlane.xlu0 %2622
      %v2624 = vmul.f32 %v2602, %v589
      %v2625 = vmul.f32 %v2605, %v589
      %v2626 = vmul.f32 %v2608, %v589
      %v2627 = vmul.f32 %v2611, %v589
      %v2628 = vmul.f32 %v2614, %v589
      %v2629 = vmul.f32 %v2617, %v589
      %v2630 = vmul.f32 %v2620, %v589
      %v2631 = vmul.f32 %v2623, %v589
      %v2632 = vsub.f32 %v2590, %v2624
      %v2633 = vsub.f32 %v2591, %v2625
      %v2634 = vsub.f32 %v2592, %v2626
      %v2635 = vsub.f32 %v2593, %v2627
      %v2636 = vsub.f32 %v2594, %v2628
      %v2637 = vsub.f32 %v2595, %v2629
      %v2638 = vsub.f32 %v2596, %v2630
      %v2639 = vsub.f32 %v2597, %v2631
      %v2640 = vmul.f32 %v2632, %v2632
      %v2641 = vmul.f32 %v2633, %v2633
      %v2642 = vmul.f32 %v2634, %v2634
      %v2643 = vmul.f32 %v2635, %v2635
      %v2644 = vmul.f32 %v2636, %v2636
      %v2645 = vmul.f32 %v2637, %v2637
      %v2646 = vmul.f32 %v2638, %v2638
      %v2647 = vmul.f32 %v2639, %v2639
      %v2648 = vsel %vm564, %v2640, 0.0
      %2649 = vadd.xlane.f32.xlu0 %v2648
      %v2650 = vpop.xlane.xlu0 %2649
      %v2651 = vsel %vm564, %v2641, 0.0
      %2652 = vadd.xlane.f32.xlu0 %v2651
      %v2653 = vpop.xlane.xlu0 %2652
      %v2654 = vsel %vm564, %v2642, 0.0
      %2655 = vadd.xlane.f32.xlu0 %v2654
      %v2656 = vpop.xlane.xlu0 %2655
      %v2657 = vsel %vm564, %v2643, 0.0
      %2658 = vadd.xlane.f32.xlu0 %v2657
      %v2659 = vpop.xlane.xlu0 %2658
      %v2660 = vsel %vm564, %v2644, 0.0
      %2661 = vadd.xlane.f32.xlu0 %v2660
      %v2662 = vpop.xlane.xlu0 %2661
      %v2663 = vsel %vm564, %v2645, 0.0
      %2664 = vadd.xlane.f32.xlu0 %v2663
      %v2665 = vpop.xlane.xlu0 %2664
      %v2666 = vsel %vm564, %v2646, 0.0
      %2667 = vadd.xlane.f32.xlu0 %v2666
      %v2668 = vpop.xlane.xlu0 %2667
      %v2669 = vsel %vm564, %v2647, 0.0
      %2670 = vadd.xlane.f32.xlu0 %v2669
      %v2671 = vpop.xlane.xlu0 %2670
      %v2672 = vmul.f32 %v2650, %v589
      %v2673 = vmul.f32 %v2653, %v589
      %v2674 = vmul.f32 %v2656, %v589
      %v2675 = vmul.f32 %v2659, %v589
      %v2676 = vmul.f32 %v2662, %v589
      %v2677 = vmul.f32 %v2665, %v589
      %v2678 = vmul.f32 %v2668, %v589
      %v2679 = vmul.f32 %v2671, %v589
      %v2680 = vadd.f32 %v2672, 1e-05
      %v2681 = vadd.f32 %v2673, 1e-05
      %v2682 = vadd.f32 %v2674, 1e-05
      %v2683 = vadd.f32 %v2675, 1e-05
      %v2684 = vadd.f32 %v2676, 1e-05
      %v2685 = vadd.f32 %v2677, 1e-05
      %v2686 = vadd.f32 %v2678, 1e-05
      %v2687 = vadd.f32 %v2679, 1e-05
      %v2688 = vrsqrt.pop %v2680
      %v2689 = vrsqrt.pop %v2681
      %v2690 = vrsqrt.pop %v2682
      %v2691 = vrsqrt.pop %v2683
      %v2692 = vrsqrt.pop %v2684
      %v2693 = vrsqrt.pop %v2685
      %v2694 = vrsqrt.pop %v2686
      %v2695 = vrsqrt.pop %v2687
      %v2696 = vmul.f32 %v2632, %v2688
      %v2697 = vmul.f32 %v2633, %v2689
      %v2698 = vmul.f32 %v2634, %v2690
      %v2699 = vmul.f32 %v2635, %v2691
      %v2700 = vmul.f32 %v2636, %v2692
      %v2701 = vmul.f32 %v2637, %v2693
      %v2702 = vmul.f32 %v2638, %v2694
      %v2703 = vmul.f32 %v2639, %v2695
      %v2705 = vlaneseq
      %v2706 = vshrl.u32 %v2705, 7
      %v2707 = vsub.s32 0, %v2706
      %v2708 = vrot.slane %v2598, %v2707
      %v2710 = vmul.f32 %v2696, %v2708
      %v2711 = vmul.f32 %v2697, %v2708
      %v2712 = vmul.f32 %v2698, %v2708
      %v2713 = vmul.f32 %v2699, %v2708
      %v2714 = vmul.f32 %v2700, %v2708
      %v2715 = vmul.f32 %v2701, %v2708
      %v2716 = vmul.f32 %v2702, %v2708
      %v2717 = vmul.f32 %v2703, %v2708
      %v2719 = vlaneseq
      %v2720 = vshrl.u32 %v2719, 7
      %v2721 = vsub.s32 0, %v2720
      %v2722 = vrot.slane %v2599, %v2721
      %v2724 = vadd.f32 %v2710, %v2722
      %v2725 = vadd.f32 %v2711, %v2722
      %v2726 = vadd.f32 %v2712, %v2722
      %v2727 = vadd.f32 %v2713, %v2722
      %v2728 = vadd.f32 %v2714, %v2722
      %v2729 = vadd.f32 %v2715, %v2722
      %v2730 = vadd.f32 %v2716, %v2722
      %v2731 = vadd.f32 %v2717, %v2722
      %v2732 = vld [vmem:[%s9] sm:$0xff]
      %v2733 = vld [vmem:[%s9 + $0x8] sm:$0xff]
      %v2734 = vld [vmem:[%s9 + $0x10] sm:$0xff]
      %v2735 = vld [vmem:[%s9 + $0x18] sm:$0xff]
      %v2736 = vld [vmem:[%s10] sm:$0x1]
      %v2738 = vlaneseq
      %v2739 = vshrl.u32 %v2738, 7
      %v2740 = vsub.s32 0, %v2739
      %v2741 = vrot.slane %v2736, %v2740
      %v2744 = vsel %vm564, %v2724, 0
      %v2747 = vsel %vm564, %v2725, 0
      %v2750 = vsel %vm564, %v2726, 0
      %v2753 = vsel %vm564, %v2727, 0
      %v2756 = vsel %vm564, %v2728, 0
      %v2759 = vsel %vm564, %v2729, 0
      %v2762 = vsel %vm564, %v2730, 0
      %v2765 = vsel %vm564, %v2731, 0
      %2767 = vmatprep.subr.mxu0 0.0
      %2768 = vmatpush1.msra.mxu0 0.0
      %2769 = vmatprep.subr.mxu0 0.0
      %2770 = vmatpush1.msra.mxu0 0.0
      %2771 = vmatprep.subr.mxu0 0.0
      %2772 = vmatpush1.msra.mxu0 0.0
      %2773 = vmatprep.subr.mxu0 0.0
      %2774 = vmatpush1.msra.mxu0 0.0
      %2775 = vmatprep.subr.mxu0 0.0
      %2776 = vmatpush1.msra.mxu0 0.0
      %2777 = vmatprep.subr.mxu0 0.0
      %2778 = vmatpush1.msra.mxu0 0.0
      %2779 = vmatprep.subr.mxu0 0.0
      %2780 = vmatpush1.msra.mxu0 0.0
      %2781 = vmatprep.subr.mxu0 0.0
      %2782 = vmatpush1.msra.mxu0 0.0
      %2783 = vmatprep.subr.mxu0 0.0
      %2784 = vmatpush1.msra.mxu0 0.0
      %2785 = vmatprep.subr.mxu0 0.0
      %2786 = vmatpush1.msra.mxu0 0.0
      %2787 = vmatprep.subr.mxu0 0.0
      %2788 = vmatpush1.msra.mxu0 0.0
      %2789 = vmatprep.subr.mxu0 0.0
      %2790 = vmatpush1.msra.mxu0 0.0
      %2791 = vmatprep.subr.mxu0 0.0
      %2792 = vmatpush1.msra.mxu0 %v2735
      %2793 = vmatprep.subr.mxu0 0.0
      %2794 = vmatpush1.msra.mxu0 %v2734
      %2795 = vmatprep.subr.mxu0 0.0
      %2796 = vmatpush1.msra.mxu0 %v2733
      %2797 = vmatprep.subr.mxu0 0.0
      %2798 = vmatpush1.msra.mxu0 %v2732
      %2799 = vmatprep.subr.mxu0 0.0
      %2800 = vmatpush2.msra.mxu0 0.0
      %2801 = vmatprep.subr.mxu0 0.0
      %2802 = vmatpush2.msra.mxu0 0.0
      %2803 = vmatprep.subr.mxu0 0.0
      %2804 = vmatpush2.msra.mxu0 0.0
      %2805 = vmatprep.subr.mxu0 0.0
      %2806 = vmatpush2.msra.mxu0 0.0
      %2807 = vmatprep.subr.mxu0 0.0
      %2808 = vmatpush2.msra.mxu0 0.0
      %2809 = vmatprep.subr.mxu0 0.0
      %2810 = vmatpush2.msra.mxu0 0.0
      %2811 = vmatprep.subr.mxu0 0.0
      %2812 = vmatpush2.msra.mxu0 0.0
      %2813 = vmatprep.subr.mxu0 0.0
      %2814 = vmatpush2.msra.mxu0 0.0
      %2815 = vmatprep.subr.mxu0 0.0
      %2816 = vmatpush2.msra.mxu0 0.0
      %2817 = vmatprep.subr.mxu0 0.0
      %2818 = vmatpush2.msra.mxu0 0.0
      %2819 = vmatprep.subr.mxu0 0.0
      %2820 = vmatpush2.msra.mxu0 0.0
      %2821 = vmatprep.subr.mxu0 0.0
      %2822 = vmatpush2.msra.mxu0 0.0
      %2823 = vmatprep.subr.mxu0 0.0
      %2824 = vmatpush2.msra.mxu0 0.0
      %2825 = vmatprep.subr.mxu0 0.0
      %2826 = vmatpush2.msra.mxu0 0.0
      %2827 = vmatprep.subr.mxu0 0.0
      %2828 = vmatpush2.msra.mxu0 0.0
      %2829 = vmatprep.subr.mxu0 0.0
      %2830 = vmatpush2.msra.mxu0 0.0
      %2831 = vmatprep.mubr.f32.mxu0 0.0
      %2832 = vmatmul.mubr.f32.gmra.mxu0 %v2744
      %v2833 = vpop.f32.mrf.mxu0
      %v2834 = vadd.f32 %v2741, %v2833
      %v2835 = vpop.f32.mrf.mxu0
      %2836 = vmatprep.mubr.f32.mxu0 0.0
      %2837 = vmatmul.mubr.f32.gmra.mxu0 %v2747
      %v2838 = vpop.f32.mrf.mxu0
      %v2839 = vadd.f32 %v2741, %v2838
      %v2840 = vpop.f32.mrf.mxu0
      %2841 = vmatprep.mubr.f32.mxu0 0.0
      %2842 = vmatmul.mubr.f32.gmra.mxu0 %v2750
      %v2843 = vpop.f32.mrf.mxu0
      %v2844 = vadd.f32 %v2741, %v2843
      %v2845 = vpop.f32.mrf.mxu0
      %2846 = vmatprep.mubr.f32.mxu0 0.0
      %2847 = vmatmul.mubr.f32.gmra.mxu0 %v2753
      %v2848 = vpop.f32.mrf.mxu0
      %v2849 = vadd.f32 %v2741, %v2848
      %v2850 = vpop.f32.mrf.mxu0
      %2851 = vmatprep.mubr.f32.mxu0 0.0
      %2852 = vmatmul.mubr.f32.gmra.mxu0 %v2756
      %v2853 = vpop.f32.mrf.mxu0
      %v2854 = vadd.f32 %v2741, %v2853
      %v2855 = vpop.f32.mrf.mxu0
      %2856 = vmatprep.mubr.f32.mxu0 0.0
      %2857 = vmatmul.mubr.f32.gmra.mxu0 %v2759
      %v2858 = vpop.f32.mrf.mxu0
      %v2859 = vadd.f32 %v2741, %v2858
      %v2860 = vpop.f32.mrf.mxu0
      %2861 = vmatprep.mubr.f32.mxu0 0.0
      %2862 = vmatmul.mubr.f32.gmra.mxu0 %v2762
      %v2863 = vpop.f32.mrf.mxu0
      %v2864 = vadd.f32 %v2741, %v2863
      %v2865 = vpop.f32.mrf.mxu0
      %2866 = vmatprep.mubr.f32.mxu0 0.0
      %2867 = vmatmul.mubr.f32.gmra.mxu0 %v2765
      %v2868 = vpop.f32.mrf.mxu0
      %v2869 = vadd.f32 %v2741, %v2868
      %v2870 = vpop.f32.mrf.mxu0
      %2871 = vdwg.mxu0
      %v2872 = vmax.f32 %v2834, 0.0
      %v2873 = vmax.f32 %v2839, 0.0
      %v2874 = vmax.f32 %v2844, 0.0
      %v2875 = vmax.f32 %v2849, 0.0
      %v2876 = vmax.f32 %v2854, 0.0
      %v2877 = vmax.f32 %v2859, 0.0
      %v2878 = vmax.f32 %v2864, 0.0
      %v2879 = vmax.f32 %v2869, 0.0
      %v2880 = vld [vmem:[%s11] sm:$0xff]
      %v2881 = vld [vmem:[%s11 + $0x8] sm:$0xff]
      %v2882 = vld [vmem:[%s11 + $0x10] sm:$0xff]
      %v2883 = vld [vmem:[%s11 + $0x18] sm:$0xff]
      %v2884 = vld [vmem:[%s11 + $0x20] sm:$0xff]
      %v2885 = vld [vmem:[%s11 + $0x28] sm:$0xff]
      %v2886 = vld [vmem:[%s11 + $0x30] sm:$0xff]
      %v2887 = vld [vmem:[%s11 + $0x38] sm:$0xff]
      %v2888 = vld [vmem:[%s12] sm:$0x1]
      %v2890 = vlaneseq
      %v2891 = vshrl.u32 %v2890, 7
      %v2892 = vsub.s32 0, %v2891
      %v2893 = vrot.slane %v2888, %v2892
      %vm2895 = vcmask 523264
      %v2897 = vsel %vm2895, %v2872, 0
      %v2900 = vsel %vm2895, %v2873, 0
      %v2903 = vsel %vm2895, %v2874, 0
      %v2906 = vsel %vm2895, %v2875, 0
      %v2909 = vsel %vm2895, %v2876, 0
      %v2912 = vsel %vm2895, %v2877, 0
      %v2915 = vsel %vm2895, %v2878, 0
      %v2918 = vsel %vm2895, %v2879, 0
      %2920 = vmatprep.subr.mxu0 0.0
      %2921 = vmatpush1.msra.mxu0 0.0
      %2922 = vmatprep.subr.mxu0 0.0
      %2923 = vmatpush1.msra.mxu0 0.0
      %2924 = vmatprep.subr.mxu0 0.0
      %2925 = vmatpush1.msra.mxu0 0.0
      %2926 = vmatprep.subr.mxu0 0.0
      %2927 = vmatpush1.msra.mxu0 0.0
      %2928 = vmatprep.subr.mxu0 0.0
      %2929 = vmatpush1.msra.mxu0 0.0
      %2930 = vmatprep.subr.mxu0 0.0
      %2931 = vmatpush1.msra.mxu0 0.0
      %2932 = vmatprep.subr.mxu0 0.0
      %2933 = vmatpush1.msra.mxu0 0.0
      %2934 = vmatprep.subr.mxu0 0.0
      %2935 = vmatpush1.msra.mxu0 0.0
      %2936 = vmatprep.subr.mxu0 0.0
      %2937 = vmatpush1.msra.mxu0 %v2887
      %2938 = vmatprep.subr.mxu0 0.0
      %2939 = vmatpush1.msra.mxu0 %v2886
      %2940 = vmatprep.subr.mxu0 0.0
      %2941 = vmatpush1.msra.mxu0 %v2885
      %2942 = vmatprep.subr.mxu0 0.0
      %2943 = vmatpush1.msra.mxu0 %v2884
      %2944 = vmatprep.subr.mxu0 0.0
      %2945 = vmatpush1.msra.mxu0 %v2883
      %2946 = vmatprep.subr.mxu0 0.0
      %2947 = vmatpush1.msra.mxu0 %v2882
      %2948 = vmatprep.subr.mxu0 0.0
      %2949 = vmatpush1.msra.mxu0 %v2881
      %2950 = vmatprep.subr.mxu0 0.0
      %2951 = vmatpush1.msra.mxu0 %v2880
      %2952 = vmatprep.subr.mxu0 0.0
      %2953 = vmatpush2.msra.mxu0 0.0
      %2954 = vmatprep.subr.mxu0 0.0
      %2955 = vmatpush2.msra.mxu0 0.0
      %2956 = vmatprep.subr.mxu0 0.0
      %2957 = vmatpush2.msra.mxu0 0.0
      %2958 = vmatprep.subr.mxu0 0.0
      %2959 = vmatpush2.msra.mxu0 0.0
      %2960 = vmatprep.subr.mxu0 0.0
      %2961 = vmatpush2.msra.mxu0 0.0
      %2962 = vmatprep.subr.mxu0 0.0
      %2963 = vmatpush2.msra.mxu0 0.0
      %2964 = vmatprep.subr.mxu0 0.0
      %2965 = vmatpush2.msra.mxu0 0.0
      %2966 = vmatprep.subr.mxu0 0.0
      %2967 = vmatpush2.msra.mxu0 0.0
      %2968 = vmatprep.subr.mxu0 0.0
      %2969 = vmatpush2.msra.mxu0 0.0
      %2970 = vmatprep.subr.mxu0 0.0
      %2971 = vmatpush2.msra.mxu0 0.0
      %2972 = vmatprep.subr.mxu0 0.0
      %2973 = vmatpush2.msra.mxu0 0.0
      %2974 = vmatprep.subr.mxu0 0.0
      %2975 = vmatpush2.msra.mxu0 0.0
      %2976 = vmatprep.subr.mxu0 0.0
      %2977 = vmatpush2.msra.mxu0 0.0
      %2978 = vmatprep.subr.mxu0 0.0
      %2979 = vmatpush2.msra.mxu0 0.0
      %2980 = vmatprep.subr.mxu0 0.0
      %2981 = vmatpush2.msra.mxu0 0.0
      %2982 = vmatprep.subr.mxu0 0.0
      %2983 = vmatpush2.msra.mxu0 0.0
      %2984 = vmatprep.mubr.f32.mxu0 0.0
      %2985 = vmatmul.mubr.f32.gmra.mxu0 %v2897
      %v2986 = vpop.f32.mrf.mxu0
      %v2987 = vadd.f32 %v2893, %v2986
      %v2988 = vpop.f32.mrf.mxu0
      %2989 = vmatprep.mubr.f32.mxu0 0.0
      %2990 = vmatmul.mubr.f32.gmra.mxu0 %v2900
      %v2991 = vpop.f32.mrf.mxu0
      %v2992 = vadd.f32 %v2893, %v2991
      %v2993 = vpop.f32.mrf.mxu0
      %2994 = vmatprep.mubr.f32.mxu0 0.0
      %2995 = vmatmul.mubr.f32.gmra.mxu0 %v2903
      %v2996 = vpop.f32.mrf.mxu0
      %v2997 = vadd.f32 %v2893, %v2996
      %v2998 = vpop.f32.mrf.mxu0
      %2999 = vmatprep.mubr.f32.mxu0 0.0
      %3000 = vmatmul.mubr.f32.gmra.mxu0 %v2906
      %v3001 = vpop.f32.mrf.mxu0
      %v3002 = vadd.f32 %v2893, %v3001
      %v3003 = vpop.f32.mrf.mxu0
      %3004 = vmatprep.mubr.f32.mxu0 0.0
      %3005 = vmatmul.mubr.f32.gmra.mxu0 %v2909
      %v3006 = vpop.f32.mrf.mxu0
      %v3007 = vadd.f32 %v2893, %v3006
      %v3008 = vpop.f32.mrf.mxu0
      %3009 = vmatprep.mubr.f32.mxu0 0.0
      %3010 = vmatmul.mubr.f32.gmra.mxu0 %v2912
      %v3011 = vpop.f32.mrf.mxu0
      %v3012 = vadd.f32 %v2893, %v3011
      %v3013 = vpop.f32.mrf.mxu0
      %3014 = vmatprep.mubr.f32.mxu0 0.0
      %3015 = vmatmul.mubr.f32.gmra.mxu0 %v2915
      %v3016 = vpop.f32.mrf.mxu0
      %v3017 = vadd.f32 %v2893, %v3016
      %v3018 = vpop.f32.mrf.mxu0
      %3019 = vmatprep.mubr.f32.mxu0 0.0
      %3020 = vmatmul.mubr.f32.gmra.mxu0 %v2918
      %v3021 = vpop.f32.mrf.mxu0
      %v3022 = vadd.f32 %v2893, %v3021
      %v3023 = vpop.f32.mrf.mxu0
      %3024 = vdwg.mxu0
      %v3025 = vadd.f32 %v2987, %v2590
      %v3026 = vadd.f32 %v2992, %v2591
      %v3027 = vadd.f32 %v2997, %v2592
      %v3028 = vadd.f32 %v3002, %v2593
      %v3029 = vadd.f32 %v3007, %v2594
      %v3030 = vadd.f32 %v3012, %v2595
      %v3031 = vadd.f32 %v3017, %v2596
      %v3032 = vadd.f32 %v3022, %v2597
      %3033 = vst.msk [vmem:[%s518] sm:$0xff] %vm564, %v3025
      %3034 = vst.msk [vmem:[%s518 + $0x8] sm:$0xff] %vm564, %v3026
      %3035 = vst.msk [vmem:[%s518 + $0x10] sm:$0xff] %vm564, %v3027
      %3036 = vst.msk [vmem:[%s518 + $0x18] sm:$0xff] %vm564, %v3028
      %3037 = vst.msk [vmem:[%s518 + $0x20] sm:$0xff] %vm564, %v3029
      %3038 = vst.msk [vmem:[%s518 + $0x28] sm:$0xff] %vm564, %v3030
      %3039 = vst.msk [vmem:[%s518 + $0x30] sm:$0xff] %vm564, %v3031
      %3040 = vst.msk [vmem:[%s518 + $0x38] sm:$0xff] %vm564, %v3032
      %s3041 = smul.u32 8, %s26
      %p3042 = scmp.lt.s32.totalorder %s3041, 15
      %s3043 = scalar_select %p3042, %s3041, 15
      %s3044 = smul.addr %s3043, 8
      %s3045 = scalar_lea.vmem %s15, %s3044
      // Predicated region
      $region81: #{tpu_custom_call.1} parent=79 // pred_check
        %p3046 = pneg %p369
      $region82: #{tpu_custom_call.1} parent=79 // pred_check_branch
        %3048 = sbr.rel (%p3046) target = $region84
      $region83: #{tpu_custom_call.1} parent=79 // pred_region
        %s3049 = smul.u32 8, %s26
      $region84: #{tpu_custom_call.1} parent=79 // pred_fallthru
        _
    $region80: #{tpu_custom_call.1} parent=5 // pred_fallthru
      _
    %p3050 = scmp.le.s32.totalorder 2, %s21
    // Predicated region
    $region85: #{tpu_custom_call.1} parent=5 // pred_check
      %p3051 = pneg %p3050
    $region86: #{tpu_custom_call.1} parent=5 // pred_check_branch
      %3053 = sbr.rel (%p3051) target = $region88
    $region87: #{tpu_custom_call.1} parent=5 // pred_region
      %s3054 = ssub.s32 %s21, 2
      // Predicated region
      $region89: #{tpu_custom_call.1} parent=87 // pred_check
        %p3055 = pneg %p375
      $region90: #{tpu_custom_call.1} parent=87 // pred_check_branch
        %3057 = sbr.rel (%p3055) target = $region92
      $region91: #{tpu_custom_call.1} parent=87 // pred_region
        %s3058 = smul.u32 8, %s27
        %p3059 = scmp.lt.s32.totalorder %s3058, 15
        %s3060 = scalar_select %p3059, %s3058, 15
        %s3061 = smul.addr %s3060, 8
        %s3062 = scalar_lea.vmem %s15, %s3061
      $region92: #{tpu_custom_call.1} parent=87 // pred_fallthru
        _
    $region88: #{tpu_custom_call.1} parent=5 // pred_fallthru
      _
  $region6: #{tpu_custom_call.1} parent=0 // loop_footer
    %s25 = sadd.s32 1, %s21
  $region7: #{tpu_custom_call.1} parent=0 // loop_footer_branch
    %20 = sbr.rel target = $region3
  $region8: #{tpu_custom_call.1} parent=0 // loop_exit
    _

</llo_original>
